<compile_context>
chip_gen: v5e
topology: v5e:2x2
jax: 0.10.0
libtpu: 0.0.40
codegen_flags: <defaults>
</compile_context>

<pallas_src>
import jax
import jax.numpy as jnp
from jax.experimental import pallas as pl
from jax.experimental.pallas import tpu as pltpu

MAX_ROW_TILE = 1024  # rows per grid step (cap)
SUBLANE = 8
EPS_NORM = 1e-8      # _norm_no_nan eps
EPS_LN = 1e-5        # nn.LayerNorm eps

NS, NV = 32, 4       # node_h_dim
ES, EV = 32, 1       # edge_h_dim
NODE_IN = (6, 3)     # node_in_dim
EDGE_IN = (32, 1)    # edge_in_dim
NUM_LAYERS = 3

_CPARAMS = pltpu.CompilerParams(
    dimension_semantics=("parallel",),
    vmem_limit_bytes=32 * 1024 * 1024,
)


# ----------------------------------------------------------------------------
# In-kernel math on packed values
# ----------------------------------------------------------------------------
def _ln_apply(s, vp, gamma, beta, repT_v):
    """GVP LayerNorm: torch LayerNorm on scalars + RMS-over-channels scaling on vectors.

    s: [T, ds]; vp: [T, 3*dv] packed; repT_v: [3*dv, dv] = [I;I;I] (per-channel xyz sum).
    """
    mu = jnp.mean(s, axis=-1, keepdims=True)
    xc = s - mu
    var = jnp.mean(xc * xc, axis=-1, keepdims=True)
    s_out = xc * jax.lax.rsqrt(var + EPS_LN) * gamma + beta
    ch = jnp.maximum(jnp.dot(vp * vp, repT_v, preferred_element_type=jnp.float32),
                     EPS_NORM)                                      # [T, dv]
    inv = jax.lax.rsqrt(jnp.mean(ch, axis=-1, keepdims=True))       # [T, 1]
    return s_out, vp * inv


def _gvp_apply(s, vp, w, *, scalar_act, vector_act):
    """GVP (vector_gate=False) on packed vectors.

    w = [wh_bd(3vi,3h), wss(si,so), wsv(h,so), wsb(1,so), repT_h(3h,h)]
        (+ wv_bd(3h,3vo)) (+ norm_rep(3vo,3vo))
    """
    wh_bd, wss, wsv, wsb, repT_h = w[0], w[1], w[2], w[3], w[4]
    vh = jnp.dot(vp, wh_bd, preferred_element_type=jnp.float32)       # [T, 3h] packed
    ch = jnp.dot(vh * vh, repT_h, preferred_element_type=jnp.float32) # [T, h]
    vn = jnp.sqrt(jnp.maximum(ch, EPS_NORM))
    so = (jnp.dot(s, wss, preferred_element_type=jnp.float32)
          + jnp.dot(vn, wsv, preferred_element_type=jnp.float32) + wsb)
    if scalar_act:
        so = jax.nn.relu(so)
    if len(w) == 5:
        return so, None
    vo = jnp.dot(vh, w[5], preferred_element_type=jnp.float32)        # [T, 3vo] packed
    if vector_act:
        # per-channel squared norm, already replicated across the 3 xyz blocks
        sq = jnp.dot(vo * vo, w[6], preferred_element_type=jnp.float32)
        vo = vo * jax.nn.sigmoid(jnp.sqrt(jnp.maximum(sq, EPS_NORM)))
    return so, vo


# ----------------------------------------------------------------------------
# Fused Pallas kernels
# ----------------------------------------------------------------------------
def _ln_gvp_kernel(s_ref, vp_ref, *refs):
    """W_v / W_e: LayerNorm -> GVP(activations=(None, None)) with vector output."""
    w = [r[...] for r in refs[:9]]            # ln(3) + gvp(6)
    s_out_ref, v_out_ref = refs[9], refs[10]
    s, vp = _ln_apply(s_ref[...], vp_ref[...], w[0], w[1], w[2])
    so, vo = _gvp_apply(s, vp, w[3:9], scalar_act=False, vector_act=False)
    s_out_ref[...] = so
    v_out_ref[...] = vo


def _wout_kernel(s_ref, vp_ref, *refs):
    """W_out: LayerNorm -> GVP(-> (ns, 0)) with scalar ReLU."""
    w = [r[...] for r in refs[:8]]            # ln(3) + gvp-no-vout(5)
    s_out_ref = refs[8]
    s, vp = _ln_apply(s_ref[...], vp_ref[...], w[0], w[1], w[2])
    so, _ = _gvp_apply(s, vp, w[3:8], scalar_act=True, vector_act=False)
    s_out_ref[...] = so


def _message_kernel(ss_ref, se_ref, sd_ref, vs_ref, ve_ref, vd_ref, *refs):
    """Fused GVPConv message func: GVP(relu,sig) -> GVP(relu,sig) -> GVP(None,None).

    The (src, edge, dst) concat is never materialized: msg0's weights arrive pre-split
    into row blocks, and concat . W == sum(block_i . W_i).
    """
    w = [r[...] for r in refs[:24]]           # msg0(11) + msg1(7) + msg2(6)
    s_out_ref, v_out_ref = refs[24], refs[25]
    whb_s, whb_e, whb_d = w[0], w[1], w[2]
    wss_s, wss_e, wss_d = w[3], w[4], w[5]
    wsv, wsb, repT_h, wv_bd, norm_rep = w[6], w[7], w[8], w[9], w[10]

    vh = (jnp.dot(vs_ref[...], whb_s, preferred_element_type=jnp.float32)
          + jnp.dot(ve_ref[...], whb_e, preferred_element_type=jnp.float32)
          + jnp.dot(vd_ref[...], whb_d, preferred_element_type=jnp.float32))  # [T, 27]
    ch = jnp.dot(vh * vh, repT_h, preferred_element_type=jnp.float32)          # [T, 9]
    vn = jnp.sqrt(jnp.maximum(ch, EPS_NORM))
    so = (jnp.dot(ss_ref[...], wss_s, preferred_element_type=jnp.float32)
          + jnp.dot(se_ref[...], wss_e, preferred_element_type=jnp.float32)
          + jnp.dot(sd_ref[...], wss_d, preferred_element_type=jnp.float32)
          + jnp.dot(vn, wsv, preferred_element_type=jnp.float32) + wsb)
    s = jax.nn.relu(so)
    v = jnp.dot(vh, wv_bd, preferred_element_type=jnp.float32)                 # [T, 12]
    sq = jnp.dot(v * v, norm_rep, preferred_element_type=jnp.float32)
    v = v * jax.nn.sigmoid(jnp.sqrt(jnp.maximum(sq, EPS_NORM)))

    s, v = _gvp_apply(s, v, w[11:18], scalar_act=True, vector_act=True)        # msg1
    s, v = _gvp_apply(s, v, w[18:24], scalar_act=False, vector_act=False)      # msg2
    s_out_ref[...] = s
    v_out_ref[...] = v


def _node_update_kernel(s_ref, vp_ref, as_ref, av_ref, inv_ref, *refs):
    """Fused: (x + mean_aggr) -> norm0 -> ff(GVP relu/sig, GVP none) -> (+res) -> norm1."""
    w = [r[...] for r in refs[:19]]           # norm0(3) + ff0(7) + ff1(6) + norm1(3)
    s_out_ref, v_out_ref = refs[19], refs[20]
    inv = inv_ref[...]                        # [T, 1]  (1/deg; folds the scatter-mean)
    s = s_ref[...] + as_ref[...] * inv
    vp = vp_ref[...] + av_ref[...] * inv
    s, vp = _ln_apply(s, vp, w[0], w[1], w[2])
    fs, fv = _gvp_apply(s, vp, w[3:10], scalar_act=True, vector_act=True)
    fs, fv = _gvp_apply(fs, fv, w[10:16], scalar_act=False, vector_act=False)
    s, vp = _ln_apply(s + fs, vp + fv, w[16], w[17], w[18])
    s_out_ref[...] = s
    v_out_ref[...] = vp


# ----------------------------------------------------------------------------
# pallas_call wrapper (row-tiled grid, broadcast weights)
# ----------------------------------------------------------------------------
def _round_up(n, m):
    return ((n + m - 1) // m) * m


def _pick_tile(n):
    padded = _round_up(max(n, 1), SUBLANE)
    if padded <= SUBLANE:
        return SUBLANE
    # >= 2 grid steps so both v7x TensorCores get work; cap tile at MAX_ROW_TILE.
    return min(MAX_ROW_TILE, _round_up((padded + 1) // 2, SUBLANE))


def _pad_rows(x, rows):
    pad = rows - x.shape[0]
    if pad == 0:
        return x
    return jnp.pad(x, ((0, pad), (0, 0)))   # zero padding (keep this guarantee)


def _row_call(kernel, tile, row_arrays, weights, out_dims):
    """Run `kernel` over row tiles; weights use constant-index full blocks (DMAed once)."""
    rows = row_arrays[0].shape[0]
    grid = (rows // tile,)
    in_specs = [pl.BlockSpec((tile, a.shape[1]), lambda i: (i, 0)) for a in row_arrays]
    in_specs += [pl.BlockSpec(w.shape, lambda i, _n=w.ndim: (0,) * _n) for w in weights]
    out_specs = [pl.BlockSpec((tile, d), lambda i: (i, 0)) for d in out_dims]
    out_shapes = [jax.ShapeDtypeStruct((rows, d), jnp.float32) for d in out_dims]
    if len(out_dims) == 1:
        out_specs, out_shapes = out_specs[0], out_shapes[0]
    else:
        out_specs, out_shapes = tuple(out_specs), tuple(out_shapes)
    return pl.pallas_call(
        kernel, grid=grid, in_specs=in_specs,
        out_specs=out_specs, out_shape=out_shapes,
        compiler_params=_CPARAMS,
    )(*row_arrays, *weights)


# ----------------------------------------------------------------------------
# Host-side weight packing helpers (run once at init)
# ----------------------------------------------------------------------------
def _rep(k):                      # [k, 3k] = [I I I]
    eye = jnp.eye(k, dtype=jnp.float32)
    return jnp.concatenate([eye, eye, eye], axis=1)


def _repT(k):                     # [3k, k] = [I; I; I]  (sum x^2+y^2+z^2 per channel)
    return jnp.transpose(_rep(k))


def _norm_rep(k):                 # [3k, 3k]: per-channel xyz sum, replicated to all blocks
    return jnp.dot(_repT(k), _rep(k))


def _bd3(w):                      # [k,h] -> blockdiag(w,w,w) [3k,3h]
    k, h = w.shape
    z = jnp.zeros((k, h), jnp.float32)
    return jnp.concatenate([
        jnp.concatenate([w, z, z], axis=1),
        jnp.concatenate([z, w, z], axis=1),
        jnp.concatenate([z, z, w], axis=1)], axis=0)


def _ln_w(p):
    return [p["gamma"], p["beta"], p["repT_v"]]


def _gvp_w(p):
    w = [p["wh_bd"], p["wss"], p["wsv"], p["wsb"], p["repT_h"]]
    if "wv_bd" in p:
        w.append(p["wv_bd"])
    if "norm_rep" in p:
        w.append(p["norm_rep"])
    return w


def _msg0_w(p):
    return (list(p["wh_bd_parts"]) + list(p["wss_parts"])
            + [p["wsv"], p["wsb"], p["repT_h"], p["wv_bd"], p["norm_rep"]])


# ----------------------------------------------------------------------------
# Deterministic parameter construction (synthetic init; shapes follow the module)
# ----------------------------------------------------------------------------
def init_layernorm(ds, dv):
    return {"gamma": jnp.ones((1, ds), jnp.float32),
            "beta": jnp.zeros((1, ds), jnp.float32),
            "repT_v": _repT(dv)}


def init_gvp(key, si, vi, so, vo, vector_act=False, scale=0.2):
    h = max(vi, vo) if vo > 0 else vi      # GVP h_dim = max(vi, vo)
    k1, k2, k3, k4, k5 = jax.random.split(key, 5)
    p = {
        "wh_bd": _bd3(scale * jax.random.normal(k1, (vi, h), jnp.float32)),
        "wss":   scale * jax.random.normal(k2, (si, so), jnp.float32),
        "wsv":   scale * jax.random.normal(k3, (h, so), jnp.float32),
        "wsb":   scale * jax.random.normal(k4, (1, so), jnp.float32),
        "repT_h": _repT(h),
    }
    if vo > 0:
        p["wv_bd"] = _bd3(scale * jax.random.normal(k5, (h, vo), jnp.float32))
        if vector_act:
            p["norm_rep"] = _norm_rep(vo)
    return p


def init_gvp_msg0(key, so, vo, scale=0.2):
    """First message GVP, with weights pre-split over the (src, edge, dst) concat."""
    si, vi = 2 * NS + ES, 2 * NV + EV
    h = max(vi, vo)
    k1, k2, k3, k4, k5 = jax.random.split(key, 5)
    wh = scale * jax.random.normal(k1, (vi, h), jnp.float32)
    wss = scale * jax.random.normal(k2, (si, so), jnp.float32)
    v_off = (0, NV, NV + EV, vi)
    s_off = (0, NS, NS + ES, si)
    return {
        "wh_bd_parts": [_bd3(wh[v_off[i]:v_off[i + 1]]) for i in range(3)],
        "wss_parts":   [wss[s_off[i]:s_off[i + 1]] for i in range(3)],
        "wsv": scale * jax.random.normal(k3, (h, so), jnp.float32),
        "wsb": scale * jax.random.normal(k4, (1, so), jnp.float32),
        "repT_h": _repT(h),
        "wv_bd": _bd3(scale * jax.random.normal(k5, (h, vo), jnp.float32)),
        "norm_rep": _norm_rep(vo),
    }


def init_structure_encoder(key):
    keys = jax.random.split(key, 3 + NUM_LAYERS)
    params = {
        "Wv_ln": init_layernorm(NODE_IN[0], NODE_IN[1]),
        "Wv_gvp": init_gvp(keys[0], NODE_IN[0], NODE_IN[1], NS, NV, vector_act=False),
        "We_ln": init_layernorm(EDGE_IN[0], EDGE_IN[1]),
        "We_gvp": init_gvp(keys[1], EDGE_IN[0], EDGE_IN[1], ES, EV, vector_act=False),
        "layers": [],
        "Wout_ln": init_layernorm(NS, NV),
        "Wout_gvp": init_gvp(keys[2], NS, NV, NS, 0),
    }
    for l in range(NUM_LAYERS):
        lk = jax.random.split(keys[3 + l], 5)
        params["layers"].append({
            "msg0": init_gvp_msg0(lk[0], NS, NV),
            "msg1": init_gvp(lk[1], NS, NV, NS, NV, vector_act=True),
            "msg2": init_gvp(lk[2], NS, NV, NS, NV, vector_act=False),
            "norm0": init_layernorm(NS, NV),
            "norm1": init_layernorm(NS, NV),
            "ff0": init_gvp(lk[3], NS, NV, 4 * NS, 2 * NV, vector_act=True),
            "ff1": init_gvp(lk[4], 4 * NS, 2 * NV, NS, NV, vector_act=False),
        })
    return params


# ----------------------------------------------------------------------------
# structure_encoder forward (seq=None path; dropout = identity, eval mode)
# ----------------------------------------------------------------------------
def _pack_v(v):
    """[3, R, dv] (xyz leading) -> lane-packed [R, 3*dv] = [x | y | z]."""
    return jnp.transpose(v, (1, 0, 2)).reshape(v.shape[1], 3 * v.shape[2])


def structure_encoder_forward(params, h_V, edge_index, h_E):
    s_V, v_V = h_V
    s_E, v_E = h_E
    src, dst = edge_index[0], edge_index[1]   # PyG source_to_target: j = src, i = dst
    n_nodes, n_edges = s_V.shape[0], s_E.shape[0]

    tile_n, tile_e = _pick_tile(n_nodes), _pick_tile(n_edges)
    np_rows, ep_rows = _round_up(n_nodes, tile_n), _round_up(n_edges, tile_e)

    # Zero-pad rows once so every kernel sees full tiles.  Padded node rows stay
    # finite, are never gathered by real edges, and are sliced off at the end.
    # Padded edges gather node 0 harmlessly and scatter to row index np_rows,
    # which is out of bounds by construction and therefore dropped.
    s_V = _pad_rows(s_V, np_rows)
    vp_V = _pad_rows(_pack_v(v_V), np_rows)
    s_E = _pad_rows(s_E, ep_rows)
    vp_E = _pad_rows(_pack_v(v_E), ep_rows)
    pe = ep_rows - n_edges
    src_g = jnp.pad(src, (0, pe))                               # gather-safe pad
    dst_g = jnp.pad(dst, (0, pe))                               # gather-safe pad
    dst_s = jnp.pad(dst, (0, pe), constant_values=np_rows)      # OOB -> dropped at scatter

    # W_v / W_e : fused LayerNorm -> GVP(activations=(None, None))
    s_V, vp_V = _row_call(_ln_gvp_kernel, tile_n, [s_V, vp_V],
                          _ln_w(params["Wv_ln"]) + _gvp_w(params["Wv_gvp"]),
                          [NS, 3 * NV])
    s_E, vp_E = _row_call(_ln_gvp_kernel, tile_e, [s_E, vp_E],
                          _ln_w(params["We_ln"]) + _gvp_w(params["We_gvp"]),
                          [ES, 3 * EV])

    # mean aggregation: 1/deg computed once and folded into the node-update kernel
    deg = jnp.zeros((np_rows, 1), jnp.float32).at[dst_s].add(1.0, mode="drop")
    inv_deg = 1.0 / jnp.maximum(deg, 1.0)

    for layer in params["layers"]:
        # TODO(synk): the neighbor gathers and the scatter-add below are the only
        # XLA-side ops left; an in-kernel CSR (sorted-by-dst) segment-mean with
        # PrefetchScalarGridSpec would remove these remaining HBM round trips.
        ss, sd = s_V[src_g], s_V[dst_g]
        vs, vd = vp_V[src_g], vp_V[dst_g]
        ms, mv = _row_call(_message_kernel, tile_e,
                           [ss, s_E, sd, vs, vp_E, vd],
                           _msg0_w(layer["msg0"]) + _gvp_w(layer["msg1"])
                           + _gvp_w(layer["msg2"]),
                           [NS, 3 * NV])

        agg_s = jnp.zeros((np_rows, NS), jnp.float32).at[dst_s].add(ms, mode="drop")
        agg_v = jnp.zeros((np_rows, 3 * NV), jnp.float32).at[dst_s].add(mv, mode="drop")

        s_V, vp_V = _row_call(_node_update_kernel, tile_n,
                              [s_V, vp_V, agg_s, agg_v, inv_deg],
                              _ln_w(layer["norm0"]) + _gvp_w(layer["ff0"])
                              + _gvp_w(layer["ff1"]) + _ln_w(layer["norm1"]),
                              [NS, 3 * NV])

    # W_out : fused LayerNorm -> GVP(node_h_dim -> (NS, 0)) with scalar ReLU
    out = _row_call(_wout_kernel, tile_n, [s_V, vp_V],
                    _ln_w(params["Wout_ln"]) + _gvp_w(params["Wout_gvp"]),
                    [NS])
    return out[:n_nodes]   # [n_nodes, NS]


# ----------------------------------------------------------------------------
if __name__ == "__main__":
    key = jax.random.PRNGKey(0)
    kp, kns, knv, kes, kev = jax.random.split(key, 5)
    params = init_structure_encoder(kp)

    # Small, non-tile-aligned sizes to exercise the padding/tail path.
    N_NODES, K_NEIGH = 18, 3
    N_EDGES = N_NODES * K_NEIGH
    s_V = jax.random.normal(kns, (N_NODES, NODE_IN[0]), jnp.float32)
    v_V = jax.random.normal(knv, (3, N_NODES, NODE_IN[1]), jnp.float32)
    s_E = jax.random.normal(kes, (N_EDGES, EDGE_IN[0]), jnp.float32)
    v_E = jax.random.normal(kev, (3, N_EDGES, EDGE_IN[1]), jnp.float32)

    # 3 incoming edges per node: sources (i-1, i+1, i+2) mod N  ->  target i
    dst = jnp.repeat(jnp.arange(N_NODES, dtype=jnp.int32), K_NEIGH)
    offs = jnp.tile(jnp.array([-1, 1, 2], dtype=jnp.int32), N_NODES)
    src = (dst + offs) % N_NODES
    edge_index = jnp.stack([src, dst], axis=0)     # [2, num_edges]

    fwd = jax.jit(structure_encoder_forward)
    out = fwd(params, (s_V, v_V), edge_index, (s_E, v_E))
    out = jax.block_until_ready(out)

    assert out.shape == (N_NODES, NS)
    assert bool(jnp.all(jnp.isfinite(out)))
    print("KERNEL_OK")
</pallas_src>

<mosaic_0001>
module attributes {stable_mosaic.version = 11 : i64} {
  func.func @_ln_gvp_kernel(%arg0: i32, %arg1: memref<16x6xf32, #tpu.memory_space<vmem>>, %arg2: memref<16x9xf32, #tpu.memory_space<vmem>>, %arg3: memref<1x6xf32, #tpu.memory_space<vmem>>, %arg4: memref<1x6xf32, #tpu.memory_space<vmem>>, %arg5: memref<9x3xf32, #tpu.memory_space<vmem>>, %arg6: memref<9x12xf32, #tpu.memory_space<vmem>>, %arg7: memref<6x32xf32, #tpu.memory_space<vmem>>, %arg8: memref<4x32xf32, #tpu.memory_space<vmem>>, %arg9: memref<1x32xf32, #tpu.memory_space<vmem>>, %arg10: memref<12x4xf32, #tpu.memory_space<vmem>>, %arg11: memref<12x12xf32, #tpu.memory_space<vmem>>, %arg12: memref<16x32xf32, #tpu.memory_space<vmem>>, %arg13: memref<16x12xf32, #tpu.memory_space<vmem>>) attributes {dimension_semantics = [#tpu.dimension_semantics<parallel>], iteration_bounds = array<i64: 2>, scalar_prefetch = 0 : i64, scratch_operands = 0 : i64, tpu.core_type = #tpu.core_type<tc>, window_params = [{transform_indices = @transform_0, window_bounds = array<i64: 16, 6>}, {transform_indices = @transform_1, window_bounds = array<i64: 16, 9>}, {pipeline_mode = #tpu.pipeline_mode<synchronous>, transform_indices = @transform_2, window_bounds = array<i64: 1, 6>}, {pipeline_mode = #tpu.pipeline_mode<synchronous>, transform_indices = @transform_3, window_bounds = array<i64: 1, 6>}, {pipeline_mode = #tpu.pipeline_mode<synchronous>, transform_indices = @transform_4, window_bounds = array<i64: 9, 3>}, {pipeline_mode = #tpu.pipeline_mode<synchronous>, transform_indices = @transform_5, window_bounds = array<i64: 9, 12>}, {pipeline_mode = #tpu.pipeline_mode<synchronous>, transform_indices = @transform_6, window_bounds = array<i64: 6, 32>}, {pipeline_mode = #tpu.pipeline_mode<synchronous>, transform_indices = @transform_7, window_bounds = array<i64: 4, 32>}, {pipeline_mode = #tpu.pipeline_mode<synchronous>, transform_indices = @transform_8, window_bounds = array<i64: 1, 32>}, {pipeline_mode = #tpu.pipeline_mode<synchronous>, transform_indices = @transform_9, window_bounds = array<i64: 12, 4>}, {pipeline_mode = #tpu.pipeline_mode<synchronous>, transform_indices = @transform_10, window_bounds = array<i64: 12, 12>}, {transform_indices = @transform_11, window_bounds = array<i64: 16, 32>}, {transform_indices = @transform_12, window_bounds = array<i64: 16, 12>}]} {
    %c0 = arith.constant 0 : index
    %c0_0 = arith.constant 0 : index
    %0 = vector.load %arg3[%c0, %c0_0] : memref<1x6xf32, #tpu.memory_space<vmem>>, vector<1x6xf32>
    %c0_1 = arith.constant 0 : index
    %c0_2 = arith.constant 0 : index
    %1 = vector.load %arg4[%c0_1, %c0_2] : memref<1x6xf32, #tpu.memory_space<vmem>>, vector<1x6xf32>
    %c0_3 = arith.constant 0 : index
    %c0_4 = arith.constant 0 : index
    %2 = vector.load %arg5[%c0_3, %c0_4] : memref<9x3xf32, #tpu.memory_space<vmem>>, vector<9x3xf32>
    %c0_5 = arith.constant 0 : index
    %c0_6 = arith.constant 0 : index
    %3 = vector.load %arg6[%c0_5, %c0_6] : memref<9x12xf32, #tpu.memory_space<vmem>>, vector<9x12xf32>
    %c0_7 = arith.constant 0 : index
    %c0_8 = arith.constant 0 : index
    %4 = vector.load %arg7[%c0_7, %c0_8] : memref<6x32xf32, #tpu.memory_space<vmem>>, vector<6x32xf32>
    %c0_9 = arith.constant 0 : index
    %c0_10 = arith.constant 0 : index
    %5 = vector.load %arg8[%c0_9, %c0_10] : memref<4x32xf32, #tpu.memory_space<vmem>>, vector<4x32xf32>
    %c0_11 = arith.constant 0 : index
    %c0_12 = arith.constant 0 : index
    %6 = vector.load %arg9[%c0_11, %c0_12] : memref<1x32xf32, #tpu.memory_space<vmem>>, vector<1x32xf32>
    %c0_13 = arith.constant 0 : index
    %c0_14 = arith.constant 0 : index
    %7 = vector.load %arg10[%c0_13, %c0_14] : memref<12x4xf32, #tpu.memory_space<vmem>>, vector<12x4xf32>
    %c0_15 = arith.constant 0 : index
    %c0_16 = arith.constant 0 : index
    %8 = vector.load %arg11[%c0_15, %c0_16] : memref<12x12xf32, #tpu.memory_space<vmem>>, vector<12x12xf32>
    %c0_17 = arith.constant 0 : index
    %c0_18 = arith.constant 0 : index
    %9 = vector.load %arg1[%c0_17, %c0_18] : memref<16x6xf32, #tpu.memory_space<vmem>>, vector<16x6xf32>
    %c0_19 = arith.constant 0 : index
    %c0_20 = arith.constant 0 : index
    %10 = vector.load %arg2[%c0_19, %c0_20] : memref<16x9xf32, #tpu.memory_space<vmem>>, vector<16x9xf32>
    %cst = arith.constant dense<0.000000e+00> : vector<16xf32>
    %11 = vector.multi_reduction <add>, %9, %cst [1] : vector<16x6xf32> to vector<16xf32>
    %12 = vector.shape_cast %11 : vector<16xf32> to vector<16x1xf32>
    %cst_21 = arith.constant 6.000000e+00 : f32
    %13 = vector.broadcast %cst_21 : f32 to vector<16x1xf32>
    %14 = arith.divf %12, %13 : vector<16x1xf32>
    %15 = vector.broadcast %14 : vector<16x1xf32> to vector<16x6xf32>
    %16 = arith.subf %9, %15 : vector<16x6xf32>
    %17 = arith.mulf %16, %16 : vector<16x6xf32>
    %cst_22 = arith.constant dense<0.000000e+00> : vector<16xf32>
    %18 = vector.multi_reduction <add>, %17, %cst_22 [1] : vector<16x6xf32> to vector<16xf32>
    %19 = vector.shape_cast %18 : vector<16xf32> to vector<16x1xf32>
    %cst_23 = arith.constant 6.000000e+00 : f32
    %20 = vector.broadcast %cst_23 : f32 to vector<16x1xf32>
    %21 = arith.divf %19, %20 : vector<16x1xf32>
    %cst_24 = arith.constant 9.99999974E-6 : f32
    %22 = vector.broadcast %cst_24 : f32 to vector<16x1xf32>
    %23 = arith.addf %21, %22 : vector<16x1xf32>
    %24 = math.rsqrt %23 : vector<16x1xf32>
    %25 = vector.broadcast %24 : vector<16x1xf32> to vector<16x6xf32>
    %26 = arith.mulf %16, %25 : vector<16x6xf32>
    %27 = vector.broadcast %0 : vector<1x6xf32> to vector<16x6xf32>
    %28 = arith.mulf %26, %27 : vector<16x6xf32>
    %29 = vector.broadcast %1 : vector<1x6xf32> to vector<16x6xf32>
    %30 = arith.addf %28, %29 : vector<16x6xf32>
    %31 = arith.mulf %10, %10 : vector<16x9xf32>
    %cst_25 = arith.constant dense<0.000000e+00> : vector<16x3xf32>
    %32 = tpu.matmul %31, %2, %cst_25 {dimension_numbers = #tpu.dot_dimension_numbers<[1], [0], [0], [1], [0, 0, 1, 1], [], []>} : vector<16x9xf32>, vector<9x3xf32>, vector<16x3xf32> -> vector<16x3xf32>
    %cst_26 = arith.constant 9.99999993E-9 : f32
    %33 = vector.broadcast %cst_26 : f32 to vector<16x3xf32>
    %34 = arith.maximumf %32, %33 : vector<16x3xf32>
    %cst_27 = arith.constant dense<0.000000e+00> : vector<16xf32>
    %35 = vector.multi_reduction <add>, %34, %cst_27 [1] : vector<16x3xf32> to vector<16xf32>
    %36 = vector.shape_cast %35 : vector<16xf32> to vector<16x1xf32>
    %cst_28 = arith.constant 3.000000e+00 : f32
    %37 = vector.broadcast %cst_28 : f32 to vector<16x1xf32>
    %38 = arith.divf %36, %37 : vector<16x1xf32>
    %39 = math.rsqrt %38 : vector<16x1xf32>
    %40 = vector.broadcast %39 : vector<16x1xf32> to vector<16x9xf32>
    %41 = arith.mulf %10, %40 : vector<16x9xf32>
    %cst_29 = arith.constant dense<0.000000e+00> : vector<16x12xf32>
    %42 = tpu.matmul %41, %3, %cst_29 {dimension_numbers = #tpu.dot_dimension_numbers<[1], [0], [0], [1], [0, 0, 1, 1], [], []>} : vector<16x9xf32>, vector<9x12xf32>, vector<16x12xf32> -> vector<16x12xf32>
    %43 = arith.mulf %42, %42 : vector<16x12xf32>
    %cst_30 = arith.constant dense<0.000000e+00> : vector<16x4xf32>
    %44 = tpu.matmul %43, %7, %cst_30 {dimension_numbers = #tpu.dot_dimension_numbers<[1], [0], [0], [1], [0, 0, 1, 1], [], []>} : vector<16x12xf32>, vector<12x4xf32>, vector<16x4xf32> -> vector<16x4xf32>
    %cst_31 = arith.constant 9.99999993E-9 : f32
    %45 = vector.broadcast %cst_31 : f32 to vector<16x4xf32>
    %46 = arith.maximumf %44, %45 : vector<16x4xf32>
    %47 = math.sqrt %46 : vector<16x4xf32>
    %cst_32 = arith.constant dense<0.000000e+00> : vector<16x32xf32>
    %48 = tpu.matmul %30, %4, %cst_32 {dimension_numbers = #tpu.dot_dimension_numbers<[1], [0], [0], [1], [0, 0, 1, 1], [], []>} : vector<16x6xf32>, vector<6x32xf32>, vector<16x32xf32> -> vector<16x32xf32>
    %cst_33 = arith.constant dense<0.000000e+00> : vector<16x32xf32>
    %49 = tpu.matmul %47, %5, %cst_33 {dimension_numbers = #tpu.dot_dimension_numbers<[1], [0], [0], [1], [0, 0, 1, 1], [], []>} : vector<16x4xf32>, vector<4x32xf32>, vector<16x32xf32> -> vector<16x32xf32>
    %50 = arith.addf %48, %49 : vector<16x32xf32>
    %51 = vector.broadcast %6 : vector<1x32xf32> to vector<16x32xf32>
    %52 = arith.addf %50, %51 : vector<16x32xf32>
    %cst_34 = arith.constant dense<0.000000e+00> : vector<16x12xf32>
    %53 = tpu.matmul %42, %8, %cst_34 {dimension_numbers = #tpu.dot_dimension_numbers<[1], [0], [0], [1], [0, 0, 1, 1], [], []>} : vector<16x12xf32>, vector<12x12xf32>, vector<16x12xf32> -> vector<16x12xf32>
    %c0_35 = arith.constant 0 : index
    %c0_36 = arith.constant 0 : index
    %54 = vector.load %arg12[%c0_35, %c0_36] : memref<16x32xf32, #tpu.memory_space<vmem>>, vector<16x32xf32>
    tpu.vector_store %arg12[%c0_35, %c0_36], %52 {strides = array<i32>} : memref<16x32xf32, #tpu.memory_space<vmem>>, vector<16x32xf32>,
    %c0_37 = arith.constant 0 : index
    %c0_38 = arith.constant 0 : index
    %55 = vector.load %arg13[%c0_37, %c0_38] : memref<16x12xf32, #tpu.memory_space<vmem>>, vector<16x12xf32>
    tpu.vector_store %arg13[%c0_37, %c0_38], %53 {strides = array<i32>} : memref<16x12xf32, #tpu.memory_space<vmem>>, vector<16x12xf32>,
    return
  }
  func.func @transform_0(%arg0: i32) -> (i32, i32) {
    %c0_i32 = arith.constant 0 : i32
    %c0_i32_0 = arith.constant 0 : i32
    return %arg0, %c0_i32 : i32, i32
  }
  func.func @transform_1(%arg0: i32) -> (i32, i32) {
    %c0_i32 = arith.constant 0 : i32
    %c0_i32_0 = arith.constant 0 : i32
    return %arg0, %c0_i32 : i32, i32
  }
  func.func @transform_2(%arg0: i32) -> (i32, i32) {
    %c0_i32 = arith.constant 0 : i32
    %c0_i32_0 = arith.constant 0 : i32
    %c0_i32_1 = arith.constant 0 : i32
    return %c0_i32, %c0_i32_0 : i32, i32
  }
  func.func @transform_3(%arg0: i32) -> (i32, i32) {
    %c0_i32 = arith.constant 0 : i32
    %c0_i32_0 = arith.constant 0 : i32
    %c0_i32_1 = arith.constant 0 : i32
    return %c0_i32, %c0_i32_0 : i32, i32
  }
  func.func @transform_4(%arg0: i32) -> (i32, i32) {
    %c0_i32 = arith.constant 0 : i32
    %c0_i32_0 = arith.constant 0 : i32
    %c0_i32_1 = arith.constant 0 : i32
    return %c0_i32, %c0_i32_0 : i32, i32
  }
  func.func @transform_5(%arg0: i32) -> (i32, i32) {
    %c0_i32 = arith.constant 0 : i32
    %c0_i32_0 = arith.constant 0 : i32
    %c0_i32_1 = arith.constant 0 : i32
    return %c0_i32, %c0_i32_0 : i32, i32
  }
  func.func @transform_6(%arg0: i32) -> (i32, i32) {
    %c0_i32 = arith.constant 0 : i32
    %c0_i32_0 = arith.constant 0 : i32
    %c0_i32_1 = arith.constant 0 : i32
    return %c0_i32, %c0_i32_0 : i32, i32
  }
  func.func @transform_7(%arg0: i32) -> (i32, i32) {
    %c0_i32 = arith.constant 0 : i32
    %c0_i32_0 = arith.constant 0 : i32
    %c0_i32_1 = arith.constant 0 : i32
    return %c0_i32, %c0_i32_0 : i32, i32
  }
  func.func @transform_8(%arg0: i32) -> (i32, i32) {
    %c0_i32 = arith.constant 0 : i32
    %c0_i32_0 = arith.constant 0 : i32
    %c0_i32_1 = arith.constant 0 : i32
    return %c0_i32, %c0_i32_0 : i32, i32
  }
  func.func @transform_9(%arg0: i32) -> (i32, i32) {
    %c0_i32 = arith.constant 0 : i32
    %c0_i32_0 = arith.constant 0 : i32
    %c0_i32_1 = arith.constant 0 : i32
    return %c0_i32, %c0_i32_0 : i32, i32
  }
  func.func @transform_10(%arg0: i32) -> (i32, i32) {
    %c0_i32 = arith.constant 0 : i32
    %c0_i32_0 = arith.constant 0 : i32
    %c0_i32_1 = arith.constant 0 : i32
    return %c0_i32, %c0_i32_0 : i32, i32
  }
  func.func @transform_11(%arg0: i32) -> (i32, i32) {
    %c0_i32 = arith.constant 0 : i32
    %c0_i32_0 = arith.constant 0 : i32
    return %arg0, %c0_i32 : i32, i32
  }
  func.func @transform_12(%arg0: i32) -> (i32, i32) {
    %c0_i32 = arith.constant 0 : i32
    %c0_i32_0 = arith.constant 0 : i32
    return %arg0, %c0_i32 : i32, i32
  }
}

module attributes {stable_mosaic.version = 11 : i64} {
  func.func @_ln_gvp_kernel(%arg0: i32, %arg1: memref<32x32xf32, #tpu.memory_space<vmem>>, %arg2: memref<32x3xf32, #tpu.memory_space<vmem>>, %arg3: memref<1x32xf32, #tpu.memory_space<vmem>>, %arg4: memref<1x32xf32, #tpu.memory_space<vmem>>, %arg5: memref<3x1xf32, #tpu.memory_space<vmem>>, %arg6: memref<3x3xf32, #tpu.memory_space<vmem>>, %arg7: memref<32x32xf32, #tpu.memory_space<vmem>>, %arg8: memref<1x32xf32, #tpu.memory_space<vmem>>, %arg9: memref<1x32xf32, #tpu.memory_space<vmem>>, %arg10: memref<3x1xf32, #tpu.memory_space<vmem>>, %arg11: memref<3x3xf32, #tpu.memory_space<vmem>>, %arg12: memref<32x32xf32, #tpu.memory_space<vmem>>, %arg13: memref<32x3xf32, #tpu.memory_space<vmem>>) attributes {dimension_semantics = [#tpu.dimension_semantics<parallel>], iteration_bounds = array<i64: 2>, scalar_prefetch = 0 : i64, scratch_operands = 0 : i64, tpu.core_type = #tpu.core_type<tc>, window_params = [{transform_indices = @transform_0, window_bounds = array<i64: 32, 32>}, {transform_indices = @transform_1, window_bounds = array<i64: 32, 3>}, {pipeline_mode = #tpu.pipeline_mode<synchronous>, transform_indices = @transform_2, window_bounds = array<i64: 1, 32>}, {pipeline_mode = #tpu.pipeline_mode<synchronous>, transform_indices = @transform_3, window_bounds = array<i64: 1, 32>}, {pipeline_mode = #tpu.pipeline_mode<synchronous>, transform_indices = @transform_4, window_bounds = array<i64: 3, 1>}, {pipeline_mode = #tpu.pipeline_mode<synchronous>, transform_indices = @transform_5, window_bounds = array<i64: 3, 3>}, {pipeline_mode = #tpu.pipeline_mode<synchronous>, transform_indices = @transform_6, window_bounds = array<i64: 32, 32>}, {pipeline_mode = #tpu.pipeline_mode<synchronous>, transform_indices = @transform_7, window_bounds = array<i64: 1, 32>}, {pipeline_mode = #tpu.pipeline_mode<synchronous>, transform_indices = @transform_8, window_bounds = array<i64: 1, 32>}, {pipeline_mode = #tpu.pipeline_mode<synchronous>, transform_indices = @transform_9, window_bounds = array<i64: 3, 1>}, {pipeline_mode = #tpu.pipeline_mode<synchronous>, transform_indices = @transform_10, window_bounds = array<i64: 3, 3>}, {transform_indices = @transform_11, window_bounds = array<i64: 32, 32>}, {transform_indices = @transform_12, window_bounds = array<i64: 32, 3>}]} {
    %c0 = arith.constant 0 : index
    %c0_0 = arith.constant 0 : index
    %0 = vector.load %arg3[%c0, %c0_0] : memref<1x32xf32, #tpu.memory_space<vmem>>, vector<1x32xf32>
    %c0_1 = arith.constant 0 : index
    %c0_2 = arith.constant 0 : index
    %1 = vector.load %arg4[%c0_1, %c0_2] : memref<1x32xf32, #tpu.memory_space<vmem>>, vector<1x32xf32>
    %c0_3 = arith.constant 0 : index
    %c0_4 = arith.constant 0 : index
    %2 = vector.load %arg5[%c0_3, %c0_4] : memref<3x1xf32, #tpu.memory_space<vmem>>, vector<3x1xf32>
    %c0_5 = arith.constant 0 : index
    %c0_6 = arith.constant 0 : index
    %3 = vector.load %arg6[%c0_5, %c0_6] : memref<3x3xf32, #tpu.memory_space<vmem>>, vector<3x3xf32>
    %c0_7 = arith.constant 0 : index
    %c0_8 = arith.constant 0 : index
    %4 = vector.load %arg7[%c0_7, %c0_8] : memref<32x32xf32, #tpu.memory_space<vmem>>, vector<32x32xf32>
    %c0_9 = arith.constant 0 : index
    %c0_10 = arith.constant 0 : index
    %5 = vector.load %arg8[%c0_9, %c0_10] : memref<1x32xf32, #tpu.memory_space<vmem>>, vector<1x32xf32>
    %c0_11 = arith.constant 0 : index
    %c0_12 = arith.constant 0 : index
    %6 = vector.load %arg9[%c0_11, %c0_12] : memref<1x32xf32, #tpu.memory_space<vmem>>, vector<1x32xf32>
    %c0_13 = arith.constant 0 : index
    %c0_14 = arith.constant 0 : index
    %7 = vector.load %arg10[%c0_13, %c0_14] : memref<3x1xf32, #tpu.memory_space<vmem>>, vector<3x1xf32>
    %c0_15 = arith.constant 0 : index
    %c0_16 = arith.constant 0 : index
    %8 = vector.load %arg11[%c0_15, %c0_16] : memref<3x3xf32, #tpu.memory_space<vmem>>, vector<3x3xf32>
    %c0_17 = arith.constant 0 : index
    %c0_18 = arith.constant 0 : index
    %9 = vector.load %arg1[%c0_17, %c0_18] : memref<32x32xf32, #tpu.memory_space<vmem>>, vector<32x32xf32>
    %c0_19 = arith.constant 0 : index
    %c0_20 = arith.constant 0 : index
    %10 = vector.load %arg2[%c0_19, %c0_20] : memref<32x3xf32, #tpu.memory_space<vmem>>, vector<32x3xf32>
    %cst = arith.constant dense<0.000000e+00> : vector<32xf32>
    %11 = vector.multi_reduction <add>, %9, %cst [1] : vector<32x32xf32> to vector<32xf32>
    %12 = vector.shape_cast %11 : vector<32xf32> to vector<32x1xf32>
    %cst_21 = arith.constant 3.200000e+01 : f32
    %13 = vector.broadcast %cst_21 : f32 to vector<32x1xf32>
    %14 = arith.divf %12, %13 : vector<32x1xf32>
    %15 = vector.broadcast %14 : vector<32x1xf32> to vector<32x32xf32>
    %16 = arith.subf %9, %15 : vector<32x32xf32>
    %17 = arith.mulf %16, %16 : vector<32x32xf32>
    %cst_22 = arith.constant dense<0.000000e+00> : vector<32xf32>
    %18 = vector.multi_reduction <add>, %17, %cst_22 [1] : vector<32x32xf32> to vector<32xf32>
    %19 = vector.shape_cast %18 : vector<32xf32> to vector<32x1xf32>
    %cst_23 = arith.constant 3.200000e+01 : f32
    %20 = vector.broadcast %cst_23 : f32 to vector<32x1xf32>
    %21 = arith.divf %19, %20 : vector<32x1xf32>
    %cst_24 = arith.constant 9.99999974E-6 : f32
    %22 = vector.broadcast %cst_24 : f32 to vector<32x1xf32>
    %23 = arith.addf %21, %22 : vector<32x1xf32>
    %24 = math.rsqrt %23 : vector<32x1xf32>
    %25 = vector.broadcast %24 : vector<32x1xf32> to vector<32x32xf32>
    %26 = arith.mulf %16, %25 : vector<32x32xf32>
    %27 = vector.broadcast %0 : vector<1x32xf32> to vector<32x32xf32>
    %28 = arith.mulf %26, %27 : vector<32x32xf32>
    %29 = vector.broadcast %1 : vector<1x32xf32> to vector<32x32xf32>
    %30 = arith.addf %28, %29 : vector<32x32xf32>
    %31 = arith.mulf %10, %10 : vector<32x3xf32>
    %cst_25 = arith.constant dense<0.000000e+00> : vector<32x1xf32>
    %32 = tpu.matmul %31, %2, %cst_25 {dimension_numbers = #tpu.dot_dimension_numbers<[1], [0], [0], [1], [0, 0, 1, 1], [], []>} : vector<32x3xf32>, vector<3x1xf32>, vector<32x1xf32> -> vector<32x1xf32>
    %cst_26 = arith.constant 9.99999993E-9 : f32
    %33 = vector.broadcast %cst_26 : f32 to vector<32x1xf32>
    %34 = arith.maximumf %32, %33 : vector<32x1xf32>
    %cst_27 = arith.constant dense<0.000000e+00> : vector<32xf32>
    %35 = vector.multi_reduction <add>, %34, %cst_27 [1] : vector<32x1xf32> to vector<32xf32>
    %36 = vector.shape_cast %35 : vector<32xf32> to vector<32x1xf32>
    %cst_28 = arith.constant 1.000000e+00 : f32
    %37 = vector.broadcast %cst_28 : f32 to vector<32x1xf32>
    %38 = arith.divf %36, %37 : vector<32x1xf32>
    %39 = math.rsqrt %38 : vector<32x1xf32>
    %40 = vector.broadcast %39 : vector<32x1xf32> to vector<32x3xf32>
    %41 = arith.mulf %10, %40 : vector<32x3xf32>
    %cst_29 = arith.constant dense<0.000000e+00> : vector<32x3xf32>
    %42 = tpu.matmul %41, %3, %cst_29 {dimension_numbers = #tpu.dot_dimension_numbers<[1], [0], [0], [1], [0, 0, 1, 1], [], []>} : vector<32x3xf32>, vector<3x3xf32>, vector<32x3xf32> -> vector<32x3xf32>
    %43 = arith.mulf %42, %42 : vector<32x3xf32>
    %cst_30 = arith.constant dense<0.000000e+00> : vector<32x1xf32>
    %44 = tpu.matmul %43, %7, %cst_30 {dimension_numbers = #tpu.dot_dimension_numbers<[1], [0], [0], [1], [0, 0, 1, 1], [], []>} : vector<32x3xf32>, vector<3x1xf32>, vector<32x1xf32> -> vector<32x1xf32>
    %cst_31 = arith.constant 9.99999993E-9 : f32
    %45 = vector.broadcast %cst_31 : f32 to vector<32x1xf32>
    %46 = arith.maximumf %44, %45 : vector<32x1xf32>
    %47 = math.sqrt %46 : vector<32x1xf32>
    %cst_32 = arith.constant dense<0.000000e+00> : vector<32x32xf32>
    %48 = tpu.matmul %30, %4, %cst_32 {dimension_numbers = #tpu.dot_dimension_numbers<[1], [0], [0], [1], [0, 0, 1, 1], [], []>} : vector<32x32xf32>, vector<32x32xf32>, vector<32x32xf32> -> vector<32x32xf32>
    %cst_33 = arith.constant dense<0.000000e+00> : vector<32x32xf32>
    %49 = tpu.matmul %47, %5, %cst_33 {dimension_numbers = #tpu.dot_dimension_numbers<[1], [0], [0], [1], [0, 0, 1, 1], [], []>} : vector<32x1xf32>, vector<1x32xf32>, vector<32x32xf32> -> vector<32x32xf32>
    %50 = arith.addf %48, %49 : vector<32x32xf32>
    %51 = vector.broadcast %6 : vector<1x32xf32> to vector<32x32xf32>
    %52 = arith.addf %50, %51 : vector<32x32xf32>
    %cst_34 = arith.constant dense<0.000000e+00> : vector<32x3xf32>
    %53 = tpu.matmul %42, %8, %cst_34 {dimension_numbers = #tpu.dot_dimension_numbers<[1], [0], [0], [1], [0, 0, 1, 1], [], []>} : vector<32x3xf32>, vector<3x3xf32>, vector<32x3xf32> -> vector<32x3xf32>
    %c0_35 = arith.constant 0 : index
    %c0_36 = arith.constant 0 : index
    %54 = vector.load %arg12[%c0_35, %c0_36] : memref<32x32xf32, #tpu.memory_space<vmem>>, vector<32x32xf32>
    tpu.vector_store %arg12[%c0_35, %c0_36], %52 {strides = array<i32>} : memref<32x32xf32, #tpu.memory_space<vmem>>, vector<32x32xf32>,
    %c0_37 = arith.constant 0 : index
    %c0_38 = arith.constant 0 : index
    %55 = vector.load %arg13[%c0_37, %c0_38] : memref<32x3xf32, #tpu.memory_space<vmem>>, vector<32x3xf32>
    tpu.vector_store %arg13[%c0_37, %c0_38], %53 {strides = array<i32>} : memref<32x3xf32, #tpu.memory_space<vmem>>, vector<32x3xf32>,
    return
  }
  func.func @transform_0(%arg0: i32) -> (i32, i32) {
    %c0_i32 = arith.constant 0 : i32
    %c0_i32_0 = arith.constant 0 : i32
    return %arg0, %c0_i32 : i32, i32
  }
  func.func @transform_1(%arg0: i32) -> (i32, i32) {
    %c0_i32 = arith.constant 0 : i32
    %c0_i32_0 = arith.constant 0 : i32
    return %arg0, %c0_i32 : i32, i32
  }
  func.func @transform_2(%arg0: i32) -> (i32, i32) {
    %c0_i32 = arith.constant 0 : i32
    %c0_i32_0 = arith.constant 0 : i32
    %c0_i32_1 = arith.constant 0 : i32
    return %c0_i32, %c0_i32_0 : i32, i32
  }
  func.func @transform_3(%arg0: i32) -> (i32, i32) {
    %c0_i32 = arith.constant 0 : i32
    %c0_i32_0 = arith.constant 0 : i32
    %c0_i32_1 = arith.constant 0 : i32
    return %c0_i32, %c0_i32_0 : i32, i32
  }
  func.func @transform_4(%arg0: i32) -> (i32, i32) {
    %c0_i32 = arith.constant 0 : i32
    %c0_i32_0 = arith.constant 0 : i32
    %c0_i32_1 = arith.constant 0 : i32
    return %c0_i32, %c0_i32_0 : i32, i32
  }
  func.func @transform_5(%arg0: i32) -> (i32, i32) {
    %c0_i32 = arith.constant 0 : i32
    %c0_i32_0 = arith.constant 0 : i32
    %c0_i32_1 = arith.constant 0 : i32
    return %c0_i32, %c0_i32_0 : i32, i32
  }
  func.func @transform_6(%arg0: i32) -> (i32, i32) {
    %c0_i32 = arith.constant 0 : i32
    %c0_i32_0 = arith.constant 0 : i32
    %c0_i32_1 = arith.constant 0 : i32
    return %c0_i32, %c0_i32_0 : i32, i32
  }
  func.func @transform_7(%arg0: i32) -> (i32, i32) {
    %c0_i32 = arith.constant 0 : i32
    %c0_i32_0 = arith.constant 0 : i32
    %c0_i32_1 = arith.constant 0 : i32
    return %c0_i32, %c0_i32_0 : i32, i32
  }
  func.func @transform_8(%arg0: i32) -> (i32, i32) {
    %c0_i32 = arith.constant 0 : i32
    %c0_i32_0 = arith.constant 0 : i32
    %c0_i32_1 = arith.constant 0 : i32
    return %c0_i32, %c0_i32_0 : i32, i32
  }
  func.func @transform_9(%arg0: i32) -> (i32, i32) {
    %c0_i32 = arith.constant 0 : i32
    %c0_i32_0 = arith.constant 0 : i32
    %c0_i32_1 = arith.constant 0 : i32
    return %c0_i32, %c0_i32_0 : i32, i32
  }
  func.func @transform_10(%arg0: i32) -> (i32, i32) {
    %c0_i32 = arith.constant 0 : i32
    %c0_i32_0 = arith.constant 0 : i32
    %c0_i32_1 = arith.constant 0 : i32
    return %c0_i32, %c0_i32_0 : i32, i32
  }
  func.func @transform_11(%arg0: i32) -> (i32, i32) {
    %c0_i32 = arith.constant 0 : i32
    %c0_i32_0 = arith.constant 0 : i32
    return %arg0, %c0_i32 : i32, i32
  }
  func.func @transform_12(%arg0: i32) -> (i32, i32) {
    %c0_i32 = arith.constant 0 : i32
    %c0_i32_0 = arith.constant 0 : i32
    return %arg0, %c0_i32 : i32, i32
  }
}

module attributes {stable_mosaic.version = 11 : i64} {
  func.func @_message_kernel(%arg0: i32, %arg1: memref<32x32xf32, #tpu.memory_space<vmem>>, %arg2: memref<32x32xf32, #tpu.memory_space<vmem>>, %arg3: memref<32x32xf32, #tpu.memory_space<vmem>>, %arg4: memref<32x12xf32, #tpu.memory_space<vmem>>, %arg5: memref<32x3xf32, #tpu.memory_space<vmem>>, %arg6: memref<32x12xf32, #tpu.memory_space<vmem>>, %arg7: memref<12x27xf32, #tpu.memory_space<vmem>>, %arg8: memref<3x27xf32, #tpu.memory_space<vmem>>, %arg9: memref<12x27xf32, #tpu.memory_space<vmem>>, %arg10: memref<32x32xf32, #tpu.memory_space<vmem>>, %arg11: memref<32x32xf32, #tpu.memory_space<vmem>>, %arg12: memref<32x32xf32, #tpu.memory_space<vmem>>, %arg13: memref<9x32xf32, #tpu.memory_space<vmem>>, %arg14: memref<1x32xf32, #tpu.memory_space<vmem>>, %arg15: memref<27x9xf32, #tpu.memory_space<vmem>>, %arg16: memref<27x12xf32, #tpu.memory_space<vmem>>, %arg17: memref<12x12xf32, #tpu.memory_space<vmem>>, %arg18: memref<12x12xf32, #tpu.memory_space<vmem>>, %arg19: memref<32x32xf32, #tpu.memory_space<vmem>>, %arg20: memref<4x32xf32, #tpu.memory_space<vmem>>, %arg21: memref<1x32xf32, #tpu.memory_space<vmem>>, %arg22: memref<12x4xf32, #tpu.memory_space<vmem>>, %arg23: memref<12x12xf32, #tpu.memory_space<vmem>>, %arg24: memref<12x12xf32, #tpu.memory_space<vmem>>, %arg25: memref<12x12xf32, #tpu.memory_space<vmem>>, %arg26: memref<32x32xf32, #tpu.memory_space<vmem>>, %arg27: memref<4x32xf32, #tpu.memory_space<vmem>>, %arg28: memref<1x32xf32, #tpu.memory_space<vmem>>, %arg29: memref<12x4xf32, #tpu.memory_space<vmem>>, %arg30: memref<12x12xf32, #tpu.memory_space<vmem>>, %arg31: memref<32x32xf32, #tpu.memory_space<vmem>>, %arg32: memref<32x12xf32, #tpu.memory_space<vmem>>) attributes {dimension_semantics = [#tpu.dimension_semantics<parallel>], iteration_bounds = array<i64: 2>, scalar_prefetch = 0 : i64, scratch_operands = 0 : i64, tpu.core_type = #tpu.core_type<tc>, window_params = [{transform_indices = @transform_0, window_bounds = array<i64: 32, 32>}, {transform_indices = @transform_1, window_bounds = array<i64: 32, 32>}, {transform_indices = @transform_2, window_bounds = array<i64: 32, 32>}, {transform_indices = @transform_3, window_bounds = array<i64: 32, 12>}, {transform_indices = @transform_4, window_bounds = array<i64: 32, 3>}, {transform_indices = @transform_5, window_bounds = array<i64: 32, 12>}, {pipeline_mode = #tpu.pipeline_mode<synchronous>, transform_indices = @transform_6, window_bounds = array<i64: 12, 27>}, {pipeline_mode = #tpu.pipeline_mode<synchronous>, transform_indices = @transform_7, window_bounds = array<i64: 3, 27>}, {pipeline_mode = #tpu.pipeline_mode<synchronous>, transform_indices = @transform_8, window_bounds = array<i64: 12, 27>}, {pipeline_mode = #tpu.pipeline_mode<synchronous>, transform_indices = @transform_9, window_bounds = array<i64: 32, 32>}, {pipeline_mode = #tpu.pipeline_mode<synchronous>, transform_indices = @transform_10, window_bounds = array<i64: 32, 32>}, {pipeline_mode = #tpu.pipeline_mode<synchronous>, transform_indices = @transform_11, window_bounds = array<i64: 32, 32>}, {pipeline_mode = #tpu.pipeline_mode<synchronous>, transform_indices = @transform_12, window_bounds = array<i64: 9, 32>}, {pipeline_mode = #tpu.pipeline_mode<synchronous>, transform_indices = @transform_13, window_bounds = array<i64: 1, 32>}, {pipeline_mode = #tpu.pipeline_mode<synchronous>, transform_indices = @transform_14, window_bounds = array<i64: 27, 9>}, {pipeline_mode = #tpu.pipeline_mode<synchronous>, transform_indices = @transform_15, window_bounds = array<i64: 27, 12>}, {pipeline_mode = #tpu.pipeline_mode<synchronous>, transform_indices = @transform_16, window_bounds = array<i64: 12, 12>}, {pipeline_mode = #tpu.pipeline_mode<synchronous>, transform_indices = @transform_17, window_bounds = array<i64: 12, 12>}, {pipeline_mode = #tpu.pipeline_mode<synchronous>, transform_indices = @transform_18, window_bounds = array<i64: 32, 32>}, {pipeline_mode = #tpu.pipeline_mode<synchronous>, transform_indices = @transform_19, window_bounds = array<i64: 4, 32>}, {pipeline_mode = #tpu.pipeline_mode<synchronous>, transform_indices = @transform_20, window_bounds = array<i64: 1, 32>}, {pipeline_mode = #tpu.pipeline_mode<synchronous>, transform_indices = @transform_21, window_bounds = array<i64: 12, 4>}, {pipeline_mode = #tpu.pipeline_mode<synchronous>, transform_indices = @transform_22, window_bounds = array<i64: 12, 12>}, {pipeline_mode = #tpu.pipeline_mode<synchronous>, transform_indices = @transform_23, window_bounds = array<i64: 12, 12>}, {pipeline_mode = #tpu.pipeline_mode<synchronous>, transform_indices = @transform_24, window_bounds = array<i64: 12, 12>}, {pipeline_mode = #tpu.pipeline_mode<synchronous>, transform_indices = @transform_25, window_bounds = array<i64: 32, 32>}, {pipeline_mode = #tpu.pipeline_mode<synchronous>, transform_indices = @transform_26, window_bounds = array<i64: 4, 32>}, {pipeline_mode = #tpu.pipeline_mode<synchronous>, transform_indices = @transform_27, window_bounds = array<i64: 1, 32>}, {pipeline_mode = #tpu.pipeline_mode<synchronous>, transform_indices = @transform_28, window_bounds = array<i64: 12, 4>}, {pipeline_mode = #tpu.pipeline_mode<synchronous>, transform_indices = @transform_29, window_bounds = array<i64: 12, 12>}, {transform_indices = @transform_30, window_bounds = array<i64: 32, 32>}, {transform_indices = @transform_31, window_bounds = array<i64: 32, 12>}]} {
    %c0 = arith.constant 0 : index
    %c0_0 = arith.constant 0 : index
    %0 = vector.load %arg7[%c0, %c0_0] : memref<12x27xf32, #tpu.memory_space<vmem>>, vector<12x27xf32>
    %c0_1 = arith.constant 0 : index
    %c0_2 = arith.constant 0 : index
    %1 = vector.load %arg8[%c0_1, %c0_2] : memref<3x27xf32, #tpu.memory_space<vmem>>, vector<3x27xf32>
    %c0_3 = arith.constant 0 : index
    %c0_4 = arith.constant 0 : index
    %2 = vector.load %arg9[%c0_3, %c0_4] : memref<12x27xf32, #tpu.memory_space<vmem>>, vector<12x27xf32>
    %c0_5 = arith.constant 0 : index
    %c0_6 = arith.constant 0 : index
    %3 = vector.load %arg10[%c0_5, %c0_6] : memref<32x32xf32, #tpu.memory_space<vmem>>, vector<32x32xf32>
    %c0_7 = arith.constant 0 : index
    %c0_8 = arith.constant 0 : index
    %4 = vector.load %arg11[%c0_7, %c0_8] : memref<32x32xf32, #tpu.memory_space<vmem>>, vector<32x32xf32>
    %c0_9 = arith.constant 0 : index
    %c0_10 = arith.constant 0 : index
    %5 = vector.load %arg12[%c0_9, %c0_10] : memref<32x32xf32, #tpu.memory_space<vmem>>, vector<32x32xf32>
    %c0_11 = arith.constant 0 : index
    %c0_12 = arith.constant 0 : index
    %6 = vector.load %arg13[%c0_11, %c0_12] : memref<9x32xf32, #tpu.memory_space<vmem>>, vector<9x32xf32>
    %c0_13 = arith.constant 0 : index
    %c0_14 = arith.constant 0 : index
    %7 = vector.load %arg14[%c0_13, %c0_14] : memref<1x32xf32, #tpu.memory_space<vmem>>, vector<1x32xf32>
    %c0_15 = arith.constant 0 : index
    %c0_16 = arith.constant 0 : index
    %8 = vector.load %arg15[%c0_15, %c0_16] : memref<27x9xf32, #tpu.memory_space<vmem>>, vector<27x9xf32>
    %c0_17 = arith.constant 0 : index
    %c0_18 = arith.constant 0 : index
    %9 = vector.load %arg16[%c0_17, %c0_18] : memref<27x12xf32, #tpu.memory_space<vmem>>, vector<27x12xf32>
    %c0_19 = arith.constant 0 : index
    %c0_20 = arith.constant 0 : index
    %10 = vector.load %arg17[%c0_19, %c0_20] : memref<12x12xf32, #tpu.memory_space<vmem>>, vector<12x12xf32>
    %c0_21 = arith.constant 0 : index
    %c0_22 = arith.constant 0 : index
    %11 = vector.load %arg18[%c0_21, %c0_22] : memref<12x12xf32, #tpu.memory_space<vmem>>, vector<12x12xf32>
    %c0_23 = arith.constant 0 : index
    %c0_24 = arith.constant 0 : index
    %12 = vector.load %arg19[%c0_23, %c0_24] : memref<32x32xf32, #tpu.memory_space<vmem>>, vector<32x32xf32>
    %c0_25 = arith.constant 0 : index
    %c0_26 = arith.constant 0 : index
    %13 = vector.load %arg20[%c0_25, %c0_26] : memref<4x32xf32, #tpu.memory_space<vmem>>, vector<4x32xf32>
    %c0_27 = arith.constant 0 : index
    %c0_28 = arith.constant 0 : index
    %14 = vector.load %arg21[%c0_27, %c0_28] : memref<1x32xf32, #tpu.memory_space<vmem>>, vector<1x32xf32>
    %c0_29 = arith.constant 0 : index
    %c0_30 = arith.constant 0 : index
    %15 = vector.load %arg22[%c0_29, %c0_30] : memref<12x4xf32, #tpu.memory_space<vmem>>, vector<12x4xf32>
    %c0_31 = arith.constant 0 : index
    %c0_32 = arith.constant 0 : index
    %16 = vector.load %arg23[%c0_31, %c0_32] : memref<12x12xf32, #tpu.memory_space<vmem>>, vector<12x12xf32>
    %c0_33 = arith.constant 0 : index
    %c0_34 = arith.constant 0 : index
    %17 = vector.load %arg24[%c0_33, %c0_34] : memref<12x12xf32, #tpu.memory_space<vmem>>, vector<12x12xf32>
    %c0_35 = arith.constant 0 : index
    %c0_36 = arith.constant 0 : index
    %18 = vector.load %arg25[%c0_35, %c0_36] : memref<12x12xf32, #tpu.memory_space<vmem>>, vector<12x12xf32>
    %c0_37 = arith.constant 0 : index
    %c0_38 = arith.constant 0 : index
    %19 = vector.load %arg26[%c0_37, %c0_38] : memref<32x32xf32, #tpu.memory_space<vmem>>, vector<32x32xf32>
    %c0_39 = arith.constant 0 : index
    %c0_40 = arith.constant 0 : index
    %20 = vector.load %arg27[%c0_39, %c0_40] : memref<4x32xf32, #tpu.memory_space<vmem>>, vector<4x32xf32>
    %c0_41 = arith.constant 0 : index
    %c0_42 = arith.constant 0 : index
    %21 = vector.load %arg28[%c0_41, %c0_42] : memref<1x32xf32, #tpu.memory_space<vmem>>, vector<1x32xf32>
    %c0_43 = arith.constant 0 : index
    %c0_44 = arith.constant 0 : index
    %22 = vector.load %arg29[%c0_43, %c0_44] : memref<12x4xf32, #tpu.memory_space<vmem>>, vector<12x4xf32>
    %c0_45 = arith.constant 0 : index
    %c0_46 = arith.constant 0 : index
    %23 = vector.load %arg30[%c0_45, %c0_46] : memref<12x12xf32, #tpu.memory_space<vmem>>, vector<12x12xf32>
    %c0_47 = arith.constant 0 : index
    %c0_48 = arith.constant 0 : index
    %24 = vector.load %arg4[%c0_47, %c0_48] : memref<32x12xf32, #tpu.memory_space<vmem>>, vector<32x12xf32>
    %cst = arith.constant dense<0.000000e+00> : vector<32x27xf32>
    %25 = tpu.matmul %24, %0, %cst {dimension_numbers = #tpu.dot_dimension_numbers<[1], [0], [0], [1], [0, 0, 1, 1], [], []>} : vector<32x12xf32>, vector<12x27xf32>, vector<32x27xf32> -> vector<32x27xf32>
    %c0_49 = arith.constant 0 : index
    %c0_50 = arith.constant 0 : index
    %26 = vector.load %arg5[%c0_49, %c0_50] : memref<32x3xf32, #tpu.memory_space<vmem>>, vector<32x3xf32>
    %cst_51 = arith.constant dense<0.000000e+00> : vector<32x27xf32>
    %27 = tpu.matmul %26, %1, %cst_51 {dimension_numbers = #tpu.dot_dimension_numbers<[1], [0], [0], [1], [0, 0, 1, 1], [], []>} : vector<32x3xf32>, vector<3x27xf32>, vector<32x27xf32> -> vector<32x27xf32>
    %28 = arith.addf %25, %27 : vector<32x27xf32>
    %c0_52 = arith.constant 0 : index
    %c0_53 = arith.constant 0 : index
    %29 = vector.load %arg6[%c0_52, %c0_53] : memref<32x12xf32, #tpu.memory_space<vmem>>, vector<32x12xf32>
    %cst_54 = arith.constant dense<0.000000e+00> : vector<32x27xf32>
    %30 = tpu.matmul %29, %2, %cst_54 {dimension_numbers = #tpu.dot_dimension_numbers<[1], [0], [0], [1], [0, 0, 1, 1], [], []>} : vector<32x12xf32>, vector<12x27xf32>, vector<32x27xf32> -> vector<32x27xf32>
    %31 = arith.addf %28, %30 : vector<32x27xf32>
    %32 = arith.mulf %31, %31 : vector<32x27xf32>
    %cst_55 = arith.constant dense<0.000000e+00> : vector<32x9xf32>
    %33 = tpu.matmul %32, %8, %cst_55 {dimension_numbers = #tpu.dot_dimension_numbers<[1], [0], [0], [1], [0, 0, 1, 1], [], []>} : vector<32x27xf32>, vector<27x9xf32>, vector<32x9xf32> -> vector<32x9xf32>
    %cst_56 = arith.constant 9.99999993E-9 : f32
    %34 = vector.broadcast %cst_56 : f32 to vector<32x9xf32>
    %35 = arith.maximumf %33, %34 : vector<32x9xf32>
    %36 = math.sqrt %35 : vector<32x9xf32>
    %c0_57 = arith.constant 0 : index
    %c0_58 = arith.constant 0 : index
    %37 = vector.load %arg1[%c0_57, %c0_58] : memref<32x32xf32, #tpu.memory_space<vmem>>, vector<32x32xf32>
    %cst_59 = arith.constant dense<0.000000e+00> : vector<32x32xf32>
    %38 = tpu.matmul %37, %3, %cst_59 {dimension_numbers = #tpu.dot_dimension_numbers<[1], [0], [0], [1], [0, 0, 1, 1], [], []>} : vector<32x32xf32>, vector<32x32xf32>, vector<32x32xf32> -> vector<32x32xf32>
    %c0_60 = arith.constant 0 : index
    %c0_61 = arith.constant 0 : index
    %39 = vector.load %arg2[%c0_60, %c0_61] : memref<32x32xf32, #tpu.memory_space<vmem>>, vector<32x32xf32>
    %cst_62 = arith.constant dense<0.000000e+00> : vector<32x32xf32>
    %40 = tpu.matmul %39, %4, %cst_62 {dimension_numbers = #tpu.dot_dimension_numbers<[1], [0], [0], [1], [0, 0, 1, 1], [], []>} : vector<32x32xf32>, vector<32x32xf32>, vector<32x32xf32> -> vector<32x32xf32>
    %41 = arith.addf %38, %40 : vector<32x32xf32>
    %c0_63 = arith.constant 0 : index
    %c0_64 = arith.constant 0 : index
    %42 = vector.load %arg3[%c0_63, %c0_64] : memref<32x32xf32, #tpu.memory_space<vmem>>, vector<32x32xf32>
    %cst_65 = arith.constant dense<0.000000e+00> : vector<32x32xf32>
    %43 = tpu.matmul %42, %5, %cst_65 {dimension_numbers = #tpu.dot_dimension_numbers<[1], [0], [0], [1], [0, 0, 1, 1], [], []>} : vector<32x32xf32>, vector<32x32xf32>, vector<32x32xf32> -> vector<32x32xf32>
    %44 = arith.addf %41, %43 : vector<32x32xf32>
    %cst_66 = arith.constant dense<0.000000e+00> : vector<32x32xf32>
    %45 = tpu.matmul %36, %6, %cst_66 {dimension_numbers = #tpu.dot_dimension_numbers<[1], [0], [0], [1], [0, 0, 1, 1], [], []>} : vector<32x9xf32>, vector<9x32xf32>, vector<32x32xf32> -> vector<32x32xf32>
    %46 = arith.addf %44, %45 : vector<32x32xf32>
    %47 = vector.broadcast %7 : vector<1x32xf32> to vector<32x32xf32>
    %48 = arith.addf %46, %47 : vector<32x32xf32>
    %cst_67 = arith.constant 0.000000e+00 : f32
    %49 = vector.broadcast %cst_67 : f32 to vector<32x32xf32>
    %50 = arith.maximumf %48, %49 : vector<32x32xf32>
    %cst_68 = arith.constant dense<0.000000e+00> : vector<32x12xf32>
    %51 = tpu.matmul %31, %9, %cst_68 {dimension_numbers = #tpu.dot_dimension_numbers<[1], [0], [0], [1], [0, 0, 1, 1], [], []>} : vector<32x27xf32>, vector<27x12xf32>, vector<32x12xf32> -> vector<32x12xf32>
    %52 = arith.mulf %51, %51 : vector<32x12xf32>
    %cst_69 = arith.constant dense<0.000000e+00> : vector<32x12xf32>
    %53 = tpu.matmul %52, %10, %cst_69 {dimension_numbers = #tpu.dot_dimension_numbers<[1], [0], [0], [1], [0, 0, 1, 1], [], []>} : vector<32x12xf32>, vector<12x12xf32>, vector<32x12xf32> -> vector<32x12xf32>
    %cst_70 = arith.constant 9.99999993E-9 : f32
    %54 = vector.broadcast %cst_70 : f32 to vector<32x12xf32>
    %55 = arith.maximumf %53, %54 : vector<32x12xf32>
    %56 = math.sqrt %55 : vector<32x12xf32>
    %57 = arith.negf %56 : vector<32x12xf32>
    %58 = math.exp %57 : vector<32x12xf32>
    %cst_71 = arith.constant 1.000000e+00 : f32
    %59 = vector.broadcast %cst_71 : f32 to vector<32x12xf32>
    %60 = arith.addf %59, %58 : vector<32x12xf32>
    %61 = arith.divf %59, %60 : vector<32x12xf32>
    %62 = arith.mulf %51, %61 : vector<32x12xf32>
    %cst_72 = arith.constant dense<0.000000e+00> : vector<32x12xf32>
    %63 = tpu.matmul %62, %11, %cst_72 {dimension_numbers = #tpu.dot_dimension_numbers<[1], [0], [0], [1], [0, 0, 1, 1], [], []>} : vector<32x12xf32>, vector<12x12xf32>, vector<32x12xf32> -> vector<32x12xf32>
    %64 = arith.mulf %63, %63 : vector<32x12xf32>
    %cst_73 = arith.constant dense<0.000000e+00> : vector<32x4xf32>
    %65 = tpu.matmul %64, %15, %cst_73 {dimension_numbers = #tpu.dot_dimension_numbers<[1], [0], [0], [1], [0, 0, 1, 1], [], []>} : vector<32x12xf32>, vector<12x4xf32>, vector<32x4xf32> -> vector<32x4xf32>
    %cst_74 = arith.constant 9.99999993E-9 : f32
    %66 = vector.broadcast %cst_74 : f32 to vector<32x4xf32>
    %67 = arith.maximumf %65, %66 : vector<32x4xf32>
    %68 = math.sqrt %67 : vector<32x4xf32>
    %cst_75 = arith.constant dense<0.000000e+00> : vector<32x32xf32>
    %69 = tpu.matmul %50, %12, %cst_75 {dimension_numbers = #tpu.dot_dimension_numbers<[1], [0], [0], [1], [0, 0, 1, 1], [], []>} : vector<32x32xf32>, vector<32x32xf32>, vector<32x32xf32> -> vector<32x32xf32>
    %cst_76 = arith.constant dense<0.000000e+00> : vector<32x32xf32>
    %70 = tpu.matmul %68, %13, %cst_76 {dimension_numbers = #tpu.dot_dimension_numbers<[1], [0], [0], [1], [0, 0, 1, 1], [], []>} : vector<32x4xf32>, vector<4x32xf32>, vector<32x32xf32> -> vector<32x32xf32>
    %71 = arith.addf %69, %70 : vector<32x32xf32>
    %72 = vector.broadcast %14 : vector<1x32xf32> to vector<32x32xf32>
    %73 = arith.addf %71, %72 : vector<32x32xf32>
    %cst_77 = arith.constant 0.000000e+00 : f32
    %74 = vector.broadcast %cst_77 : f32 to vector<32x32xf32>
    %75 = arith.maximumf %73, %74 : vector<32x32xf32>
    %cst_78 = arith.constant dense<0.000000e+00> : vector<32x12xf32>
    %76 = tpu.matmul %63, %16, %cst_78 {dimension_numbers = #tpu.dot_dimension_numbers<[1], [0], [0], [1], [0, 0, 1, 1], [], []>} : vector<32x12xf32>, vector<12x12xf32>, vector<32x12xf32> -> vector<32x12xf32>
    %77 = arith.mulf %76, %76 : vector<32x12xf32>
    %cst_79 = arith.constant dense<0.000000e+00> : vector<32x12xf32>
    %78 = tpu.matmul %77, %17, %cst_79 {dimension_numbers = #tpu.dot_dimension_numbers<[1], [0], [0], [1], [0, 0, 1, 1], [], []>} : vector<32x12xf32>, vector<12x12xf32>, vector<32x12xf32> -> vector<32x12xf32>
    %cst_80 = arith.constant 9.99999993E-9 : f32
    %79 = vector.broadcast %cst_80 : f32 to vector<32x12xf32>
    %80 = arith.maximumf %78, %79 : vector<32x12xf32>
    %81 = math.sqrt %80 : vector<32x12xf32>
    %82 = arith.negf %81 : vector<32x12xf32>
    %83 = math.exp %82 : vector<32x12xf32>
    %cst_81 = arith.constant 1.000000e+00 : f32
    %84 = vector.broadcast %cst_81 : f32 to vector<32x12xf32>
    %85 = arith.addf %84, %83 : vector<32x12xf32>
    %86 = arith.divf %84, %85 : vector<32x12xf32>
    %87 = arith.mulf %76, %86 : vector<32x12xf32>
    %cst_82 = arith.constant dense<0.000000e+00> : vector<32x12xf32>
    %88 = tpu.matmul %87, %18, %cst_82 {dimension_numbers = #tpu.dot_dimension_numbers<[1], [0], [0], [1], [0, 0, 1, 1], [], []>} : vector<32x12xf32>, vector<12x12xf32>, vector<32x12xf32> -> vector<32x12xf32>
    %89 = arith.mulf %88, %88 : vector<32x12xf32>
    %cst_83 = arith.constant dense<0.000000e+00> : vector<32x4xf32>
    %90 = tpu.matmul %89, %22, %cst_83 {dimension_numbers = #tpu.dot_dimension_numbers<[1], [0], [0], [1], [0, 0, 1, 1], [], []>} : vector<32x12xf32>, vector<12x4xf32>, vector<32x4xf32> -> vector<32x4xf32>
    %cst_84 = arith.constant 9.99999993E-9 : f32
    %91 = vector.broadcast %cst_84 : f32 to vector<32x4xf32>
    %92 = arith.maximumf %90, %91 : vector<32x4xf32>
    %93 = math.sqrt %92 : vector<32x4xf32>
    %cst_85 = arith.constant dense<0.000000e+00> : vector<32x32xf32>
    %94 = tpu.matmul %75, %19, %cst_85 {dimension_numbers = #tpu.dot_dimension_numbers<[1], [0], [0], [1], [0, 0, 1, 1], [], []>} : vector<32x32xf32>, vector<32x32xf32>, vector<32x32xf32> -> vector<32x32xf32>
    %cst_86 = arith.constant dense<0.000000e+00> : vector<32x32xf32>
    %95 = tpu.matmul %93, %20, %cst_86 {dimension_numbers = #tpu.dot_dimension_numbers<[1], [0], [0], [1], [0, 0, 1, 1], [], []>} : vector<32x4xf32>, vector<4x32xf32>, vector<32x32xf32> -> vector<32x32xf32>
    %96 = arith.addf %94, %95 : vector<32x32xf32>
    %97 = vector.broadcast %21 : vector<1x32xf32> to vector<32x32xf32>
    %98 = arith.addf %96, %97 : vector<32x32xf32>
    %cst_87 = arith.constant dense<0.000000e+00> : vector<32x12xf32>
    %99 = tpu.matmul %88, %23, %cst_87 {dimension_numbers = #tpu.dot_dimension_numbers<[1], [0], [0], [1], [0, 0, 1, 1], [], []>} : vector<32x12xf32>, vector<12x12xf32>, vector<32x12xf32> -> vector<32x12xf32>
    %c0_88 = arith.constant 0 : index
    %c0_89 = arith.constant 0 : index
    %100 = vector.load %arg31[%c0_88, %c0_89] : memref<32x32xf32, #tpu.memory_space<vmem>>, vector<32x32xf32>
    tpu.vector_store %arg31[%c0_88, %c0_89], %98 {strides = array<i32>} : memref<32x32xf32, #tpu.memory_space<vmem>>, vector<32x32xf32>,
    %c0_90 = arith.constant 0 : index
    %c0_91 = arith.constant 0 : index
    %101 = vector.load %arg32[%c0_90, %c0_91] : memref<32x12xf32, #tpu.memory_space<vmem>>, vector<32x12xf32>
    tpu.vector_store %arg32[%c0_90, %c0_91], %99 {strides = array<i32>} : memref<32x12xf32, #tpu.memory_space<vmem>>, vector<32x12xf32>,
    return
  }
  func.func @transform_0(%arg0: i32) -> (i32, i32) {
    %c0_i32 = arith.constant 0 : i32
    %c0_i32_0 = arith.constant 0 : i32
    return %arg0, %c0_i32 : i32, i32
  }
  func.func @transform_1(%arg0: i32) -> (i32, i32) {
    %c0_i32 = arith.constant 0 : i32
    %c0_i32_0 = arith.constant 0 : i32
    return %arg0, %c0_i32 : i32, i32
  }
  func.func @transform_2(%arg0: i32) -> (i32, i32) {
    %c0_i32 = arith.constant 0 : i32
    %c0_i32_0 = arith.constant 0 : i32
    return %arg0, %c0_i32 : i32, i32
  }
  func.func @transform_3(%arg0: i32) -> (i32, i32) {
    %c0_i32 = arith.constant 0 : i32
    %c0_i32_0 = arith.constant 0 : i32
    return %arg0, %c0_i32 : i32, i32
  }
  func.func @transform_4(%arg0: i32) -> (i32, i32) {
    %c0_i32 = arith.constant 0 : i32
    %c0_i32_0 = arith.constant 0 : i32
    return %arg0, %c0_i32 : i32, i32
  }
  func.func @transform_5(%arg0: i32) -> (i32, i32) {
    %c0_i32 = arith.constant 0 : i32
    %c0_i32_0 = arith.constant 0 : i32
    return %arg0, %c0_i32 : i32, i32
  }
  func.func @transform_6(%arg0: i32) -> (i32, i32) {
    %c0_i32 = arith.constant 0 : i32
    %c0_i32_0 = arith.constant 0 : i32
    %c0_i32_1 = arith.constant 0 : i32
    return %c0_i32, %c0_i32_0 : i32, i32
  }
  func.func @transform_7(%arg0: i32) -> (i32, i32) {
    %c0_i32 = arith.constant 0 : i32
    %c0_i32_0 = arith.constant 0 : i32
    %c0_i32_1 = arith.constant 0 : i32
    return %c0_i32, %c0_i32_0 : i32, i32
  }
  func.func @transform_8(%arg0: i32) -> (i32, i32) {
    %c0_i32 = arith.constant 0 : i32
    %c0_i32_0 = arith.constant 0 : i32
    %c0_i32_1 = arith.constant 0 : i32
    return %c0_i32, %c0_i32_0 : i32, i32
  }
  func.func @transform_9(%arg0: i32) -> (i32, i32) {
    %c0_i32 = arith.constant 0 : i32
    %c0_i32_0 = arith.constant 0 : i32
    %c0_i32_1 = arith.constant 0 : i32
    return %c0_i32, %c0_i32_0 : i32, i32
  }
  func.func @transform_10(%arg0: i32) -> (i32, i32) {
    %c0_i32 = arith.constant 0 : i32
    %c0_i32_0 = arith.constant 0 : i32
    %c0_i32_1 = arith.constant 0 : i32
    return %c0_i32, %c0_i32_0 : i32, i32
  }
  func.func @transform_11(%arg0: i32) -> (i32, i32) {
    %c0_i32 = arith.constant 0 : i32
    %c0_i32_0 = arith.constant 0 : i32
    %c0_i32_1 = arith.constant 0 : i32
    return %c0_i32, %c0_i32_0 : i32, i32
  }
  func.func @transform_12(%arg0: i32) -> (i32, i32) {
    %c0_i32 = arith.constant 0 : i32
    %c0_i32_0 = arith.constant 0 : i32
    %c0_i32_1 = arith.constant 0 : i32
    return %c0_i32, %c0_i32_0 : i32, i32
  }
  func.func @transform_13(%arg0: i32) -> (i32, i32) {
    %c0_i32 = arith.constant 0 : i32
    %c0_i32_0 = arith.constant 0 : i32
    %c0_i32_1 = arith.constant 0 : i32
    return %c0_i32, %c0_i32_0 : i32, i32
  }
  func.func @transform_14(%arg0: i32) -> (i32, i32) {
    %c0_i32 = arith.constant 0 : i32
    %c0_i32_0 = arith.constant 0 : i32
    %c0_i32_1 = arith.constant 0 : i32
    return %c0_i32, %c0_i32_0 : i32, i32
  }
  func.func @transform_15(%arg0: i32) -> (i32, i32) {
    %c0_i32 = arith.constant 0 : i32
    %c0_i32_0 = arith.constant 0 : i32
    %c0_i32_1 = arith.constant 0 : i32
    return %c0_i32, %c0_i32_0 : i32, i32
  }
  func.func @transform_16(%arg0: i32) -> (i32, i32) {
    %c0_i32 = arith.constant 0 : i32
    %c0_i32_0 = arith.constant 0 : i32
    %c0_i32_1 = arith.constant 0 : i32
    return %c0_i32, %c0_i32_0 : i32, i32
  }
  func.func @transform_17(%arg0: i32) -> (i32, i32) {
    %c0_i32 = arith.constant 0 : i32
    %c0_i32_0 = arith.constant 0 : i32
    %c0_i32_1 = arith.constant 0 : i32
    return %c0_i32, %c0_i32_0 : i32, i32
  }
  func.func @transform_18(%arg0: i32) -> (i32, i32) {
    %c0_i32 = arith.constant 0 : i32
    %c0_i32_0 = arith.constant 0 : i32
    %c0_i32_1 = arith.constant 0 : i32
    return %c0_i32, %c0_i32_0 : i32, i32
  }
  func.func @transform_19(%arg0: i32) -> (i32, i32) {
    %c0_i32 = arith.constant 0 : i32
    %c0_i32_0 = arith.constant 0 : i32
    %c0_i32_1 = arith.constant 0 : i32
    return %c0_i32, %c0_i32_0 : i32, i32
  }
  func.func @transform_20(%arg0: i32) -> (i32, i32) {
    %c0_i32 = arith.constant 0 : i32
    %c0_i32_0 = arith.constant 0 : i32
    %c0_i32_1 = arith.constant 0 : i32
    return %c0_i32, %c0_i32_0 : i32, i32
  }
  func.func @transform_21(%arg0: i32) -> (i32, i32) {
    %c0_i32 = arith.constant 0 : i32
    %c0_i32_0 = arith.constant 0 : i32
    %c0_i32_1 = arith.constant 0 : i32
    return %c0_i32, %c0_i32_0 : i32, i32
  }
  func.func @transform_22(%arg0: i32) -> (i32, i32) {
    %c0_i32 = arith.constant 0 : i32
    %c0_i32_0 = arith.constant 0 : i32
    %c0_i32_1 = arith.constant 0 : i32
    return %c0_i32, %c0_i32_0 : i32, i32
  }
  func.func @transform_23(%arg0: i32) -> (i32, i32) {
    %c0_i32 = arith.constant 0 : i32
    %c0_i32_0 = arith.constant 0 : i32
    %c0_i32_1 = arith.constant 0 : i32
    return %c0_i32, %c0_i32_0 : i32, i32
  }
  func.func @transform_24(%arg0: i32) -> (i32, i32) {
    %c0_i32 = arith.constant 0 : i32
    %c0_i32_0 = arith.constant 0 : i32
    %c0_i32_1 = arith.constant 0 : i32
    return %c0_i32, %c0_i32_0 : i32, i32
  }
  func.func @transform_25(%arg0: i32) -> (i32, i32) {
    %c0_i32 = arith.constant 0 : i32
    %c0_i32_0 = arith.constant 0 : i32
    %c0_i32_1 = arith.constant 0 : i32
    return %c0_i32, %c0_i32_0 : i32, i32
  }
  func.func @transform_26(%arg0: i32) -> (i32, i32) {
    %c0_i32 = arith.constant 0 : i32
    %c0_i32_0 = arith.constant 0 : i32
    %c0_i32_1 = arith.constant 0 : i32
    return %c0_i32, %c0_i32_0 : i32, i32
  }
  func.func @transform_27(%arg0: i32) -> (i32, i32) {
    %c0_i32 = arith.constant 0 : i32
    %c0_i32_0 = arith.constant 0 : i32
    %c0_i32_1 = arith.constant 0 : i32
    return %c0_i32, %c0_i32_0 : i32, i32
  }
  func.func @transform_28(%arg0: i32) -> (i32, i32) {
    %c0_i32 = arith.constant 0 : i32
    %c0_i32_0 = arith.constant 0 : i32
    %c0_i32_1 = arith.constant 0 : i32
    return %c0_i32, %c0_i32_0 : i32, i32
  }
  func.func @transform_29(%arg0: i32) -> (i32, i32) {
    %c0_i32 = arith.constant 0 : i32
    %c0_i32_0 = arith.constant 0 : i32
    %c0_i32_1 = arith.constant 0 : i32
    return %c0_i32, %c0_i32_0 : i32, i32
  }
  func.func @transform_30(%arg0: i32) -> (i32, i32) {
    %c0_i32 = arith.constant 0 : i32
    %c0_i32_0 = arith.constant 0 : i32
    return %arg0, %c0_i32 : i32, i32
  }
  func.func @transform_31(%arg0: i32) -> (i32, i32) {
    %c0_i32 = arith.constant 0 : i32
    %c0_i32_0 = arith.constant 0 : i32
    return %arg0, %c0_i32 : i32, i32
  }
}

module attributes {stable_mosaic.version = 11 : i64} {
  func.func @_node_update_kernel(%arg0: i32, %arg1: memref<16x32xf32, #tpu.memory_space<vmem>>, %arg2: memref<16x12xf32, #tpu.memory_space<vmem>>, %arg3: memref<16x32xf32, #tpu.memory_space<vmem>>, %arg4: memref<16x12xf32, #tpu.memory_space<vmem>>, %arg5: memref<16x1xf32, #tpu.memory_space<vmem>>, %arg6: memref<1x32xf32, #tpu.memory_space<vmem>>, %arg7: memref<1x32xf32, #tpu.memory_space<vmem>>, %arg8: memref<12x4xf32, #tpu.memory_space<vmem>>, %arg9: memref<12x24xf32, #tpu.memory_space<vmem>>, %arg10: memref<32x128xf32, #tpu.memory_space<vmem>>, %arg11: memref<8x128xf32, #tpu.memory_space<vmem>>, %arg12: memref<1x128xf32, #tpu.memory_space<vmem>>, %arg13: memref<24x8xf32, #tpu.memory_space<vmem>>, %arg14: memref<24x24xf32, #tpu.memory_space<vmem>>, %arg15: memref<24x24xf32, #tpu.memory_space<vmem>>, %arg16: memref<24x24xf32, #tpu.memory_space<vmem>>, %arg17: memref<128x32xf32, #tpu.memory_space<vmem>>, %arg18: memref<8x32xf32, #tpu.memory_space<vmem>>, %arg19: memref<1x32xf32, #tpu.memory_space<vmem>>, %arg20: memref<24x8xf32, #tpu.memory_space<vmem>>, %arg21: memref<24x12xf32, #tpu.memory_space<vmem>>, %arg22: memref<1x32xf32, #tpu.memory_space<vmem>>, %arg23: memref<1x32xf32, #tpu.memory_space<vmem>>, %arg24: memref<12x4xf32, #tpu.memory_space<vmem>>, %arg25: memref<16x32xf32, #tpu.memory_space<vmem>>, %arg26: memref<16x12xf32, #tpu.memory_space<vmem>>) attributes {dimension_semantics = [#tpu.dimension_semantics<parallel>], iteration_bounds = array<i64: 2>, scalar_prefetch = 0 : i64, scratch_operands = 0 : i64, tpu.core_type = #tpu.core_type<tc>, window_params = [{transform_indices = @transform_0, window_bounds = array<i64: 16, 32>}, {transform_indices = @transform_1, window_bounds = array<i64: 16, 12>}, {transform_indices = @transform_2, window_bounds = array<i64: 16, 32>}, {transform_indices = @transform_3, window_bounds = array<i64: 16, 12>}, {transform_indices = @transform_4, window_bounds = array<i64: 16, 1>}, {pipeline_mode = #tpu.pipeline_mode<synchronous>, transform_indices = @transform_5, window_bounds = array<i64: 1, 32>}, {pipeline_mode = #tpu.pipeline_mode<synchronous>, transform_indices = @transform_6, window_bounds = array<i64: 1, 32>}, {pipeline_mode = #tpu.pipeline_mode<synchronous>, transform_indices = @transform_7, window_bounds = array<i64: 12, 4>}, {pipeline_mode = #tpu.pipeline_mode<synchronous>, transform_indices = @transform_8, window_bounds = array<i64: 12, 24>}, {pipeline_mode = #tpu.pipeline_mode<synchronous>, transform_indices = @transform_9, window_bounds = array<i64: 32, 128>}, {pipeline_mode = #tpu.pipeline_mode<synchronous>, transform_indices = @transform_10, window_bounds = array<i64: 8, 128>}, {pipeline_mode = #tpu.pipeline_mode<synchronous>, transform_indices = @transform_11, window_bounds = array<i64: 1, 128>}, {pipeline_mode = #tpu.pipeline_mode<synchronous>, transform_indices = @transform_12, window_bounds = array<i64: 24, 8>}, {pipeline_mode = #tpu.pipeline_mode<synchronous>, transform_indices = @transform_13, window_bounds = array<i64: 24, 24>}, {pipeline_mode = #tpu.pipeline_mode<synchronous>, transform_indices = @transform_14, window_bounds = array<i64: 24, 24>}, {pipeline_mode = #tpu.pipeline_mode<synchronous>, transform_indices = @transform_15, window_bounds = array<i64: 24, 24>}, {pipeline_mode = #tpu.pipeline_mode<synchronous>, transform_indices = @transform_16, window_bounds = array<i64: 128, 32>}, {pipeline_mode = #tpu.pipeline_mode<synchronous>, transform_indices = @transform_17, window_bounds = array<i64: 8, 32>}, {pipeline_mode = #tpu.pipeline_mode<synchronous>, transform_indices = @transform_18, window_bounds = array<i64: 1, 32>}, {pipeline_mode = #tpu.pipeline_mode<synchronous>, transform_indices = @transform_19, window_bounds = array<i64: 24, 8>}, {pipeline_mode = #tpu.pipeline_mode<synchronous>, transform_indices = @transform_20, window_bounds = array<i64: 24, 12>}, {pipeline_mode = #tpu.pipeline_mode<synchronous>, transform_indices = @transform_21, window_bounds = array<i64: 1, 32>}, {pipeline_mode = #tpu.pipeline_mode<synchronous>, transform_indices = @transform_22, window_bounds = array<i64: 1, 32>}, {pipeline_mode = #tpu.pipeline_mode<synchronous>, transform_indices = @transform_23, window_bounds = array<i64: 12, 4>}, {transform_indices = @transform_24, window_bounds = array<i64: 16, 32>}, {transform_indices = @transform_25, window_bounds = array<i64: 16, 12>}]} {
    %c0 = arith.constant 0 : index
    %c0_0 = arith.constant 0 : index
    %0 = vector.load %arg6[%c0, %c0_0] : memref<1x32xf32, #tpu.memory_space<vmem>>, vector<1x32xf32>
    %c0_1 = arith.constant 0 : index
    %c0_2 = arith.constant 0 : index
    %1 = vector.load %arg7[%c0_1, %c0_2] : memref<1x32xf32, #tpu.memory_space<vmem>>, vector<1x32xf32>
    %c0_3 = arith.constant 0 : index
    %c0_4 = arith.constant 0 : index
    %2 = vector.load %arg8[%c0_3, %c0_4] : memref<12x4xf32, #tpu.memory_space<vmem>>, vector<12x4xf32>
    %c0_5 = arith.constant 0 : index
    %c0_6 = arith.constant 0 : index
    %3 = vector.load %arg9[%c0_5, %c0_6] : memref<12x24xf32, #tpu.memory_space<vmem>>, vector<12x24xf32>
    %c0_7 = arith.constant 0 : index
    %c0_8 = arith.constant 0 : index
    %4 = vector.load %arg10[%c0_7, %c0_8] : memref<32x128xf32, #tpu.memory_space<vmem>>, vector<32x128xf32>
    %c0_9 = arith.constant 0 : index
    %c0_10 = arith.constant 0 : index
    %5 = vector.load %arg11[%c0_9, %c0_10] : memref<8x128xf32, #tpu.memory_space<vmem>>, vector<8x128xf32>
    %c0_11 = arith.constant 0 : index
    %c0_12 = arith.constant 0 : index
    %6 = vector.load %arg12[%c0_11, %c0_12] : memref<1x128xf32, #tpu.memory_space<vmem>>, vector<1x128xf32>
    %c0_13 = arith.constant 0 : index
    %c0_14 = arith.constant 0 : index
    %7 = vector.load %arg13[%c0_13, %c0_14] : memref<24x8xf32, #tpu.memory_space<vmem>>, vector<24x8xf32>
    %c0_15 = arith.constant 0 : index
    %c0_16 = arith.constant 0 : index
    %8 = vector.load %arg14[%c0_15, %c0_16] : memref<24x24xf32, #tpu.memory_space<vmem>>, vector<24x24xf32>
    %c0_17 = arith.constant 0 : index
    %c0_18 = arith.constant 0 : index
    %9 = vector.load %arg15[%c0_17, %c0_18] : memref<24x24xf32, #tpu.memory_space<vmem>>, vector<24x24xf32>
    %c0_19 = arith.constant 0 : index
    %c0_20 = arith.constant 0 : index
    %10 = vector.load %arg16[%c0_19, %c0_20] : memref<24x24xf32, #tpu.memory_space<vmem>>, vector<24x24xf32>
    %c0_21 = arith.constant 0 : index
    %c0_22 = arith.constant 0 : index
    %11 = vector.load %arg17[%c0_21, %c0_22] : memref<128x32xf32, #tpu.memory_space<vmem>>, vector<128x32xf32>
    %c0_23 = arith.constant 0 : index
    %c0_24 = arith.constant 0 : index
    %12 = vector.load %arg18[%c0_23, %c0_24] : memref<8x32xf32, #tpu.memory_space<vmem>>, vector<8x32xf32>
    %c0_25 = arith.constant 0 : index
    %c0_26 = arith.constant 0 : index
    %13 = vector.load %arg19[%c0_25, %c0_26] : memref<1x32xf32, #tpu.memory_space<vmem>>, vector<1x32xf32>
    %c0_27 = arith.constant 0 : index
    %c0_28 = arith.constant 0 : index
    %14 = vector.load %arg20[%c0_27, %c0_28] : memref<24x8xf32, #tpu.memory_space<vmem>>, vector<24x8xf32>
    %c0_29 = arith.constant 0 : index
    %c0_30 = arith.constant 0 : index
    %15 = vector.load %arg21[%c0_29, %c0_30] : memref<24x12xf32, #tpu.memory_space<vmem>>, vector<24x12xf32>
    %c0_31 = arith.constant 0 : index
    %c0_32 = arith.constant 0 : index
    %16 = vector.load %arg22[%c0_31, %c0_32] : memref<1x32xf32, #tpu.memory_space<vmem>>, vector<1x32xf32>
    %c0_33 = arith.constant 0 : index
    %c0_34 = arith.constant 0 : index
    %17 = vector.load %arg23[%c0_33, %c0_34] : memref<1x32xf32, #tpu.memory_space<vmem>>, vector<1x32xf32>
    %c0_35 = arith.constant 0 : index
    %c0_36 = arith.constant 0 : index
    %18 = vector.load %arg24[%c0_35, %c0_36] : memref<12x4xf32, #tpu.memory_space<vmem>>, vector<12x4xf32>
    %c0_37 = arith.constant 0 : index
    %c0_38 = arith.constant 0 : index
    %19 = vector.load %arg5[%c0_37, %c0_38] : memref<16x1xf32, #tpu.memory_space<vmem>>, vector<16x1xf32>
    %c0_39 = arith.constant 0 : index
    %c0_40 = arith.constant 0 : index
    %20 = vector.load %arg1[%c0_39, %c0_40] : memref<16x32xf32, #tpu.memory_space<vmem>>, vector<16x32xf32>
    %c0_41 = arith.constant 0 : index
    %c0_42 = arith.constant 0 : index
    %21 = vector.load %arg3[%c0_41, %c0_42] : memref<16x32xf32, #tpu.memory_space<vmem>>, vector<16x32xf32>
    %22 = vector.broadcast %19 : vector<16x1xf32> to vector<16x32xf32>
    %23 = arith.mulf %21, %22 : vector<16x32xf32>
    %24 = arith.addf %20, %23 : vector<16x32xf32>
    %c0_43 = arith.constant 0 : index
    %c0_44 = arith.constant 0 : index
    %25 = vector.load %arg2[%c0_43, %c0_44] : memref<16x12xf32, #tpu.memory_space<vmem>>, vector<16x12xf32>
    %c0_45 = arith.constant 0 : index
    %c0_46 = arith.constant 0 : index
    %26 = vector.load %arg4[%c0_45, %c0_46] : memref<16x12xf32, #tpu.memory_space<vmem>>, vector<16x12xf32>
    %27 = vector.broadcast %19 : vector<16x1xf32> to vector<16x12xf32>
    %28 = arith.mulf %26, %27 : vector<16x12xf32>
    %29 = arith.addf %25, %28 : vector<16x12xf32>
    %cst = arith.constant dense<0.000000e+00> : vector<16xf32>
    %30 = vector.multi_reduction <add>, %24, %cst [1] : vector<16x32xf32> to vector<16xf32>
    %31 = vector.shape_cast %30 : vector<16xf32> to vector<16x1xf32>
    %cst_47 = arith.constant 3.200000e+01 : f32
    %32 = vector.broadcast %cst_47 : f32 to vector<16x1xf32>
    %33 = arith.divf %31, %32 : vector<16x1xf32>
    %34 = vector.broadcast %33 : vector<16x1xf32> to vector<16x32xf32>
    %35 = arith.subf %24, %34 : vector<16x32xf32>
    %36 = arith.mulf %35, %35 : vector<16x32xf32>
    %cst_48 = arith.constant dense<0.000000e+00> : vector<16xf32>
    %37 = vector.multi_reduction <add>, %36, %cst_48 [1] : vector<16x32xf32> to vector<16xf32>
    %38 = vector.shape_cast %37 : vector<16xf32> to vector<16x1xf32>
    %cst_49 = arith.constant 3.200000e+01 : f32
    %39 = vector.broadcast %cst_49 : f32 to vector<16x1xf32>
    %40 = arith.divf %38, %39 : vector<16x1xf32>
    %cst_50 = arith.constant 9.99999974E-6 : f32
    %41 = vector.broadcast %cst_50 : f32 to vector<16x1xf32>
    %42 = arith.addf %40, %41 : vector<16x1xf32>
    %43 = math.rsqrt %42 : vector<16x1xf32>
    %44 = vector.broadcast %43 : vector<16x1xf32> to vector<16x32xf32>
    %45 = arith.mulf %35, %44 : vector<16x32xf32>
    %46 = vector.broadcast %0 : vector<1x32xf32> to vector<16x32xf32>
    %47 = arith.mulf %45, %46 : vector<16x32xf32>
    %48 = vector.broadcast %1 : vector<1x32xf32> to vector<16x32xf32>
    %49 = arith.addf %47, %48 : vector<16x32xf32>
    %50 = arith.mulf %29, %29 : vector<16x12xf32>
    %cst_51 = arith.constant dense<0.000000e+00> : vector<16x4xf32>
    %51 = tpu.matmul %50, %2, %cst_51 {dimension_numbers = #tpu.dot_dimension_numbers<[1], [0], [0], [1], [0, 0, 1, 1], [], []>} : vector<16x12xf32>, vector<12x4xf32>, vector<16x4xf32> -> vector<16x4xf32>
    %cst_52 = arith.constant 9.99999993E-9 : f32
    %52 = vector.broadcast %cst_52 : f32 to vector<16x4xf32>
    %53 = arith.maximumf %51, %52 : vector<16x4xf32>
    %cst_53 = arith.constant dense<0.000000e+00> : vector<16xf32>
    %54 = vector.multi_reduction <add>, %53, %cst_53 [1] : vector<16x4xf32> to vector<16xf32>
    %55 = vector.shape_cast %54 : vector<16xf32> to vector<16x1xf32>
    %cst_54 = arith.constant 4.000000e+00 : f32
    %56 = vector.broadcast %cst_54 : f32 to vector<16x1xf32>
    %57 = arith.divf %55, %56 : vector<16x1xf32>
    %58 = math.rsqrt %57 : vector<16x1xf32>
    %59 = vector.broadcast %58 : vector<16x1xf32> to vector<16x12xf32>
    %60 = arith.mulf %29, %59 : vector<16x12xf32>
    %cst_55 = arith.constant dense<0.000000e+00> : vector<16x24xf32>
    %61 = tpu.matmul %60, %3, %cst_55 {dimension_numbers = #tpu.dot_dimension_numbers<[1], [0], [0], [1], [0, 0, 1, 1], [], []>} : vector<16x12xf32>, vector<12x24xf32>, vector<16x24xf32> -> vector<16x24xf32>
    %62 = arith.mulf %61, %61 : vector<16x24xf32>
    %cst_56 = arith.constant dense<0.000000e+00> : vector<16x8xf32>
    %63 = tpu.matmul %62, %7, %cst_56 {dimension_numbers = #tpu.dot_dimension_numbers<[1], [0], [0], [1], [0, 0, 1, 1], [], []>} : vector<16x24xf32>, vector<24x8xf32>, vector<16x8xf32> -> vector<16x8xf32>
    %cst_57 = arith.constant 9.99999993E-9 : f32
    %64 = vector.broadcast %cst_57 : f32 to vector<16x8xf32>
    %65 = arith.maximumf %63, %64 : vector<16x8xf32>
    %66 = math.sqrt %65 : vector<16x8xf32>
    %cst_58 = arith.constant dense<0.000000e+00> : vector<16x128xf32>
    %67 = tpu.matmul %49, %4, %cst_58 {dimension_numbers = #tpu.dot_dimension_numbers<[1], [0], [0], [1], [0, 0, 1, 1], [], []>} : vector<16x32xf32>, vector<32x128xf32>, vector<16x128xf32> -> vector<16x128xf32>
    %cst_59 = arith.constant dense<0.000000e+00> : vector<16x128xf32>
    %68 = tpu.matmul %66, %5, %cst_59 {dimension_numbers = #tpu.dot_dimension_numbers<[1], [0], [0], [1], [0, 0, 1, 1], [], []>} : vector<16x8xf32>, vector<8x128xf32>, vector<16x128xf32> -> vector<16x128xf32>
    %69 = arith.addf %67, %68 : vector<16x128xf32>
    %70 = vector.broadcast %6 : vector<1x128xf32> to vector<16x128xf32>
    %71 = arith.addf %69, %70 : vector<16x128xf32>
    %cst_60 = arith.constant 0.000000e+00 : f32
    %72 = vector.broadcast %cst_60 : f32 to vector<16x128xf32>
    %73 = arith.maximumf %71, %72 : vector<16x128xf32>
    %cst_61 = arith.constant dense<0.000000e+00> : vector<16x24xf32>
    %74 = tpu.matmul %61, %8, %cst_61 {dimension_numbers = #tpu.dot_dimension_numbers<[1], [0], [0], [1], [0, 0, 1, 1], [], []>} : vector<16x24xf32>, vector<24x24xf32>, vector<16x24xf32> -> vector<16x24xf32>
    %75 = arith.mulf %74, %74 : vector<16x24xf32>
    %cst_62 = arith.constant dense<0.000000e+00> : vector<16x24xf32>
    %76 = tpu.matmul %75, %9, %cst_62 {dimension_numbers = #tpu.dot_dimension_numbers<[1], [0], [0], [1], [0, 0, 1, 1], [], []>} : vector<16x24xf32>, vector<24x24xf32>, vector<16x24xf32> -> vector<16x24xf32>
    %cst_63 = arith.constant 9.99999993E-9 : f32
    %77 = vector.broadcast %cst_63 : f32 to vector<16x24xf32>
    %78 = arith.maximumf %76, %77 : vector<16x24xf32>
    %79 = math.sqrt %78 : vector<16x24xf32>
    %80 = arith.negf %79 : vector<16x24xf32>
    %81 = math.exp %80 : vector<16x24xf32>
    %cst_64 = arith.constant 1.000000e+00 : f32
    %82 = vector.broadcast %cst_64 : f32 to vector<16x24xf32>
    %83 = arith.addf %82, %81 : vector<16x24xf32>
    %84 = arith.divf %82, %83 : vector<16x24xf32>
    %85 = arith.mulf %74, %84 : vector<16x24xf32>
    %cst_65 = arith.constant dense<0.000000e+00> : vector<16x24xf32>
    %86 = tpu.matmul %85, %10, %cst_65 {dimension_numbers = #tpu.dot_dimension_numbers<[1], [0], [0], [1], [0, 0, 1, 1], [], []>} : vector<16x24xf32>, vector<24x24xf32>, vector<16x24xf32> -> vector<16x24xf32>
    %87 = arith.mulf %86, %86 : vector<16x24xf32>
    %cst_66 = arith.constant dense<0.000000e+00> : vector<16x8xf32>
    %88 = tpu.matmul %87, %14, %cst_66 {dimension_numbers = #tpu.dot_dimension_numbers<[1], [0], [0], [1], [0, 0, 1, 1], [], []>} : vector<16x24xf32>, vector<24x8xf32>, vector<16x8xf32> -> vector<16x8xf32>
    %cst_67 = arith.constant 9.99999993E-9 : f32
    %89 = vector.broadcast %cst_67 : f32 to vector<16x8xf32>
    %90 = arith.maximumf %88, %89 : vector<16x8xf32>
    %91 = math.sqrt %90 : vector<16x8xf32>
    %cst_68 = arith.constant dense<0.000000e+00> : vector<16x32xf32>
    %92 = tpu.matmul %73, %11, %cst_68 {dimension_numbers = #tpu.dot_dimension_numbers<[1], [0], [0], [1], [0, 0, 1, 1], [], []>} : vector<16x128xf32>, vector<128x32xf32>, vector<16x32xf32> -> vector<16x32xf32>
    %cst_69 = arith.constant dense<0.000000e+00> : vector<16x32xf32>
    %93 = tpu.matmul %91, %12, %cst_69 {dimension_numbers = #tpu.dot_dimension_numbers<[1], [0], [0], [1], [0, 0, 1, 1], [], []>} : vector<16x8xf32>, vector<8x32xf32>, vector<16x32xf32> -> vector<16x32xf32>
    %94 = arith.addf %92, %93 : vector<16x32xf32>
    %95 = vector.broadcast %13 : vector<1x32xf32> to vector<16x32xf32>
    %96 = arith.addf %94, %95 : vector<16x32xf32>
    %cst_70 = arith.constant dense<0.000000e+00> : vector<16x12xf32>
    %97 = tpu.matmul %86, %15, %cst_70 {dimension_numbers = #tpu.dot_dimension_numbers<[1], [0], [0], [1], [0, 0, 1, 1], [], []>} : vector<16x24xf32>, vector<24x12xf32>, vector<16x12xf32> -> vector<16x12xf32>
    %98 = arith.addf %49, %96 : vector<16x32xf32>
    %99 = arith.addf %60, %97 : vector<16x12xf32>
    %cst_71 = arith.constant dense<0.000000e+00> : vector<16xf32>
    %100 = vector.multi_reduction <add>, %98, %cst_71 [1] : vector<16x32xf32> to vector<16xf32>
    %101 = vector.shape_cast %100 : vector<16xf32> to vector<16x1xf32>
    %cst_72 = arith.constant 3.200000e+01 : f32
    %102 = vector.broadcast %cst_72 : f32 to vector<16x1xf32>
    %103 = arith.divf %101, %102 : vector<16x1xf32>
    %104 = vector.broadcast %103 : vector<16x1xf32> to vector<16x32xf32>
    %105 = arith.subf %98, %104 : vector<16x32xf32>
    %106 = arith.mulf %105, %105 : vector<16x32xf32>
    %cst_73 = arith.constant dense<0.000000e+00> : vector<16xf32>
    %107 = vector.multi_reduction <add>, %106, %cst_73 [1] : vector<16x32xf32> to vector<16xf32>
    %108 = vector.shape_cast %107 : vector<16xf32> to vector<16x1xf32>
    %cst_74 = arith.constant 3.200000e+01 : f32
    %109 = vector.broadcast %cst_74 : f32 to vector<16x1xf32>
    %110 = arith.divf %108, %109 : vector<16x1xf32>
    %cst_75 = arith.constant 9.99999974E-6 : f32
    %111 = vector.broadcast %cst_75 : f32 to vector<16x1xf32>
    %112 = arith.addf %110, %111 : vector<16x1xf32>
    %113 = math.rsqrt %112 : vector<16x1xf32>
    %114 = vector.broadcast %113 : vector<16x1xf32> to vector<16x32xf32>
    %115 = arith.mulf %105, %114 : vector<16x32xf32>
    %116 = vector.broadcast %16 : vector<1x32xf32> to vector<16x32xf32>
    %117 = arith.mulf %115, %116 : vector<16x32xf32>
    %118 = vector.broadcast %17 : vector<1x32xf32> to vector<16x32xf32>
    %119 = arith.addf %117, %118 : vector<16x32xf32>
    %120 = arith.mulf %99, %99 : vector<16x12xf32>
    %cst_76 = arith.constant dense<0.000000e+00> : vector<16x4xf32>
    %121 = tpu.matmul %120, %18, %cst_76 {dimension_numbers = #tpu.dot_dimension_numbers<[1], [0], [0], [1], [0, 0, 1, 1], [], []>} : vector<16x12xf32>, vector<12x4xf32>, vector<16x4xf32> -> vector<16x4xf32>
    %cst_77 = arith.constant 9.99999993E-9 : f32
    %122 = vector.broadcast %cst_77 : f32 to vector<16x4xf32>
    %123 = arith.maximumf %121, %122 : vector<16x4xf32>
    %cst_78 = arith.constant dense<0.000000e+00> : vector<16xf32>
    %124 = vector.multi_reduction <add>, %123, %cst_78 [1] : vector<16x4xf32> to vector<16xf32>
    %125 = vector.shape_cast %124 : vector<16xf32> to vector<16x1xf32>
    %cst_79 = arith.constant 4.000000e+00 : f32
    %126 = vector.broadcast %cst_79 : f32 to vector<16x1xf32>
    %127 = arith.divf %125, %126 : vector<16x1xf32>
    %128 = math.rsqrt %127 : vector<16x1xf32>
    %129 = vector.broadcast %128 : vector<16x1xf32> to vector<16x12xf32>
    %130 = arith.mulf %99, %129 : vector<16x12xf32>
    %c0_80 = arith.constant 0 : index
    %c0_81 = arith.constant 0 : index
    %131 = vector.load %arg25[%c0_80, %c0_81] : memref<16x32xf32, #tpu.memory_space<vmem>>, vector<16x32xf32>
    tpu.vector_store %arg25[%c0_80, %c0_81], %119 {strides = array<i32>} : memref<16x32xf32, #tpu.memory_space<vmem>>, vector<16x32xf32>,
    %c0_82 = arith.constant 0 : index
    %c0_83 = arith.constant 0 : index
    %132 = vector.load %arg26[%c0_82, %c0_83] : memref<16x12xf32, #tpu.memory_space<vmem>>, vector<16x12xf32>
    tpu.vector_store %arg26[%c0_82, %c0_83], %130 {strides = array<i32>} : memref<16x12xf32, #tpu.memory_space<vmem>>, vector<16x12xf32>,
    return
  }
  func.func @transform_0(%arg0: i32) -> (i32, i32) {
    %c0_i32 = arith.constant 0 : i32
    %c0_i32_0 = arith.constant 0 : i32
    return %arg0, %c0_i32 : i32, i32
  }
  func.func @transform_1(%arg0: i32) -> (i32, i32) {
    %c0_i32 = arith.constant 0 : i32
    %c0_i32_0 = arith.constant 0 : i32
    return %arg0, %c0_i32 : i32, i32
  }
  func.func @transform_2(%arg0: i32) -> (i32, i32) {
    %c0_i32 = arith.constant 0 : i32
    %c0_i32_0 = arith.constant 0 : i32
    return %arg0, %c0_i32 : i32, i32
  }
  func.func @transform_3(%arg0: i32) -> (i32, i32) {
    %c0_i32 = arith.constant 0 : i32
    %c0_i32_0 = arith.constant 0 : i32
    return %arg0, %c0_i32 : i32, i32
  }
  func.func @transform_4(%arg0: i32) -> (i32, i32) {
    %c0_i32 = arith.constant 0 : i32
    %c0_i32_0 = arith.constant 0 : i32
    return %arg0, %c0_i32 : i32, i32
  }
  func.func @transform_5(%arg0: i32) -> (i32, i32) {
    %c0_i32 = arith.constant 0 : i32
    %c0_i32_0 = arith.constant 0 : i32
    %c0_i32_1 = arith.constant 0 : i32
    return %c0_i32, %c0_i32_0 : i32, i32
  }
  func.func @transform_6(%arg0: i32) -> (i32, i32) {
    %c0_i32 = arith.constant 0 : i32
    %c0_i32_0 = arith.constant 0 : i32
    %c0_i32_1 = arith.constant 0 : i32
    return %c0_i32, %c0_i32_0 : i32, i32
  }
  func.func @transform_7(%arg0: i32) -> (i32, i32) {
    %c0_i32 = arith.constant 0 : i32
    %c0_i32_0 = arith.constant 0 : i32
    %c0_i32_1 = arith.constant 0 : i32
    return %c0_i32, %c0_i32_0 : i32, i32
  }
  func.func @transform_8(%arg0: i32) -> (i32, i32) {
    %c0_i32 = arith.constant 0 : i32
    %c0_i32_0 = arith.constant 0 : i32
    %c0_i32_1 = arith.constant 0 : i32
    return %c0_i32, %c0_i32_0 : i32, i32
  }
  func.func @transform_9(%arg0: i32) -> (i32, i32) {
    %c0_i32 = arith.constant 0 : i32
    %c0_i32_0 = arith.constant 0 : i32
    %c0_i32_1 = arith.constant 0 : i32
    return %c0_i32, %c0_i32_0 : i32, i32
  }
  func.func @transform_10(%arg0: i32) -> (i32, i32) {
    %c0_i32 = arith.constant 0 : i32
    %c0_i32_0 = arith.constant 0 : i32
    %c0_i32_1 = arith.constant 0 : i32
    return %c0_i32, %c0_i32_0 : i32, i32
  }
  func.func @transform_11(%arg0: i32) -> (i32, i32) {
    %c0_i32 = arith.constant 0 : i32
    %c0_i32_0 = arith.constant 0 : i32
    %c0_i32_1 = arith.constant 0 : i32
    return %c0_i32, %c0_i32_0 : i32, i32
  }
  func.func @transform_12(%arg0: i32) -> (i32, i32) {
    %c0_i32 = arith.constant 0 : i32
    %c0_i32_0 = arith.constant 0 : i32
    %c0_i32_1 = arith.constant 0 : i32
    return %c0_i32, %c0_i32_0 : i32, i32
  }
  func.func @transform_13(%arg0: i32) -> (i32, i32) {
    %c0_i32 = arith.constant 0 : i32
    %c0_i32_0 = arith.constant 0 : i32
    %c0_i32_1 = arith.constant 0 : i32
    return %c0_i32, %c0_i32_0 : i32, i32
  }
  func.func @transform_14(%arg0: i32) -> (i32, i32) {
    %c0_i32 = arith.constant 0 : i32
    %c0_i32_0 = arith.constant 0 : i32
    %c0_i32_1 = arith.constant 0 : i32
    return %c0_i32, %c0_i32_0 : i32, i32
  }
  func.func @transform_15(%arg0: i32) -> (i32, i32) {
    %c0_i32 = arith.constant 0 : i32
    %c0_i32_0 = arith.constant 0 : i32
    %c0_i32_1 = arith.constant 0 : i32
    return %c0_i32, %c0_i32_0 : i32, i32
  }
  func.func @transform_16(%arg0: i32) -> (i32, i32) {
    %c0_i32 = arith.constant 0 : i32
    %c0_i32_0 = arith.constant 0 : i32
    %c0_i32_1 = arith.constant 0 : i32
    return %c0_i32, %c0_i32_0 : i32, i32
  }
  func.func @transform_17(%arg0: i32) -> (i32, i32) {
    %c0_i32 = arith.constant 0 : i32
    %c0_i32_0 = arith.constant 0 : i32
    %c0_i32_1 = arith.constant 0 : i32
    return %c0_i32, %c0_i32_0 : i32, i32
  }
  func.func @transform_18(%arg0: i32) -> (i32, i32) {
    %c0_i32 = arith.constant 0 : i32
    %c0_i32_0 = arith.constant 0 : i32
    %c0_i32_1 = arith.constant 0 : i32
    return %c0_i32, %c0_i32_0 : i32, i32
  }
  func.func @transform_19(%arg0: i32) -> (i32, i32) {
    %c0_i32 = arith.constant 0 : i32
    %c0_i32_0 = arith.constant 0 : i32
    %c0_i32_1 = arith.constant 0 : i32
    return %c0_i32, %c0_i32_0 : i32, i32
  }
  func.func @transform_20(%arg0: i32) -> (i32, i32) {
    %c0_i32 = arith.constant 0 : i32
    %c0_i32_0 = arith.constant 0 : i32
    %c0_i32_1 = arith.constant 0 : i32
    return %c0_i32, %c0_i32_0 : i32, i32
  }
  func.func @transform_21(%arg0: i32) -> (i32, i32) {
    %c0_i32 = arith.constant 0 : i32
    %c0_i32_0 = arith.constant 0 : i32
    %c0_i32_1 = arith.constant 0 : i32
    return %c0_i32, %c0_i32_0 : i32, i32
  }
  func.func @transform_22(%arg0: i32) -> (i32, i32) {
    %c0_i32 = arith.constant 0 : i32
    %c0_i32_0 = arith.constant 0 : i32
    %c0_i32_1 = arith.constant 0 : i32
    return %c0_i32, %c0_i32_0 : i32, i32
  }
  func.func @transform_23(%arg0: i32) -> (i32, i32) {
    %c0_i32 = arith.constant 0 : i32
    %c0_i32_0 = arith.constant 0 : i32
    %c0_i32_1 = arith.constant 0 : i32
    return %c0_i32, %c0_i32_0 : i32, i32
  }
  func.func @transform_24(%arg0: i32) -> (i32, i32) {
    %c0_i32 = arith.constant 0 : i32
    %c0_i32_0 = arith.constant 0 : i32
    return %arg0, %c0_i32 : i32, i32
  }
  func.func @transform_25(%arg0: i32) -> (i32, i32) {
    %c0_i32 = arith.constant 0 : i32
    %c0_i32_0 = arith.constant 0 : i32
    return %arg0, %c0_i32 : i32, i32
  }
}

module attributes {stable_mosaic.version = 11 : i64} {
  func.func @_wout_kernel(%arg0: i32, %arg1: memref<16x32xf32, #tpu.memory_space<vmem>>, %arg2: memref<16x12xf32, #tpu.memory_space<vmem>>, %arg3: memref<1x32xf32, #tpu.memory_space<vmem>>, %arg4: memref<1x32xf32, #tpu.memory_space<vmem>>, %arg5: memref<12x4xf32, #tpu.memory_space<vmem>>, %arg6: memref<12x12xf32, #tpu.memory_space<vmem>>, %arg7: memref<32x32xf32, #tpu.memory_space<vmem>>, %arg8: memref<4x32xf32, #tpu.memory_space<vmem>>, %arg9: memref<1x32xf32, #tpu.memory_space<vmem>>, %arg10: memref<12x4xf32, #tpu.memory_space<vmem>>, %arg11: memref<16x32xf32, #tpu.memory_space<vmem>>) attributes {dimension_semantics = [#tpu.dimension_semantics<parallel>], iteration_bounds = array<i64: 2>, scalar_prefetch = 0 : i64, scratch_operands = 0 : i64, tpu.core_type = #tpu.core_type<tc>, window_params = [{transform_indices = @transform_0, window_bounds = array<i64: 16, 32>}, {transform_indices = @transform_1, window_bounds = array<i64: 16, 12>}, {pipeline_mode = #tpu.pipeline_mode<synchronous>, transform_indices = @transform_2, window_bounds = array<i64: 1, 32>}, {pipeline_mode = #tpu.pipeline_mode<synchronous>, transform_indices = @transform_3, window_bounds = array<i64: 1, 32>}, {pipeline_mode = #tpu.pipeline_mode<synchronous>, transform_indices = @transform_4, window_bounds = array<i64: 12, 4>}, {pipeline_mode = #tpu.pipeline_mode<synchronous>, transform_indices = @transform_5, window_bounds = array<i64: 12, 12>}, {pipeline_mode = #tpu.pipeline_mode<synchronous>, transform_indices = @transform_6, window_bounds = array<i64: 32, 32>}, {pipeline_mode = #tpu.pipeline_mode<synchronous>, transform_indices = @transform_7, window_bounds = array<i64: 4, 32>}, {pipeline_mode = #tpu.pipeline_mode<synchronous>, transform_indices = @transform_8, window_bounds = array<i64: 1, 32>}, {pipeline_mode = #tpu.pipeline_mode<synchronous>, transform_indices = @transform_9, window_bounds = array<i64: 12, 4>}, {transform_indices = @transform_10, window_bounds = array<i64: 16, 32>}]} {
    %c0 = arith.constant 0 : index
    %c0_0 = arith.constant 0 : index
    %0 = vector.load %arg3[%c0, %c0_0] : memref<1x32xf32, #tpu.memory_space<vmem>>, vector<1x32xf32>
    %c0_1 = arith.constant 0 : index
    %c0_2 = arith.constant 0 : index
    %1 = vector.load %arg4[%c0_1, %c0_2] : memref<1x32xf32, #tpu.memory_space<vmem>>, vector<1x32xf32>
    %c0_3 = arith.constant 0 : index
    %c0_4 = arith.constant 0 : index
    %2 = vector.load %arg5[%c0_3, %c0_4] : memref<12x4xf32, #tpu.memory_space<vmem>>, vector<12x4xf32>
    %c0_5 = arith.constant 0 : index
    %c0_6 = arith.constant 0 : index
    %3 = vector.load %arg6[%c0_5, %c0_6] : memref<12x12xf32, #tpu.memory_space<vmem>>, vector<12x12xf32>
    %c0_7 = arith.constant 0 : index
    %c0_8 = arith.constant 0 : index
    %4 = vector.load %arg7[%c0_7, %c0_8] : memref<32x32xf32, #tpu.memory_space<vmem>>, vector<32x32xf32>
    %c0_9 = arith.constant 0 : index
    %c0_10 = arith.constant 0 : index
    %5 = vector.load %arg8[%c0_9, %c0_10] : memref<4x32xf32, #tpu.memory_space<vmem>>, vector<4x32xf32>
    %c0_11 = arith.constant 0 : index
    %c0_12 = arith.constant 0 : index
    %6 = vector.load %arg9[%c0_11, %c0_12] : memref<1x32xf32, #tpu.memory_space<vmem>>, vector<1x32xf32>
    %c0_13 = arith.constant 0 : index
    %c0_14 = arith.constant 0 : index
    %7 = vector.load %arg10[%c0_13, %c0_14] : memref<12x4xf32, #tpu.memory_space<vmem>>, vector<12x4xf32>
    %c0_15 = arith.constant 0 : index
    %c0_16 = arith.constant 0 : index
    %8 = vector.load %arg1[%c0_15, %c0_16] : memref<16x32xf32, #tpu.memory_space<vmem>>, vector<16x32xf32>
    %c0_17 = arith.constant 0 : index
    %c0_18 = arith.constant 0 : index
    %9 = vector.load %arg2[%c0_17, %c0_18] : memref<16x12xf32, #tpu.memory_space<vmem>>, vector<16x12xf32>
    %cst = arith.constant dense<0.000000e+00> : vector<16xf32>
    %10 = vector.multi_reduction <add>, %8, %cst [1] : vector<16x32xf32> to vector<16xf32>
    %11 = vector.shape_cast %10 : vector<16xf32> to vector<16x1xf32>
    %cst_19 = arith.constant 3.200000e+01 : f32
    %12 = vector.broadcast %cst_19 : f32 to vector<16x1xf32>
    %13 = arith.divf %11, %12 : vector<16x1xf32>
    %14 = vector.broadcast %13 : vector<16x1xf32> to vector<16x32xf32>
    %15 = arith.subf %8, %14 : vector<16x32xf32>
    %16 = arith.mulf %15, %15 : vector<16x32xf32>
    %cst_20 = arith.constant dense<0.000000e+00> : vector<16xf32>
    %17 = vector.multi_reduction <add>, %16, %cst_20 [1] : vector<16x32xf32> to vector<16xf32>
    %18 = vector.shape_cast %17 : vector<16xf32> to vector<16x1xf32>
    %cst_21 = arith.constant 3.200000e+01 : f32
    %19 = vector.broadcast %cst_21 : f32 to vector<16x1xf32>
    %20 = arith.divf %18, %19 : vector<16x1xf32>
    %cst_22 = arith.constant 9.99999974E-6 : f32
    %21 = vector.broadcast %cst_22 : f32 to vector<16x1xf32>
    %22 = arith.addf %20, %21 : vector<16x1xf32>
    %23 = math.rsqrt %22 : vector<16x1xf32>
    %24 = vector.broadcast %23 : vector<16x1xf32> to vector<16x32xf32>
    %25 = arith.mulf %15, %24 : vector<16x32xf32>
    %26 = vector.broadcast %0 : vector<1x32xf32> to vector<16x32xf32>
    %27 = arith.mulf %25, %26 : vector<16x32xf32>
    %28 = vector.broadcast %1 : vector<1x32xf32> to vector<16x32xf32>
    %29 = arith.addf %27, %28 : vector<16x32xf32>
    %30 = arith.mulf %9, %9 : vector<16x12xf32>
    %cst_23 = arith.constant dense<0.000000e+00> : vector<16x4xf32>
    %31 = tpu.matmul %30, %2, %cst_23 {dimension_numbers = #tpu.dot_dimension_numbers<[1], [0], [0], [1], [0, 0, 1, 1], [], []>} : vector<16x12xf32>, vector<12x4xf32>, vector<16x4xf32> -> vector<16x4xf32>
    %cst_24 = arith.constant 9.99999993E-9 : f32
    %32 = vector.broadcast %cst_24 : f32 to vector<16x4xf32>
    %33 = arith.maximumf %31, %32 : vector<16x4xf32>
    %cst_25 = arith.constant dense<0.000000e+00> : vector<16xf32>
    %34 = vector.multi_reduction <add>, %33, %cst_25 [1] : vector<16x4xf32> to vector<16xf32>
    %35 = vector.shape_cast %34 : vector<16xf32> to vector<16x1xf32>
    %cst_26 = arith.constant 4.000000e+00 : f32
    %36 = vector.broadcast %cst_26 : f32 to vector<16x1xf32>
    %37 = arith.divf %35, %36 : vector<16x1xf32>
    %38 = math.rsqrt %37 : vector<16x1xf32>
    %39 = vector.broadcast %38 : vector<16x1xf32> to vector<16x12xf32>
    %40 = arith.mulf %9, %39 : vector<16x12xf32>
    %cst_27 = arith.constant dense<0.000000e+00> : vector<16x12xf32>
    %41 = tpu.matmul %40, %3, %cst_27 {dimension_numbers = #tpu.dot_dimension_numbers<[1], [0], [0], [1], [0, 0, 1, 1], [], []>} : vector<16x12xf32>, vector<12x12xf32>, vector<16x12xf32> -> vector<16x12xf32>
    %42 = arith.mulf %41, %41 : vector<16x12xf32>
    %cst_28 = arith.constant dense<0.000000e+00> : vector<16x4xf32>
    %43 = tpu.matmul %42, %7, %cst_28 {dimension_numbers = #tpu.dot_dimension_numbers<[1], [0], [0], [1], [0, 0, 1, 1], [], []>} : vector<16x12xf32>, vector<12x4xf32>, vector<16x4xf32> -> vector<16x4xf32>
    %cst_29 = arith.constant 9.99999993E-9 : f32
    %44 = vector.broadcast %cst_29 : f32 to vector<16x4xf32>
    %45 = arith.maximumf %43, %44 : vector<16x4xf32>
    %46 = math.sqrt %45 : vector<16x4xf32>
    %cst_30 = arith.constant dense<0.000000e+00> : vector<16x32xf32>
    %47 = tpu.matmul %29, %4, %cst_30 {dimension_numbers = #tpu.dot_dimension_numbers<[1], [0], [0], [1], [0, 0, 1, 1], [], []>} : vector<16x32xf32>, vector<32x32xf32>, vector<16x32xf32> -> vector<16x32xf32>
    %cst_31 = arith.constant dense<0.000000e+00> : vector<16x32xf32>
    %48 = tpu.matmul %46, %5, %cst_31 {dimension_numbers = #tpu.dot_dimension_numbers<[1], [0], [0], [1], [0, 0, 1, 1], [], []>} : vector<16x4xf32>, vector<4x32xf32>, vector<16x32xf32> -> vector<16x32xf32>
    %49 = arith.addf %47, %48 : vector<16x32xf32>
    %50 = vector.broadcast %6 : vector<1x32xf32> to vector<16x32xf32>
    %51 = arith.addf %49, %50 : vector<16x32xf32>
    %cst_32 = arith.constant 0.000000e+00 : f32
    %52 = vector.broadcast %cst_32 : f32 to vector<16x32xf32>
    %53 = arith.maximumf %51, %52 : vector<16x32xf32>
    %c0_33 = arith.constant 0 : index
    %c0_34 = arith.constant 0 : index
    %54 = vector.load %arg11[%c0_33, %c0_34] : memref<16x32xf32, #tpu.memory_space<vmem>>, vector<16x32xf32>
    tpu.vector_store %arg11[%c0_33, %c0_34], %53 {strides = array<i32>} : memref<16x32xf32, #tpu.memory_space<vmem>>, vector<16x32xf32>,
    return
  }
  func.func @transform_0(%arg0: i32) -> (i32, i32) {
    %c0_i32 = arith.constant 0 : i32
    %c0_i32_0 = arith.constant 0 : i32
    return %arg0, %c0_i32 : i32, i32
  }
  func.func @transform_1(%arg0: i32) -> (i32, i32) {
    %c0_i32 = arith.constant 0 : i32
    %c0_i32_0 = arith.constant 0 : i32
    return %arg0, %c0_i32 : i32, i32
  }
  func.func @transform_2(%arg0: i32) -> (i32, i32) {
    %c0_i32 = arith.constant 0 : i32
    %c0_i32_0 = arith.constant 0 : i32
    %c0_i32_1 = arith.constant 0 : i32
    return %c0_i32, %c0_i32_0 : i32, i32
  }
  func.func @transform_3(%arg0: i32) -> (i32, i32) {
    %c0_i32 = arith.constant 0 : i32
    %c0_i32_0 = arith.constant 0 : i32
    %c0_i32_1 = arith.constant 0 : i32
    return %c0_i32, %c0_i32_0 : i32, i32
  }
  func.func @transform_4(%arg0: i32) -> (i32, i32) {
    %c0_i32 = arith.constant 0 : i32
    %c0_i32_0 = arith.constant 0 : i32
    %c0_i32_1 = arith.constant 0 : i32
    return %c0_i32, %c0_i32_0 : i32, i32
  }
  func.func @transform_5(%arg0: i32) -> (i32, i32) {
    %c0_i32 = arith.constant 0 : i32
    %c0_i32_0 = arith.constant 0 : i32
    %c0_i32_1 = arith.constant 0 : i32
    return %c0_i32, %c0_i32_0 : i32, i32
  }
  func.func @transform_6(%arg0: i32) -> (i32, i32) {
    %c0_i32 = arith.constant 0 : i32
    %c0_i32_0 = arith.constant 0 : i32
    %c0_i32_1 = arith.constant 0 : i32
    return %c0_i32, %c0_i32_0 : i32, i32
  }
  func.func @transform_7(%arg0: i32) -> (i32, i32) {
    %c0_i32 = arith.constant 0 : i32
    %c0_i32_0 = arith.constant 0 : i32
    %c0_i32_1 = arith.constant 0 : i32
    return %c0_i32, %c0_i32_0 : i32, i32
  }
  func.func @transform_8(%arg0: i32) -> (i32, i32) {
    %c0_i32 = arith.constant 0 : i32
    %c0_i32_0 = arith.constant 0 : i32
    %c0_i32_1 = arith.constant 0 : i32
    return %c0_i32, %c0_i32_0 : i32, i32
  }
  func.func @transform_9(%arg0: i32) -> (i32, i32) {
    %c0_i32 = arith.constant 0 : i32
    %c0_i32_0 = arith.constant 0 : i32
    %c0_i32_1 = arith.constant 0 : i32
    return %c0_i32, %c0_i32_0 : i32, i32
  }
  func.func @transform_10(%arg0: i32) -> (i32, i32) {
    %c0_i32 = arith.constant 0 : i32
    %c0_i32_0 = arith.constant 0 : i32
    return %arg0, %c0_i32 : i32, i32
  }
}

</mosaic_0001>

<llo_original>
// kernel: structure_encoder_forward.9
$region0: #{structure_encoder_forward.9}
  #allocation0 [shape = 'u32[]', space=smem, size = 0x4, offset = 0x4, fixed_abs, tag = 'smem constant byte address 0x4 - core index']
  #allocation1 [shape = 'u32[72,128]{1,0:T(1,128)}', space=vmem, size = 0x9000, scoped, tag = 'internal scratch']
  %s0 = inlined_call_operand.vmem [shape: f32[32,6], index: 0, kind: input, shape index: {}]
  %s1 = inlined_call_operand.vmem [shape: f32[32,9], index: 1, kind: input, shape index: {}]
  %s2 = inlined_call_operand.vmem [shape: f32[1,6], index: 2, kind: input, shape index: {}]
  %s3 = inlined_call_operand.vmem [shape: f32[1,6], index: 3, kind: input, shape index: {}]
  %s4 = inlined_call_operand.vmem [shape: f32[9,3], index: 4, kind: input, shape index: {}]
  %s5 = inlined_call_operand.vmem [shape: f32[9,12], index: 5, kind: input, shape index: {}]
  %s6 = inlined_call_operand.vmem [shape: f32[6,32], index: 6, kind: input, shape index: {}]
  %s7 = inlined_call_operand.vmem [shape: f32[4,32], index: 7, kind: input, shape index: {}]
  %s8 = inlined_call_operand.vmem [shape: f32[1,32], index: 8, kind: input, shape index: {}]
  %s9 = inlined_call_operand.vmem [shape: f32[12,4], index: 9, kind: input, shape index: {}]
  %s10 = inlined_call_operand.vmem [shape: f32[12,12], index: 10, kind: input, shape index: {}]
  %s11 = inlined_call_operand.vmem [shape: f32[32,32], index: 11, kind: output, shape index: {0}]
  %s12 = inlined_call_operand.vmem [shape: f32[32,12], index: 12, kind: output, shape index: {1}]
  %13 = xla_tuple %s11, %s12
  %s14 = sld [smem:[#allocation0]]
  $region85: #{structure_encoder_forward.9} parent=0
    _
  %s16 = ssub.s32 1, %s14
  %s17 = scalar_select 0, %s16, %s14
  loop: start=0, step=1, limit=4
  $region2: #{structure_encoder_forward.9} parent=0 // loop_pre_header
    _
  $region3: #{structure_encoder_forward.9} parent=0 // loop_header
    %s19 = sphi 0, %s23
    %p20 = scmp.ge.s32.totalorder %s19, 4
    %s29 = sphi 0, %s31
    %s32 = sphi 0, %s29
    %s33 = sphi 0, %s32
    %s49 = sphi 0, %s33
    %s55 = sphi 0, %s57
    %s58 = sphi 0, %s55
    %s59 = sphi 0, %s58
    %s75 = sphi 0, %s59
    %s79 = sphi 0, %s79
    %s81 = sphi 0, %s79
    %s82 = sphi 0, %s81
    %s96 = sphi 0, %s82
    %s100 = sphi 0, %s100
    %s102 = sphi 0, %s100
    %s103 = sphi 0, %s102
    %s117 = sphi 0, %s103
    %s121 = sphi 0, %s121
    %s123 = sphi 0, %s121
    %s124 = sphi 0, %s123
    %s138 = sphi 0, %s124
    %s142 = sphi 0, %s142
    %s144 = sphi 0, %s142
    %s145 = sphi 0, %s144
    %s159 = sphi 0, %s145
    %s163 = sphi 0, %s163
    %s165 = sphi 0, %s163
    %s166 = sphi 0, %s165
    %s180 = sphi 0, %s166
    %s184 = sphi 0, %s184
    %s186 = sphi 0, %s184
    %s187 = sphi 0, %s186
    %s201 = sphi 0, %s187
    %s205 = sphi 0, %s205
    %s207 = sphi 0, %s205
    %s208 = sphi 0, %s207
    %s222 = sphi 0, %s208
    %s226 = sphi 0, %s226
    %s228 = sphi 0, %s226
    %s229 = sphi 0, %s228
    %s243 = sphi 0, %s229
    %s247 = sphi 0, %s247
    %s249 = sphi 0, %s247
    %s250 = sphi 0, %s249
    %s264 = sphi 0, %s250
    %s270 = sphi 0, %s272
    %s273 = sphi 0, %s270
    %s274 = sphi 0, %s273
    %s290 = sphi 0, %s274
    %s296 = sphi 0, %s298
    %s299 = sphi 0, %s296
    %s300 = sphi 0, %s299
    %s316 = sphi 0, %s300
  $region4: #{structure_encoder_forward.9} parent=0 // loop_header_branch
    %22 = sbr.rel (%p20) target = $region8
  $region5: #{structure_encoder_forward.9} parent=0 // loop_body
    %s24 = ssub.s32 %s19, 1
    %s25 = ssub.s32 %s19, 2
    %s26 = sadd.s32 %s19, 1
    %s27 = ssub.s32 %s19, %s26
    %p28 = scmp.eq.s32.totalorder %s27, 0
    %s30 = sadd.s32 %s29, 1
    %s31 = scalar_select %p28, %s29, %s30
    %p34 = pneg %p28
    %p35 = scmp.eq.s32.totalorder %s19, 1
    %p36 = por %p34, %p35
    %p37 = scmp.ne.s32.totalorder %s29, %s32
    %p38 = scmp.eq.s32.totalorder %s19, 0
    %p39 = por %p37, %p38
    %p40 = scmp.ne.s32.totalorder %s29, %s32
    %p41 = scmp.eq.s32.totalorder %s24, 1
    %p42 = por %p40, %p41
    %p43 = scmp.ne.s32.totalorder %s32, %s33
    %p44 = scmp.eq.s32.totalorder %s24, 0
    %p45 = por %p43, %p44
    %p46 = scmp.ne.s32.totalorder %s32, %s33
    %p47 = scmp.eq.s32.totalorder %s25, 1
    %p48 = por %p46, %p47
    %p50 = scmp.ne.s32.totalorder %s33, %s49
    %p51 = scmp.eq.s32.totalorder %s25, 0
    %p52 = por %p50, %p51
    %s53 = ssub.s32 %s19, %s26
    %p54 = scmp.eq.s32.totalorder %s53, 0
    %s56 = sadd.s32 %s55, 1
    %s57 = scalar_select %p54, %s55, %s56
    %p60 = pneg %p54
    %p61 = scmp.eq.s32.totalorder %s19, 1
    %p62 = por %p60, %p61
    %p63 = scmp.ne.s32.totalorder %s55, %s58
    %p64 = scmp.eq.s32.totalorder %s19, 0
    %p65 = por %p63, %p64
    %p66 = scmp.ne.s32.totalorder %s55, %s58
    %p67 = scmp.eq.s32.totalorder %s24, 1
    %p68 = por %p66, %p67
    %p69 = scmp.ne.s32.totalorder %s58, %s59
    %p70 = scmp.eq.s32.totalorder %s24, 0
    %p71 = por %p69, %p70
    %p72 = scmp.ne.s32.totalorder %s58, %s59
    %p73 = scmp.eq.s32.totalorder %s25, 1
    %p74 = por %p72, %p73
    %p76 = scmp.ne.s32.totalorder %s59, %s75
    %p77 = scmp.eq.s32.totalorder %s25, 0
    %p78 = por %p76, %p77
    %s80 = sadd.s32 %s79, 1
    %p83 = scmp.eq.s32.totalorder %s19, 1
    %p84 = scmp.ne.s32.totalorder %s79, %s81
    %p85 = scmp.eq.s32.totalorder %s19, 0
    %p86 = por %p84, %p85
    %p87 = scmp.ne.s32.totalorder %s79, %s81
    %p88 = scmp.eq.s32.totalorder %s24, 1
    %p89 = por %p87, %p88
    %p90 = scmp.ne.s32.totalorder %s81, %s82
    %p91 = scmp.eq.s32.totalorder %s24, 0
    %p92 = por %p90, %p91
    %p93 = scmp.ne.s32.totalorder %s81, %s82
    %p94 = scmp.eq.s32.totalorder %s25, 1
    %p95 = por %p93, %p94
    %p97 = scmp.ne.s32.totalorder %s82, %s96
    %p98 = scmp.eq.s32.totalorder %s25, 0
    %p99 = por %p97, %p98
    %s101 = sadd.s32 %s100, 1
    %p104 = scmp.eq.s32.totalorder %s19, 1
    %p105 = scmp.ne.s32.totalorder %s100, %s102
    %p106 = scmp.eq.s32.totalorder %s19, 0
    %p107 = por %p105, %p106
    %p108 = scmp.ne.s32.totalorder %s100, %s102
    %p109 = scmp.eq.s32.totalorder %s24, 1
    %p110 = por %p108, %p109
    %p111 = scmp.ne.s32.totalorder %s102, %s103
    %p112 = scmp.eq.s32.totalorder %s24, 0
    %p113 = por %p111, %p112
    %p114 = scmp.ne.s32.totalorder %s102, %s103
    %p115 = scmp.eq.s32.totalorder %s25, 1
    %p116 = por %p114, %p115
    %p118 = scmp.ne.s32.totalorder %s103, %s117
    %p119 = scmp.eq.s32.totalorder %s25, 0
    %p120 = por %p118, %p119
    %s122 = sadd.s32 %s121, 1
    %p125 = scmp.eq.s32.totalorder %s19, 1
    %p126 = scmp.ne.s32.totalorder %s121, %s123
    %p127 = scmp.eq.s32.totalorder %s19, 0
    %p128 = por %p126, %p127
    %p129 = scmp.ne.s32.totalorder %s121, %s123
    %p130 = scmp.eq.s32.totalorder %s24, 1
    %p131 = por %p129, %p130
    %p132 = scmp.ne.s32.totalorder %s123, %s124
    %p133 = scmp.eq.s32.totalorder %s24, 0
    %p134 = por %p132, %p133
    %p135 = scmp.ne.s32.totalorder %s123, %s124
    %p136 = scmp.eq.s32.totalorder %s25, 1
    %p137 = por %p135, %p136
    %p139 = scmp.ne.s32.totalorder %s124, %s138
    %p140 = scmp.eq.s32.totalorder %s25, 0
    %p141 = por %p139, %p140
    %s143 = sadd.s32 %s142, 1
    %p146 = scmp.eq.s32.totalorder %s19, 1
    %p147 = scmp.ne.s32.totalorder %s142, %s144
    %p148 = scmp.eq.s32.totalorder %s19, 0
    %p149 = por %p147, %p148
    %p150 = scmp.ne.s32.totalorder %s142, %s144
    %p151 = scmp.eq.s32.totalorder %s24, 1
    %p152 = por %p150, %p151
    %p153 = scmp.ne.s32.totalorder %s144, %s145
    %p154 = scmp.eq.s32.totalorder %s24, 0
    %p155 = por %p153, %p154
    %p156 = scmp.ne.s32.totalorder %s144, %s145
    %p157 = scmp.eq.s32.totalorder %s25, 1
    %p158 = por %p156, %p157
    %p160 = scmp.ne.s32.totalorder %s145, %s159
    %p161 = scmp.eq.s32.totalorder %s25, 0
    %p162 = por %p160, %p161
    %s164 = sadd.s32 %s163, 1
    %p167 = scmp.eq.s32.totalorder %s19, 1
    %p168 = scmp.ne.s32.totalorder %s163, %s165
    %p169 = scmp.eq.s32.totalorder %s19, 0
    %p170 = por %p168, %p169
    %p171 = scmp.ne.s32.totalorder %s163, %s165
    %p172 = scmp.eq.s32.totalorder %s24, 1
    %p173 = por %p171, %p172
    %p174 = scmp.ne.s32.totalorder %s165, %s166
    %p175 = scmp.eq.s32.totalorder %s24, 0
    %p176 = por %p174, %p175
    %p177 = scmp.ne.s32.totalorder %s165, %s166
    %p178 = scmp.eq.s32.totalorder %s25, 1
    %p179 = por %p177, %p178
    %p181 = scmp.ne.s32.totalorder %s166, %s180
    %p182 = scmp.eq.s32.totalorder %s25, 0
    %p183 = por %p181, %p182
    %s185 = sadd.s32 %s184, 1
    %p188 = scmp.eq.s32.totalorder %s19, 1
    %p189 = scmp.ne.s32.totalorder %s184, %s186
    %p190 = scmp.eq.s32.totalorder %s19, 0
    %p191 = por %p189, %p190
    %p192 = scmp.ne.s32.totalorder %s184, %s186
    %p193 = scmp.eq.s32.totalorder %s24, 1
    %p194 = por %p192, %p193
    %p195 = scmp.ne.s32.totalorder %s186, %s187
    %p196 = scmp.eq.s32.totalorder %s24, 0
    %p197 = por %p195, %p196
    %p198 = scmp.ne.s32.totalorder %s186, %s187
    %p199 = scmp.eq.s32.totalorder %s25, 1
    %p200 = por %p198, %p199
    %p202 = scmp.ne.s32.totalorder %s187, %s201
    %p203 = scmp.eq.s32.totalorder %s25, 0
    %p204 = por %p202, %p203
    %s206 = sadd.s32 %s205, 1
    %p209 = scmp.eq.s32.totalorder %s19, 1
    %p210 = scmp.ne.s32.totalorder %s205, %s207
    %p211 = scmp.eq.s32.totalorder %s19, 0
    %p212 = por %p210, %p211
    %p213 = scmp.ne.s32.totalorder %s205, %s207
    %p214 = scmp.eq.s32.totalorder %s24, 1
    %p215 = por %p213, %p214
    %p216 = scmp.ne.s32.totalorder %s207, %s208
    %p217 = scmp.eq.s32.totalorder %s24, 0
    %p218 = por %p216, %p217
    %p219 = scmp.ne.s32.totalorder %s207, %s208
    %p220 = scmp.eq.s32.totalorder %s25, 1
    %p221 = por %p219, %p220
    %p223 = scmp.ne.s32.totalorder %s208, %s222
    %p224 = scmp.eq.s32.totalorder %s25, 0
    %p225 = por %p223, %p224
    %s227 = sadd.s32 %s226, 1
    %p230 = scmp.eq.s32.totalorder %s19, 1
    %p231 = scmp.ne.s32.totalorder %s226, %s228
    %p232 = scmp.eq.s32.totalorder %s19, 0
    %p233 = por %p231, %p232
    %p234 = scmp.ne.s32.totalorder %s226, %s228
    %p235 = scmp.eq.s32.totalorder %s24, 1
    %p236 = por %p234, %p235
    %p237 = scmp.ne.s32.totalorder %s228, %s229
    %p238 = scmp.eq.s32.totalorder %s24, 0
    %p239 = por %p237, %p238
    %p240 = scmp.ne.s32.totalorder %s228, %s229
    %p241 = scmp.eq.s32.totalorder %s25, 1
    %p242 = por %p240, %p241
    %p244 = scmp.ne.s32.totalorder %s229, %s243
    %p245 = scmp.eq.s32.totalorder %s25, 0
    %p246 = por %p244, %p245
    %s248 = sadd.s32 %s247, 1
    %p251 = scmp.eq.s32.totalorder %s19, 1
    %p252 = scmp.ne.s32.totalorder %s247, %s249
    %p253 = scmp.eq.s32.totalorder %s19, 0
    %p254 = por %p252, %p253
    %p255 = scmp.ne.s32.totalorder %s247, %s249
    %p256 = scmp.eq.s32.totalorder %s24, 1
    %p257 = por %p255, %p256
    %p258 = scmp.ne.s32.totalorder %s249, %s250
    %p259 = scmp.eq.s32.totalorder %s24, 0
    %p260 = por %p258, %p259
    %p261 = scmp.ne.s32.totalorder %s249, %s250
    %p262 = scmp.eq.s32.totalorder %s25, 1
    %p263 = por %p261, %p262
    %p265 = scmp.ne.s32.totalorder %s250, %s264
    %p266 = scmp.eq.s32.totalorder %s25, 0
    %p267 = por %p265, %p266
    %s268 = ssub.s32 %s19, %s26
    %p269 = scmp.eq.s32.totalorder %s268, 0
    %s271 = sadd.s32 %s270, 1
    %s272 = scalar_select %p269, %s270, %s271
    %p275 = pneg %p269
    %p276 = scmp.eq.s32.totalorder %s19, 1
    %p277 = por %p275, %p276
    %p278 = scmp.ne.s32.totalorder %s270, %s273
    %p279 = scmp.eq.s32.totalorder %s19, 0
    %p280 = por %p278, %p279
    %p281 = scmp.ne.s32.totalorder %s270, %s273
    %p282 = scmp.eq.s32.totalorder %s24, 1
    %p283 = por %p281, %p282
    %p284 = scmp.ne.s32.totalorder %s273, %s274
    %p285 = scmp.eq.s32.totalorder %s24, 0
    %p286 = por %p284, %p285
    %p287 = scmp.ne.s32.totalorder %s273, %s274
    %p288 = scmp.eq.s32.totalorder %s25, 1
    %p289 = por %p287, %p288
    %p291 = scmp.ne.s32.totalorder %s274, %s290
    %p292 = scmp.eq.s32.totalorder %s25, 0
    %p293 = por %p291, %p292
    %s294 = ssub.s32 %s19, %s26
    %p295 = scmp.eq.s32.totalorder %s294, 0
    %s297 = sadd.s32 %s296, 1
    %s298 = scalar_select %p295, %s296, %s297
    %p301 = pneg %p295
    %p302 = scmp.eq.s32.totalorder %s19, 1
    %p303 = por %p301, %p302
    %p304 = scmp.ne.s32.totalorder %s296, %s299
    %p305 = scmp.eq.s32.totalorder %s19, 0
    %p306 = por %p304, %p305
    %p307 = scmp.ne.s32.totalorder %s296, %s299
    %p308 = scmp.eq.s32.totalorder %s24, 1
    %p309 = por %p307, %p308
    %p310 = scmp.ne.s32.totalorder %s299, %s300
    %p311 = scmp.eq.s32.totalorder %s24, 0
    %p312 = por %p310, %p311
    %p313 = scmp.ne.s32.totalorder %s299, %s300
    %p314 = scmp.eq.s32.totalorder %s25, 1
    %p315 = por %p313, %p314
    %p317 = scmp.ne.s32.totalorder %s300, %s316
    %p318 = scmp.eq.s32.totalorder %s25, 0
    %p319 = por %p317, %p318
    %p320 = scmp.le.s32.totalorder 1, %s19
    %p321 = scmp.lt.s32.totalorder %s19, 3
    %p322 = pnand %p320, %p321
    %p323 = pneg %p322
    // Predicated region
    $region9: #{structure_encoder_forward.9} parent=5 // pred_check
      _
    $region10: #{structure_encoder_forward.9} parent=5 // pred_check_branch
      %325 = sbr.rel (%p322) target = $region12
    $region11: #{structure_encoder_forward.9} parent=5 // pred_region
      %s326 = ssub.s32 %s19, 1
      // Predicated region
      $region13: #{structure_encoder_forward.9} parent=11 // pred_check
        %p327 = pneg %p92
      $region14: #{structure_encoder_forward.9} parent=11 // pred_check_branch
        %329 = sbr.rel (%p327) target = $region16
      $region15: #{structure_encoder_forward.9} parent=11 // pred_region
        _
      $region16: #{structure_encoder_forward.9} parent=11 // pred_fallthru
        _
      // Predicated region
      $region17: #{structure_encoder_forward.9} parent=11 // pred_check
        %p330 = pneg %p113
      $region18: #{structure_encoder_forward.9} parent=11 // pred_check_branch
        %332 = sbr.rel (%p330) target = $region20
      $region19: #{structure_encoder_forward.9} parent=11 // pred_region
        _
      $region20: #{structure_encoder_forward.9} parent=11 // pred_fallthru
        _
      // Predicated region
      $region21: #{structure_encoder_forward.9} parent=11 // pred_check
        %p333 = pneg %p134
      $region22: #{structure_encoder_forward.9} parent=11 // pred_check_branch
        %335 = sbr.rel (%p333) target = $region24
      $region23: #{structure_encoder_forward.9} parent=11 // pred_region
        _
      $region24: #{structure_encoder_forward.9} parent=11 // pred_fallthru
        _
      // Predicated region
      $region25: #{structure_encoder_forward.9} parent=11 // pred_check
        %p336 = pneg %p155
      $region26: #{structure_encoder_forward.9} parent=11 // pred_check_branch
        %338 = sbr.rel (%p336) target = $region28
      $region27: #{structure_encoder_forward.9} parent=11 // pred_region
        _
      $region28: #{structure_encoder_forward.9} parent=11 // pred_fallthru
        _
      // Predicated region
      $region29: #{structure_encoder_forward.9} parent=11 // pred_check
        %p339 = pneg %p176
      $region30: #{structure_encoder_forward.9} parent=11 // pred_check_branch
        %341 = sbr.rel (%p339) target = $region32
      $region31: #{structure_encoder_forward.9} parent=11 // pred_region
        _
      $region32: #{structure_encoder_forward.9} parent=11 // pred_fallthru
        _
      // Predicated region
      $region33: #{structure_encoder_forward.9} parent=11 // pred_check
        %p342 = pneg %p197
      $region34: #{structure_encoder_forward.9} parent=11 // pred_check_branch
        %344 = sbr.rel (%p342) target = $region36
      $region35: #{structure_encoder_forward.9} parent=11 // pred_region
        _
      $region36: #{structure_encoder_forward.9} parent=11 // pred_fallthru
        _
      // Predicated region
      $region37: #{structure_encoder_forward.9} parent=11 // pred_check
        %p345 = pneg %p218
      $region38: #{structure_encoder_forward.9} parent=11 // pred_check_branch
        %347 = sbr.rel (%p345) target = $region40
      $region39: #{structure_encoder_forward.9} parent=11 // pred_region
        _
      $region40: #{structure_encoder_forward.9} parent=11 // pred_fallthru
        _
      // Predicated region
      $region41: #{structure_encoder_forward.9} parent=11 // pred_check
        %p348 = pneg %p239
      $region42: #{structure_encoder_forward.9} parent=11 // pred_check_branch
        %350 = sbr.rel (%p348) target = $region44
      $region43: #{structure_encoder_forward.9} parent=11 // pred_region
        _
      $region44: #{structure_encoder_forward.9} parent=11 // pred_fallthru
        _
      // Predicated region
      $region45: #{structure_encoder_forward.9} parent=11 // pred_check
        %p351 = pneg %p260
      $region46: #{structure_encoder_forward.9} parent=11 // pred_check_branch
        %353 = sbr.rel (%p351) target = $region48
      $region47: #{structure_encoder_forward.9} parent=11 // pred_region
        _
      $region48: #{structure_encoder_forward.9} parent=11 // pred_fallthru
        _
    $region12: #{structure_encoder_forward.9} parent=5 // pred_fallthru
      _
    %p354 = scmp.lt.s32.totalorder %s19, 2
    // Predicated region
    $region49: #{structure_encoder_forward.9} parent=5 // pred_check
      %p355 = pneg %p354
    $region50: #{structure_encoder_forward.9} parent=5 // pred_check_branch
      %357 = sbr.rel (%p355) target = $region52
    $region51: #{structure_encoder_forward.9} parent=5 // pred_region
      // Predicated region
      $region53: #{structure_encoder_forward.9} parent=51 // pred_check
        %p358 = pneg %p39
      $region54: #{structure_encoder_forward.9} parent=51 // pred_check_branch
        %360 = sbr.rel (%p358) target = $region56
      $region55: #{structure_encoder_forward.9} parent=51 // pred_region
        %s361 = smul.u32 2, %s19
        %p362 = scmp.lt.s32.totalorder %s361, 3
        %s363 = scalar_select %p362, %s361, 3
        %s364 = smul.addr %s363, 8
        %s365 = scalar_lea.vmem %s0, %s364
        %s366 = smul.u32 2, %s19
      $region56: #{structure_encoder_forward.9} parent=51 // pred_fallthru
        _
      // Predicated region
      $region57: #{structure_encoder_forward.9} parent=51 // pred_check
        %p367 = pneg %p65
      $region58: #{structure_encoder_forward.9} parent=51 // pred_check_branch
        %369 = sbr.rel (%p367) target = $region60
      $region59: #{structure_encoder_forward.9} parent=51 // pred_region
        %s370 = smul.u32 2, %s19
        %p371 = scmp.lt.s32.totalorder %s370, 3
        %s372 = scalar_select %p371, %s370, 3
        %s373 = smul.addr %s372, 8
        %s374 = scalar_lea.vmem %s1, %s373
        %s375 = smul.u32 2, %s19
      $region60: #{structure_encoder_forward.9} parent=51 // pred_fallthru
        _
    $region52: #{structure_encoder_forward.9} parent=5 // pred_fallthru
      _
    %p376 = scmp.le.s32.totalorder 1, %s19
    %p377 = scmp.lt.s32.totalorder %s19, 3
    %p378 = pnand %p376, %p377
    %p379 = pneg %p378
    // Predicated region
    $region61: #{structure_encoder_forward.9} parent=5 // pred_check
      _
    $region62: #{structure_encoder_forward.9} parent=5 // pred_check_branch
      %381 = sbr.rel (%p378) target = $region64
    $region63: #{structure_encoder_forward.9} parent=5 // pred_region
      %s382 = ssub.s32 %s19, 1
      %s383 = smul.u32 2, %s24
      %p384 = scmp.lt.s32.totalorder %s383, 3
      %s385 = scalar_select %p384, %s383, 3
      %s386 = smul.addr %s385, 8
      %s387 = scalar_lea.vmem %s0, %s386
      %p388 = pneg %p45
      %p389 = pneg %p42
      %s390 = smul.u32 2, %s24
      %p391 = scmp.lt.s32.totalorder %s390, 3
      %s392 = scalar_select %p391, %s390, 3
      %s393 = smul.addr %s392, 8
      %s394 = scalar_lea.vmem %s1, %s393
      %p395 = pneg %p71
      %p396 = pneg %p68
      %p397 = pneg %p92
      %p398 = pneg %p89
      %p399 = pneg %p113
      %p400 = pneg %p110
      %p401 = pneg %p134
      %p402 = pneg %p131
      %p403 = pneg %p155
      %p404 = pneg %p152
      %p405 = pneg %p176
      %p406 = pneg %p173
      %p407 = pneg %p197
      %p408 = pneg %p194
      %p409 = pneg %p218
      %p410 = pneg %p215
      %p411 = pneg %p239
      %p412 = pneg %p236
      %p413 = pneg %p260
      %p414 = pneg %p257
      %p415 = pneg %p286
      %p416 = pneg %p283
      %s417 = smul.u32 2, %s24
      %p418 = scmp.lt.s32.totalorder %s417, 3
      %s419 = scalar_select %p418, %s417, 3
      %s420 = smul.addr %s419, 8
      %s421 = scalar_lea.vmem %s11, %s420
      %p422 = pneg %p312
      %p423 = pneg %p309
      %s424 = smul.u32 2, %s24
      %p425 = scmp.lt.s32.totalorder %s424, 3
      %s426 = scalar_select %p425, %s424, 3
      %s427 = smul.addr %s426, 8
      %s428 = scalar_lea.vmem %s12, %s427
      %s429 = smul.u32 2, %s24
      %p430 = scmp.lt.s32.totalorder %s429, 3
      %s431 = scalar_select %p430, %s429, 3
      %s432 = smul.addr %s431, 8
      %s433 = scalar_lea.vmem %s0, %s432
      %s434 = smul.u32 2, %s24
      %s435 = smul.u32 2, %s24
      %p436 = scmp.lt.s32.totalorder %s435, 3
      %s437 = scalar_select %p436, %s435, 3
      %s438 = smul.addr %s437, 8
      %s439 = scalar_lea.vmem %s1, %s438
      %s440 = smul.u32 2, %s24
      %s441 = smul.u32 2, %s24
      %p442 = scmp.lt.s32.totalorder %s441, 3
      %s443 = scalar_select %p442, %s441, 3
      %s444 = smul.addr %s443, 8
      %s445 = scalar_lea.vmem %s11, %s444
      %s446 = smul.u32 2, %s24
      %s447 = smul.u32 2, %s24
      %p448 = scmp.lt.s32.totalorder %s447, 3
      %s449 = scalar_select %p448, %s447, 3
      %s450 = smul.addr %s449, 8
      %s451 = scalar_lea.vmem %s12, %s450
      %s452 = smul.u32 2, %s24
      %v453 = vld [vmem:[%s2] sm:$0x1]
      %v454 = vld [vmem:[%s3] sm:$0x1]
      %v455 = vld [vmem:[%s4] sm:$0xff]
      %v456 = vld [vmem:[%s4 + $0x8] sm:$0x1]
      %v457 = vld [vmem:[%s5] sm:$0xff]
      %v458 = vld [vmem:[%s5 + $0x8] sm:$0x1]
      %v459 = vld [vmem:[%s6] sm:$0x3f]
      %v460 = vld [vmem:[%s7] sm:$0xf]
      %v461 = vld [vmem:[%s8] sm:$0x1]
      %v462 = vld [vmem:[%s9] sm:$0xff]
      %v463 = vld [vmem:[%s9 + $0x8] sm:$0xf]
      %v464 = vld [vmem:[%s10] sm:$0xff]
      %v465 = vld [vmem:[%s10 + $0x8] sm:$0xf]
      %v466 = vld [vmem:[%s433] sm:$0xff]
      %v467 = vld [vmem:[%s433 + $0x8] sm:$0xff]
      %v468 = vld [vmem:[%s439] sm:$0xff]
      %v469 = vld [vmem:[%s439 + $0x8] sm:$0xff]
      %vm470 = vcmask 48128
      %v471 = vsel %vm470, %v466, 0.0
      %472 = vadd.xlane.f32.xlu0 %v471
      %v473 = vpop.xlane.xlu0 %472
      %v474 = vsel %vm470, %v467, 0.0
      %475 = vadd.xlane.f32.xlu0 %v474
      %v476 = vpop.xlane.xlu0 %475
      %v477 = vrcp.pop 6.0
      %v478 = vmul.f32 6.0, %v477
      %v479 = vsub.f32 1.0, %v478
      %v480 = vmul.f32 %v477, %v479
      %v481 = vadd.f32 %v477, %v480
      %vm482 = vweird.f32 %v477
      %v483 = vsel %vm482, %v477, %v481
      %v484 = vmul.f32 %v473, %v483
      %v485 = vmul.f32 %v476, %v483
      %v486 = vsub.f32 %v466, %v484
      %v487 = vsub.f32 %v467, %v485
      %v488 = vmul.f32 %v486, %v486
      %v489 = vmul.f32 %v487, %v487
      %v490 = vsel %vm470, %v488, 0.0
      %491 = vadd.xlane.f32.xlu0 %v490
      %v492 = vpop.xlane.xlu0 %491
      %v493 = vsel %vm470, %v489, 0.0
      %494 = vadd.xlane.f32.xlu0 %v493
      %v495 = vpop.xlane.xlu0 %494
      %v496 = vmul.f32 %v492, %v483
      %v497 = vmul.f32 %v495, %v483
      %v498 = vadd.f32 %v496, 1e-05
      %v499 = vadd.f32 %v497, 1e-05
      %v500 = vrsqrt.pop %v498
      %v501 = vmul.f32 %v500, %v498
      %v502 = vmul.f32 %v501, %v500
      %v503 = vmul.f32 0.5, %v502
      %v504 = vsub.f32 1.5, %v503
      %v505 = vmul.f32 %v500, %v504
      %vm506 = vweird.f32 %v498
      %vm507 = vweird.f32 %v500
      %vm508 = vmor %vm506, %vm507
      %v509 = vsel %vm508, %v500, %v505
      %v510 = vrsqrt.pop %v499
      %v511 = vmul.f32 %v510, %v499
      %v512 = vmul.f32 %v511, %v510
      %v513 = vmul.f32 0.5, %v512
      %v514 = vsub.f32 1.5, %v513
      %v515 = vmul.f32 %v510, %v514
      %vm516 = vweird.f32 %v499
      %vm517 = vweird.f32 %v510
      %vm518 = vmor %vm516, %vm517
      %v519 = vsel %vm518, %v510, %v515
      %v520 = vmul.f32 %v486, %v509
      %v521 = vmul.f32 %v487, %v519
      %v523 = vperm.slane %v453, 0
      %v525 = vmul.f32 %v520, %v523
      %v526 = vmul.f32 %v521, %v523
      %v528 = vperm.slane %v454, 0
      %v530 = vadd.f32 %v525, %v528
      %v531 = vadd.f32 %v526, %v528
      %v532 = vmul.f32 %v468, %v468
      %v533 = vmul.f32 %v469, %v469
      %vm534 = vcmask 72704
      %v536 = vsel %vm534, %v532, 0
      %v539 = vsel %vm534, %v533, 0
      %vm541 = vcmask 1040384
      %v543 = vsel %vm541, %v456, 0
      %545 = vmatpush.msra.mxu0 0.0
      %546 = vmatpush.msra.mxu0 0.0
      %547 = vmatpush.msra.mxu0 0.0
      %548 = vmatpush.msra.mxu0 0.0
      %549 = vmatpush.msra.mxu0 0.0
      %550 = vmatpush.msra.mxu0 0.0
      %551 = vmatpush.msra.mxu0 0.0
      %552 = vmatpush.msra.mxu0 0.0
      %553 = vmatpush.msra.mxu0 0.0
      %554 = vmatpush.msra.mxu0 0.0
      %555 = vmatpush.msra.mxu0 0.0
      %556 = vmatpush.msra.mxu0 0.0
      %557 = vmatpush.msra.mxu0 0.0
      %558 = vmatpush.msra.mxu0 0.0
      %559 = vmatpush.msra.mxu0 %v543
      %560 = vmatpush.msra.mxu0 %v455
      %561 = vmatmul.f32.gmra.mxu0 %v536
      %v562 = vpop.f32.mrf.mxu0
      %v563 = vadd.f32 0.0, %v562
      %564 = vmatmul.f32.gmra.mxu0 %v539
      %v565 = vpop.f32.mrf.mxu0
      %v566 = vadd.f32 0.0, %v565
      %567 = vdwg.mxu0
      %v568 = vmax.f32 %v563, 1e-08
      %v569 = vmax.f32 %v566, 1e-08
      %vm570 = vcmask 23552
      %v571 = vsel %vm570, %v568, 0.0
      %572 = vadd.xlane.f32.xlu0 %v571
      %v573 = vpop.xlane.xlu0 %572
      %v574 = vsel %vm570, %v569, 0.0
      %575 = vadd.xlane.f32.xlu0 %v574
      %v576 = vpop.xlane.xlu0 %575
      %v577 = vrcp.pop 3.0
      %v578 = vmul.f32 3.0, %v577
      %v579 = vsub.f32 1.0, %v578
      %v580 = vmul.f32 %v577, %v579
      %v581 = vadd.f32 %v577, %v580
      %vm582 = vweird.f32 %v577
      %v583 = vsel %vm582, %v577, %v581
      %v584 = vmul.f32 %v573, %v583
      %v585 = vmul.f32 %v576, %v583
      %v586 = vrsqrt.pop %v584
      %v587 = vmul.f32 %v586, %v584
      %v588 = vmul.f32 %v587, %v586
      %v589 = vmul.f32 0.5, %v588
      %v590 = vsub.f32 1.5, %v589
      %v591 = vmul.f32 %v586, %v590
      %vm592 = vweird.f32 %v584
      %vm593 = vweird.f32 %v586
      %vm594 = vmor %vm592, %vm593
      %v595 = vsel %vm594, %v586, %v591
      %v596 = vrsqrt.pop %v585
      %v597 = vmul.f32 %v596, %v585
      %v598 = vmul.f32 %v597, %v596
      %v599 = vmul.f32 0.5, %v598
      %v600 = vsub.f32 1.5, %v599
      %v601 = vmul.f32 %v596, %v600
      %vm602 = vweird.f32 %v585
      %vm603 = vweird.f32 %v596
      %vm604 = vmor %vm602, %vm603
      %v605 = vsel %vm604, %v596, %v601
      %v606 = vmul.f32 %v468, %v595
      %v607 = vmul.f32 %v469, %v605
      %v609 = vsel %vm534, %v606, 0
      %v612 = vsel %vm534, %v607, 0
      %v615 = vsel %vm541, %v458, 0
      %617 = vmatpush.msra.mxu0 0.0
      %618 = vmatpush.msra.mxu0 0.0
      %619 = vmatpush.msra.mxu0 0.0
      %620 = vmatpush.msra.mxu0 0.0
      %621 = vmatpush.msra.mxu0 0.0
      %622 = vmatpush.msra.mxu0 0.0
      %623 = vmatpush.msra.mxu0 0.0
      %624 = vmatpush.msra.mxu0 0.0
      %625 = vmatpush.msra.mxu0 0.0
      %626 = vmatpush.msra.mxu0 0.0
      %627 = vmatpush.msra.mxu0 0.0
      %628 = vmatpush.msra.mxu0 0.0
      %629 = vmatpush.msra.mxu0 0.0
      %630 = vmatpush.msra.mxu0 0.0
      %631 = vmatpush.msra.mxu0 %v615
      %632 = vmatpush.msra.mxu0 %v457
      %633 = vmatmul.f32.gmra.mxu0 %v609
      %v634 = vpop.f32.mrf.mxu0
      %v635 = vadd.f32 0.0, %v634
      %636 = vmatmul.f32.gmra.mxu0 %v612
      %v637 = vpop.f32.mrf.mxu0
      %v638 = vadd.f32 0.0, %v637
      %639 = vdwg.mxu0
      %v640 = vmul.f32 %v635, %v635
      %v641 = vmul.f32 %v638, %v638
      %vm642 = vcmask 97280
      %v644 = vsel %vm642, %v640, 0
      %v647 = vsel %vm642, %v641, 0
      %vm649 = vcmask 1043456
      %v651 = vsel %vm649, %v463, 0
      %653 = vmatpush.msra.mxu0 0.0
      %654 = vmatpush.msra.mxu0 0.0
      %655 = vmatpush.msra.mxu0 0.0
      %656 = vmatpush.msra.mxu0 0.0
      %657 = vmatpush.msra.mxu0 0.0
      %658 = vmatpush.msra.mxu0 0.0
      %659 = vmatpush.msra.mxu0 0.0
      %660 = vmatpush.msra.mxu0 0.0
      %661 = vmatpush.msra.mxu0 0.0
      %662 = vmatpush.msra.mxu0 0.0
      %663 = vmatpush.msra.mxu0 0.0
      %664 = vmatpush.msra.mxu0 0.0
      %665 = vmatpush.msra.mxu0 0.0
      %666 = vmatpush.msra.mxu0 0.0
      %667 = vmatpush.msra.mxu0 %v651
      %668 = vmatpush.msra.mxu0 %v462
      %669 = vmatmul.f32.gmra.mxu0 %v644
      %v670 = vpop.f32.mrf.mxu0
      %v671 = vadd.f32 0.0, %v670
      %672 = vmatmul.f32.gmra.mxu0 %v647
      %v673 = vpop.f32.mrf.mxu0
      %v674 = vadd.f32 0.0, %v673
      %675 = vdwg.mxu0
      %v676 = vmax.f32 %v671, 1e-08
      %v677 = vmax.f32 %v674, 1e-08
      %v678 = vrsqrt.pop %v676
      %v679 = vmul.f32 %v678, %v676
      %v680 = vmul.f32 %v679, %v678
      %v681 = vmul.f32 0.5, %v680
      %v682 = vsub.f32 1.5, %v681
      %v683 = vmul.f32 %v678, %v682
      %v684 = vmul.f32 %v676, %v683
      %vm685 = vcmp.eq.f32.partialorder %v676, inf
      %v686 = vsel %vm685, %v676, %v684
      %vm687 = vcmp.eq.f32.partialorder %v676, 0.0
      %v688 = vand.u32 %v676, 2147483648
      %v689 = vsel %vm687, %v688, %v686
      %v690 = vrsqrt.pop %v677
      %v691 = vmul.f32 %v690, %v677
      %v692 = vmul.f32 %v691, %v690
      %v693 = vmul.f32 0.5, %v692
      %v694 = vsub.f32 1.5, %v693
      %v695 = vmul.f32 %v690, %v694
      %v696 = vmul.f32 %v677, %v695
      %vm697 = vcmp.eq.f32.partialorder %v677, inf
      %v698 = vsel %vm697, %v677, %v696
      %vm699 = vcmp.eq.f32.partialorder %v677, 0.0
      %v700 = vand.u32 %v677, 2147483648
      %v701 = vsel %vm699, %v700, %v698
      %vm702 = vcmask 31744
      %v704 = vsel %vm702, %v689, 0
      %v707 = vsel %vm702, %v701, 0
      %v710 = vsel %vm649, %v460, 0
      %712 = vmatpush.msra.mxu0 0.0
      %713 = vmatpush.msra.mxu0 0.0
      %714 = vmatpush.msra.mxu0 0.0
      %715 = vmatpush.msra.mxu0 0.0
      %716 = vmatpush.msra.mxu0 0.0
      %717 = vmatpush.msra.mxu0 0.0
      %718 = vmatpush.msra.mxu0 0.0
      %719 = vmatpush.msra.mxu0 0.0
      %720 = vmatpush.msra.mxu0 0.0
      %721 = vmatpush.msra.mxu0 0.0
      %722 = vmatpush.msra.mxu0 0.0
      %723 = vmatpush.msra.mxu0 0.0
      %724 = vmatpush.msra.mxu0 0.0
      %725 = vmatpush.msra.mxu0 0.0
      %726 = vmatpush.msra.mxu0 0.0
      %727 = vmatpush.msra.mxu0 %v710
      %728 = vmatmul.f32.gmra.mxu0 %v704
      %v729 = vpop.f32.mrf.mxu0
      %v730 = vadd.f32 0.0, %v729
      %731 = vmatmul.f32.gmra.mxu0 %v707
      %v732 = vpop.f32.mrf.mxu0
      %v733 = vadd.f32 0.0, %v732
      %734 = vdwg.mxu0
      %v736 = vsel %vm470, %v530, 0
      %v739 = vsel %vm470, %v531, 0
      %vm741 = vcmask 1045504
      %v743 = vsel %vm741, %v459, 0
      %745 = vmatpush.msra.mxu0 0.0
      %746 = vmatpush.msra.mxu0 0.0
      %747 = vmatpush.msra.mxu0 0.0
      %748 = vmatpush.msra.mxu0 0.0
      %749 = vmatpush.msra.mxu0 0.0
      %750 = vmatpush.msra.mxu0 0.0
      %751 = vmatpush.msra.mxu0 0.0
      %752 = vmatpush.msra.mxu0 0.0
      %753 = vmatpush.msra.mxu0 0.0
      %754 = vmatpush.msra.mxu0 0.0
      %755 = vmatpush.msra.mxu0 0.0
      %756 = vmatpush.msra.mxu0 0.0
      %757 = vmatpush.msra.mxu0 0.0
      %758 = vmatpush.msra.mxu0 0.0
      %759 = vmatpush.msra.mxu0 0.0
      %760 = vmatpush.msra.mxu0 %v743
      %761 = vmatmul.f32.gmra.mxu0 %v736
      %v762 = vpop.f32.mrf.mxu0
      %v763 = vadd.f32 %v730, %v762
      %764 = vmatmul.f32.gmra.mxu0 %v739
      %v765 = vpop.f32.mrf.mxu0
      %v766 = vadd.f32 %v733, %v765
      %767 = vdwg.mxu0
      %v769 = vperm.slane %v461, 0
      %v771 = vadd.f32 %v763, %v769
      %v772 = vadd.f32 %v766, %v769
      %v774 = vsel %vm642, %v635, 0
      %v777 = vsel %vm642, %v638, 0
      %v780 = vsel %vm649, %v465, 0
      %782 = vmatpush.msra.mxu0 0.0
      %783 = vmatpush.msra.mxu0 0.0
      %784 = vmatpush.msra.mxu0 0.0
      %785 = vmatpush.msra.mxu0 0.0
      %786 = vmatpush.msra.mxu0 0.0
      %787 = vmatpush.msra.mxu0 0.0
      %788 = vmatpush.msra.mxu0 0.0
      %789 = vmatpush.msra.mxu0 0.0
      %790 = vmatpush.msra.mxu0 0.0
      %791 = vmatpush.msra.mxu0 0.0
      %792 = vmatpush.msra.mxu0 0.0
      %793 = vmatpush.msra.mxu0 0.0
      %794 = vmatpush.msra.mxu0 0.0
      %795 = vmatpush.msra.mxu0 0.0
      %796 = vmatpush.msra.mxu0 %v780
      %797 = vmatpush.msra.mxu0 %v464
      %798 = vmatmul.f32.gmra.mxu0 %v774
      %v799 = vpop.f32.mrf.mxu0
      %v800 = vadd.f32 0.0, %v799
      %801 = vmatmul.f32.gmra.mxu0 %v777
      %v802 = vpop.f32.mrf.mxu0
      %v803 = vadd.f32 0.0, %v802
      %804 = vdwg.mxu0
      %vm805 = vcmask 261120
      %806 = vst.msk [vmem:[%s445] sm:$0xff] %vm805, %v771
      %807 = vst.msk [vmem:[%s445 + $0x8] sm:$0xff] %vm805, %v772
      %808 = vst.msk [vmem:[%s451] sm:$0xff] %vm642, %v800
      %809 = vst.msk [vmem:[%s451 + $0x8] sm:$0xff] %vm642, %v803
      %s810 = smul.u32 2, %s24
      %p811 = scmp.lt.s32.totalorder %s810, 3
      %s812 = scalar_select %p811, %s810, 3
      %s813 = smul.addr %s812, 8
      %s814 = scalar_lea.vmem %s11, %s813
      %s815 = smul.u32 2, %s24
      %p816 = scmp.lt.s32.totalorder %s815, 3
      %s817 = scalar_select %p816, %s815, 3
      %s818 = smul.addr %s817, 8
      %s819 = scalar_lea.vmem %s12, %s818
      // Predicated region
      $region65: #{structure_encoder_forward.9} parent=63 // pred_check
        %p820 = pneg %p283
      $region66: #{structure_encoder_forward.9} parent=63 // pred_check_branch
        %822 = sbr.rel (%p820) target = $region68
      $region67: #{structure_encoder_forward.9} parent=63 // pred_region
        %s823 = smul.u32 2, %s24
      $region68: #{structure_encoder_forward.9} parent=63 // pred_fallthru
        _
      // Predicated region
      $region69: #{structure_encoder_forward.9} parent=63 // pred_check
        %p824 = pneg %p309
      $region70: #{structure_encoder_forward.9} parent=63 // pred_check_branch
        %826 = sbr.rel (%p824) target = $region72
      $region71: #{structure_encoder_forward.9} parent=63 // pred_region
        %s827 = smul.u32 2, %s24
      $region72: #{structure_encoder_forward.9} parent=63 // pred_fallthru
        _
    $region64: #{structure_encoder_forward.9} parent=5 // pred_fallthru
      _
    %p828 = scmp.le.s32.totalorder 2, %s19
    // Predicated region
    $region73: #{structure_encoder_forward.9} parent=5 // pred_check
      %p829 = pneg %p828
    $region74: #{structure_encoder_forward.9} parent=5 // pred_check_branch
      %831 = sbr.rel (%p829) target = $region76
    $region75: #{structure_encoder_forward.9} parent=5 // pred_region
      %s832 = ssub.s32 %s19, 2
      // Predicated region
      $region77: #{structure_encoder_forward.9} parent=75 // pred_check
        %p833 = pneg %p289
      $region78: #{structure_encoder_forward.9} parent=75 // pred_check_branch
        %835 = sbr.rel (%p833) target = $region80
      $region79: #{structure_encoder_forward.9} parent=75 // pred_region
        %s836 = smul.u32 2, %s25
        %p837 = scmp.lt.s32.totalorder %s836, 3
        %s838 = scalar_select %p837, %s836, 3
        %s839 = smul.addr %s838, 8
        %s840 = scalar_lea.vmem %s11, %s839
      $region80: #{structure_encoder_forward.9} parent=75 // pred_fallthru
        _
      // Predicated region
      $region81: #{structure_encoder_forward.9} parent=75 // pred_check
        %p841 = pneg %p315
      $region82: #{structure_encoder_forward.9} parent=75 // pred_check_branch
        %843 = sbr.rel (%p841) target = $region84
      $region83: #{structure_encoder_forward.9} parent=75 // pred_region
        %s844 = smul.u32 2, %s25
        %p845 = scmp.lt.s32.totalorder %s844, 3
        %s846 = scalar_select %p845, %s844, 3
        %s847 = smul.addr %s846, 8
        %s848 = scalar_lea.vmem %s12, %s847
      $region84: #{structure_encoder_forward.9} parent=75 // pred_fallthru
        _
    $region76: #{structure_encoder_forward.9} parent=5 // pred_fallthru
      _
  $region6: #{structure_encoder_forward.9} parent=0 // loop_footer
    %s23 = sadd.s32 1, %s19
  $region7: #{structure_encoder_forward.9} parent=0 // loop_footer_branch
    %18 = sbr.rel target = $region3
  $region8: #{structure_encoder_forward.9} parent=0 // loop_exit
    _

// kernel: structure_encoder_forward.10
$region0: #{structure_encoder_forward.10}
  #allocation0 [shape = 'u32[]', space=smem, size = 0x4, offset = 0x4, fixed_abs, tag = 'smem constant byte address 0x4 - core index']
  #allocation1 [shape = 'u32[72,128]{1,0:T(1,128)}', space=vmem, size = 0x9000, scoped, tag = 'internal scratch']
  %s0 = inlined_call_operand.vmem [shape: f32[64,32], index: 0, kind: input, shape index: {}]
  %s1 = inlined_call_operand.vmem [shape: f32[64,3], index: 1, kind: input, shape index: {}]
  %s2 = inlined_call_operand.vmem [shape: f32[1,32], index: 2, kind: input, shape index: {}]
  %s3 = inlined_call_operand.vmem [shape: f32[1,32], index: 3, kind: input, shape index: {}]
  %s4 = inlined_call_operand.vmem [shape: f32[3,1], index: 4, kind: input, shape index: {}]
  %s5 = inlined_call_operand.vmem [shape: f32[3,3], index: 5, kind: input, shape index: {}]
  %s6 = inlined_call_operand.vmem [shape: f32[32,32], index: 6, kind: input, shape index: {}]
  %s7 = inlined_call_operand.vmem [shape: f32[1,32], index: 7, kind: input, shape index: {}]
  %s8 = inlined_call_operand.vmem [shape: f32[1,32], index: 8, kind: input, shape index: {}]
  %s9 = inlined_call_operand.vmem [shape: f32[3,1], index: 9, kind: input, shape index: {}]
  %s10 = inlined_call_operand.vmem [shape: f32[3,3], index: 10, kind: input, shape index: {}]
  %s11 = inlined_call_operand.vmem [shape: f32[64,32], index: 11, kind: output, shape index: {0}]
  %s12 = inlined_call_operand.vmem [shape: f32[64,3], index: 12, kind: output, shape index: {1}]
  %13 = xla_tuple %s11, %s12
  %s14 = sld [smem:[#allocation0]]
  $region85: #{structure_encoder_forward.10} parent=0
    _
  %s16 = ssub.s32 1, %s14
  %s17 = scalar_select 0, %s16, %s14
  loop: start=0, step=1, limit=4
  $region2: #{structure_encoder_forward.10} parent=0 // loop_pre_header
    _
  $region3: #{structure_encoder_forward.10} parent=0 // loop_header
    %s19 = sphi 0, %s23
    %p20 = scmp.ge.s32.totalorder %s19, 4
    %s29 = sphi 0, %s31
    %s32 = sphi 0, %s29
    %s33 = sphi 0, %s32
    %s49 = sphi 0, %s33
    %s55 = sphi 0, %s57
    %s58 = sphi 0, %s55
    %s59 = sphi 0, %s58
    %s75 = sphi 0, %s59
    %s79 = sphi 0, %s79
    %s81 = sphi 0, %s79
    %s82 = sphi 0, %s81
    %s96 = sphi 0, %s82
    %s100 = sphi 0, %s100
    %s102 = sphi 0, %s100
    %s103 = sphi 0, %s102
    %s117 = sphi 0, %s103
    %s121 = sphi 0, %s121
    %s123 = sphi 0, %s121
    %s124 = sphi 0, %s123
    %s138 = sphi 0, %s124
    %s142 = sphi 0, %s142
    %s144 = sphi 0, %s142
    %s145 = sphi 0, %s144
    %s159 = sphi 0, %s145
    %s163 = sphi 0, %s163
    %s165 = sphi 0, %s163
    %s166 = sphi 0, %s165
    %s180 = sphi 0, %s166
    %s184 = sphi 0, %s184
    %s186 = sphi 0, %s184
    %s187 = sphi 0, %s186
    %s201 = sphi 0, %s187
    %s205 = sphi 0, %s205
    %s207 = sphi 0, %s205
    %s208 = sphi 0, %s207
    %s222 = sphi 0, %s208
    %s226 = sphi 0, %s226
    %s228 = sphi 0, %s226
    %s229 = sphi 0, %s228
    %s243 = sphi 0, %s229
    %s247 = sphi 0, %s247
    %s249 = sphi 0, %s247
    %s250 = sphi 0, %s249
    %s264 = sphi 0, %s250
    %s270 = sphi 0, %s272
    %s273 = sphi 0, %s270
    %s274 = sphi 0, %s273
    %s290 = sphi 0, %s274
    %s296 = sphi 0, %s298
    %s299 = sphi 0, %s296
    %s300 = sphi 0, %s299
    %s316 = sphi 0, %s300
  $region4: #{structure_encoder_forward.10} parent=0 // loop_header_branch
    %22 = sbr.rel (%p20) target = $region8
  $region5: #{structure_encoder_forward.10} parent=0 // loop_body
    %s24 = ssub.s32 %s19, 1
    %s25 = ssub.s32 %s19, 2
    %s26 = sadd.s32 %s19, 1
    %s27 = ssub.s32 %s19, %s26
    %p28 = scmp.eq.s32.totalorder %s27, 0
    %s30 = sadd.s32 %s29, 1
    %s31 = scalar_select %p28, %s29, %s30
    %p34 = pneg %p28
    %p35 = scmp.eq.s32.totalorder %s19, 1
    %p36 = por %p34, %p35
    %p37 = scmp.ne.s32.totalorder %s29, %s32
    %p38 = scmp.eq.s32.totalorder %s19, 0
    %p39 = por %p37, %p38
    %p40 = scmp.ne.s32.totalorder %s29, %s32
    %p41 = scmp.eq.s32.totalorder %s24, 1
    %p42 = por %p40, %p41
    %p43 = scmp.ne.s32.totalorder %s32, %s33
    %p44 = scmp.eq.s32.totalorder %s24, 0
    %p45 = por %p43, %p44
    %p46 = scmp.ne.s32.totalorder %s32, %s33
    %p47 = scmp.eq.s32.totalorder %s25, 1
    %p48 = por %p46, %p47
    %p50 = scmp.ne.s32.totalorder %s33, %s49
    %p51 = scmp.eq.s32.totalorder %s25, 0
    %p52 = por %p50, %p51
    %s53 = ssub.s32 %s19, %s26
    %p54 = scmp.eq.s32.totalorder %s53, 0
    %s56 = sadd.s32 %s55, 1
    %s57 = scalar_select %p54, %s55, %s56
    %p60 = pneg %p54
    %p61 = scmp.eq.s32.totalorder %s19, 1
    %p62 = por %p60, %p61
    %p63 = scmp.ne.s32.totalorder %s55, %s58
    %p64 = scmp.eq.s32.totalorder %s19, 0
    %p65 = por %p63, %p64
    %p66 = scmp.ne.s32.totalorder %s55, %s58
    %p67 = scmp.eq.s32.totalorder %s24, 1
    %p68 = por %p66, %p67
    %p69 = scmp.ne.s32.totalorder %s58, %s59
    %p70 = scmp.eq.s32.totalorder %s24, 0
    %p71 = por %p69, %p70
    %p72 = scmp.ne.s32.totalorder %s58, %s59
    %p73 = scmp.eq.s32.totalorder %s25, 1
    %p74 = por %p72, %p73
    %p76 = scmp.ne.s32.totalorder %s59, %s75
    %p77 = scmp.eq.s32.totalorder %s25, 0
    %p78 = por %p76, %p77
    %s80 = sadd.s32 %s79, 1
    %p83 = scmp.eq.s32.totalorder %s19, 1
    %p84 = scmp.ne.s32.totalorder %s79, %s81
    %p85 = scmp.eq.s32.totalorder %s19, 0
    %p86 = por %p84, %p85
    %p87 = scmp.ne.s32.totalorder %s79, %s81
    %p88 = scmp.eq.s32.totalorder %s24, 1
    %p89 = por %p87, %p88
    %p90 = scmp.ne.s32.totalorder %s81, %s82
    %p91 = scmp.eq.s32.totalorder %s24, 0
    %p92 = por %p90, %p91
    %p93 = scmp.ne.s32.totalorder %s81, %s82
    %p94 = scmp.eq.s32.totalorder %s25, 1
    %p95 = por %p93, %p94
    %p97 = scmp.ne.s32.totalorder %s82, %s96
    %p98 = scmp.eq.s32.totalorder %s25, 0
    %p99 = por %p97, %p98
    %s101 = sadd.s32 %s100, 1
    %p104 = scmp.eq.s32.totalorder %s19, 1
    %p105 = scmp.ne.s32.totalorder %s100, %s102
    %p106 = scmp.eq.s32.totalorder %s19, 0
    %p107 = por %p105, %p106
    %p108 = scmp.ne.s32.totalorder %s100, %s102
    %p109 = scmp.eq.s32.totalorder %s24, 1
    %p110 = por %p108, %p109
    %p111 = scmp.ne.s32.totalorder %s102, %s103
    %p112 = scmp.eq.s32.totalorder %s24, 0
    %p113 = por %p111, %p112
    %p114 = scmp.ne.s32.totalorder %s102, %s103
    %p115 = scmp.eq.s32.totalorder %s25, 1
    %p116 = por %p114, %p115
    %p118 = scmp.ne.s32.totalorder %s103, %s117
    %p119 = scmp.eq.s32.totalorder %s25, 0
    %p120 = por %p118, %p119
    %s122 = sadd.s32 %s121, 1
    %p125 = scmp.eq.s32.totalorder %s19, 1
    %p126 = scmp.ne.s32.totalorder %s121, %s123
    %p127 = scmp.eq.s32.totalorder %s19, 0
    %p128 = por %p126, %p127
    %p129 = scmp.ne.s32.totalorder %s121, %s123
    %p130 = scmp.eq.s32.totalorder %s24, 1
    %p131 = por %p129, %p130
    %p132 = scmp.ne.s32.totalorder %s123, %s124
    %p133 = scmp.eq.s32.totalorder %s24, 0
    %p134 = por %p132, %p133
    %p135 = scmp.ne.s32.totalorder %s123, %s124
    %p136 = scmp.eq.s32.totalorder %s25, 1
    %p137 = por %p135, %p136
    %p139 = scmp.ne.s32.totalorder %s124, %s138
    %p140 = scmp.eq.s32.totalorder %s25, 0
    %p141 = por %p139, %p140
    %s143 = sadd.s32 %s142, 1
    %p146 = scmp.eq.s32.totalorder %s19, 1
    %p147 = scmp.ne.s32.totalorder %s142, %s144
    %p148 = scmp.eq.s32.totalorder %s19, 0
    %p149 = por %p147, %p148
    %p150 = scmp.ne.s32.totalorder %s142, %s144
    %p151 = scmp.eq.s32.totalorder %s24, 1
    %p152 = por %p150, %p151
    %p153 = scmp.ne.s32.totalorder %s144, %s145
    %p154 = scmp.eq.s32.totalorder %s24, 0
    %p155 = por %p153, %p154
    %p156 = scmp.ne.s32.totalorder %s144, %s145
    %p157 = scmp.eq.s32.totalorder %s25, 1
    %p158 = por %p156, %p157
    %p160 = scmp.ne.s32.totalorder %s145, %s159
    %p161 = scmp.eq.s32.totalorder %s25, 0
    %p162 = por %p160, %p161
    %s164 = sadd.s32 %s163, 1
    %p167 = scmp.eq.s32.totalorder %s19, 1
    %p168 = scmp.ne.s32.totalorder %s163, %s165
    %p169 = scmp.eq.s32.totalorder %s19, 0
    %p170 = por %p168, %p169
    %p171 = scmp.ne.s32.totalorder %s163, %s165
    %p172 = scmp.eq.s32.totalorder %s24, 1
    %p173 = por %p171, %p172
    %p174 = scmp.ne.s32.totalorder %s165, %s166
    %p175 = scmp.eq.s32.totalorder %s24, 0
    %p176 = por %p174, %p175
    %p177 = scmp.ne.s32.totalorder %s165, %s166
    %p178 = scmp.eq.s32.totalorder %s25, 1
    %p179 = por %p177, %p178
    %p181 = scmp.ne.s32.totalorder %s166, %s180
    %p182 = scmp.eq.s32.totalorder %s25, 0
    %p183 = por %p181, %p182
    %s185 = sadd.s32 %s184, 1
    %p188 = scmp.eq.s32.totalorder %s19, 1
    %p189 = scmp.ne.s32.totalorder %s184, %s186
    %p190 = scmp.eq.s32.totalorder %s19, 0
    %p191 = por %p189, %p190
    %p192 = scmp.ne.s32.totalorder %s184, %s186
    %p193 = scmp.eq.s32.totalorder %s24, 1
    %p194 = por %p192, %p193
    %p195 = scmp.ne.s32.totalorder %s186, %s187
    %p196 = scmp.eq.s32.totalorder %s24, 0
    %p197 = por %p195, %p196
    %p198 = scmp.ne.s32.totalorder %s186, %s187
    %p199 = scmp.eq.s32.totalorder %s25, 1
    %p200 = por %p198, %p199
    %p202 = scmp.ne.s32.totalorder %s187, %s201
    %p203 = scmp.eq.s32.totalorder %s25, 0
    %p204 = por %p202, %p203
    %s206 = sadd.s32 %s205, 1
    %p209 = scmp.eq.s32.totalorder %s19, 1
    %p210 = scmp.ne.s32.totalorder %s205, %s207
    %p211 = scmp.eq.s32.totalorder %s19, 0
    %p212 = por %p210, %p211
    %p213 = scmp.ne.s32.totalorder %s205, %s207
    %p214 = scmp.eq.s32.totalorder %s24, 1
    %p215 = por %p213, %p214
    %p216 = scmp.ne.s32.totalorder %s207, %s208
    %p217 = scmp.eq.s32.totalorder %s24, 0
    %p218 = por %p216, %p217
    %p219 = scmp.ne.s32.totalorder %s207, %s208
    %p220 = scmp.eq.s32.totalorder %s25, 1
    %p221 = por %p219, %p220
    %p223 = scmp.ne.s32.totalorder %s208, %s222
    %p224 = scmp.eq.s32.totalorder %s25, 0
    %p225 = por %p223, %p224
    %s227 = sadd.s32 %s226, 1
    %p230 = scmp.eq.s32.totalorder %s19, 1
    %p231 = scmp.ne.s32.totalorder %s226, %s228
    %p232 = scmp.eq.s32.totalorder %s19, 0
    %p233 = por %p231, %p232
    %p234 = scmp.ne.s32.totalorder %s226, %s228
    %p235 = scmp.eq.s32.totalorder %s24, 1
    %p236 = por %p234, %p235
    %p237 = scmp.ne.s32.totalorder %s228, %s229
    %p238 = scmp.eq.s32.totalorder %s24, 0
    %p239 = por %p237, %p238
    %p240 = scmp.ne.s32.totalorder %s228, %s229
    %p241 = scmp.eq.s32.totalorder %s25, 1
    %p242 = por %p240, %p241
    %p244 = scmp.ne.s32.totalorder %s229, %s243
    %p245 = scmp.eq.s32.totalorder %s25, 0
    %p246 = por %p244, %p245
    %s248 = sadd.s32 %s247, 1
    %p251 = scmp.eq.s32.totalorder %s19, 1
    %p252 = scmp.ne.s32.totalorder %s247, %s249
    %p253 = scmp.eq.s32.totalorder %s19, 0
    %p254 = por %p252, %p253
    %p255 = scmp.ne.s32.totalorder %s247, %s249
    %p256 = scmp.eq.s32.totalorder %s24, 1
    %p257 = por %p255, %p256
    %p258 = scmp.ne.s32.totalorder %s249, %s250
    %p259 = scmp.eq.s32.totalorder %s24, 0
    %p260 = por %p258, %p259
    %p261 = scmp.ne.s32.totalorder %s249, %s250
    %p262 = scmp.eq.s32.totalorder %s25, 1
    %p263 = por %p261, %p262
    %p265 = scmp.ne.s32.totalorder %s250, %s264
    %p266 = scmp.eq.s32.totalorder %s25, 0
    %p267 = por %p265, %p266
    %s268 = ssub.s32 %s19, %s26
    %p269 = scmp.eq.s32.totalorder %s268, 0
    %s271 = sadd.s32 %s270, 1
    %s272 = scalar_select %p269, %s270, %s271
    %p275 = pneg %p269
    %p276 = scmp.eq.s32.totalorder %s19, 1
    %p277 = por %p275, %p276
    %p278 = scmp.ne.s32.totalorder %s270, %s273
    %p279 = scmp.eq.s32.totalorder %s19, 0
    %p280 = por %p278, %p279
    %p281 = scmp.ne.s32.totalorder %s270, %s273
    %p282 = scmp.eq.s32.totalorder %s24, 1
    %p283 = por %p281, %p282
    %p284 = scmp.ne.s32.totalorder %s273, %s274
    %p285 = scmp.eq.s32.totalorder %s24, 0
    %p286 = por %p284, %p285
    %p287 = scmp.ne.s32.totalorder %s273, %s274
    %p288 = scmp.eq.s32.totalorder %s25, 1
    %p289 = por %p287, %p288
    %p291 = scmp.ne.s32.totalorder %s274, %s290
    %p292 = scmp.eq.s32.totalorder %s25, 0
    %p293 = por %p291, %p292
    %s294 = ssub.s32 %s19, %s26
    %p295 = scmp.eq.s32.totalorder %s294, 0
    %s297 = sadd.s32 %s296, 1
    %s298 = scalar_select %p295, %s296, %s297
    %p301 = pneg %p295
    %p302 = scmp.eq.s32.totalorder %s19, 1
    %p303 = por %p301, %p302
    %p304 = scmp.ne.s32.totalorder %s296, %s299
    %p305 = scmp.eq.s32.totalorder %s19, 0
    %p306 = por %p304, %p305
    %p307 = scmp.ne.s32.totalorder %s296, %s299
    %p308 = scmp.eq.s32.totalorder %s24, 1
    %p309 = por %p307, %p308
    %p310 = scmp.ne.s32.totalorder %s299, %s300
    %p311 = scmp.eq.s32.totalorder %s24, 0
    %p312 = por %p310, %p311
    %p313 = scmp.ne.s32.totalorder %s299, %s300
    %p314 = scmp.eq.s32.totalorder %s25, 1
    %p315 = por %p313, %p314
    %p317 = scmp.ne.s32.totalorder %s300, %s316
    %p318 = scmp.eq.s32.totalorder %s25, 0
    %p319 = por %p317, %p318
    %p320 = scmp.le.s32.totalorder 1, %s19
    %p321 = scmp.lt.s32.totalorder %s19, 3
    %p322 = pnand %p320, %p321
    %p323 = pneg %p322
    // Predicated region
    $region9: #{structure_encoder_forward.10} parent=5 // pred_check
      _
    $region10: #{structure_encoder_forward.10} parent=5 // pred_check_branch
      %325 = sbr.rel (%p322) target = $region12
    $region11: #{structure_encoder_forward.10} parent=5 // pred_region
      %s326 = ssub.s32 %s19, 1
      // Predicated region
      $region13: #{structure_encoder_forward.10} parent=11 // pred_check
        %p327 = pneg %p92
      $region14: #{structure_encoder_forward.10} parent=11 // pred_check_branch
        %329 = sbr.rel (%p327) target = $region16
      $region15: #{structure_encoder_forward.10} parent=11 // pred_region
        _
      $region16: #{structure_encoder_forward.10} parent=11 // pred_fallthru
        _
      // Predicated region
      $region17: #{structure_encoder_forward.10} parent=11 // pred_check
        %p330 = pneg %p113
      $region18: #{structure_encoder_forward.10} parent=11 // pred_check_branch
        %332 = sbr.rel (%p330) target = $region20
      $region19: #{structure_encoder_forward.10} parent=11 // pred_region
        _
      $region20: #{structure_encoder_forward.10} parent=11 // pred_fallthru
        _
      // Predicated region
      $region21: #{structure_encoder_forward.10} parent=11 // pred_check
        %p333 = pneg %p134
      $region22: #{structure_encoder_forward.10} parent=11 // pred_check_branch
        %335 = sbr.rel (%p333) target = $region24
      $region23: #{structure_encoder_forward.10} parent=11 // pred_region
        _
      $region24: #{structure_encoder_forward.10} parent=11 // pred_fallthru
        _
      // Predicated region
      $region25: #{structure_encoder_forward.10} parent=11 // pred_check
        %p336 = pneg %p155
      $region26: #{structure_encoder_forward.10} parent=11 // pred_check_branch
        %338 = sbr.rel (%p336) target = $region28
      $region27: #{structure_encoder_forward.10} parent=11 // pred_region
        _
      $region28: #{structure_encoder_forward.10} parent=11 // pred_fallthru
        _
      // Predicated region
      $region29: #{structure_encoder_forward.10} parent=11 // pred_check
        %p339 = pneg %p176
      $region30: #{structure_encoder_forward.10} parent=11 // pred_check_branch
        %341 = sbr.rel (%p339) target = $region32
      $region31: #{structure_encoder_forward.10} parent=11 // pred_region
        _
      $region32: #{structure_encoder_forward.10} parent=11 // pred_fallthru
        _
      // Predicated region
      $region33: #{structure_encoder_forward.10} parent=11 // pred_check
        %p342 = pneg %p197
      $region34: #{structure_encoder_forward.10} parent=11 // pred_check_branch
        %344 = sbr.rel (%p342) target = $region36
      $region35: #{structure_encoder_forward.10} parent=11 // pred_region
        _
      $region36: #{structure_encoder_forward.10} parent=11 // pred_fallthru
        _
      // Predicated region
      $region37: #{structure_encoder_forward.10} parent=11 // pred_check
        %p345 = pneg %p218
      $region38: #{structure_encoder_forward.10} parent=11 // pred_check_branch
        %347 = sbr.rel (%p345) target = $region40
      $region39: #{structure_encoder_forward.10} parent=11 // pred_region
        _
      $region40: #{structure_encoder_forward.10} parent=11 // pred_fallthru
        _
      // Predicated region
      $region41: #{structure_encoder_forward.10} parent=11 // pred_check
        %p348 = pneg %p239
      $region42: #{structure_encoder_forward.10} parent=11 // pred_check_branch
        %350 = sbr.rel (%p348) target = $region44
      $region43: #{structure_encoder_forward.10} parent=11 // pred_region
        _
      $region44: #{structure_encoder_forward.10} parent=11 // pred_fallthru
        _
      // Predicated region
      $region45: #{structure_encoder_forward.10} parent=11 // pred_check
        %p351 = pneg %p260
      $region46: #{structure_encoder_forward.10} parent=11 // pred_check_branch
        %353 = sbr.rel (%p351) target = $region48
      $region47: #{structure_encoder_forward.10} parent=11 // pred_region
        _
      $region48: #{structure_encoder_forward.10} parent=11 // pred_fallthru
        _
    $region12: #{structure_encoder_forward.10} parent=5 // pred_fallthru
      _
    %p354 = scmp.lt.s32.totalorder %s19, 2
    // Predicated region
    $region49: #{structure_encoder_forward.10} parent=5 // pred_check
      %p355 = pneg %p354
    $region50: #{structure_encoder_forward.10} parent=5 // pred_check_branch
      %357 = sbr.rel (%p355) target = $region52
    $region51: #{structure_encoder_forward.10} parent=5 // pred_region
      // Predicated region
      $region53: #{structure_encoder_forward.10} parent=51 // pred_check
        %p358 = pneg %p39
      $region54: #{structure_encoder_forward.10} parent=51 // pred_check_branch
        %360 = sbr.rel (%p358) target = $region56
      $region55: #{structure_encoder_forward.10} parent=51 // pred_region
        %s361 = smul.u32 4, %s19
        %p362 = scmp.lt.s32.totalorder %s361, 7
        %s363 = scalar_select %p362, %s361, 7
        %s364 = smul.addr %s363, 8
        %s365 = scalar_lea.vmem %s0, %s364
        %s366 = smul.u32 4, %s19
      $region56: #{structure_encoder_forward.10} parent=51 // pred_fallthru
        _
      // Predicated region
      $region57: #{structure_encoder_forward.10} parent=51 // pred_check
        %p367 = pneg %p65
      $region58: #{structure_encoder_forward.10} parent=51 // pred_check_branch
        %369 = sbr.rel (%p367) target = $region60
      $region59: #{structure_encoder_forward.10} parent=51 // pred_region
        %s370 = smul.u32 4, %s19
        %p371 = scmp.lt.s32.totalorder %s370, 7
        %s372 = scalar_select %p371, %s370, 7
        %s373 = smul.addr %s372, 8
        %s374 = scalar_lea.vmem %s1, %s373
        %s375 = smul.u32 4, %s19
      $region60: #{structure_encoder_forward.10} parent=51 // pred_fallthru
        _
    $region52: #{structure_encoder_forward.10} parent=5 // pred_fallthru
      _
    %p376 = scmp.le.s32.totalorder 1, %s19
    %p377 = scmp.lt.s32.totalorder %s19, 3
    %p378 = pnand %p376, %p377
    %p379 = pneg %p378
    // Predicated region
    $region61: #{structure_encoder_forward.10} parent=5 // pred_check
      _
    $region62: #{structure_encoder_forward.10} parent=5 // pred_check_branch
      %381 = sbr.rel (%p378) target = $region64
    $region63: #{structure_encoder_forward.10} parent=5 // pred_region
      %s382 = ssub.s32 %s19, 1
      %s383 = smul.u32 4, %s24
      %p384 = scmp.lt.s32.totalorder %s383, 7
      %s385 = scalar_select %p384, %s383, 7
      %s386 = smul.addr %s385, 8
      %s387 = scalar_lea.vmem %s0, %s386
      %p388 = pneg %p45
      %p389 = pneg %p42
      %s390 = smul.u32 4, %s24
      %p391 = scmp.lt.s32.totalorder %s390, 7
      %s392 = scalar_select %p391, %s390, 7
      %s393 = smul.addr %s392, 8
      %s394 = scalar_lea.vmem %s1, %s393
      %p395 = pneg %p71
      %p396 = pneg %p68
      %p397 = pneg %p92
      %p398 = pneg %p89
      %p399 = pneg %p113
      %p400 = pneg %p110
      %p401 = pneg %p134
      %p402 = pneg %p131
      %p403 = pneg %p155
      %p404 = pneg %p152
      %p405 = pneg %p176
      %p406 = pneg %p173
      %p407 = pneg %p197
      %p408 = pneg %p194
      %p409 = pneg %p218
      %p410 = pneg %p215
      %p411 = pneg %p239
      %p412 = pneg %p236
      %p413 = pneg %p260
      %p414 = pneg %p257
      %p415 = pneg %p286
      %p416 = pneg %p283
      %s417 = smul.u32 4, %s24
      %p418 = scmp.lt.s32.totalorder %s417, 7
      %s419 = scalar_select %p418, %s417, 7
      %s420 = smul.addr %s419, 8
      %s421 = scalar_lea.vmem %s11, %s420
      %p422 = pneg %p312
      %p423 = pneg %p309
      %s424 = smul.u32 4, %s24
      %p425 = scmp.lt.s32.totalorder %s424, 7
      %s426 = scalar_select %p425, %s424, 7
      %s427 = smul.addr %s426, 8
      %s428 = scalar_lea.vmem %s12, %s427
      %s429 = smul.u32 4, %s24
      %p430 = scmp.lt.s32.totalorder %s429, 7
      %s431 = scalar_select %p430, %s429, 7
      %s432 = smul.addr %s431, 8
      %s433 = scalar_lea.vmem %s0, %s432
      %s434 = smul.u32 4, %s24
      %s435 = smul.u32 4, %s24
      %p436 = scmp.lt.s32.totalorder %s435, 7
      %s437 = scalar_select %p436, %s435, 7
      %s438 = smul.addr %s437, 8
      %s439 = scalar_lea.vmem %s1, %s438
      %s440 = smul.u32 4, %s24
      %s441 = smul.u32 4, %s24
      %p442 = scmp.lt.s32.totalorder %s441, 7
      %s443 = scalar_select %p442, %s441, 7
      %s444 = smul.addr %s443, 8
      %s445 = scalar_lea.vmem %s11, %s444
      %s446 = smul.u32 4, %s24
      %s447 = smul.u32 4, %s24
      %p448 = scmp.lt.s32.totalorder %s447, 7
      %s449 = scalar_select %p448, %s447, 7
      %s450 = smul.addr %s449, 8
      %s451 = scalar_lea.vmem %s12, %s450
      %s452 = smul.u32 4, %s24
      %v453 = vld [vmem:[%s2] sm:$0x1]
      %v454 = vld [vmem:[%s3] sm:$0x1]
      %v455 = vld [vmem:[%s4] sm:$0x7]
      %v456 = vld [vmem:[%s5] sm:$0x7]
      %v457 = vld [vmem:[%s6] sm:$0xff]
      %v458 = vld [vmem:[%s6 + $0x8] sm:$0xff]
      %v459 = vld [vmem:[%s6 + $0x10] sm:$0xff]
      %v460 = vld [vmem:[%s6 + $0x18] sm:$0xff]
      %v461 = vld [vmem:[%s7] sm:$0x1]
      %v462 = vld [vmem:[%s8] sm:$0x1]
      %v463 = vld [vmem:[%s9] sm:$0x7]
      %v464 = vld [vmem:[%s10] sm:$0x7]
      %v465 = vld [vmem:[%s433] sm:$0xff]
      %v466 = vld [vmem:[%s433 + $0x8] sm:$0xff]
      %v467 = vld [vmem:[%s433 + $0x10] sm:$0xff]
      %v468 = vld [vmem:[%s433 + $0x18] sm:$0xff]
      %v469 = vld [vmem:[%s439] sm:$0xff]
      %v470 = vld [vmem:[%s439 + $0x8] sm:$0xff]
      %v471 = vld [vmem:[%s439 + $0x10] sm:$0xff]
      %v472 = vld [vmem:[%s439 + $0x18] sm:$0xff]
      %vm473 = vcmask 261120
      %v474 = vsel %vm473, %v465, 0.0
      %475 = vadd.xlane.f32.xlu0 %v474
      %v476 = vpop.xlane.xlu0 %475
      %v477 = vsel %vm473, %v466, 0.0
      %478 = vadd.xlane.f32.xlu0 %v477
      %v479 = vpop.xlane.xlu0 %478
      %v480 = vsel %vm473, %v467, 0.0
      %481 = vadd.xlane.f32.xlu0 %v480
      %v482 = vpop.xlane.xlu0 %481
      %v483 = vsel %vm473, %v468, 0.0
      %484 = vadd.xlane.f32.xlu0 %v483
      %v485 = vpop.xlane.xlu0 %484
      %v486 = vrcp.pop 32.0
      %v487 = vmul.f32 32.0, %v486
      %v488 = vsub.f32 1.0, %v487
      %v489 = vmul.f32 %v486, %v488
      %v490 = vadd.f32 %v486, %v489
      %vm491 = vweird.f32 %v486
      %v492 = vsel %vm491, %v486, %v490
      %v493 = vmul.f32 %v476, %v492
      %v494 = vmul.f32 %v479, %v492
      %v495 = vmul.f32 %v482, %v492
      %v496 = vmul.f32 %v485, %v492
      %v497 = vsub.f32 %v465, %v493
      %v498 = vsub.f32 %v466, %v494
      %v499 = vsub.f32 %v467, %v495
      %v500 = vsub.f32 %v468, %v496
      %v501 = vmul.f32 %v497, %v497
      %v502 = vmul.f32 %v498, %v498
      %v503 = vmul.f32 %v499, %v499
      %v504 = vmul.f32 %v500, %v500
      %v505 = vsel %vm473, %v501, 0.0
      %506 = vadd.xlane.f32.xlu0 %v505
      %v507 = vpop.xlane.xlu0 %506
      %v508 = vsel %vm473, %v502, 0.0
      %509 = vadd.xlane.f32.xlu0 %v508
      %v510 = vpop.xlane.xlu0 %509
      %v511 = vsel %vm473, %v503, 0.0
      %512 = vadd.xlane.f32.xlu0 %v511
      %v513 = vpop.xlane.xlu0 %512
      %v514 = vsel %vm473, %v504, 0.0
      %515 = vadd.xlane.f32.xlu0 %v514
      %v516 = vpop.xlane.xlu0 %515
      %v517 = vmul.f32 %v507, %v492
      %v518 = vmul.f32 %v510, %v492
      %v519 = vmul.f32 %v513, %v492
      %v520 = vmul.f32 %v516, %v492
      %v521 = vadd.f32 %v517, 1e-05
      %v522 = vadd.f32 %v518, 1e-05
      %v523 = vadd.f32 %v519, 1e-05
      %v524 = vadd.f32 %v520, 1e-05
      %v525 = vrsqrt.pop %v521
      %v526 = vmul.f32 %v525, %v521
      %v527 = vmul.f32 %v526, %v525
      %v528 = vmul.f32 0.5, %v527
      %v529 = vsub.f32 1.5, %v528
      %v530 = vmul.f32 %v525, %v529
      %vm531 = vweird.f32 %v521
      %vm532 = vweird.f32 %v525
      %vm533 = vmor %vm531, %vm532
      %v534 = vsel %vm533, %v525, %v530
      %v535 = vrsqrt.pop %v522
      %v536 = vmul.f32 %v535, %v522
      %v537 = vmul.f32 %v536, %v535
      %v538 = vmul.f32 0.5, %v537
      %v539 = vsub.f32 1.5, %v538
      %v540 = vmul.f32 %v535, %v539
      %vm541 = vweird.f32 %v522
      %vm542 = vweird.f32 %v535
      %vm543 = vmor %vm541, %vm542
      %v544 = vsel %vm543, %v535, %v540
      %v545 = vrsqrt.pop %v523
      %v546 = vmul.f32 %v545, %v523
      %v547 = vmul.f32 %v546, %v545
      %v548 = vmul.f32 0.5, %v547
      %v549 = vsub.f32 1.5, %v548
      %v550 = vmul.f32 %v545, %v549
      %vm551 = vweird.f32 %v523
      %vm552 = vweird.f32 %v545
      %vm553 = vmor %vm551, %vm552
      %v554 = vsel %vm553, %v545, %v550
      %v555 = vrsqrt.pop %v524
      %v556 = vmul.f32 %v555, %v524
      %v557 = vmul.f32 %v556, %v555
      %v558 = vmul.f32 0.5, %v557
      %v559 = vsub.f32 1.5, %v558
      %v560 = vmul.f32 %v555, %v559
      %vm561 = vweird.f32 %v524
      %vm562 = vweird.f32 %v555
      %vm563 = vmor %vm561, %vm562
      %v564 = vsel %vm563, %v555, %v560
      %v565 = vmul.f32 %v497, %v534
      %v566 = vmul.f32 %v498, %v544
      %v567 = vmul.f32 %v499, %v554
      %v568 = vmul.f32 %v500, %v564
      %v570 = vperm.slane %v453, 0
      %v572 = vmul.f32 %v565, %v570
      %v573 = vmul.f32 %v566, %v570
      %v574 = vmul.f32 %v567, %v570
      %v575 = vmul.f32 %v568, %v570
      %v577 = vperm.slane %v454, 0
      %v579 = vadd.f32 %v572, %v577
      %v580 = vadd.f32 %v573, %v577
      %v581 = vadd.f32 %v574, %v577
      %v582 = vadd.f32 %v575, %v577
      %v583 = vmul.f32 %v469, %v469
      %v584 = vmul.f32 %v470, %v470
      %v585 = vmul.f32 %v471, %v471
      %v586 = vmul.f32 %v472, %v472
      %vm587 = vcmask 23552
      %v589 = vsel %vm587, %v583, 0
      %v592 = vsel %vm587, %v584, 0
      %v595 = vsel %vm587, %v585, 0
      %v598 = vsel %vm587, %v586, 0
      %vm600 = vcmask 1042432
      %v602 = vsel %vm600, %v455, 0
      %604 = vmatpush.msra.mxu0 0.0
      %605 = vmatpush.msra.mxu0 0.0
      %606 = vmatpush.msra.mxu0 0.0
      %607 = vmatpush.msra.mxu0 0.0
      %608 = vmatpush.msra.mxu0 0.0
      %609 = vmatpush.msra.mxu0 0.0
      %610 = vmatpush.msra.mxu0 0.0
      %611 = vmatpush.msra.mxu0 0.0
      %612 = vmatpush.msra.mxu0 0.0
      %613 = vmatpush.msra.mxu0 0.0
      %614 = vmatpush.msra.mxu0 0.0
      %615 = vmatpush.msra.mxu0 0.0
      %616 = vmatpush.msra.mxu0 0.0
      %617 = vmatpush.msra.mxu0 0.0
      %618 = vmatpush.msra.mxu0 0.0
      %619 = vmatpush.msra.mxu0 %v602
      %620 = vmatmul.f32.gmra.mxu0 %v589
      %v621 = vpop.f32.mrf.mxu0
      %v622 = vadd.f32 0.0, %v621
      %623 = vmatmul.f32.gmra.mxu0 %v592
      %v624 = vpop.f32.mrf.mxu0
      %v625 = vadd.f32 0.0, %v624
      %626 = vmatmul.f32.gmra.mxu0 %v595
      %v627 = vpop.f32.mrf.mxu0
      %v628 = vadd.f32 0.0, %v627
      %629 = vmatmul.f32.gmra.mxu0 %v598
      %v630 = vpop.f32.mrf.mxu0
      %v631 = vadd.f32 0.0, %v630
      %632 = vdwg.mxu0
      %v633 = vmax.f32 %v622, 1e-08
      %v634 = vmax.f32 %v625, 1e-08
      %v635 = vmax.f32 %v628, 1e-08
      %v636 = vmax.f32 %v631, 1e-08
      %v637 = vadd.f32 %v633, 0.0
      %v638 = vadd.f32 %v634, 0.0
      %v639 = vadd.f32 %v635, 0.0
      %v640 = vadd.f32 %v636, 0.0
      %v641 = vrsqrt.pop %v637
      %v642 = vmul.f32 %v641, %v637
      %v643 = vmul.f32 %v642, %v641
      %v644 = vmul.f32 0.5, %v643
      %v645 = vsub.f32 1.5, %v644
      %v646 = vmul.f32 %v641, %v645
      %vm647 = vweird.f32 %v637
      %vm648 = vweird.f32 %v641
      %vm649 = vmor %vm647, %vm648
      %v650 = vsel %vm649, %v641, %v646
      %v651 = vrsqrt.pop %v638
      %v652 = vmul.f32 %v651, %v638
      %v653 = vmul.f32 %v652, %v651
      %v654 = vmul.f32 0.5, %v653
      %v655 = vsub.f32 1.5, %v654
      %v656 = vmul.f32 %v651, %v655
      %vm657 = vweird.f32 %v638
      %vm658 = vweird.f32 %v651
      %vm659 = vmor %vm657, %vm658
      %v660 = vsel %vm659, %v651, %v656
      %v661 = vrsqrt.pop %v639
      %v662 = vmul.f32 %v661, %v639
      %v663 = vmul.f32 %v662, %v661
      %v664 = vmul.f32 0.5, %v663
      %v665 = vsub.f32 1.5, %v664
      %v666 = vmul.f32 %v661, %v665
      %vm667 = vweird.f32 %v639
      %vm668 = vweird.f32 %v661
      %vm669 = vmor %vm667, %vm668
      %v670 = vsel %vm669, %v661, %v666
      %v671 = vrsqrt.pop %v640
      %v672 = vmul.f32 %v671, %v640
      %v673 = vmul.f32 %v672, %v671
      %v674 = vmul.f32 0.5, %v673
      %v675 = vsub.f32 1.5, %v674
      %v676 = vmul.f32 %v671, %v675
      %vm677 = vweird.f32 %v640
      %vm678 = vweird.f32 %v671
      %vm679 = vmor %vm677, %vm678
      %v680 = vsel %vm679, %v671, %v676
      %682 = vset.pattern.permute.xlu0 0
      %683 = vperm.xlu0 %682, %v650
      %v684 = vpop.permute.xlu0 %683
      %687 = vset.pattern.permute.xlu0 0
      %688 = vperm.xlu0 %687, %v660
      %v689 = vpop.permute.xlu0 %688
      %692 = vset.pattern.permute.xlu0 0
      %693 = vperm.xlu0 %692, %v670
      %v694 = vpop.permute.xlu0 %693
      %697 = vset.pattern.permute.xlu0 0
      %698 = vperm.xlu0 %697, %v680
      %v699 = vpop.permute.xlu0 %698
      %v701 = vmul.f32 %v469, %v684
      %v702 = vmul.f32 %v470, %v689
      %v703 = vmul.f32 %v471, %v694
      %v704 = vmul.f32 %v472, %v699
      %v706 = vsel %vm587, %v701, 0
      %v709 = vsel %vm587, %v702, 0
      %v712 = vsel %vm587, %v703, 0
      %v715 = vsel %vm587, %v704, 0
      %v718 = vsel %vm600, %v456, 0
      %720 = vmatpush.msra.mxu0 0.0
      %721 = vmatpush.msra.mxu0 0.0
      %722 = vmatpush.msra.mxu0 0.0
      %723 = vmatpush.msra.mxu0 0.0
      %724 = vmatpush.msra.mxu0 0.0
      %725 = vmatpush.msra.mxu0 0.0
      %726 = vmatpush.msra.mxu0 0.0
      %727 = vmatpush.msra.mxu0 0.0
      %728 = vmatpush.msra.mxu0 0.0
      %729 = vmatpush.msra.mxu0 0.0
      %730 = vmatpush.msra.mxu0 0.0
      %731 = vmatpush.msra.mxu0 0.0
      %732 = vmatpush.msra.mxu0 0.0
      %733 = vmatpush.msra.mxu0 0.0
      %734 = vmatpush.msra.mxu0 0.0
      %735 = vmatpush.msra.mxu0 %v718
      %736 = vmatmul.f32.gmra.mxu0 %v706
      %v737 = vpop.f32.mrf.mxu0
      %v738 = vadd.f32 0.0, %v737
      %739 = vmatmul.f32.gmra.mxu0 %v709
      %v740 = vpop.f32.mrf.mxu0
      %v741 = vadd.f32 0.0, %v740
      %742 = vmatmul.f32.gmra.mxu0 %v712
      %v743 = vpop.f32.mrf.mxu0
      %v744 = vadd.f32 0.0, %v743
      %745 = vmatmul.f32.gmra.mxu0 %v715
      %v746 = vpop.f32.mrf.mxu0
      %v747 = vadd.f32 0.0, %v746
      %748 = vdwg.mxu0
      %v749 = vmul.f32 %v738, %v738
      %v750 = vmul.f32 %v741, %v741
      %v751 = vmul.f32 %v744, %v744
      %v752 = vmul.f32 %v747, %v747
      %v754 = vsel %vm587, %v749, 0
      %v757 = vsel %vm587, %v750, 0
      %v760 = vsel %vm587, %v751, 0
      %v763 = vsel %vm587, %v752, 0
      %v766 = vsel %vm600, %v463, 0
      %768 = vmatpush.msra.mxu0 0.0
      %769 = vmatpush.msra.mxu0 0.0
      %770 = vmatpush.msra.mxu0 0.0
      %771 = vmatpush.msra.mxu0 0.0
      %772 = vmatpush.msra.mxu0 0.0
      %773 = vmatpush.msra.mxu0 0.0
      %774 = vmatpush.msra.mxu0 0.0
      %775 = vmatpush.msra.mxu0 0.0
      %776 = vmatpush.msra.mxu0 0.0
      %777 = vmatpush.msra.mxu0 0.0
      %778 = vmatpush.msra.mxu0 0.0
      %779 = vmatpush.msra.mxu0 0.0
      %780 = vmatpush.msra.mxu0 0.0
      %781 = vmatpush.msra.mxu0 0.0
      %782 = vmatpush.msra.mxu0 0.0
      %783 = vmatpush.msra.mxu0 %v766
      %784 = vmatmul.f32.gmra.mxu0 %v754
      %v785 = vpop.f32.mrf.mxu0
      %v786 = vadd.f32 0.0, %v785
      %787 = vmatmul.f32.gmra.mxu0 %v757
      %v788 = vpop.f32.mrf.mxu0
      %v789 = vadd.f32 0.0, %v788
      %790 = vmatmul.f32.gmra.mxu0 %v760
      %v791 = vpop.f32.mrf.mxu0
      %v792 = vadd.f32 0.0, %v791
      %793 = vmatmul.f32.gmra.mxu0 %v763
      %v794 = vpop.f32.mrf.mxu0
      %v795 = vadd.f32 0.0, %v794
      %796 = vdwg.mxu0
      %v797 = vmax.f32 %v786, 1e-08
      %v798 = vmax.f32 %v789, 1e-08
      %v799 = vmax.f32 %v792, 1e-08
      %v800 = vmax.f32 %v795, 1e-08
      %v801 = vrsqrt.pop %v797
      %v802 = vmul.f32 %v801, %v797
      %v803 = vmul.f32 %v802, %v801
      %v804 = vmul.f32 0.5, %v803
      %v805 = vsub.f32 1.5, %v804
      %v806 = vmul.f32 %v801, %v805
      %v807 = vmul.f32 %v797, %v806
      %vm808 = vcmp.eq.f32.partialorder %v797, inf
      %v809 = vsel %vm808, %v797, %v807
      %vm810 = vcmp.eq.f32.partialorder %v797, 0.0
      %v811 = vand.u32 %v797, 2147483648
      %v812 = vsel %vm810, %v811, %v809
      %v813 = vrsqrt.pop %v798
      %v814 = vmul.f32 %v813, %v798
      %v815 = vmul.f32 %v814, %v813
      %v816 = vmul.f32 0.5, %v815
      %v817 = vsub.f32 1.5, %v816
      %v818 = vmul.f32 %v813, %v817
      %v819 = vmul.f32 %v798, %v818
      %vm820 = vcmp.eq.f32.partialorder %v798, inf
      %v821 = vsel %vm820, %v798, %v819
      %vm822 = vcmp.eq.f32.partialorder %v798, 0.0
      %v823 = vand.u32 %v798, 2147483648
      %v824 = vsel %vm822, %v823, %v821
      %v825 = vrsqrt.pop %v799
      %v826 = vmul.f32 %v825, %v799
      %v827 = vmul.f32 %v826, %v825
      %v828 = vmul.f32 0.5, %v827
      %v829 = vsub.f32 1.5, %v828
      %v830 = vmul.f32 %v825, %v829
      %v831 = vmul.f32 %v799, %v830
      %vm832 = vcmp.eq.f32.partialorder %v799, inf
      %v833 = vsel %vm832, %v799, %v831
      %vm834 = vcmp.eq.f32.partialorder %v799, 0.0
      %v835 = vand.u32 %v799, 2147483648
      %v836 = vsel %vm834, %v835, %v833
      %v837 = vrsqrt.pop %v800
      %v838 = vmul.f32 %v837, %v800
      %v839 = vmul.f32 %v838, %v837
      %v840 = vmul.f32 0.5, %v839
      %v841 = vsub.f32 1.5, %v840
      %v842 = vmul.f32 %v837, %v841
      %v843 = vmul.f32 %v800, %v842
      %vm844 = vcmp.eq.f32.partialorder %v800, inf
      %v845 = vsel %vm844, %v800, %v843
      %vm846 = vcmp.eq.f32.partialorder %v800, 0.0
      %v847 = vand.u32 %v800, 2147483648
      %v848 = vsel %vm846, %v847, %v845
      %vm849 = vcmask 7168
      %v851 = vsel %vm849, %v812, 0
      %v854 = vsel %vm849, %v824, 0
      %v857 = vsel %vm849, %v836, 0
      %v860 = vsel %vm849, %v848, 0
      %vm862 = vcmask 1040384
      %v864 = vsel %vm862, %v461, 0
      %866 = vmatpush.msra.mxu0 0.0
      %867 = vmatpush.msra.mxu0 0.0
      %868 = vmatpush.msra.mxu0 0.0
      %869 = vmatpush.msra.mxu0 0.0
      %870 = vmatpush.msra.mxu0 0.0
      %871 = vmatpush.msra.mxu0 0.0
      %872 = vmatpush.msra.mxu0 0.0
      %873 = vmatpush.msra.mxu0 0.0
      %874 = vmatpush.msra.mxu0 0.0
      %875 = vmatpush.msra.mxu0 0.0
      %876 = vmatpush.msra.mxu0 0.0
      %877 = vmatpush.msra.mxu0 0.0
      %878 = vmatpush.msra.mxu0 0.0
      %879 = vmatpush.msra.mxu0 0.0
      %880 = vmatpush.msra.mxu0 0.0
      %881 = vmatpush.msra.mxu0 %v864
      %882 = vmatmul.f32.gmra.mxu0 %v851
      %v883 = vpop.f32.mrf.mxu0
      %v884 = vadd.f32 0.0, %v883
      %885 = vmatmul.f32.gmra.mxu0 %v854
      %v886 = vpop.f32.mrf.mxu0
      %v887 = vadd.f32 0.0, %v886
      %888 = vmatmul.f32.gmra.mxu0 %v857
      %v889 = vpop.f32.mrf.mxu0
      %v890 = vadd.f32 0.0, %v889
      %891 = vmatmul.f32.gmra.mxu0 %v860
      %v892 = vpop.f32.mrf.mxu0
      %v893 = vadd.f32 0.0, %v892
      %894 = vdwg.mxu0
      %v896 = vsel %vm473, %v579, 0
      %v899 = vsel %vm473, %v580, 0
      %v902 = vsel %vm473, %v581, 0
      %v905 = vsel %vm473, %v582, 0
      %907 = vmatpush.msra.mxu0 0.0
      %908 = vmatpush.msra.mxu0 0.0
      %909 = vmatpush.msra.mxu0 0.0
      %910 = vmatpush.msra.mxu0 0.0
      %911 = vmatpush.msra.mxu0 0.0
      %912 = vmatpush.msra.mxu0 0.0
      %913 = vmatpush.msra.mxu0 0.0
      %914 = vmatpush.msra.mxu0 0.0
      %915 = vmatpush.msra.mxu0 0.0
      %916 = vmatpush.msra.mxu0 0.0
      %917 = vmatpush.msra.mxu0 0.0
      %918 = vmatpush.msra.mxu0 0.0
      %919 = vmatpush.msra.mxu0 %v460
      %920 = vmatpush.msra.mxu0 %v459
      %921 = vmatpush.msra.mxu0 %v458
      %922 = vmatpush.msra.mxu0 %v457
      %923 = vmatmul.f32.gmra.mxu0 %v896
      %v924 = vpop.f32.mrf.mxu0
      %v925 = vadd.f32 %v884, %v924
      %926 = vmatmul.f32.gmra.mxu0 %v899
      %v927 = vpop.f32.mrf.mxu0
      %v928 = vadd.f32 %v887, %v927
      %929 = vmatmul.f32.gmra.mxu0 %v902
      %v930 = vpop.f32.mrf.mxu0
      %v931 = vadd.f32 %v890, %v930
      %932 = vmatmul.f32.gmra.mxu0 %v905
      %v933 = vpop.f32.mrf.mxu0
      %v934 = vadd.f32 %v893, %v933
      %935 = vdwg.mxu0
      %v937 = vperm.slane %v462, 0
      %v939 = vadd.f32 %v925, %v937
      %v940 = vadd.f32 %v928, %v937
      %v941 = vadd.f32 %v931, %v937
      %v942 = vadd.f32 %v934, %v937
      %v944 = vsel %vm587, %v738, 0
      %v947 = vsel %vm587, %v741, 0
      %v950 = vsel %vm587, %v744, 0
      %v953 = vsel %vm587, %v747, 0
      %v956 = vsel %vm600, %v464, 0
      %958 = vmatpush.msra.mxu0 0.0
      %959 = vmatpush.msra.mxu0 0.0
      %960 = vmatpush.msra.mxu0 0.0
      %961 = vmatpush.msra.mxu0 0.0
      %962 = vmatpush.msra.mxu0 0.0
      %963 = vmatpush.msra.mxu0 0.0
      %964 = vmatpush.msra.mxu0 0.0
      %965 = vmatpush.msra.mxu0 0.0
      %966 = vmatpush.msra.mxu0 0.0
      %967 = vmatpush.msra.mxu0 0.0
      %968 = vmatpush.msra.mxu0 0.0
      %969 = vmatpush.msra.mxu0 0.0
      %970 = vmatpush.msra.mxu0 0.0
      %971 = vmatpush.msra.mxu0 0.0
      %972 = vmatpush.msra.mxu0 0.0
      %973 = vmatpush.msra.mxu0 %v956
      %974 = vmatmul.f32.gmra.mxu0 %v944
      %v975 = vpop.f32.mrf.mxu0
      %v976 = vadd.f32 0.0, %v975
      %977 = vmatmul.f32.gmra.mxu0 %v947
      %v978 = vpop.f32.mrf.mxu0
      %v979 = vadd.f32 0.0, %v978
      %980 = vmatmul.f32.gmra.mxu0 %v950
      %v981 = vpop.f32.mrf.mxu0
      %v982 = vadd.f32 0.0, %v981
      %983 = vmatmul.f32.gmra.mxu0 %v953
      %v984 = vpop.f32.mrf.mxu0
      %v985 = vadd.f32 0.0, %v984
      %986 = vdwg.mxu0
      %987 = vst.msk [vmem:[%s445] sm:$0xff] %vm473, %v939
      %988 = vst.msk [vmem:[%s445 + $0x8] sm:$0xff] %vm473, %v940
      %989 = vst.msk [vmem:[%s445 + $0x10] sm:$0xff] %vm473, %v941
      %990 = vst.msk [vmem:[%s445 + $0x18] sm:$0xff] %vm473, %v942
      %991 = vst.msk [vmem:[%s451] sm:$0xff] %vm587, %v976
      %992 = vst.msk [vmem:[%s451 + $0x8] sm:$0xff] %vm587, %v979
      %993 = vst.msk [vmem:[%s451 + $0x10] sm:$0xff] %vm587, %v982
      %994 = vst.msk [vmem:[%s451 + $0x18] sm:$0xff] %vm587, %v985
      %s995 = smul.u32 4, %s24
      %p996 = scmp.lt.s32.totalorder %s995, 7
      %s997 = scalar_select %p996, %s995, 7
      %s998 = smul.addr %s997, 8
      %s999 = scalar_lea.vmem %s11, %s998
      %s1000 = smul.u32 4, %s24
      %p1001 = scmp.lt.s32.totalorder %s1000, 7
      %s1002 = scalar_select %p1001, %s1000, 7
      %s1003 = smul.addr %s1002, 8
      %s1004 = scalar_lea.vmem %s12, %s1003
      // Predicated region
      $region65: #{structure_encoder_forward.10} parent=63 // pred_check
        %p1005 = pneg %p283
      $region66: #{structure_encoder_forward.10} parent=63 // pred_check_branch
        %1007 = sbr.rel (%p1005) target = $region68
      $region67: #{structure_encoder_forward.10} parent=63 // pred_region
        %s1008 = smul.u32 4, %s24
      $region68: #{structure_encoder_forward.10} parent=63 // pred_fallthru
        _
      // Predicated region
      $region69: #{structure_encoder_forward.10} parent=63 // pred_check
        %p1009 = pneg %p309
      $region70: #{structure_encoder_forward.10} parent=63 // pred_check_branch
        %1011 = sbr.rel (%p1009) target = $region72
      $region71: #{structure_encoder_forward.10} parent=63 // pred_region
        %s1012 = smul.u32 4, %s24
      $region72: #{structure_encoder_forward.10} parent=63 // pred_fallthru
        _
    $region64: #{structure_encoder_forward.10} parent=5 // pred_fallthru
      _
    %p1013 = scmp.le.s32.totalorder 2, %s19
    // Predicated region
    $region73: #{structure_encoder_forward.10} parent=5 // pred_check
      %p1014 = pneg %p1013
    $region74: #{structure_encoder_forward.10} parent=5 // pred_check_branch
      %1016 = sbr.rel (%p1014) target = $region76
    $region75: #{structure_encoder_forward.10} parent=5 // pred_region
      %s1017 = ssub.s32 %s19, 2
      // Predicated region
      $region77: #{structure_encoder_forward.10} parent=75 // pred_check
        %p1018 = pneg %p289
      $region78: #{structure_encoder_forward.10} parent=75 // pred_check_branch
        %1020 = sbr.rel (%p1018) target = $region80
      $region79: #{structure_encoder_forward.10} parent=75 // pred_region
        %s1021 = smul.u32 4, %s25
        %p1022 = scmp.lt.s32.totalorder %s1021, 7
        %s1023 = scalar_select %p1022, %s1021, 7
        %s1024 = smul.addr %s1023, 8
        %s1025 = scalar_lea.vmem %s11, %s1024
      $region80: #{structure_encoder_forward.10} parent=75 // pred_fallthru
        _
      // Predicated region
      $region81: #{structure_encoder_forward.10} parent=75 // pred_check
        %p1026 = pneg %p315
      $region82: #{structure_encoder_forward.10} parent=75 // pred_check_branch
        %1028 = sbr.rel (%p1026) target = $region84
      $region83: #{structure_encoder_forward.10} parent=75 // pred_region
        %s1029 = smul.u32 4, %s25
        %p1030 = scmp.lt.s32.totalorder %s1029, 7
        %s1031 = scalar_select %p1030, %s1029, 7
        %s1032 = smul.addr %s1031, 8
        %s1033 = scalar_lea.vmem %s12, %s1032
      $region84: #{structure_encoder_forward.10} parent=75 // pred_fallthru
        _
    $region76: #{structure_encoder_forward.10} parent=5 // pred_fallthru
      _
  $region6: #{structure_encoder_forward.10} parent=0 // loop_footer
    %s23 = sadd.s32 1, %s19
  $region7: #{structure_encoder_forward.10} parent=0 // loop_footer_branch
    %18 = sbr.rel target = $region3
  $region8: #{structure_encoder_forward.10} parent=0 // loop_exit
    _

// kernel: structure_encoder_forward.11
$region0: #{structure_encoder_forward.11}
  #allocation0 [shape = 'u32[]', space=smem, size = 0x4, offset = 0x4, fixed_abs, tag = 'smem constant byte address 0x4 - core index']
  #allocation1 [shape = 'u32[72,128]{1,0:T(1,128)}', space=vmem, size = 0x9000, scoped, tag = 'internal scratch']
  %s0 = inlined_call_operand.smem [shape: u32[32], index: -1, kind: input, shape index: {}]
  %s1 = sld [smem:[%s0]]
  %s2 = scalar_lea.smem %s0, 1
  %s3 = sld [smem:[%s2]]
  %s4 = scalar_lea.smem %s0, 2
  %s5 = sld [smem:[%s4]]
  %s6 = scalar_lea.smem %s0, 3
  %s7 = sld [smem:[%s6]]
  %s8 = scalar_lea.smem %s0, 4
  %s9 = sld [smem:[%s8]]
  %s10 = scalar_lea.smem %s0, 5
  %s11 = sld [smem:[%s10]]
  %s12 = scalar_lea.smem %s0, 6
  %s13 = sld [smem:[%s12]]
  %s14 = scalar_lea.smem %s0, 7
  %s15 = sld [smem:[%s14]]
  %s16 = scalar_lea.smem %s0, 8
  %s17 = sld [smem:[%s16]]
  %s18 = scalar_lea.smem %s0, 9
  %s19 = sld [smem:[%s18]]
  %s20 = scalar_lea.smem %s0, 10
  %s21 = sld [smem:[%s20]]
  %s22 = scalar_lea.smem %s0, 11
  %s23 = sld [smem:[%s22]]
  %s24 = scalar_lea.smem %s0, 12
  %s25 = sld [smem:[%s24]]
  %s26 = scalar_lea.smem %s0, 13
  %s27 = sld [smem:[%s26]]
  %s28 = scalar_lea.smem %s0, 14
  %s29 = sld [smem:[%s28]]
  %s30 = scalar_lea.smem %s0, 15
  %s31 = sld [smem:[%s30]]
  %s32 = scalar_lea.smem %s0, 16
  %s33 = sld [smem:[%s32]]
  %s34 = scalar_lea.smem %s0, 17
  %s35 = sld [smem:[%s34]]
  %s36 = scalar_lea.smem %s0, 18
  %s37 = sld [smem:[%s36]]
  %s38 = scalar_lea.smem %s0, 19
  %s39 = sld [smem:[%s38]]
  %s40 = scalar_lea.smem %s0, 20
  %s41 = sld [smem:[%s40]]
  %s42 = scalar_lea.smem %s0, 21
  %s43 = sld [smem:[%s42]]
  %s44 = scalar_lea.smem %s0, 22
  %s45 = sld [smem:[%s44]]
  %s46 = scalar_lea.smem %s0, 23
  %s47 = sld [smem:[%s46]]
  %s48 = scalar_lea.smem %s0, 24
  %s49 = sld [smem:[%s48]]
  %s50 = scalar_lea.smem %s0, 25
  %s51 = sld [smem:[%s50]]
  %s52 = scalar_lea.smem %s0, 26
  %s53 = sld [smem:[%s52]]
  %s54 = scalar_lea.smem %s0, 27
  %s55 = sld [smem:[%s54]]
  %s56 = scalar_lea.smem %s0, 28
  %s57 = sld [smem:[%s56]]
  %s58 = scalar_lea.smem %s0, 29
  %s59 = sld [smem:[%s58]]
  %s60 = scalar_lea.smem %s0, 30
  %s61 = sld [smem:[%s60]]
  %s62 = scalar_lea.smem %s0, 31
  %s63 = sld [smem:[%s62]]
  %64 = xla_tuple %s61, %s63
  %s65 = sld [smem:[#allocation0]]
  $region161: #{structure_encoder_forward.11} parent=0
    _
  %s67 = ssub.s32 1, %s65
  %s68 = scalar_select 0, %s67, %s65
  loop: start=0, step=1, limit=4
  $region2: #{structure_encoder_forward.11} parent=0 // loop_pre_header
    _
  $region3: #{structure_encoder_forward.11} parent=0 // loop_header
    %s70 = sphi 0, %s74
    %p71 = scmp.ge.s32.totalorder %s70, 4
    %s80 = sphi 0, %s82
    %s83 = sphi 0, %s80
    %s84 = sphi 0, %s83
    %s100 = sphi 0, %s84
    %s106 = sphi 0, %s108
    %s109 = sphi 0, %s106
    %s110 = sphi 0, %s109
    %s126 = sphi 0, %s110
    %s132 = sphi 0, %s134
    %s135 = sphi 0, %s132
    %s136 = sphi 0, %s135
    %s152 = sphi 0, %s136
    %s158 = sphi 0, %s160
    %s161 = sphi 0, %s158
    %s162 = sphi 0, %s161
    %s178 = sphi 0, %s162
    %s184 = sphi 0, %s186
    %s187 = sphi 0, %s184
    %s188 = sphi 0, %s187
    %s204 = sphi 0, %s188
    %s210 = sphi 0, %s212
    %s213 = sphi 0, %s210
    %s214 = sphi 0, %s213
    %s230 = sphi 0, %s214
    %s234 = sphi 0, %s234
    %s236 = sphi 0, %s234
    %s237 = sphi 0, %s236
    %s251 = sphi 0, %s237
    %s255 = sphi 0, %s255
    %s257 = sphi 0, %s255
    %s258 = sphi 0, %s257
    %s272 = sphi 0, %s258
    %s276 = sphi 0, %s276
    %s278 = sphi 0, %s276
    %s279 = sphi 0, %s278
    %s293 = sphi 0, %s279
    %s297 = sphi 0, %s297
    %s299 = sphi 0, %s297
    %s300 = sphi 0, %s299
    %s314 = sphi 0, %s300
    %s318 = sphi 0, %s318
    %s320 = sphi 0, %s318
    %s321 = sphi 0, %s320
    %s335 = sphi 0, %s321
    %s339 = sphi 0, %s339
    %s341 = sphi 0, %s339
    %s342 = sphi 0, %s341
    %s356 = sphi 0, %s342
    %s360 = sphi 0, %s360
    %s362 = sphi 0, %s360
    %s363 = sphi 0, %s362
    %s377 = sphi 0, %s363
    %s381 = sphi 0, %s381
    %s383 = sphi 0, %s381
    %s384 = sphi 0, %s383
    %s398 = sphi 0, %s384
    %s402 = sphi 0, %s402
    %s404 = sphi 0, %s402
    %s405 = sphi 0, %s404
    %s419 = sphi 0, %s405
    %s423 = sphi 0, %s423
    %s425 = sphi 0, %s423
    %s426 = sphi 0, %s425
    %s440 = sphi 0, %s426
    %s444 = sphi 0, %s444
    %s446 = sphi 0, %s444
    %s447 = sphi 0, %s446
    %s461 = sphi 0, %s447
    %s465 = sphi 0, %s465
    %s467 = sphi 0, %s465
    %s468 = sphi 0, %s467
    %s482 = sphi 0, %s468
    %s486 = sphi 0, %s486
    %s488 = sphi 0, %s486
    %s489 = sphi 0, %s488
    %s503 = sphi 0, %s489
    %s507 = sphi 0, %s507
    %s509 = sphi 0, %s507
    %s510 = sphi 0, %s509
    %s524 = sphi 0, %s510
    %s528 = sphi 0, %s528
    %s530 = sphi 0, %s528
    %s531 = sphi 0, %s530
    %s545 = sphi 0, %s531
    %s549 = sphi 0, %s549
    %s551 = sphi 0, %s549
    %s552 = sphi 0, %s551
    %s566 = sphi 0, %s552
    %s570 = sphi 0, %s570
    %s572 = sphi 0, %s570
    %s573 = sphi 0, %s572
    %s587 = sphi 0, %s573
    %s591 = sphi 0, %s591
    %s593 = sphi 0, %s591
    %s594 = sphi 0, %s593
    %s608 = sphi 0, %s594
    %s612 = sphi 0, %s612
    %s614 = sphi 0, %s612
    %s615 = sphi 0, %s614
    %s629 = sphi 0, %s615
    %s633 = sphi 0, %s633
    %s635 = sphi 0, %s633
    %s636 = sphi 0, %s635
    %s650 = sphi 0, %s636
    %s654 = sphi 0, %s654
    %s656 = sphi 0, %s654
    %s657 = sphi 0, %s656
    %s671 = sphi 0, %s657
    %s675 = sphi 0, %s675
    %s677 = sphi 0, %s675
    %s678 = sphi 0, %s677
    %s692 = sphi 0, %s678
    %s696 = sphi 0, %s696
    %s698 = sphi 0, %s696
    %s699 = sphi 0, %s698
    %s713 = sphi 0, %s699
    %s717 = sphi 0, %s717
    %s719 = sphi 0, %s717
    %s720 = sphi 0, %s719
    %s734 = sphi 0, %s720
    %s740 = sphi 0, %s742
    %s743 = sphi 0, %s740
    %s744 = sphi 0, %s743
    %s760 = sphi 0, %s744
    %s766 = sphi 0, %s768
    %s769 = sphi 0, %s766
    %s770 = sphi 0, %s769
    %s786 = sphi 0, %s770
  $region4: #{structure_encoder_forward.11} parent=0 // loop_header_branch
    %73 = sbr.rel (%p71) target = $region8
  $region5: #{structure_encoder_forward.11} parent=0 // loop_body
    %s75 = ssub.s32 %s70, 1
    %s76 = ssub.s32 %s70, 2
    %s77 = sadd.s32 %s70, 1
    %s78 = ssub.s32 %s70, %s77
    %p79 = scmp.eq.s32.totalorder %s78, 0
    %s81 = sadd.s32 %s80, 1
    %s82 = scalar_select %p79, %s80, %s81
    %p85 = pneg %p79
    %p86 = scmp.eq.s32.totalorder %s70, 1
    %p87 = por %p85, %p86
    %p88 = scmp.ne.s32.totalorder %s80, %s83
    %p89 = scmp.eq.s32.totalorder %s70, 0
    %p90 = por %p88, %p89
    %p91 = scmp.ne.s32.totalorder %s80, %s83
    %p92 = scmp.eq.s32.totalorder %s75, 1
    %p93 = por %p91, %p92
    %p94 = scmp.ne.s32.totalorder %s83, %s84
    %p95 = scmp.eq.s32.totalorder %s75, 0
    %p96 = por %p94, %p95
    %p97 = scmp.ne.s32.totalorder %s83, %s84
    %p98 = scmp.eq.s32.totalorder %s76, 1
    %p99 = por %p97, %p98
    %p101 = scmp.ne.s32.totalorder %s84, %s100
    %p102 = scmp.eq.s32.totalorder %s76, 0
    %p103 = por %p101, %p102
    %s104 = ssub.s32 %s70, %s77
    %p105 = scmp.eq.s32.totalorder %s104, 0
    %s107 = sadd.s32 %s106, 1
    %s108 = scalar_select %p105, %s106, %s107
    %p111 = pneg %p105
    %p112 = scmp.eq.s32.totalorder %s70, 1
    %p113 = por %p111, %p112
    %p114 = scmp.ne.s32.totalorder %s106, %s109
    %p115 = scmp.eq.s32.totalorder %s70, 0
    %p116 = por %p114, %p115
    %p117 = scmp.ne.s32.totalorder %s106, %s109
    %p118 = scmp.eq.s32.totalorder %s75, 1
    %p119 = por %p117, %p118
    %p120 = scmp.ne.s32.totalorder %s109, %s110
    %p121 = scmp.eq.s32.totalorder %s75, 0
    %p122 = por %p120, %p121
    %p123 = scmp.ne.s32.totalorder %s109, %s110
    %p124 = scmp.eq.s32.totalorder %s76, 1
    %p125 = por %p123, %p124
    %p127 = scmp.ne.s32.totalorder %s110, %s126
    %p128 = scmp.eq.s32.totalorder %s76, 0
    %p129 = por %p127, %p128
    %s130 = ssub.s32 %s70, %s77
    %p131 = scmp.eq.s32.totalorder %s130, 0
    %s133 = sadd.s32 %s132, 1
    %s134 = scalar_select %p131, %s132, %s133
    %p137 = pneg %p131
    %p138 = scmp.eq.s32.totalorder %s70, 1
    %p139 = por %p137, %p138
    %p140 = scmp.ne.s32.totalorder %s132, %s135
    %p141 = scmp.eq.s32.totalorder %s70, 0
    %p142 = por %p140, %p141
    %p143 = scmp.ne.s32.totalorder %s132, %s135
    %p144 = scmp.eq.s32.totalorder %s75, 1
    %p145 = por %p143, %p144
    %p146 = scmp.ne.s32.totalorder %s135, %s136
    %p147 = scmp.eq.s32.totalorder %s75, 0
    %p148 = por %p146, %p147
    %p149 = scmp.ne.s32.totalorder %s135, %s136
    %p150 = scmp.eq.s32.totalorder %s76, 1
    %p151 = por %p149, %p150
    %p153 = scmp.ne.s32.totalorder %s136, %s152
    %p154 = scmp.eq.s32.totalorder %s76, 0
    %p155 = por %p153, %p154
    %s156 = ssub.s32 %s70, %s77
    %p157 = scmp.eq.s32.totalorder %s156, 0
    %s159 = sadd.s32 %s158, 1
    %s160 = scalar_select %p157, %s158, %s159
    %p163 = pneg %p157
    %p164 = scmp.eq.s32.totalorder %s70, 1
    %p165 = por %p163, %p164
    %p166 = scmp.ne.s32.totalorder %s158, %s161
    %p167 = scmp.eq.s32.totalorder %s70, 0
    %p168 = por %p166, %p167
    %p169 = scmp.ne.s32.totalorder %s158, %s161
    %p170 = scmp.eq.s32.totalorder %s75, 1
    %p171 = por %p169, %p170
    %p172 = scmp.ne.s32.totalorder %s161, %s162
    %p173 = scmp.eq.s32.totalorder %s75, 0
    %p174 = por %p172, %p173
    %p175 = scmp.ne.s32.totalorder %s161, %s162
    %p176 = scmp.eq.s32.totalorder %s76, 1
    %p177 = por %p175, %p176
    %p179 = scmp.ne.s32.totalorder %s162, %s178
    %p180 = scmp.eq.s32.totalorder %s76, 0
    %p181 = por %p179, %p180
    %s182 = ssub.s32 %s70, %s77
    %p183 = scmp.eq.s32.totalorder %s182, 0
    %s185 = sadd.s32 %s184, 1
    %s186 = scalar_select %p183, %s184, %s185
    %p189 = pneg %p183
    %p190 = scmp.eq.s32.totalorder %s70, 1
    %p191 = por %p189, %p190
    %p192 = scmp.ne.s32.totalorder %s184, %s187
    %p193 = scmp.eq.s32.totalorder %s70, 0
    %p194 = por %p192, %p193
    %p195 = scmp.ne.s32.totalorder %s184, %s187
    %p196 = scmp.eq.s32.totalorder %s75, 1
    %p197 = por %p195, %p196
    %p198 = scmp.ne.s32.totalorder %s187, %s188
    %p199 = scmp.eq.s32.totalorder %s75, 0
    %p200 = por %p198, %p199
    %p201 = scmp.ne.s32.totalorder %s187, %s188
    %p202 = scmp.eq.s32.totalorder %s76, 1
    %p203 = por %p201, %p202
    %p205 = scmp.ne.s32.totalorder %s188, %s204
    %p206 = scmp.eq.s32.totalorder %s76, 0
    %p207 = por %p205, %p206
    %s208 = ssub.s32 %s70, %s77
    %p209 = scmp.eq.s32.totalorder %s208, 0
    %s211 = sadd.s32 %s210, 1
    %s212 = scalar_select %p209, %s210, %s211
    %p215 = pneg %p209
    %p216 = scmp.eq.s32.totalorder %s70, 1
    %p217 = por %p215, %p216
    %p218 = scmp.ne.s32.totalorder %s210, %s213
    %p219 = scmp.eq.s32.totalorder %s70, 0
    %p220 = por %p218, %p219
    %p221 = scmp.ne.s32.totalorder %s210, %s213
    %p222 = scmp.eq.s32.totalorder %s75, 1
    %p223 = por %p221, %p222
    %p224 = scmp.ne.s32.totalorder %s213, %s214
    %p225 = scmp.eq.s32.totalorder %s75, 0
    %p226 = por %p224, %p225
    %p227 = scmp.ne.s32.totalorder %s213, %s214
    %p228 = scmp.eq.s32.totalorder %s76, 1
    %p229 = por %p227, %p228
    %p231 = scmp.ne.s32.totalorder %s214, %s230
    %p232 = scmp.eq.s32.totalorder %s76, 0
    %p233 = por %p231, %p232
    %s235 = sadd.s32 %s234, 1
    %p238 = scmp.eq.s32.totalorder %s70, 1
    %p239 = scmp.ne.s32.totalorder %s234, %s236
    %p240 = scmp.eq.s32.totalorder %s70, 0
    %p241 = por %p239, %p240
    %p242 = scmp.ne.s32.totalorder %s234, %s236
    %p243 = scmp.eq.s32.totalorder %s75, 1
    %p244 = por %p242, %p243
    %p245 = scmp.ne.s32.totalorder %s236, %s237
    %p246 = scmp.eq.s32.totalorder %s75, 0
    %p247 = por %p245, %p246
    %p248 = scmp.ne.s32.totalorder %s236, %s237
    %p249 = scmp.eq.s32.totalorder %s76, 1
    %p250 = por %p248, %p249
    %p252 = scmp.ne.s32.totalorder %s237, %s251
    %p253 = scmp.eq.s32.totalorder %s76, 0
    %p254 = por %p252, %p253
    %s256 = sadd.s32 %s255, 1
    %p259 = scmp.eq.s32.totalorder %s70, 1
    %p260 = scmp.ne.s32.totalorder %s255, %s257
    %p261 = scmp.eq.s32.totalorder %s70, 0
    %p262 = por %p260, %p261
    %p263 = scmp.ne.s32.totalorder %s255, %s257
    %p264 = scmp.eq.s32.totalorder %s75, 1
    %p265 = por %p263, %p264
    %p266 = scmp.ne.s32.totalorder %s257, %s258
    %p267 = scmp.eq.s32.totalorder %s75, 0
    %p268 = por %p266, %p267
    %p269 = scmp.ne.s32.totalorder %s257, %s258
    %p270 = scmp.eq.s32.totalorder %s76, 1
    %p271 = por %p269, %p270
    %p273 = scmp.ne.s32.totalorder %s258, %s272
    %p274 = scmp.eq.s32.totalorder %s76, 0
    %p275 = por %p273, %p274
    %s277 = sadd.s32 %s276, 1
    %p280 = scmp.eq.s32.totalorder %s70, 1
    %p281 = scmp.ne.s32.totalorder %s276, %s278
    %p282 = scmp.eq.s32.totalorder %s70, 0
    %p283 = por %p281, %p282
    %p284 = scmp.ne.s32.totalorder %s276, %s278
    %p285 = scmp.eq.s32.totalorder %s75, 1
    %p286 = por %p284, %p285
    %p287 = scmp.ne.s32.totalorder %s278, %s279
    %p288 = scmp.eq.s32.totalorder %s75, 0
    %p289 = por %p287, %p288
    %p290 = scmp.ne.s32.totalorder %s278, %s279
    %p291 = scmp.eq.s32.totalorder %s76, 1
    %p292 = por %p290, %p291
    %p294 = scmp.ne.s32.totalorder %s279, %s293
    %p295 = scmp.eq.s32.totalorder %s76, 0
    %p296 = por %p294, %p295
    %s298 = sadd.s32 %s297, 1
    %p301 = scmp.eq.s32.totalorder %s70, 1
    %p302 = scmp.ne.s32.totalorder %s297, %s299
    %p303 = scmp.eq.s32.totalorder %s70, 0
    %p304 = por %p302, %p303
    %p305 = scmp.ne.s32.totalorder %s297, %s299
    %p306 = scmp.eq.s32.totalorder %s75, 1
    %p307 = por %p305, %p306
    %p308 = scmp.ne.s32.totalorder %s299, %s300
    %p309 = scmp.eq.s32.totalorder %s75, 0
    %p310 = por %p308, %p309
    %p311 = scmp.ne.s32.totalorder %s299, %s300
    %p312 = scmp.eq.s32.totalorder %s76, 1
    %p313 = por %p311, %p312
    %p315 = scmp.ne.s32.totalorder %s300, %s314
    %p316 = scmp.eq.s32.totalorder %s76, 0
    %p317 = por %p315, %p316
    %s319 = sadd.s32 %s318, 1
    %p322 = scmp.eq.s32.totalorder %s70, 1
    %p323 = scmp.ne.s32.totalorder %s318, %s320
    %p324 = scmp.eq.s32.totalorder %s70, 0
    %p325 = por %p323, %p324
    %p326 = scmp.ne.s32.totalorder %s318, %s320
    %p327 = scmp.eq.s32.totalorder %s75, 1
    %p328 = por %p326, %p327
    %p329 = scmp.ne.s32.totalorder %s320, %s321
    %p330 = scmp.eq.s32.totalorder %s75, 0
    %p331 = por %p329, %p330
    %p332 = scmp.ne.s32.totalorder %s320, %s321
    %p333 = scmp.eq.s32.totalorder %s76, 1
    %p334 = por %p332, %p333
    %p336 = scmp.ne.s32.totalorder %s321, %s335
    %p337 = scmp.eq.s32.totalorder %s76, 0
    %p338 = por %p336, %p337
    %s340 = sadd.s32 %s339, 1
    %p343 = scmp.eq.s32.totalorder %s70, 1
    %p344 = scmp.ne.s32.totalorder %s339, %s341
    %p345 = scmp.eq.s32.totalorder %s70, 0
    %p346 = por %p344, %p345
    %p347 = scmp.ne.s32.totalorder %s339, %s341
    %p348 = scmp.eq.s32.totalorder %s75, 1
    %p349 = por %p347, %p348
    %p350 = scmp.ne.s32.totalorder %s341, %s342
    %p351 = scmp.eq.s32.totalorder %s75, 0
    %p352 = por %p350, %p351
    %p353 = scmp.ne.s32.totalorder %s341, %s342
    %p354 = scmp.eq.s32.totalorder %s76, 1
    %p355 = por %p353, %p354
    %p357 = scmp.ne.s32.totalorder %s342, %s356
    %p358 = scmp.eq.s32.totalorder %s76, 0
    %p359 = por %p357, %p358
    %s361 = sadd.s32 %s360, 1
    %p364 = scmp.eq.s32.totalorder %s70, 1
    %p365 = scmp.ne.s32.totalorder %s360, %s362
    %p366 = scmp.eq.s32.totalorder %s70, 0
    %p367 = por %p365, %p366
    %p368 = scmp.ne.s32.totalorder %s360, %s362
    %p369 = scmp.eq.s32.totalorder %s75, 1
    %p370 = por %p368, %p369
    %p371 = scmp.ne.s32.totalorder %s362, %s363
    %p372 = scmp.eq.s32.totalorder %s75, 0
    %p373 = por %p371, %p372
    %p374 = scmp.ne.s32.totalorder %s362, %s363
    %p375 = scmp.eq.s32.totalorder %s76, 1
    %p376 = por %p374, %p375
    %p378 = scmp.ne.s32.totalorder %s363, %s377
    %p379 = scmp.eq.s32.totalorder %s76, 0
    %p380 = por %p378, %p379
    %s382 = sadd.s32 %s381, 1
    %p385 = scmp.eq.s32.totalorder %s70, 1
    %p386 = scmp.ne.s32.totalorder %s381, %s383
    %p387 = scmp.eq.s32.totalorder %s70, 0
    %p388 = por %p386, %p387
    %p389 = scmp.ne.s32.totalorder %s381, %s383
    %p390 = scmp.eq.s32.totalorder %s75, 1
    %p391 = por %p389, %p390
    %p392 = scmp.ne.s32.totalorder %s383, %s384
    %p393 = scmp.eq.s32.totalorder %s75, 0
    %p394 = por %p392, %p393
    %p395 = scmp.ne.s32.totalorder %s383, %s384
    %p396 = scmp.eq.s32.totalorder %s76, 1
    %p397 = por %p395, %p396
    %p399 = scmp.ne.s32.totalorder %s384, %s398
    %p400 = scmp.eq.s32.totalorder %s76, 0
    %p401 = por %p399, %p400
    %s403 = sadd.s32 %s402, 1
    %p406 = scmp.eq.s32.totalorder %s70, 1
    %p407 = scmp.ne.s32.totalorder %s402, %s404
    %p408 = scmp.eq.s32.totalorder %s70, 0
    %p409 = por %p407, %p408
    %p410 = scmp.ne.s32.totalorder %s402, %s404
    %p411 = scmp.eq.s32.totalorder %s75, 1
    %p412 = por %p410, %p411
    %p413 = scmp.ne.s32.totalorder %s404, %s405
    %p414 = scmp.eq.s32.totalorder %s75, 0
    %p415 = por %p413, %p414
    %p416 = scmp.ne.s32.totalorder %s404, %s405
    %p417 = scmp.eq.s32.totalorder %s76, 1
    %p418 = por %p416, %p417
    %p420 = scmp.ne.s32.totalorder %s405, %s419
    %p421 = scmp.eq.s32.totalorder %s76, 0
    %p422 = por %p420, %p421
    %s424 = sadd.s32 %s423, 1
    %p427 = scmp.eq.s32.totalorder %s70, 1
    %p428 = scmp.ne.s32.totalorder %s423, %s425
    %p429 = scmp.eq.s32.totalorder %s70, 0
    %p430 = por %p428, %p429
    %p431 = scmp.ne.s32.totalorder %s423, %s425
    %p432 = scmp.eq.s32.totalorder %s75, 1
    %p433 = por %p431, %p432
    %p434 = scmp.ne.s32.totalorder %s425, %s426
    %p435 = scmp.eq.s32.totalorder %s75, 0
    %p436 = por %p434, %p435
    %p437 = scmp.ne.s32.totalorder %s425, %s426
    %p438 = scmp.eq.s32.totalorder %s76, 1
    %p439 = por %p437, %p438
    %p441 = scmp.ne.s32.totalorder %s426, %s440
    %p442 = scmp.eq.s32.totalorder %s76, 0
    %p443 = por %p441, %p442
    %s445 = sadd.s32 %s444, 1
    %p448 = scmp.eq.s32.totalorder %s70, 1
    %p449 = scmp.ne.s32.totalorder %s444, %s446
    %p450 = scmp.eq.s32.totalorder %s70, 0
    %p451 = por %p449, %p450
    %p452 = scmp.ne.s32.totalorder %s444, %s446
    %p453 = scmp.eq.s32.totalorder %s75, 1
    %p454 = por %p452, %p453
    %p455 = scmp.ne.s32.totalorder %s446, %s447
    %p456 = scmp.eq.s32.totalorder %s75, 0
    %p457 = por %p455, %p456
    %p458 = scmp.ne.s32.totalorder %s446, %s447
    %p459 = scmp.eq.s32.totalorder %s76, 1
    %p460 = por %p458, %p459
    %p462 = scmp.ne.s32.totalorder %s447, %s461
    %p463 = scmp.eq.s32.totalorder %s76, 0
    %p464 = por %p462, %p463
    %s466 = sadd.s32 %s465, 1
    %p469 = scmp.eq.s32.totalorder %s70, 1
    %p470 = scmp.ne.s32.totalorder %s465, %s467
    %p471 = scmp.eq.s32.totalorder %s70, 0
    %p472 = por %p470, %p471
    %p473 = scmp.ne.s32.totalorder %s465, %s467
    %p474 = scmp.eq.s32.totalorder %s75, 1
    %p475 = por %p473, %p474
    %p476 = scmp.ne.s32.totalorder %s467, %s468
    %p477 = scmp.eq.s32.totalorder %s75, 0
    %p478 = por %p476, %p477
    %p479 = scmp.ne.s32.totalorder %s467, %s468
    %p480 = scmp.eq.s32.totalorder %s76, 1
    %p481 = por %p479, %p480
    %p483 = scmp.ne.s32.totalorder %s468, %s482
    %p484 = scmp.eq.s32.totalorder %s76, 0
    %p485 = por %p483, %p484
    %s487 = sadd.s32 %s486, 1
    %p490 = scmp.eq.s32.totalorder %s70, 1
    %p491 = scmp.ne.s32.totalorder %s486, %s488
    %p492 = scmp.eq.s32.totalorder %s70, 0
    %p493 = por %p491, %p492
    %p494 = scmp.ne.s32.totalorder %s486, %s488
    %p495 = scmp.eq.s32.totalorder %s75, 1
    %p496 = por %p494, %p495
    %p497 = scmp.ne.s32.totalorder %s488, %s489
    %p498 = scmp.eq.s32.totalorder %s75, 0
    %p499 = por %p497, %p498
    %p500 = scmp.ne.s32.totalorder %s488, %s489
    %p501 = scmp.eq.s32.totalorder %s76, 1
    %p502 = por %p500, %p501
    %p504 = scmp.ne.s32.totalorder %s489, %s503
    %p505 = scmp.eq.s32.totalorder %s76, 0
    %p506 = por %p504, %p505
    %s508 = sadd.s32 %s507, 1
    %p511 = scmp.eq.s32.totalorder %s70, 1
    %p512 = scmp.ne.s32.totalorder %s507, %s509
    %p513 = scmp.eq.s32.totalorder %s70, 0
    %p514 = por %p512, %p513
    %p515 = scmp.ne.s32.totalorder %s507, %s509
    %p516 = scmp.eq.s32.totalorder %s75, 1
    %p517 = por %p515, %p516
    %p518 = scmp.ne.s32.totalorder %s509, %s510
    %p519 = scmp.eq.s32.totalorder %s75, 0
    %p520 = por %p518, %p519
    %p521 = scmp.ne.s32.totalorder %s509, %s510
    %p522 = scmp.eq.s32.totalorder %s76, 1
    %p523 = por %p521, %p522
    %p525 = scmp.ne.s32.totalorder %s510, %s524
    %p526 = scmp.eq.s32.totalorder %s76, 0
    %p527 = por %p525, %p526
    %s529 = sadd.s32 %s528, 1
    %p532 = scmp.eq.s32.totalorder %s70, 1
    %p533 = scmp.ne.s32.totalorder %s528, %s530
    %p534 = scmp.eq.s32.totalorder %s70, 0
    %p535 = por %p533, %p534
    %p536 = scmp.ne.s32.totalorder %s528, %s530
    %p537 = scmp.eq.s32.totalorder %s75, 1
    %p538 = por %p536, %p537
    %p539 = scmp.ne.s32.totalorder %s530, %s531
    %p540 = scmp.eq.s32.totalorder %s75, 0
    %p541 = por %p539, %p540
    %p542 = scmp.ne.s32.totalorder %s530, %s531
    %p543 = scmp.eq.s32.totalorder %s76, 1
    %p544 = por %p542, %p543
    %p546 = scmp.ne.s32.totalorder %s531, %s545
    %p547 = scmp.eq.s32.totalorder %s76, 0
    %p548 = por %p546, %p547
    %s550 = sadd.s32 %s549, 1
    %p553 = scmp.eq.s32.totalorder %s70, 1
    %p554 = scmp.ne.s32.totalorder %s549, %s551
    %p555 = scmp.eq.s32.totalorder %s70, 0
    %p556 = por %p554, %p555
    %p557 = scmp.ne.s32.totalorder %s549, %s551
    %p558 = scmp.eq.s32.totalorder %s75, 1
    %p559 = por %p557, %p558
    %p560 = scmp.ne.s32.totalorder %s551, %s552
    %p561 = scmp.eq.s32.totalorder %s75, 0
    %p562 = por %p560, %p561
    %p563 = scmp.ne.s32.totalorder %s551, %s552
    %p564 = scmp.eq.s32.totalorder %s76, 1
    %p565 = por %p563, %p564
    %p567 = scmp.ne.s32.totalorder %s552, %s566
    %p568 = scmp.eq.s32.totalorder %s76, 0
    %p569 = por %p567, %p568
    %s571 = sadd.s32 %s570, 1
    %p574 = scmp.eq.s32.totalorder %s70, 1
    %p575 = scmp.ne.s32.totalorder %s570, %s572
    %p576 = scmp.eq.s32.totalorder %s70, 0
    %p577 = por %p575, %p576
    %p578 = scmp.ne.s32.totalorder %s570, %s572
    %p579 = scmp.eq.s32.totalorder %s75, 1
    %p580 = por %p578, %p579
    %p581 = scmp.ne.s32.totalorder %s572, %s573
    %p582 = scmp.eq.s32.totalorder %s75, 0
    %p583 = por %p581, %p582
    %p584 = scmp.ne.s32.totalorder %s572, %s573
    %p585 = scmp.eq.s32.totalorder %s76, 1
    %p586 = por %p584, %p585
    %p588 = scmp.ne.s32.totalorder %s573, %s587
    %p589 = scmp.eq.s32.totalorder %s76, 0
    %p590 = por %p588, %p589
    %s592 = sadd.s32 %s591, 1
    %p595 = scmp.eq.s32.totalorder %s70, 1
    %p596 = scmp.ne.s32.totalorder %s591, %s593
    %p597 = scmp.eq.s32.totalorder %s70, 0
    %p598 = por %p596, %p597
    %p599 = scmp.ne.s32.totalorder %s591, %s593
    %p600 = scmp.eq.s32.totalorder %s75, 1
    %p601 = por %p599, %p600
    %p602 = scmp.ne.s32.totalorder %s593, %s594
    %p603 = scmp.eq.s32.totalorder %s75, 0
    %p604 = por %p602, %p603
    %p605 = scmp.ne.s32.totalorder %s593, %s594
    %p606 = scmp.eq.s32.totalorder %s76, 1
    %p607 = por %p605, %p606
    %p609 = scmp.ne.s32.totalorder %s594, %s608
    %p610 = scmp.eq.s32.totalorder %s76, 0
    %p611 = por %p609, %p610
    %s613 = sadd.s32 %s612, 1
    %p616 = scmp.eq.s32.totalorder %s70, 1
    %p617 = scmp.ne.s32.totalorder %s612, %s614
    %p618 = scmp.eq.s32.totalorder %s70, 0
    %p619 = por %p617, %p618
    %p620 = scmp.ne.s32.totalorder %s612, %s614
    %p621 = scmp.eq.s32.totalorder %s75, 1
    %p622 = por %p620, %p621
    %p623 = scmp.ne.s32.totalorder %s614, %s615
    %p624 = scmp.eq.s32.totalorder %s75, 0
    %p625 = por %p623, %p624
    %p626 = scmp.ne.s32.totalorder %s614, %s615
    %p627 = scmp.eq.s32.totalorder %s76, 1
    %p628 = por %p626, %p627
    %p630 = scmp.ne.s32.totalorder %s615, %s629
    %p631 = scmp.eq.s32.totalorder %s76, 0
    %p632 = por %p630, %p631
    %s634 = sadd.s32 %s633, 1
    %p637 = scmp.eq.s32.totalorder %s70, 1
    %p638 = scmp.ne.s32.totalorder %s633, %s635
    %p639 = scmp.eq.s32.totalorder %s70, 0
    %p640 = por %p638, %p639
    %p641 = scmp.ne.s32.totalorder %s633, %s635
    %p642 = scmp.eq.s32.totalorder %s75, 1
    %p643 = por %p641, %p642
    %p644 = scmp.ne.s32.totalorder %s635, %s636
    %p645 = scmp.eq.s32.totalorder %s75, 0
    %p646 = por %p644, %p645
    %p647 = scmp.ne.s32.totalorder %s635, %s636
    %p648 = scmp.eq.s32.totalorder %s76, 1
    %p649 = por %p647, %p648
    %p651 = scmp.ne.s32.totalorder %s636, %s650
    %p652 = scmp.eq.s32.totalorder %s76, 0
    %p653 = por %p651, %p652
    %s655 = sadd.s32 %s654, 1
    %p658 = scmp.eq.s32.totalorder %s70, 1
    %p659 = scmp.ne.s32.totalorder %s654, %s656
    %p660 = scmp.eq.s32.totalorder %s70, 0
    %p661 = por %p659, %p660
    %p662 = scmp.ne.s32.totalorder %s654, %s656
    %p663 = scmp.eq.s32.totalorder %s75, 1
    %p664 = por %p662, %p663
    %p665 = scmp.ne.s32.totalorder %s656, %s657
    %p666 = scmp.eq.s32.totalorder %s75, 0
    %p667 = por %p665, %p666
    %p668 = scmp.ne.s32.totalorder %s656, %s657
    %p669 = scmp.eq.s32.totalorder %s76, 1
    %p670 = por %p668, %p669
    %p672 = scmp.ne.s32.totalorder %s657, %s671
    %p673 = scmp.eq.s32.totalorder %s76, 0
    %p674 = por %p672, %p673
    %s676 = sadd.s32 %s675, 1
    %p679 = scmp.eq.s32.totalorder %s70, 1
    %p680 = scmp.ne.s32.totalorder %s675, %s677
    %p681 = scmp.eq.s32.totalorder %s70, 0
    %p682 = por %p680, %p681
    %p683 = scmp.ne.s32.totalorder %s675, %s677
    %p684 = scmp.eq.s32.totalorder %s75, 1
    %p685 = por %p683, %p684
    %p686 = scmp.ne.s32.totalorder %s677, %s678
    %p687 = scmp.eq.s32.totalorder %s75, 0
    %p688 = por %p686, %p687
    %p689 = scmp.ne.s32.totalorder %s677, %s678
    %p690 = scmp.eq.s32.totalorder %s76, 1
    %p691 = por %p689, %p690
    %p693 = scmp.ne.s32.totalorder %s678, %s692
    %p694 = scmp.eq.s32.totalorder %s76, 0
    %p695 = por %p693, %p694
    %s697 = sadd.s32 %s696, 1
    %p700 = scmp.eq.s32.totalorder %s70, 1
    %p701 = scmp.ne.s32.totalorder %s696, %s698
    %p702 = scmp.eq.s32.totalorder %s70, 0
    %p703 = por %p701, %p702
    %p704 = scmp.ne.s32.totalorder %s696, %s698
    %p705 = scmp.eq.s32.totalorder %s75, 1
    %p706 = por %p704, %p705
    %p707 = scmp.ne.s32.totalorder %s698, %s699
    %p708 = scmp.eq.s32.totalorder %s75, 0
    %p709 = por %p707, %p708
    %p710 = scmp.ne.s32.totalorder %s698, %s699
    %p711 = scmp.eq.s32.totalorder %s76, 1
    %p712 = por %p710, %p711
    %p714 = scmp.ne.s32.totalorder %s699, %s713
    %p715 = scmp.eq.s32.totalorder %s76, 0
    %p716 = por %p714, %p715
    %s718 = sadd.s32 %s717, 1
    %p721 = scmp.eq.s32.totalorder %s70, 1
    %p722 = scmp.ne.s32.totalorder %s717, %s719
    %p723 = scmp.eq.s32.totalorder %s70, 0
    %p724 = por %p722, %p723
    %p725 = scmp.ne.s32.totalorder %s717, %s719
    %p726 = scmp.eq.s32.totalorder %s75, 1
    %p727 = por %p725, %p726
    %p728 = scmp.ne.s32.totalorder %s719, %s720
    %p729 = scmp.eq.s32.totalorder %s75, 0
    %p730 = por %p728, %p729
    %p731 = scmp.ne.s32.totalorder %s719, %s720
    %p732 = scmp.eq.s32.totalorder %s76, 1
    %p733 = por %p731, %p732
    %p735 = scmp.ne.s32.totalorder %s720, %s734
    %p736 = scmp.eq.s32.totalorder %s76, 0
    %p737 = por %p735, %p736
    %s738 = ssub.s32 %s70, %s77
    %p739 = scmp.eq.s32.totalorder %s738, 0
    %s741 = sadd.s32 %s740, 1
    %s742 = scalar_select %p739, %s740, %s741
    %p745 = pneg %p739
    %p746 = scmp.eq.s32.totalorder %s70, 1
    %p747 = por %p745, %p746
    %p748 = scmp.ne.s32.totalorder %s740, %s743
    %p749 = scmp.eq.s32.totalorder %s70, 0
    %p750 = por %p748, %p749
    %p751 = scmp.ne.s32.totalorder %s740, %s743
    %p752 = scmp.eq.s32.totalorder %s75, 1
    %p753 = por %p751, %p752
    %p754 = scmp.ne.s32.totalorder %s743, %s744
    %p755 = scmp.eq.s32.totalorder %s75, 0
    %p756 = por %p754, %p755
    %p757 = scmp.ne.s32.totalorder %s743, %s744
    %p758 = scmp.eq.s32.totalorder %s76, 1
    %p759 = por %p757, %p758
    %p761 = scmp.ne.s32.totalorder %s744, %s760
    %p762 = scmp.eq.s32.totalorder %s76, 0
    %p763 = por %p761, %p762
    %s764 = ssub.s32 %s70, %s77
    %p765 = scmp.eq.s32.totalorder %s764, 0
    %s767 = sadd.s32 %s766, 1
    %s768 = scalar_select %p765, %s766, %s767
    %p771 = pneg %p765
    %p772 = scmp.eq.s32.totalorder %s70, 1
    %p773 = por %p771, %p772
    %p774 = scmp.ne.s32.totalorder %s766, %s769
    %p775 = scmp.eq.s32.totalorder %s70, 0
    %p776 = por %p774, %p775
    %p777 = scmp.ne.s32.totalorder %s766, %s769
    %p778 = scmp.eq.s32.totalorder %s75, 1
    %p779 = por %p777, %p778
    %p780 = scmp.ne.s32.totalorder %s769, %s770
    %p781 = scmp.eq.s32.totalorder %s75, 0
    %p782 = por %p780, %p781
    %p783 = scmp.ne.s32.totalorder %s769, %s770
    %p784 = scmp.eq.s32.totalorder %s76, 1
    %p785 = por %p783, %p784
    %p787 = scmp.ne.s32.totalorder %s770, %s786
    %p788 = scmp.eq.s32.totalorder %s76, 0
    %p789 = por %p787, %p788
    %p790 = scmp.le.s32.totalorder 1, %s70
    %p791 = scmp.lt.s32.totalorder %s70, 3
    %p792 = pnand %p790, %p791
    %p793 = pneg %p792
    // Predicated region
    $region9: #{structure_encoder_forward.11} parent=5 // pred_check
      _
    $region10: #{structure_encoder_forward.11} parent=5 // pred_check_branch
      %795 = sbr.rel (%p792) target = $region12
    $region11: #{structure_encoder_forward.11} parent=5 // pred_region
      %s796 = ssub.s32 %s70, 1
      // Predicated region
      $region13: #{structure_encoder_forward.11} parent=11 // pred_check
        %p797 = pneg %p247
      $region14: #{structure_encoder_forward.11} parent=11 // pred_check_branch
        %799 = sbr.rel (%p797) target = $region16
      $region15: #{structure_encoder_forward.11} parent=11 // pred_region
        _
      $region16: #{structure_encoder_forward.11} parent=11 // pred_fallthru
        _
      // Predicated region
      $region17: #{structure_encoder_forward.11} parent=11 // pred_check
        %p800 = pneg %p268
      $region18: #{structure_encoder_forward.11} parent=11 // pred_check_branch
        %802 = sbr.rel (%p800) target = $region20
      $region19: #{structure_encoder_forward.11} parent=11 // pred_region
        _
      $region20: #{structure_encoder_forward.11} parent=11 // pred_fallthru
        _
      // Predicated region
      $region21: #{structure_encoder_forward.11} parent=11 // pred_check
        %p803 = pneg %p289
      $region22: #{structure_encoder_forward.11} parent=11 // pred_check_branch
        %805 = sbr.rel (%p803) target = $region24
      $region23: #{structure_encoder_forward.11} parent=11 // pred_region
        _
      $region24: #{structure_encoder_forward.11} parent=11 // pred_fallthru
        _
      // Predicated region
      $region25: #{structure_encoder_forward.11} parent=11 // pred_check
        %p806 = pneg %p310
      $region26: #{structure_encoder_forward.11} parent=11 // pred_check_branch
        %808 = sbr.rel (%p806) target = $region28
      $region27: #{structure_encoder_forward.11} parent=11 // pred_region
        _
      $region28: #{structure_encoder_forward.11} parent=11 // pred_fallthru
        _
      // Predicated region
      $region29: #{structure_encoder_forward.11} parent=11 // pred_check
        %p809 = pneg %p331
      $region30: #{structure_encoder_forward.11} parent=11 // pred_check_branch
        %811 = sbr.rel (%p809) target = $region32
      $region31: #{structure_encoder_forward.11} parent=11 // pred_region
        _
      $region32: #{structure_encoder_forward.11} parent=11 // pred_fallthru
        _
      // Predicated region
      $region33: #{structure_encoder_forward.11} parent=11 // pred_check
        %p812 = pneg %p352
      $region34: #{structure_encoder_forward.11} parent=11 // pred_check_branch
        %814 = sbr.rel (%p812) target = $region36
      $region35: #{structure_encoder_forward.11} parent=11 // pred_region
        _
      $region36: #{structure_encoder_forward.11} parent=11 // pred_fallthru
        _
      // Predicated region
      $region37: #{structure_encoder_forward.11} parent=11 // pred_check
        %p815 = pneg %p373
      $region38: #{structure_encoder_forward.11} parent=11 // pred_check_branch
        %817 = sbr.rel (%p815) target = $region40
      $region39: #{structure_encoder_forward.11} parent=11 // pred_region
        _
      $region40: #{structure_encoder_forward.11} parent=11 // pred_fallthru
        _
      // Predicated region
      $region41: #{structure_encoder_forward.11} parent=11 // pred_check
        %p818 = pneg %p394
      $region42: #{structure_encoder_forward.11} parent=11 // pred_check_branch
        %820 = sbr.rel (%p818) target = $region44
      $region43: #{structure_encoder_forward.11} parent=11 // pred_region
        _
      $region44: #{structure_encoder_forward.11} parent=11 // pred_fallthru
        _
      // Predicated region
      $region45: #{structure_encoder_forward.11} parent=11 // pred_check
        %p821 = pneg %p415
      $region46: #{structure_encoder_forward.11} parent=11 // pred_check_branch
        %823 = sbr.rel (%p821) target = $region48
      $region47: #{structure_encoder_forward.11} parent=11 // pred_region
        _
      $region48: #{structure_encoder_forward.11} parent=11 // pred_fallthru
        _
      // Predicated region
      $region49: #{structure_encoder_forward.11} parent=11 // pred_check
        %p824 = pneg %p436
      $region50: #{structure_encoder_forward.11} parent=11 // pred_check_branch
        %826 = sbr.rel (%p824) target = $region52
      $region51: #{structure_encoder_forward.11} parent=11 // pred_region
        _
      $region52: #{structure_encoder_forward.11} parent=11 // pred_fallthru
        _
      // Predicated region
      $region53: #{structure_encoder_forward.11} parent=11 // pred_check
        %p827 = pneg %p457
      $region54: #{structure_encoder_forward.11} parent=11 // pred_check_branch
        %829 = sbr.rel (%p827) target = $region56
      $region55: #{structure_encoder_forward.11} parent=11 // pred_region
        _
      $region56: #{structure_encoder_forward.11} parent=11 // pred_fallthru
        _
      // Predicated region
      $region57: #{structure_encoder_forward.11} parent=11 // pred_check
        %p830 = pneg %p478
      $region58: #{structure_encoder_forward.11} parent=11 // pred_check_branch
        %832 = sbr.rel (%p830) target = $region60
      $region59: #{structure_encoder_forward.11} parent=11 // pred_region
        _
      $region60: #{structure_encoder_forward.11} parent=11 // pred_fallthru
        _
      // Predicated region
      $region61: #{structure_encoder_forward.11} parent=11 // pred_check
        %p833 = pneg %p499
      $region62: #{structure_encoder_forward.11} parent=11 // pred_check_branch
        %835 = sbr.rel (%p833) target = $region64
      $region63: #{structure_encoder_forward.11} parent=11 // pred_region
        _
      $region64: #{structure_encoder_forward.11} parent=11 // pred_fallthru
        _
      // Predicated region
      $region65: #{structure_encoder_forward.11} parent=11 // pred_check
        %p836 = pneg %p520
      $region66: #{structure_encoder_forward.11} parent=11 // pred_check_branch
        %838 = sbr.rel (%p836) target = $region68
      $region67: #{structure_encoder_forward.11} parent=11 // pred_region
        _
      $region68: #{structure_encoder_forward.11} parent=11 // pred_fallthru
        _
      // Predicated region
      $region69: #{structure_encoder_forward.11} parent=11 // pred_check
        %p839 = pneg %p541
      $region70: #{structure_encoder_forward.11} parent=11 // pred_check_branch
        %841 = sbr.rel (%p839) target = $region72
      $region71: #{structure_encoder_forward.11} parent=11 // pred_region
        _
      $region72: #{structure_encoder_forward.11} parent=11 // pred_fallthru
        _
      // Predicated region
      $region73: #{structure_encoder_forward.11} parent=11 // pred_check
        %p842 = pneg %p562
      $region74: #{structure_encoder_forward.11} parent=11 // pred_check_branch
        %844 = sbr.rel (%p842) target = $region76
      $region75: #{structure_encoder_forward.11} parent=11 // pred_region
        _
      $region76: #{structure_encoder_forward.11} parent=11 // pred_fallthru
        _
      // Predicated region
      $region77: #{structure_encoder_forward.11} parent=11 // pred_check
        %p845 = pneg %p583
      $region78: #{structure_encoder_forward.11} parent=11 // pred_check_branch
        %847 = sbr.rel (%p845) target = $region80
      $region79: #{structure_encoder_forward.11} parent=11 // pred_region
        _
      $region80: #{structure_encoder_forward.11} parent=11 // pred_fallthru
        _
      // Predicated region
      $region81: #{structure_encoder_forward.11} parent=11 // pred_check
        %p848 = pneg %p604
      $region82: #{structure_encoder_forward.11} parent=11 // pred_check_branch
        %850 = sbr.rel (%p848) target = $region84
      $region83: #{structure_encoder_forward.11} parent=11 // pred_region
        _
      $region84: #{structure_encoder_forward.11} parent=11 // pred_fallthru
        _
      // Predicated region
      $region85: #{structure_encoder_forward.11} parent=11 // pred_check
        %p851 = pneg %p625
      $region86: #{structure_encoder_forward.11} parent=11 // pred_check_branch
        %853 = sbr.rel (%p851) target = $region88
      $region87: #{structure_encoder_forward.11} parent=11 // pred_region
        _
      $region88: #{structure_encoder_forward.11} parent=11 // pred_fallthru
        _
      // Predicated region
      $region89: #{structure_encoder_forward.11} parent=11 // pred_check
        %p854 = pneg %p646
      $region90: #{structure_encoder_forward.11} parent=11 // pred_check_branch
        %856 = sbr.rel (%p854) target = $region92
      $region91: #{structure_encoder_forward.11} parent=11 // pred_region
        _
      $region92: #{structure_encoder_forward.11} parent=11 // pred_fallthru
        _
      // Predicated region
      $region93: #{structure_encoder_forward.11} parent=11 // pred_check
        %p857 = pneg %p667
      $region94: #{structure_encoder_forward.11} parent=11 // pred_check_branch
        %859 = sbr.rel (%p857) target = $region96
      $region95: #{structure_encoder_forward.11} parent=11 // pred_region
        _
      $region96: #{structure_encoder_forward.11} parent=11 // pred_fallthru
        _
      // Predicated region
      $region97: #{structure_encoder_forward.11} parent=11 // pred_check
        %p860 = pneg %p688
      $region98: #{structure_encoder_forward.11} parent=11 // pred_check_branch
        %862 = sbr.rel (%p860) target = $region100
      $region99: #{structure_encoder_forward.11} parent=11 // pred_region
        _
      $region100: #{structure_encoder_forward.11} parent=11 // pred_fallthru
        _
      // Predicated region
      $region101: #{structure_encoder_forward.11} parent=11 // pred_check
        %p863 = pneg %p709
      $region102: #{structure_encoder_forward.11} parent=11 // pred_check_branch
        %865 = sbr.rel (%p863) target = $region104
      $region103: #{structure_encoder_forward.11} parent=11 // pred_region
        _
      $region104: #{structure_encoder_forward.11} parent=11 // pred_fallthru
        _
      // Predicated region
      $region105: #{structure_encoder_forward.11} parent=11 // pred_check
        %p866 = pneg %p730
      $region106: #{structure_encoder_forward.11} parent=11 // pred_check_branch
        %868 = sbr.rel (%p866) target = $region108
      $region107: #{structure_encoder_forward.11} parent=11 // pred_region
        _
      $region108: #{structure_encoder_forward.11} parent=11 // pred_fallthru
        _
    $region12: #{structure_encoder_forward.11} parent=5 // pred_fallthru
      _
    %p869 = scmp.lt.s32.totalorder %s70, 2
    // Predicated region
    $region109: #{structure_encoder_forward.11} parent=5 // pred_check
      %p870 = pneg %p869
    $region110: #{structure_encoder_forward.11} parent=5 // pred_check_branch
      %872 = sbr.rel (%p870) target = $region112
    $region111: #{structure_encoder_forward.11} parent=5 // pred_region
      // Predicated region
      $region113: #{structure_encoder_forward.11} parent=111 // pred_check
        %p873 = pneg %p90
      $region114: #{structure_encoder_forward.11} parent=111 // pred_check_branch
        %875 = sbr.rel (%p873) target = $region116
      $region115: #{structure_encoder_forward.11} parent=111 // pred_region
        %s876 = smul.u32 4, %s70
        %p877 = scmp.lt.s32.totalorder %s876, 7
        %s878 = scalar_select %p877, %s876, 7
        %s879 = smul.addr %s878, 8
        %s880 = scalar_lea.vmem %s1, %s879
        %s881 = smul.u32 4, %s70
      $region116: #{structure_encoder_forward.11} parent=111 // pred_fallthru
        _
      // Predicated region
      $region117: #{structure_encoder_forward.11} parent=111 // pred_check
        %p882 = pneg %p116
      $region118: #{structure_encoder_forward.11} parent=111 // pred_check_branch
        %884 = sbr.rel (%p882) target = $region120
      $region119: #{structure_encoder_forward.11} parent=111 // pred_region
        %s885 = smul.u32 4, %s70
        %p886 = scmp.lt.s32.totalorder %s885, 7
        %s887 = scalar_select %p886, %s885, 7
        %s888 = smul.addr %s887, 8
        %s889 = scalar_lea.vmem %s3, %s888
        %s890 = smul.u32 4, %s70
      $region120: #{structure_encoder_forward.11} parent=111 // pred_fallthru
        _
      // Predicated region
      $region121: #{structure_encoder_forward.11} parent=111 // pred_check
        %p891 = pneg %p142
      $region122: #{structure_encoder_forward.11} parent=111 // pred_check_branch
        %893 = sbr.rel (%p891) target = $region124
      $region123: #{structure_encoder_forward.11} parent=111 // pred_region
        %s894 = smul.u32 4, %s70
        %p895 = scmp.lt.s32.totalorder %s894, 7
        %s896 = scalar_select %p895, %s894, 7
        %s897 = smul.addr %s896, 8
        %s898 = scalar_lea.vmem %s5, %s897
        %s899 = smul.u32 4, %s70
      $region124: #{structure_encoder_forward.11} parent=111 // pred_fallthru
        _
      // Predicated region
      $region125: #{structure_encoder_forward.11} parent=111 // pred_check
        %p900 = pneg %p168
      $region126: #{structure_encoder_forward.11} parent=111 // pred_check_branch
        %902 = sbr.rel (%p900) target = $region128
      $region127: #{structure_encoder_forward.11} parent=111 // pred_region
        %s903 = smul.u32 4, %s70
        %p904 = scmp.lt.s32.totalorder %s903, 7
        %s905 = scalar_select %p904, %s903, 7
        %s906 = smul.addr %s905, 8
        %s907 = scalar_lea.vmem %s7, %s906
        %s908 = smul.u32 4, %s70
      $region128: #{structure_encoder_forward.11} parent=111 // pred_fallthru
        _
      // Predicated region
      $region129: #{structure_encoder_forward.11} parent=111 // pred_check
        %p909 = pneg %p194
      $region130: #{structure_encoder_forward.11} parent=111 // pred_check_branch
        %911 = sbr.rel (%p909) target = $region132
      $region131: #{structure_encoder_forward.11} parent=111 // pred_region
        %s912 = smul.u32 4, %s70
        %p913 = scmp.lt.s32.totalorder %s912, 7
        %s914 = scalar_select %p913, %s912, 7
        %s915 = smul.addr %s914, 8
        %s916 = scalar_lea.vmem %s9, %s915
        %s917 = smul.u32 4, %s70
      $region132: #{structure_encoder_forward.11} parent=111 // pred_fallthru
        _
      // Predicated region
      $region133: #{structure_encoder_forward.11} parent=111 // pred_check
        %p918 = pneg %p220
      $region134: #{structure_encoder_forward.11} parent=111 // pred_check_branch
        %920 = sbr.rel (%p918) target = $region136
      $region135: #{structure_encoder_forward.11} parent=111 // pred_region
        %s921 = smul.u32 4, %s70
        %p922 = scmp.lt.s32.totalorder %s921, 7
        %s923 = scalar_select %p922, %s921, 7
        %s924 = smul.addr %s923, 8
        %s925 = scalar_lea.vmem %s11, %s924
        %s926 = smul.u32 4, %s70
      $region136: #{structure_encoder_forward.11} parent=111 // pred_fallthru
        _
    $region112: #{structure_encoder_forward.11} parent=5 // pred_fallthru
      _
    %p927 = scmp.le.s32.totalorder 1, %s70
    %p928 = scmp.lt.s32.totalorder %s70, 3
    %p929 = pnand %p927, %p928
    %p930 = pneg %p929
    // Predicated region
    $region137: #{structure_encoder_forward.11} parent=5 // pred_check
      _
    $region138: #{structure_encoder_forward.11} parent=5 // pred_check_branch
      %932 = sbr.rel (%p929) target = $region140
    $region139: #{structure_encoder_forward.11} parent=5 // pred_region
      %s933 = ssub.s32 %s70, 1
      %s934 = smul.u32 4, %s75
      %p935 = scmp.lt.s32.totalorder %s934, 7
      %s936 = scalar_select %p935, %s934, 7
      %s937 = smul.addr %s936, 8
      %s938 = scalar_lea.vmem %s1, %s937
      %p939 = pneg %p96
      %p940 = pneg %p93
      %s941 = smul.u32 4, %s75
      %p942 = scmp.lt.s32.totalorder %s941, 7
      %s943 = scalar_select %p942, %s941, 7
      %s944 = smul.addr %s943, 8
      %s945 = scalar_lea.vmem %s3, %s944
      %p946 = pneg %p122
      %p947 = pneg %p119
      %s948 = smul.u32 4, %s75
      %p949 = scmp.lt.s32.totalorder %s948, 7
      %s950 = scalar_select %p949, %s948, 7
      %s951 = smul.addr %s950, 8
      %s952 = scalar_lea.vmem %s5, %s951
      %p953 = pneg %p148
      %p954 = pneg %p145
      %s955 = smul.u32 4, %s75
      %p956 = scmp.lt.s32.totalorder %s955, 7
      %s957 = scalar_select %p956, %s955, 7
      %s958 = smul.addr %s957, 8
      %s959 = scalar_lea.vmem %s7, %s958
      %p960 = pneg %p174
      %p961 = pneg %p171
      %s962 = smul.u32 4, %s75
      %p963 = scmp.lt.s32.totalorder %s962, 7
      %s964 = scalar_select %p963, %s962, 7
      %s965 = smul.addr %s964, 8
      %s966 = scalar_lea.vmem %s9, %s965
      %p967 = pneg %p200
      %p968 = pneg %p197
      %s969 = smul.u32 4, %s75
      %p970 = scmp.lt.s32.totalorder %s969, 7
      %s971 = scalar_select %p970, %s969, 7
      %s972 = smul.addr %s971, 8
      %s973 = scalar_lea.vmem %s11, %s972
      %p974 = pneg %p226
      %p975 = pneg %p223
      %p976 = pneg %p247
      %p977 = pneg %p244
      %p978 = pneg %p268
      %p979 = pneg %p265
      %p980 = pneg %p289
      %p981 = pneg %p286
      %p982 = pneg %p310
      %p983 = pneg %p307
      %p984 = pneg %p331
      %p985 = pneg %p328
      %p986 = pneg %p352
      %p987 = pneg %p349
      %p988 = pneg %p373
      %p989 = pneg %p370
      %p990 = pneg %p394
      %p991 = pneg %p391
      %p992 = pneg %p415
      %p993 = pneg %p412
      %p994 = pneg %p436
      %p995 = pneg %p433
      %p996 = pneg %p457
      %p997 = pneg %p454
      %p998 = pneg %p478
      %p999 = pneg %p475
      %p1000 = pneg %p499
      %p1001 = pneg %p496
      %p1002 = pneg %p520
      %p1003 = pneg %p517
      %p1004 = pneg %p541
      %p1005 = pneg %p538
      %p1006 = pneg %p562
      %p1007 = pneg %p559
      %p1008 = pneg %p583
      %p1009 = pneg %p580
      %p1010 = pneg %p604
      %p1011 = pneg %p601
      %p1012 = pneg %p625
      %p1013 = pneg %p622
      %p1014 = pneg %p646
      %p1015 = pneg %p643
      %p1016 = pneg %p667
      %p1017 = pneg %p664
      %p1018 = pneg %p688
      %p1019 = pneg %p685
      %p1020 = pneg %p709
      %p1021 = pneg %p706
      %p1022 = pneg %p730
      %p1023 = pneg %p727
      %p1024 = pneg %p756
      %p1025 = pneg %p753
      %s1026 = smul.u32 4, %s75
      %p1027 = scmp.lt.s32.totalorder %s1026, 7
      %s1028 = scalar_select %p1027, %s1026, 7
      %s1029 = smul.addr %s1028, 8
      %s1030 = scalar_lea.vmem %s61, %s1029
      %p1031 = pneg %p782
      %p1032 = pneg %p779
      %s1033 = smul.u32 4, %s75
      %p1034 = scmp.lt.s32.totalorder %s1033, 7
      %s1035 = scalar_select %p1034, %s1033, 7
      %s1036 = smul.addr %s1035, 8
      %s1037 = scalar_lea.vmem %s63, %s1036
      %s1038 = smul.u32 4, %s75
      %p1039 = scmp.lt.s32.totalorder %s1038, 7
      %s1040 = scalar_select %p1039, %s1038, 7
      %s1041 = smul.addr %s1040, 8
      %s1042 = scalar_lea.vmem %s1, %s1041
      %s1043 = smul.u32 4, %s75
      %s1044 = smul.u32 4, %s75
      %p1045 = scmp.lt.s32.totalorder %s1044, 7
      %s1046 = scalar_select %p1045, %s1044, 7
      %s1047 = smul.addr %s1046, 8
      %s1048 = scalar_lea.vmem %s3, %s1047
      %s1049 = smul.u32 4, %s75
      %s1050 = smul.u32 4, %s75
      %p1051 = scmp.lt.s32.totalorder %s1050, 7
      %s1052 = scalar_select %p1051, %s1050, 7
      %s1053 = smul.addr %s1052, 8
      %s1054 = scalar_lea.vmem %s5, %s1053
      %s1055 = smul.u32 4, %s75
      %s1056 = smul.u32 4, %s75
      %p1057 = scmp.lt.s32.totalorder %s1056, 7
      %s1058 = scalar_select %p1057, %s1056, 7
      %s1059 = smul.addr %s1058, 8
      %s1060 = scalar_lea.vmem %s7, %s1059
      %s1061 = smul.u32 4, %s75
      %s1062 = smul.u32 4, %s75
      %p1063 = scmp.lt.s32.totalorder %s1062, 7
      %s1064 = scalar_select %p1063, %s1062, 7
      %s1065 = smul.addr %s1064, 8
      %s1066 = scalar_lea.vmem %s9, %s1065
      %s1067 = smul.u32 4, %s75
      %s1068 = smul.u32 4, %s75
      %p1069 = scmp.lt.s32.totalorder %s1068, 7
      %s1070 = scalar_select %p1069, %s1068, 7
      %s1071 = smul.addr %s1070, 8
      %s1072 = scalar_lea.vmem %s11, %s1071
      %s1073 = smul.u32 4, %s75
      %s1074 = smul.u32 4, %s75
      %p1075 = scmp.lt.s32.totalorder %s1074, 7
      %s1076 = scalar_select %p1075, %s1074, 7
      %s1077 = smul.addr %s1076, 8
      %s1078 = scalar_lea.vmem %s61, %s1077
      %s1079 = smul.u32 4, %s75
      %s1080 = smul.u32 4, %s75
      %p1081 = scmp.lt.s32.totalorder %s1080, 7
      %s1082 = scalar_select %p1081, %s1080, 7
      %s1083 = smul.addr %s1082, 8
      %s1084 = scalar_lea.vmem %s63, %s1083
      %s1085 = smul.u32 4, %s75
      %v1086 = vld [vmem:[%s13] sm:$0xff]
      %v1087 = vld [vmem:[%s13 + $0x8] sm:$0xf]
      %v1088 = vld [vmem:[%s15] sm:$0x7]
      %v1089 = vld [vmem:[%s17] sm:$0xff]
      %v1090 = vld [vmem:[%s17 + $0x8] sm:$0xf]
      %v1091 = vld [vmem:[%s19] sm:$0xff]
      %v1092 = vld [vmem:[%s19 + $0x8] sm:$0xff]
      %v1093 = vld [vmem:[%s19 + $0x10] sm:$0xff]
      %v1094 = vld [vmem:[%s19 + $0x18] sm:$0xff]
      %v1095 = vld [vmem:[%s21] sm:$0xff]
      %v1096 = vld [vmem:[%s21 + $0x8] sm:$0xff]
      %v1097 = vld [vmem:[%s21 + $0x10] sm:$0xff]
      %v1098 = vld [vmem:[%s21 + $0x18] sm:$0xff]
      %v1099 = vld [vmem:[%s23] sm:$0xff]
      %v1100 = vld [vmem:[%s23 + $0x8] sm:$0xff]
      %v1101 = vld [vmem:[%s23 + $0x10] sm:$0xff]
      %v1102 = vld [vmem:[%s23 + $0x18] sm:$0xff]
      %v1103 = vld [vmem:[%s25] sm:$0xff]
      %v1104 = vld [vmem:[%s25 + $0x8] sm:$0x1]
      %v1105 = vld [vmem:[%s27] sm:$0x1]
      %v1106 = vld [vmem:[%s29] sm:$0xff]
      %v1107 = vld [vmem:[%s29 + $0x8] sm:$0xff]
      %v1108 = vld [vmem:[%s29 + $0x10] sm:$0xff]
      %v1109 = vld [vmem:[%s29 + $0x18] sm:$0x7]
      %v1110 = vld [vmem:[%s31] sm:$0xff]
      %v1111 = vld [vmem:[%s31 + $0x8] sm:$0xff]
      %v1112 = vld [vmem:[%s31 + $0x10] sm:$0xff]
      %v1113 = vld [vmem:[%s31 + $0x18] sm:$0x7]
      %v1114 = vld [vmem:[%s33] sm:$0xff]
      %v1115 = vld [vmem:[%s33 + $0x8] sm:$0xf]
      %v1116 = vld [vmem:[%s35] sm:$0xff]
      %v1117 = vld [vmem:[%s35 + $0x8] sm:$0xf]
      %v1118 = vld [vmem:[%s37] sm:$0xff]
      %v1119 = vld [vmem:[%s37 + $0x8] sm:$0xff]
      %v1120 = vld [vmem:[%s37 + $0x10] sm:$0xff]
      %v1121 = vld [vmem:[%s37 + $0x18] sm:$0xff]
      %v1122 = vld [vmem:[%s39] sm:$0xf]
      %v1123 = vld [vmem:[%s41] sm:$0x1]
      %v1124 = vld [vmem:[%s43] sm:$0xff]
      %v1125 = vld [vmem:[%s43 + $0x8] sm:$0xf]
      %v1126 = vld [vmem:[%s45] sm:$0xff]
      %v1127 = vld [vmem:[%s45 + $0x8] sm:$0xf]
      %v1128 = vld [vmem:[%s47] sm:$0xff]
      %v1129 = vld [vmem:[%s47 + $0x8] sm:$0xf]
      %v1130 = vld [vmem:[%s49] sm:$0xff]
      %v1131 = vld [vmem:[%s49 + $0x8] sm:$0xf]
      %v1132 = vld [vmem:[%s51] sm:$0xff]
      %v1133 = vld [vmem:[%s51 + $0x8] sm:$0xff]
      %v1134 = vld [vmem:[%s51 + $0x10] sm:$0xff]
      %v1135 = vld [vmem:[%s51 + $0x18] sm:$0xff]
      %v1136 = vld [vmem:[%s53] sm:$0xf]
      %v1137 = vld [vmem:[%s55] sm:$0x1]
      %v1138 = vld [vmem:[%s57] sm:$0xff]
      %v1139 = vld [vmem:[%s57 + $0x8] sm:$0xf]
      %v1140 = vld [vmem:[%s59] sm:$0xff]
      %v1141 = vld [vmem:[%s59 + $0x8] sm:$0xf]
      %v1142 = vld [vmem:[%s1060] sm:$0xff]
      %v1143 = vld [vmem:[%s1060 + $0x8] sm:$0xff]
      %v1144 = vld [vmem:[%s1060 + $0x10] sm:$0xff]
      %v1145 = vld [vmem:[%s1060 + $0x18] sm:$0xff]
      %v1146 = vld [vmem:[%s1066] sm:$0xff]
      %v1147 = vld [vmem:[%s1066 + $0x8] sm:$0xff]
      %v1148 = vld [vmem:[%s1066 + $0x10] sm:$0xff]
      %v1149 = vld [vmem:[%s1066 + $0x18] sm:$0xff]
      %vm1150 = vcmask 23552
      %v1152 = vsel %vm1150, %v1146, 0
      %v1155 = vsel %vm1150, %v1147, 0
      %v1158 = vsel %vm1150, %v1148, 0
      %v1161 = vsel %vm1150, %v1149, 0
      %vm1163 = vcmask 1042432
      %v1165 = vsel %vm1163, %v1088, 0
      %1167 = vmatpush.msra.mxu0 0.0
      %1168 = vmatpush.msra.mxu0 0.0
      %1169 = vmatpush.msra.mxu0 0.0
      %1170 = vmatpush.msra.mxu0 0.0
      %1171 = vmatpush.msra.mxu0 0.0
      %1172 = vmatpush.msra.mxu0 0.0
      %1173 = vmatpush.msra.mxu0 0.0
      %1174 = vmatpush.msra.mxu0 0.0
      %1175 = vmatpush.msra.mxu0 0.0
      %1176 = vmatpush.msra.mxu0 0.0
      %1177 = vmatpush.msra.mxu0 0.0
      %1178 = vmatpush.msra.mxu0 0.0
      %1179 = vmatpush.msra.mxu0 0.0
      %1180 = vmatpush.msra.mxu0 0.0
      %1181 = vmatpush.msra.mxu0 0.0
      %1182 = vmatpush.msra.mxu0 %v1165
      %1183 = vmatmul.f32.gmra.mxu0 %v1152
      %v1184 = vpop.f32.mrf.mxu0
      %v1185 = vadd.f32 0.0, %v1184
      %1186 = vmatmul.f32.gmra.mxu0 %v1155
      %v1187 = vpop.f32.mrf.mxu0
      %v1188 = vadd.f32 0.0, %v1187
      %1189 = vmatmul.f32.gmra.mxu0 %v1158
      %v1190 = vpop.f32.mrf.mxu0
      %v1191 = vadd.f32 0.0, %v1190
      %1192 = vmatmul.f32.gmra.mxu0 %v1161
      %v1193 = vpop.f32.mrf.mxu0
      %v1194 = vadd.f32 0.0, %v1193
      %1195 = vdwg.mxu0
      %vm1196 = vcmask 97280
      %v1198 = vsel %vm1196, %v1142, 0
      %v1201 = vsel %vm1196, %v1143, 0
      %v1204 = vsel %vm1196, %v1144, 0
      %v1207 = vsel %vm1196, %v1145, 0
      %vm1209 = vcmask 1043456
      %v1211 = vsel %vm1209, %v1087, 0
      %1213 = vmatpush.msra.mxu0 0.0
      %1214 = vmatpush.msra.mxu0 0.0
      %1215 = vmatpush.msra.mxu0 0.0
      %1216 = vmatpush.msra.mxu0 0.0
      %1217 = vmatpush.msra.mxu0 0.0
      %1218 = vmatpush.msra.mxu0 0.0
      %1219 = vmatpush.msra.mxu0 0.0
      %1220 = vmatpush.msra.mxu0 0.0
      %1221 = vmatpush.msra.mxu0 0.0
      %1222 = vmatpush.msra.mxu0 0.0
      %1223 = vmatpush.msra.mxu0 0.0
      %1224 = vmatpush.msra.mxu0 0.0
      %1225 = vmatpush.msra.mxu0 0.0
      %1226 = vmatpush.msra.mxu0 0.0
      %1227 = vmatpush.msra.mxu0 %v1211
      %1228 = vmatpush.msra.mxu0 %v1086
      %1229 = vmatmul.f32.gmra.mxu0 %v1198
      %v1230 = vpop.f32.mrf.mxu0
      %v1231 = vadd.f32 %v1185, %v1230
      %1232 = vmatmul.f32.gmra.mxu0 %v1201
      %v1233 = vpop.f32.mrf.mxu0
      %v1234 = vadd.f32 %v1188, %v1233
      %1235 = vmatmul.f32.gmra.mxu0 %v1204
      %v1236 = vpop.f32.mrf.mxu0
      %v1237 = vadd.f32 %v1191, %v1236
      %1238 = vmatmul.f32.gmra.mxu0 %v1207
      %v1239 = vpop.f32.mrf.mxu0
      %v1240 = vadd.f32 %v1194, %v1239
      %1241 = vdwg.mxu0
      %v1242 = vld [vmem:[%s1072] sm:$0xff]
      %v1243 = vld [vmem:[%s1072 + $0x8] sm:$0xff]
      %v1244 = vld [vmem:[%s1072 + $0x10] sm:$0xff]
      %v1245 = vld [vmem:[%s1072 + $0x18] sm:$0xff]
      %v1247 = vsel %vm1196, %v1242, 0
      %v1250 = vsel %vm1196, %v1243, 0
      %v1253 = vsel %vm1196, %v1244, 0
      %v1256 = vsel %vm1196, %v1245, 0
      %v1259 = vsel %vm1209, %v1090, 0
      %1261 = vmatpush.msra.mxu0 0.0
      %1262 = vmatpush.msra.mxu0 0.0
      %1263 = vmatpush.msra.mxu0 0.0
      %1264 = vmatpush.msra.mxu0 0.0
      %1265 = vmatpush.msra.mxu0 0.0
      %1266 = vmatpush.msra.mxu0 0.0
      %1267 = vmatpush.msra.mxu0 0.0
      %1268 = vmatpush.msra.mxu0 0.0
      %1269 = vmatpush.msra.mxu0 0.0
      %1270 = vmatpush.msra.mxu0 0.0
      %1271 = vmatpush.msra.mxu0 0.0
      %1272 = vmatpush.msra.mxu0 0.0
      %1273 = vmatpush.msra.mxu0 0.0
      %1274 = vmatpush.msra.mxu0 0.0
      %1275 = vmatpush.msra.mxu0 %v1259
      %1276 = vmatpush.msra.mxu0 %v1089
      %1277 = vmatmul.f32.gmra.mxu0 %v1247
      %v1278 = vpop.f32.mrf.mxu0
      %v1279 = vadd.f32 0.0, %v1278
      %1280 = vmatmul.f32.gmra.mxu0 %v1250
      %v1281 = vpop.f32.mrf.mxu0
      %v1282 = vadd.f32 0.0, %v1281
      %1283 = vmatmul.f32.gmra.mxu0 %v1253
      %v1284 = vpop.f32.mrf.mxu0
      %v1285 = vadd.f32 0.0, %v1284
      %1286 = vmatmul.f32.gmra.mxu0 %v1256
      %v1287 = vpop.f32.mrf.mxu0
      %v1288 = vadd.f32 0.0, %v1287
      %1289 = vdwg.mxu0
      %v1290 = vadd.f32 %v1231, %v1279
      %v1291 = vadd.f32 %v1234, %v1282
      %v1292 = vadd.f32 %v1237, %v1285
      %v1293 = vadd.f32 %v1240, %v1288
      %v1294 = vmul.f32 %v1290, %v1290
      %v1295 = vmul.f32 %v1291, %v1291
      %v1296 = vmul.f32 %v1292, %v1292
      %v1297 = vmul.f32 %v1293, %v1293
      %vm1298 = vcmask 220160
      %v1300 = vsel %vm1298, %v1294, 0
      %v1303 = vsel %vm1298, %v1295, 0
      %v1306 = vsel %vm1298, %v1296, 0
      %v1309 = vsel %vm1298, %v1297, 0
      %v1312 = vsel %vm1163, %v1109, 0
      %1314 = vmatpush.msra.mxu0 0.0
      %1315 = vmatpush.msra.mxu0 0.0
      %1316 = vmatpush.msra.mxu0 0.0
      %1317 = vmatpush.msra.mxu0 0.0
      %1318 = vmatpush.msra.mxu0 0.0
      %1319 = vmatpush.msra.mxu0 0.0
      %1320 = vmatpush.msra.mxu0 0.0
      %1321 = vmatpush.msra.mxu0 0.0
      %1322 = vmatpush.msra.mxu0 0.0
      %1323 = vmatpush.msra.mxu0 0.0
      %1324 = vmatpush.msra.mxu0 0.0
      %1325 = vmatpush.msra.mxu0 0.0
      %1326 = vmatpush.msra.mxu0 %v1312
      %1327 = vmatpush.msra.mxu0 %v1108
      %1328 = vmatpush.msra.mxu0 %v1107
      %1329 = vmatpush.msra.mxu0 %v1106
      %1330 = vmatmul.f32.gmra.mxu0 %v1300
      %v1331 = vpop.f32.mrf.mxu0
      %v1332 = vadd.f32 0.0, %v1331
      %1333 = vmatmul.f32.gmra.mxu0 %v1303
      %v1334 = vpop.f32.mrf.mxu0
      %v1335 = vadd.f32 0.0, %v1334
      %1336 = vmatmul.f32.gmra.mxu0 %v1306
      %v1337 = vpop.f32.mrf.mxu0
      %v1338 = vadd.f32 0.0, %v1337
      %1339 = vmatmul.f32.gmra.mxu0 %v1309
      %v1340 = vpop.f32.mrf.mxu0
      %v1341 = vadd.f32 0.0, %v1340
      %1342 = vdwg.mxu0
      %v1343 = vmax.f32 %v1332, 1e-08
      %v1344 = vmax.f32 %v1335, 1e-08
      %v1345 = vmax.f32 %v1338, 1e-08
      %v1346 = vmax.f32 %v1341, 1e-08
      %v1347 = vrsqrt.pop %v1343
      %v1348 = vmul.f32 %v1347, %v1343
      %v1349 = vmul.f32 %v1348, %v1347
      %v1350 = vmul.f32 0.5, %v1349
      %v1351 = vsub.f32 1.5, %v1350
      %v1352 = vmul.f32 %v1347, %v1351
      %v1353 = vmul.f32 %v1343, %v1352
      %vm1354 = vcmp.eq.f32.partialorder %v1343, inf
      %v1355 = vsel %vm1354, %v1343, %v1353
      %vm1356 = vcmp.eq.f32.partialorder %v1343, 0.0
      %v1357 = vand.u32 %v1343, 2147483648
      %v1358 = vsel %vm1356, %v1357, %v1355
      %v1359 = vrsqrt.pop %v1344
      %v1360 = vmul.f32 %v1359, %v1344
      %v1361 = vmul.f32 %v1360, %v1359
      %v1362 = vmul.f32 0.5, %v1361
      %v1363 = vsub.f32 1.5, %v1362
      %v1364 = vmul.f32 %v1359, %v1363
      %v1365 = vmul.f32 %v1344, %v1364
      %vm1366 = vcmp.eq.f32.partialorder %v1344, inf
      %v1367 = vsel %vm1366, %v1344, %v1365
      %vm1368 = vcmp.eq.f32.partialorder %v1344, 0.0
      %v1369 = vand.u32 %v1344, 2147483648
      %v1370 = vsel %vm1368, %v1369, %v1367
      %v1371 = vrsqrt.pop %v1345
      %v1372 = vmul.f32 %v1371, %v1345
      %v1373 = vmul.f32 %v1372, %v1371
      %v1374 = vmul.f32 0.5, %v1373
      %v1375 = vsub.f32 1.5, %v1374
      %v1376 = vmul.f32 %v1371, %v1375
      %v1377 = vmul.f32 %v1345, %v1376
      %vm1378 = vcmp.eq.f32.partialorder %v1345, inf
      %v1379 = vsel %vm1378, %v1345, %v1377
      %vm1380 = vcmp.eq.f32.partialorder %v1345, 0.0
      %v1381 = vand.u32 %v1345, 2147483648
      %v1382 = vsel %vm1380, %v1381, %v1379
      %v1383 = vrsqrt.pop %v1346
      %v1384 = vmul.f32 %v1383, %v1346
      %v1385 = vmul.f32 %v1384, %v1383
      %v1386 = vmul.f32 0.5, %v1385
      %v1387 = vsub.f32 1.5, %v1386
      %v1388 = vmul.f32 %v1383, %v1387
      %v1389 = vmul.f32 %v1346, %v1388
      %vm1390 = vcmp.eq.f32.partialorder %v1346, inf
      %v1391 = vsel %vm1390, %v1346, %v1389
      %vm1392 = vcmp.eq.f32.partialorder %v1346, 0.0
      %v1393 = vand.u32 %v1346, 2147483648
      %v1394 = vsel %vm1392, %v1393, %v1391
      %v1395 = vld [vmem:[%s1042] sm:$0xff]
      %v1396 = vld [vmem:[%s1042 + $0x8] sm:$0xff]
      %v1397 = vld [vmem:[%s1042 + $0x10] sm:$0xff]
      %v1398 = vld [vmem:[%s1042 + $0x18] sm:$0xff]
      %v1399 = vld [vmem:[%s1048] sm:$0xff]
      %v1400 = vld [vmem:[%s1048 + $0x8] sm:$0xff]
      %v1401 = vld [vmem:[%s1048 + $0x10] sm:$0xff]
      %v1402 = vld [vmem:[%s1048 + $0x18] sm:$0xff]
      %vm1403 = vcmask 261120
      %v1405 = vsel %vm1403, %v1399, 0
      %v1408 = vsel %vm1403, %v1400, 0
      %v1411 = vsel %vm1403, %v1401, 0
      %v1414 = vsel %vm1403, %v1402, 0
      %1416 = vmatpush.msra.mxu0 0.0
      %1417 = vmatpush.msra.mxu0 0.0
      %1418 = vmatpush.msra.mxu0 0.0
      %1419 = vmatpush.msra.mxu0 0.0
      %1420 = vmatpush.msra.mxu0 0.0
      %1421 = vmatpush.msra.mxu0 0.0
      %1422 = vmatpush.msra.mxu0 0.0
      %1423 = vmatpush.msra.mxu0 0.0
      %1424 = vmatpush.msra.mxu0 0.0
      %1425 = vmatpush.msra.mxu0 0.0
      %1426 = vmatpush.msra.mxu0 0.0
      %1427 = vmatpush.msra.mxu0 0.0
      %1428 = vmatpush.msra.mxu0 %v1098
      %1429 = vmatpush.msra.mxu0 %v1097
      %1430 = vmatpush.msra.mxu0 %v1096
      %1431 = vmatpush.msra.mxu0 %v1095
      %1432 = vmatmul.f32.gmra.mxu0 %v1405
      %v1433 = vpop.f32.mrf.mxu0
      %v1434 = vadd.f32 0.0, %v1433
      %1435 = vmatmul.f32.gmra.mxu0 %v1408
      %v1436 = vpop.f32.mrf.mxu0
      %v1437 = vadd.f32 0.0, %v1436
      %1438 = vmatmul.f32.gmra.mxu0 %v1411
      %v1439 = vpop.f32.mrf.mxu0
      %v1440 = vadd.f32 0.0, %v1439
      %1441 = vmatmul.f32.gmra.mxu0 %v1414
      %v1442 = vpop.f32.mrf.mxu0
      %v1443 = vadd.f32 0.0, %v1442
      %1444 = vdwg.mxu0
      %v1446 = vsel %vm1403, %v1395, 0
      %v1449 = vsel %vm1403, %v1396, 0
      %v1452 = vsel %vm1403, %v1397, 0
      %v1455 = vsel %vm1403, %v1398, 0
      %1457 = vmatpush.msra.mxu0 0.0
      %1458 = vmatpush.msra.mxu0 0.0
      %1459 = vmatpush.msra.mxu0 0.0
      %1460 = vmatpush.msra.mxu0 0.0
      %1461 = vmatpush.msra.mxu0 0.0
      %1462 = vmatpush.msra.mxu0 0.0
      %1463 = vmatpush.msra.mxu0 0.0
      %1464 = vmatpush.msra.mxu0 0.0
      %1465 = vmatpush.msra.mxu0 0.0
      %1466 = vmatpush.msra.mxu0 0.0
      %1467 = vmatpush.msra.mxu0 0.0
      %1468 = vmatpush.msra.mxu0 0.0
      %1469 = vmatpush.msra.mxu0 %v1094
      %1470 = vmatpush.msra.mxu0 %v1093
      %1471 = vmatpush.msra.mxu0 %v1092
      %1472 = vmatpush.msra.mxu0 %v1091
      %1473 = vmatmul.f32.gmra.mxu0 %v1446
      %v1474 = vpop.f32.mrf.mxu0
      %v1475 = vadd.f32 %v1434, %v1474
      %1476 = vmatmul.f32.gmra.mxu0 %v1449
      %v1477 = vpop.f32.mrf.mxu0
      %v1478 = vadd.f32 %v1437, %v1477
      %1479 = vmatmul.f32.gmra.mxu0 %v1452
      %v1480 = vpop.f32.mrf.mxu0
      %v1481 = vadd.f32 %v1440, %v1480
      %1482 = vmatmul.f32.gmra.mxu0 %v1455
      %v1483 = vpop.f32.mrf.mxu0
      %v1484 = vadd.f32 %v1443, %v1483
      %1485 = vdwg.mxu0
      %v1486 = vld [vmem:[%s1054] sm:$0xff]
      %v1487 = vld [vmem:[%s1054 + $0x8] sm:$0xff]
      %v1488 = vld [vmem:[%s1054 + $0x10] sm:$0xff]
      %v1489 = vld [vmem:[%s1054 + $0x18] sm:$0xff]
      %v1491 = vsel %vm1403, %v1486, 0
      %v1494 = vsel %vm1403, %v1487, 0
      %v1497 = vsel %vm1403, %v1488, 0
      %v1500 = vsel %vm1403, %v1489, 0
      %1502 = vmatpush.msra.mxu0 0.0
      %1503 = vmatpush.msra.mxu0 0.0
      %1504 = vmatpush.msra.mxu0 0.0
      %1505 = vmatpush.msra.mxu0 0.0
      %1506 = vmatpush.msra.mxu0 0.0
      %1507 = vmatpush.msra.mxu0 0.0
      %1508 = vmatpush.msra.mxu0 0.0
      %1509 = vmatpush.msra.mxu0 0.0
      %1510 = vmatpush.msra.mxu0 0.0
      %1511 = vmatpush.msra.mxu0 0.0
      %1512 = vmatpush.msra.mxu0 0.0
      %1513 = vmatpush.msra.mxu0 0.0
      %1514 = vmatpush.msra.mxu0 %v1102
      %1515 = vmatpush.msra.mxu0 %v1101
      %1516 = vmatpush.msra.mxu0 %v1100
      %1517 = vmatpush.msra.mxu0 %v1099
      %1518 = vmatmul.f32.gmra.mxu0 %v1491
      %v1519 = vpop.f32.mrf.mxu0
      %v1520 = vadd.f32 0.0, %v1519
      %1521 = vmatmul.f32.gmra.mxu0 %v1494
      %v1522 = vpop.f32.mrf.mxu0
      %v1523 = vadd.f32 0.0, %v1522
      %1524 = vmatmul.f32.gmra.mxu0 %v1497
      %v1525 = vpop.f32.mrf.mxu0
      %v1526 = vadd.f32 0.0, %v1525
      %1527 = vmatmul.f32.gmra.mxu0 %v1500
      %v1528 = vpop.f32.mrf.mxu0
      %v1529 = vadd.f32 0.0, %v1528
      %1530 = vdwg.mxu0
      %v1531 = vadd.f32 %v1475, %v1520
      %v1532 = vadd.f32 %v1478, %v1523
      %v1533 = vadd.f32 %v1481, %v1526
      %v1534 = vadd.f32 %v1484, %v1529
      %vm1535 = vcmask 72704
      %v1537 = vsel %vm1535, %v1358, 0
      %v1540 = vsel %vm1535, %v1370, 0
      %v1543 = vsel %vm1535, %v1382, 0
      %v1546 = vsel %vm1535, %v1394, 0
      %vm1548 = vcmask 1040384
      %v1550 = vsel %vm1548, %v1104, 0
      %1552 = vmatpush.msra.mxu0 0.0
      %1553 = vmatpush.msra.mxu0 0.0
      %1554 = vmatpush.msra.mxu0 0.0
      %1555 = vmatpush.msra.mxu0 0.0
      %1556 = vmatpush.msra.mxu0 0.0
      %1557 = vmatpush.msra.mxu0 0.0
      %1558 = vmatpush.msra.mxu0 0.0
      %1559 = vmatpush.msra.mxu0 0.0
      %1560 = vmatpush.msra.mxu0 0.0
      %1561 = vmatpush.msra.mxu0 0.0
      %1562 = vmatpush.msra.mxu0 0.0
      %1563 = vmatpush.msra.mxu0 0.0
      %1564 = vmatpush.msra.mxu0 0.0
      %1565 = vmatpush.msra.mxu0 0.0
      %1566 = vmatpush.msra.mxu0 %v1550
      %1567 = vmatpush.msra.mxu0 %v1103
      %1568 = vmatmul.f32.gmra.mxu0 %v1537
      %v1569 = vpop.f32.mrf.mxu0
      %v1570 = vadd.f32 0.0, %v1569
      %1571 = vmatmul.f32.gmra.mxu0 %v1540
      %v1572 = vpop.f32.mrf.mxu0
      %v1573 = vadd.f32 0.0, %v1572
      %1574 = vmatmul.f32.gmra.mxu0 %v1543
      %v1575 = vpop.f32.mrf.mxu0
      %v1576 = vadd.f32 0.0, %v1575
      %1577 = vmatmul.f32.gmra.mxu0 %v1546
      %v1578 = vpop.f32.mrf.mxu0
      %v1579 = vadd.f32 0.0, %v1578
      %1580 = vdwg.mxu0
      %v1581 = vadd.f32 %v1531, %v1570
      %v1582 = vadd.f32 %v1532, %v1573
      %v1583 = vadd.f32 %v1533, %v1576
      %v1584 = vadd.f32 %v1534, %v1579
      %v1586 = vperm.slane %v1105, 0
      %v1588 = vadd.f32 %v1581, %v1586
      %v1589 = vadd.f32 %v1582, %v1586
      %v1590 = vadd.f32 %v1583, %v1586
      %v1591 = vadd.f32 %v1584, %v1586
      %v1592 = vmax.f32 %v1588, 0.0
      %v1593 = vmax.f32 %v1589, 0.0
      %v1594 = vmax.f32 %v1590, 0.0
      %v1595 = vmax.f32 %v1591, 0.0
      %v1597 = vsel %vm1298, %v1290, 0
      %v1600 = vsel %vm1298, %v1291, 0
      %v1603 = vsel %vm1298, %v1292, 0
      %v1606 = vsel %vm1298, %v1293, 0
      %v1609 = vsel %vm1163, %v1113, 0
      %1611 = vmatpush.msra.mxu0 0.0
      %1612 = vmatpush.msra.mxu0 0.0
      %1613 = vmatpush.msra.mxu0 0.0
      %1614 = vmatpush.msra.mxu0 0.0
      %1615 = vmatpush.msra.mxu0 0.0
      %1616 = vmatpush.msra.mxu0 0.0
      %1617 = vmatpush.msra.mxu0 0.0
      %1618 = vmatpush.msra.mxu0 0.0
      %1619 = vmatpush.msra.mxu0 0.0
      %1620 = vmatpush.msra.mxu0 0.0
      %1621 = vmatpush.msra.mxu0 0.0
      %1622 = vmatpush.msra.mxu0 0.0
      %1623 = vmatpush.msra.mxu0 %v1609
      %1624 = vmatpush.msra.mxu0 %v1112
      %1625 = vmatpush.msra.mxu0 %v1111
      %1626 = vmatpush.msra.mxu0 %v1110
      %1627 = vmatmul.f32.gmra.mxu0 %v1597
      %v1628 = vpop.f32.mrf.mxu0
      %v1629 = vadd.f32 0.0, %v1628
      %1630 = vmatmul.f32.gmra.mxu0 %v1600
      %v1631 = vpop.f32.mrf.mxu0
      %v1632 = vadd.f32 0.0, %v1631
      %1633 = vmatmul.f32.gmra.mxu0 %v1603
      %v1634 = vpop.f32.mrf.mxu0
      %v1635 = vadd.f32 0.0, %v1634
      %1636 = vmatmul.f32.gmra.mxu0 %v1606
      %v1637 = vpop.f32.mrf.mxu0
      %v1638 = vadd.f32 0.0, %v1637
      %1639 = vdwg.mxu0
      %v1640 = vmul.f32 %v1629, %v1629
      %v1641 = vmul.f32 %v1632, %v1632
      %v1642 = vmul.f32 %v1635, %v1635
      %v1643 = vmul.f32 %v1638, %v1638
      %v1645 = vsel %vm1196, %v1640, 0
      %v1648 = vsel %vm1196, %v1641, 0
      %v1651 = vsel %vm1196, %v1642, 0
      %v1654 = vsel %vm1196, %v1643, 0
      %v1657 = vsel %vm1209, %v1115, 0
      %1659 = vmatpush.msra.mxu0 0.0
      %1660 = vmatpush.msra.mxu0 0.0
      %1661 = vmatpush.msra.mxu0 0.0
      %1662 = vmatpush.msra.mxu0 0.0
      %1663 = vmatpush.msra.mxu0 0.0
      %1664 = vmatpush.msra.mxu0 0.0
      %1665 = vmatpush.msra.mxu0 0.0
      %1666 = vmatpush.msra.mxu0 0.0
      %1667 = vmatpush.msra.mxu0 0.0
      %1668 = vmatpush.msra.mxu0 0.0
      %1669 = vmatpush.msra.mxu0 0.0
      %1670 = vmatpush.msra.mxu0 0.0
      %1671 = vmatpush.msra.mxu0 0.0
      %1672 = vmatpush.msra.mxu0 0.0
      %1673 = vmatpush.msra.mxu0 %v1657
      %1674 = vmatpush.msra.mxu0 %v1114
      %1675 = vmatmul.f32.gmra.mxu0 %v1645
      %v1676 = vpop.f32.mrf.mxu0
      %v1677 = vadd.f32 0.0, %v1676
      %1678 = vmatmul.f32.gmra.mxu0 %v1648
      %v1679 = vpop.f32.mrf.mxu0
      %v1680 = vadd.f32 0.0, %v1679
      %1681 = vmatmul.f32.gmra.mxu0 %v1651
      %v1682 = vpop.f32.mrf.mxu0
      %v1683 = vadd.f32 0.0, %v1682
      %1684 = vmatmul.f32.gmra.mxu0 %v1654
      %v1685 = vpop.f32.mrf.mxu0
      %v1686 = vadd.f32 0.0, %v1685
      %1687 = vdwg.mxu0
      %v1688 = vmax.f32 %v1677, 1e-08
      %v1689 = vmax.f32 %v1680, 1e-08
      %v1690 = vmax.f32 %v1683, 1e-08
      %v1691 = vmax.f32 %v1686, 1e-08
      %v1692 = vrsqrt.pop %v1688
      %v1693 = vmul.f32 %v1692, %v1688
      %v1694 = vmul.f32 %v1693, %v1692
      %v1695 = vmul.f32 0.5, %v1694
      %v1696 = vsub.f32 1.5, %v1695
      %v1697 = vmul.f32 %v1692, %v1696
      %v1698 = vmul.f32 %v1688, %v1697
      %vm1699 = vcmp.eq.f32.partialorder %v1688, inf
      %v1700 = vsel %vm1699, %v1688, %v1698
      %vm1701 = vcmp.eq.f32.partialorder %v1688, 0.0
      %v1702 = vand.u32 %v1688, 2147483648
      %v1703 = vsel %vm1701, %v1702, %v1700
      %v1704 = vrsqrt.pop %v1689
      %v1705 = vmul.f32 %v1704, %v1689
      %v1706 = vmul.f32 %v1705, %v1704
      %v1707 = vmul.f32 0.5, %v1706
      %v1708 = vsub.f32 1.5, %v1707
      %v1709 = vmul.f32 %v1704, %v1708
      %v1710 = vmul.f32 %v1689, %v1709
      %vm1711 = vcmp.eq.f32.partialorder %v1689, inf
      %v1712 = vsel %vm1711, %v1689, %v1710
      %vm1713 = vcmp.eq.f32.partialorder %v1689, 0.0
      %v1714 = vand.u32 %v1689, 2147483648
      %v1715 = vsel %vm1713, %v1714, %v1712
      %v1716 = vrsqrt.pop %v1690
      %v1717 = vmul.f32 %v1716, %v1690
      %v1718 = vmul.f32 %v1717, %v1716
      %v1719 = vmul.f32 0.5, %v1718
      %v1720 = vsub.f32 1.5, %v1719
      %v1721 = vmul.f32 %v1716, %v1720
      %v1722 = vmul.f32 %v1690, %v1721
      %vm1723 = vcmp.eq.f32.partialorder %v1690, inf
      %v1724 = vsel %vm1723, %v1690, %v1722
      %vm1725 = vcmp.eq.f32.partialorder %v1690, 0.0
      %v1726 = vand.u32 %v1690, 2147483648
      %v1727 = vsel %vm1725, %v1726, %v1724
      %v1728 = vrsqrt.pop %v1691
      %v1729 = vmul.f32 %v1728, %v1691
      %v1730 = vmul.f32 %v1729, %v1728
      %v1731 = vmul.f32 0.5, %v1730
      %v1732 = vsub.f32 1.5, %v1731
      %v1733 = vmul.f32 %v1728, %v1732
      %v1734 = vmul.f32 %v1691, %v1733
      %vm1735 = vcmp.eq.f32.partialorder %v1691, inf
      %v1736 = vsel %vm1735, %v1691, %v1734
      %vm1737 = vcmp.eq.f32.partialorder %v1691, 0.0
      %v1738 = vand.u32 %v1691, 2147483648
      %v1739 = vsel %vm1737, %v1738, %v1736
      %v1740 = vxor.u32 %v1703, 2147483648
      %v1741 = vxor.u32 %v1715, 2147483648
      %v1742 = vxor.u32 %v1727, 2147483648
      %v1743 = vxor.u32 %v1739, 2147483648
      %v1744 = vmul.f32 %v1740, 1.442695
      %v1745 = vpow.pop %v1744
      %v1746 = vmul.f32 %v1741, 1.442695
      %v1747 = vpow.pop %v1746
      %v1748 = vmul.f32 %v1742, 1.442695
      %v1749 = vpow.pop %v1748
      %v1750 = vmul.f32 %v1743, 1.442695
      %v1751 = vpow.pop %v1750
      %v1752 = vadd.f32 %v1745, 1.0
      %v1753 = vadd.f32 %v1747, 1.0
      %v1754 = vadd.f32 %v1749, 1.0
      %v1755 = vadd.f32 %v1751, 1.0
      %v1756 = vrcp.pop %v1752
      %v1757 = vmul.f32 %v1752, %v1756
      %v1758 = vsub.f32 1.0, %v1757
      %v1759 = vmul.f32 %v1756, %v1758
      %v1760 = vadd.f32 %v1756, %v1759
      %vm1761 = vweird.f32 %v1752
      %vm1762 = vweird.f32 %v1756
      %vm1763 = vmor %vm1761, %vm1762
      %v1764 = vsel %vm1763, %v1756, %v1760
      %v1765 = vand.u32 2147483647, %v1752
      %vm1766 = vcmp.eq.f32.partialorder %v1765, 8.507059e+37
      %v1767 = vand.u32 %v1752, 2147483648
      %v1768 = vor.u32 1.1754944e-38, %v1767
      %v1769 = vsel %vm1766, %v1768, %v1764
      %v1770 = vmul.f32 1.0, %v1769
      %v1771 = vrcp.pop %v1753
      %v1772 = vmul.f32 %v1753, %v1771
      %v1773 = vsub.f32 1.0, %v1772
      %v1774 = vmul.f32 %v1771, %v1773
      %v1775 = vadd.f32 %v1771, %v1774
      %vm1776 = vweird.f32 %v1753
      %vm1777 = vweird.f32 %v1771
      %vm1778 = vmor %vm1776, %vm1777
      %v1779 = vsel %vm1778, %v1771, %v1775
      %v1780 = vand.u32 2147483647, %v1753
      %vm1781 = vcmp.eq.f32.partialorder %v1780, 8.507059e+37
      %v1782 = vand.u32 %v1753, 2147483648
      %v1783 = vor.u32 1.1754944e-38, %v1782
      %v1784 = vsel %vm1781, %v1783, %v1779
      %v1785 = vmul.f32 1.0, %v1784
      %v1786 = vrcp.pop %v1754
      %v1787 = vmul.f32 %v1754, %v1786
      %v1788 = vsub.f32 1.0, %v1787
      %v1789 = vmul.f32 %v1786, %v1788
      %v1790 = vadd.f32 %v1786, %v1789
      %vm1791 = vweird.f32 %v1754
      %vm1792 = vweird.f32 %v1786
      %vm1793 = vmor %vm1791, %vm1792
      %v1794 = vsel %vm1793, %v1786, %v1790
      %v1795 = vand.u32 2147483647, %v1754
      %vm1796 = vcmp.eq.f32.partialorder %v1795, 8.507059e+37
      %v1797 = vand.u32 %v1754, 2147483648
      %v1798 = vor.u32 1.1754944e-38, %v1797
      %v1799 = vsel %vm1796, %v1798, %v1794
      %v1800 = vmul.f32 1.0, %v1799
      %v1801 = vrcp.pop %v1755
      %v1802 = vmul.f32 %v1755, %v1801
      %v1803 = vsub.f32 1.0, %v1802
      %v1804 = vmul.f32 %v1801, %v1803
      %v1805 = vadd.f32 %v1801, %v1804
      %vm1806 = vweird.f32 %v1755
      %vm1807 = vweird.f32 %v1801
      %vm1808 = vmor %vm1806, %vm1807
      %v1809 = vsel %vm1808, %v1801, %v1805
      %v1810 = vand.u32 2147483647, %v1755
      %vm1811 = vcmp.eq.f32.partialorder %v1810, 8.507059e+37
      %v1812 = vand.u32 %v1755, 2147483648
      %v1813 = vor.u32 1.1754944e-38, %v1812
      %v1814 = vsel %vm1811, %v1813, %v1809
      %v1815 = vmul.f32 1.0, %v1814
      %v1816 = vmul.f32 %v1629, %v1770
      %v1817 = vmul.f32 %v1632, %v1785
      %v1818 = vmul.f32 %v1635, %v1800
      %v1819 = vmul.f32 %v1638, %v1815
      %v1821 = vsel %vm1196, %v1816, 0
      %v1824 = vsel %vm1196, %v1817, 0
      %v1827 = vsel %vm1196, %v1818, 0
      %v1830 = vsel %vm1196, %v1819, 0
      %v1833 = vsel %vm1209, %v1117, 0
      %1835 = vmatpush.msra.mxu0 0.0
      %1836 = vmatpush.msra.mxu0 0.0
      %1837 = vmatpush.msra.mxu0 0.0
      %1838 = vmatpush.msra.mxu0 0.0
      %1839 = vmatpush.msra.mxu0 0.0
      %1840 = vmatpush.msra.mxu0 0.0
      %1841 = vmatpush.msra.mxu0 0.0
      %1842 = vmatpush.msra.mxu0 0.0
      %1843 = vmatpush.msra.mxu0 0.0
      %1844 = vmatpush.msra.mxu0 0.0
      %1845 = vmatpush.msra.mxu0 0.0
      %1846 = vmatpush.msra.mxu0 0.0
      %1847 = vmatpush.msra.mxu0 0.0
      %1848 = vmatpush.msra.mxu0 0.0
      %1849 = vmatpush.msra.mxu0 %v1833
      %1850 = vmatpush.msra.mxu0 %v1116
      %1851 = vmatmul.f32.gmra.mxu0 %v1821
      %v1852 = vpop.f32.mrf.mxu0
      %v1853 = vadd.f32 0.0, %v1852
      %1854 = vmatmul.f32.gmra.mxu0 %v1824
      %v1855 = vpop.f32.mrf.mxu0
      %v1856 = vadd.f32 0.0, %v1855
      %1857 = vmatmul.f32.gmra.mxu0 %v1827
      %v1858 = vpop.f32.mrf.mxu0
      %v1859 = vadd.f32 0.0, %v1858
      %1860 = vmatmul.f32.gmra.mxu0 %v1830
      %v1861 = vpop.f32.mrf.mxu0
      %v1862 = vadd.f32 0.0, %v1861
      %1863 = vdwg.mxu0
      %v1864 = vmul.f32 %v1853, %v1853
      %v1865 = vmul.f32 %v1856, %v1856
      %v1866 = vmul.f32 %v1859, %v1859
      %v1867 = vmul.f32 %v1862, %v1862
      %v1869 = vsel %vm1196, %v1864, 0
      %v1872 = vsel %vm1196, %v1865, 0
      %v1875 = vsel %vm1196, %v1866, 0
      %v1878 = vsel %vm1196, %v1867, 0
      %v1881 = vsel %vm1209, %v1125, 0
      %1883 = vmatpush.msra.mxu0 0.0
      %1884 = vmatpush.msra.mxu0 0.0
      %1885 = vmatpush.msra.mxu0 0.0
      %1886 = vmatpush.msra.mxu0 0.0
      %1887 = vmatpush.msra.mxu0 0.0
      %1888 = vmatpush.msra.mxu0 0.0
      %1889 = vmatpush.msra.mxu0 0.0
      %1890 = vmatpush.msra.mxu0 0.0
      %1891 = vmatpush.msra.mxu0 0.0
      %1892 = vmatpush.msra.mxu0 0.0
      %1893 = vmatpush.msra.mxu0 0.0
      %1894 = vmatpush.msra.mxu0 0.0
      %1895 = vmatpush.msra.mxu0 0.0
      %1896 = vmatpush.msra.mxu0 0.0
      %1897 = vmatpush.msra.mxu0 %v1881
      %1898 = vmatpush.msra.mxu0 %v1124
      %1899 = vmatmul.f32.gmra.mxu0 %v1869
      %v1900 = vpop.f32.mrf.mxu0
      %v1901 = vadd.f32 0.0, %v1900
      %1902 = vmatmul.f32.gmra.mxu0 %v1872
      %v1903 = vpop.f32.mrf.mxu0
      %v1904 = vadd.f32 0.0, %v1903
      %1905 = vmatmul.f32.gmra.mxu0 %v1875
      %v1906 = vpop.f32.mrf.mxu0
      %v1907 = vadd.f32 0.0, %v1906
      %1908 = vmatmul.f32.gmra.mxu0 %v1878
      %v1909 = vpop.f32.mrf.mxu0
      %v1910 = vadd.f32 0.0, %v1909
      %1911 = vdwg.mxu0
      %v1912 = vmax.f32 %v1901, 1e-08
      %v1913 = vmax.f32 %v1904, 1e-08
      %v1914 = vmax.f32 %v1907, 1e-08
      %v1915 = vmax.f32 %v1910, 1e-08
      %v1916 = vrsqrt.pop %v1912
      %v1917 = vmul.f32 %v1916, %v1912
      %v1918 = vmul.f32 %v1917, %v1916
      %v1919 = vmul.f32 0.5, %v1918
      %v1920 = vsub.f32 1.5, %v1919
      %v1921 = vmul.f32 %v1916, %v1920
      %v1922 = vmul.f32 %v1912, %v1921
      %vm1923 = vcmp.eq.f32.partialorder %v1912, inf
      %v1924 = vsel %vm1923, %v1912, %v1922
      %vm1925 = vcmp.eq.f32.partialorder %v1912, 0.0
      %v1926 = vand.u32 %v1912, 2147483648
      %v1927 = vsel %vm1925, %v1926, %v1924
      %v1928 = vrsqrt.pop %v1913
      %v1929 = vmul.f32 %v1928, %v1913
      %v1930 = vmul.f32 %v1929, %v1928
      %v1931 = vmul.f32 0.5, %v1930
      %v1932 = vsub.f32 1.5, %v1931
      %v1933 = vmul.f32 %v1928, %v1932
      %v1934 = vmul.f32 %v1913, %v1933
      %vm1935 = vcmp.eq.f32.partialorder %v1913, inf
      %v1936 = vsel %vm1935, %v1913, %v1934
      %vm1937 = vcmp.eq.f32.partialorder %v1913, 0.0
      %v1938 = vand.u32 %v1913, 2147483648
      %v1939 = vsel %vm1937, %v1938, %v1936
      %v1940 = vrsqrt.pop %v1914
      %v1941 = vmul.f32 %v1940, %v1914
      %v1942 = vmul.f32 %v1941, %v1940
      %v1943 = vmul.f32 0.5, %v1942
      %v1944 = vsub.f32 1.5, %v1943
      %v1945 = vmul.f32 %v1940, %v1944
      %v1946 = vmul.f32 %v1914, %v1945
      %vm1947 = vcmp.eq.f32.partialorder %v1914, inf
      %v1948 = vsel %vm1947, %v1914, %v1946
      %vm1949 = vcmp.eq.f32.partialorder %v1914, 0.0
      %v1950 = vand.u32 %v1914, 2147483648
      %v1951 = vsel %vm1949, %v1950, %v1948
      %v1952 = vrsqrt.pop %v1915
      %v1953 = vmul.f32 %v1952, %v1915
      %v1954 = vmul.f32 %v1953, %v1952
      %v1955 = vmul.f32 0.5, %v1954
      %v1956 = vsub.f32 1.5, %v1955
      %v1957 = vmul.f32 %v1952, %v1956
      %v1958 = vmul.f32 %v1915, %v1957
      %vm1959 = vcmp.eq.f32.partialorder %v1915, inf
      %v1960 = vsel %vm1959, %v1915, %v1958
      %vm1961 = vcmp.eq.f32.partialorder %v1915, 0.0
      %v1962 = vand.u32 %v1915, 2147483648
      %v1963 = vsel %vm1961, %v1962, %v1960
      %vm1964 = vcmask 31744
      %v1966 = vsel %vm1964, %v1927, 0
      %v1969 = vsel %vm1964, %v1939, 0
      %v1972 = vsel %vm1964, %v1951, 0
      %v1975 = vsel %vm1964, %v1963, 0
      %v1978 = vsel %vm1209, %v1122, 0
      %1980 = vmatpush.msra.mxu0 0.0
      %1981 = vmatpush.msra.mxu0 0.0
      %1982 = vmatpush.msra.mxu0 0.0
      %1983 = vmatpush.msra.mxu0 0.0
      %1984 = vmatpush.msra.mxu0 0.0
      %1985 = vmatpush.msra.mxu0 0.0
      %1986 = vmatpush.msra.mxu0 0.0
      %1987 = vmatpush.msra.mxu0 0.0
      %1988 = vmatpush.msra.mxu0 0.0
      %1989 = vmatpush.msra.mxu0 0.0
      %1990 = vmatpush.msra.mxu0 0.0
      %1991 = vmatpush.msra.mxu0 0.0
      %1992 = vmatpush.msra.mxu0 0.0
      %1993 = vmatpush.msra.mxu0 0.0
      %1994 = vmatpush.msra.mxu0 0.0
      %1995 = vmatpush.msra.mxu0 %v1978
      %1996 = vmatmul.f32.gmra.mxu0 %v1966
      %v1997 = vpop.f32.mrf.mxu0
      %v1998 = vadd.f32 0.0, %v1997
      %1999 = vmatmul.f32.gmra.mxu0 %v1969
      %v2000 = vpop.f32.mrf.mxu0
      %v2001 = vadd.f32 0.0, %v2000
      %2002 = vmatmul.f32.gmra.mxu0 %v1972
      %v2003 = vpop.f32.mrf.mxu0
      %v2004 = vadd.f32 0.0, %v2003
      %2005 = vmatmul.f32.gmra.mxu0 %v1975
      %v2006 = vpop.f32.mrf.mxu0
      %v2007 = vadd.f32 0.0, %v2006
      %2008 = vdwg.mxu0
      %v2010 = vsel %vm1403, %v1592, 0
      %v2013 = vsel %vm1403, %v1593, 0
      %v2016 = vsel %vm1403, %v1594, 0
      %v2019 = vsel %vm1403, %v1595, 0
      %2021 = vmatpush.msra.mxu0 0.0
      %2022 = vmatpush.msra.mxu0 0.0
      %2023 = vmatpush.msra.mxu0 0.0
      %2024 = vmatpush.msra.mxu0 0.0
      %2025 = vmatpush.msra.mxu0 0.0
      %2026 = vmatpush.msra.mxu0 0.0
      %2027 = vmatpush.msra.mxu0 0.0
      %2028 = vmatpush.msra.mxu0 0.0
      %2029 = vmatpush.msra.mxu0 0.0
      %2030 = vmatpush.msra.mxu0 0.0
      %2031 = vmatpush.msra.mxu0 0.0
      %2032 = vmatpush.msra.mxu0 0.0
      %2033 = vmatpush.msra.mxu0 %v1121
      %2034 = vmatpush.msra.mxu0 %v1120
      %2035 = vmatpush.msra.mxu0 %v1119
      %2036 = vmatpush.msra.mxu0 %v1118
      %2037 = vmatmul.f32.gmra.mxu0 %v2010
      %v2038 = vpop.f32.mrf.mxu0
      %v2039 = vadd.f32 %v1998, %v2038
      %2040 = vmatmul.f32.gmra.mxu0 %v2013
      %v2041 = vpop.f32.mrf.mxu0
      %v2042 = vadd.f32 %v2001, %v2041
      %2043 = vmatmul.f32.gmra.mxu0 %v2016
      %v2044 = vpop.f32.mrf.mxu0
      %v2045 = vadd.f32 %v2004, %v2044
      %2046 = vmatmul.f32.gmra.mxu0 %v2019
      %v2047 = vpop.f32.mrf.mxu0
      %v2048 = vadd.f32 %v2007, %v2047
      %2049 = vdwg.mxu0
      %v2051 = vperm.slane %v1123, 0
      %v2053 = vadd.f32 %v2039, %v2051
      %v2054 = vadd.f32 %v2042, %v2051
      %v2055 = vadd.f32 %v2045, %v2051
      %v2056 = vadd.f32 %v2048, %v2051
      %v2057 = vmax.f32 %v2053, 0.0
      %v2058 = vmax.f32 %v2054, 0.0
      %v2059 = vmax.f32 %v2055, 0.0
      %v2060 = vmax.f32 %v2056, 0.0
      %v2062 = vsel %vm1196, %v1853, 0
      %v2065 = vsel %vm1196, %v1856, 0
      %v2068 = vsel %vm1196, %v1859, 0
      %v2071 = vsel %vm1196, %v1862, 0
      %v2074 = vsel %vm1209, %v1127, 0
      %2076 = vmatpush.msra.mxu0 0.0
      %2077 = vmatpush.msra.mxu0 0.0
      %2078 = vmatpush.msra.mxu0 0.0
      %2079 = vmatpush.msra.mxu0 0.0
      %2080 = vmatpush.msra.mxu0 0.0
      %2081 = vmatpush.msra.mxu0 0.0
      %2082 = vmatpush.msra.mxu0 0.0
      %2083 = vmatpush.msra.mxu0 0.0
      %2084 = vmatpush.msra.mxu0 0.0
      %2085 = vmatpush.msra.mxu0 0.0
      %2086 = vmatpush.msra.mxu0 0.0
      %2087 = vmatpush.msra.mxu0 0.0
      %2088 = vmatpush.msra.mxu0 0.0
      %2089 = vmatpush.msra.mxu0 0.0
      %2090 = vmatpush.msra.mxu0 %v2074
      %2091 = vmatpush.msra.mxu0 %v1126
      %2092 = vmatmul.f32.gmra.mxu0 %v2062
      %v2093 = vpop.f32.mrf.mxu0
      %v2094 = vadd.f32 0.0, %v2093
      %2095 = vmatmul.f32.gmra.mxu0 %v2065
      %v2096 = vpop.f32.mrf.mxu0
      %v2097 = vadd.f32 0.0, %v2096
      %2098 = vmatmul.f32.gmra.mxu0 %v2068
      %v2099 = vpop.f32.mrf.mxu0
      %v2100 = vadd.f32 0.0, %v2099
      %2101 = vmatmul.f32.gmra.mxu0 %v2071
      %v2102 = vpop.f32.mrf.mxu0
      %v2103 = vadd.f32 0.0, %v2102
      %2104 = vdwg.mxu0
      %v2105 = vmul.f32 %v2094, %v2094
      %v2106 = vmul.f32 %v2097, %v2097
      %v2107 = vmul.f32 %v2100, %v2100
      %v2108 = vmul.f32 %v2103, %v2103
      %v2110 = vsel %vm1196, %v2105, 0
      %v2113 = vsel %vm1196, %v2106, 0
      %v2116 = vsel %vm1196, %v2107, 0
      %v2119 = vsel %vm1196, %v2108, 0
      %v2122 = vsel %vm1209, %v1129, 0
      %2124 = vmatpush.msra.mxu0 0.0
      %2125 = vmatpush.msra.mxu0 0.0
      %2126 = vmatpush.msra.mxu0 0.0
      %2127 = vmatpush.msra.mxu0 0.0
      %2128 = vmatpush.msra.mxu0 0.0
      %2129 = vmatpush.msra.mxu0 0.0
      %2130 = vmatpush.msra.mxu0 0.0
      %2131 = vmatpush.msra.mxu0 0.0
      %2132 = vmatpush.msra.mxu0 0.0
      %2133 = vmatpush.msra.mxu0 0.0
      %2134 = vmatpush.msra.mxu0 0.0
      %2135 = vmatpush.msra.mxu0 0.0
      %2136 = vmatpush.msra.mxu0 0.0
      %2137 = vmatpush.msra.mxu0 0.0
      %2138 = vmatpush.msra.mxu0 %v2122
      %2139 = vmatpush.msra.mxu0 %v1128
      %2140 = vmatmul.f32.gmra.mxu0 %v2110
      %v2141 = vpop.f32.mrf.mxu0
      %v2142 = vadd.f32 0.0, %v2141
      %2143 = vmatmul.f32.gmra.mxu0 %v2113
      %v2144 = vpop.f32.mrf.mxu0
      %v2145 = vadd.f32 0.0, %v2144
      %2146 = vmatmul.f32.gmra.mxu0 %v2116
      %v2147 = vpop.f32.mrf.mxu0
      %v2148 = vadd.f32 0.0, %v2147
      %2149 = vmatmul.f32.gmra.mxu0 %v2119
      %v2150 = vpop.f32.mrf.mxu0
      %v2151 = vadd.f32 0.0, %v2150
      %2152 = vdwg.mxu0
      %v2153 = vmax.f32 %v2142, 1e-08
      %v2154 = vmax.f32 %v2145, 1e-08
      %v2155 = vmax.f32 %v2148, 1e-08
      %v2156 = vmax.f32 %v2151, 1e-08
      %v2157 = vrsqrt.pop %v2153
      %v2158 = vmul.f32 %v2157, %v2153
      %v2159 = vmul.f32 %v2158, %v2157
      %v2160 = vmul.f32 0.5, %v2159
      %v2161 = vsub.f32 1.5, %v2160
      %v2162 = vmul.f32 %v2157, %v2161
      %v2163 = vmul.f32 %v2153, %v2162
      %vm2164 = vcmp.eq.f32.partialorder %v2153, inf
      %v2165 = vsel %vm2164, %v2153, %v2163
      %vm2166 = vcmp.eq.f32.partialorder %v2153, 0.0
      %v2167 = vand.u32 %v2153, 2147483648
      %v2168 = vsel %vm2166, %v2167, %v2165
      %v2169 = vrsqrt.pop %v2154
      %v2170 = vmul.f32 %v2169, %v2154
      %v2171 = vmul.f32 %v2170, %v2169
      %v2172 = vmul.f32 0.5, %v2171
      %v2173 = vsub.f32 1.5, %v2172
      %v2174 = vmul.f32 %v2169, %v2173
      %v2175 = vmul.f32 %v2154, %v2174
      %vm2176 = vcmp.eq.f32.partialorder %v2154, inf
      %v2177 = vsel %vm2176, %v2154, %v2175
      %vm2178 = vcmp.eq.f32.partialorder %v2154, 0.0
      %v2179 = vand.u32 %v2154, 2147483648
      %v2180 = vsel %vm2178, %v2179, %v2177
      %v2181 = vrsqrt.pop %v2155
      %v2182 = vmul.f32 %v2181, %v2155
      %v2183 = vmul.f32 %v2182, %v2181
      %v2184 = vmul.f32 0.5, %v2183
      %v2185 = vsub.f32 1.5, %v2184
      %v2186 = vmul.f32 %v2181, %v2185
      %v2187 = vmul.f32 %v2155, %v2186
      %vm2188 = vcmp.eq.f32.partialorder %v2155, inf
      %v2189 = vsel %vm2188, %v2155, %v2187
      %vm2190 = vcmp.eq.f32.partialorder %v2155, 0.0
      %v2191 = vand.u32 %v2155, 2147483648
      %v2192 = vsel %vm2190, %v2191, %v2189
      %v2193 = vrsqrt.pop %v2156
      %v2194 = vmul.f32 %v2193, %v2156
      %v2195 = vmul.f32 %v2194, %v2193
      %v2196 = vmul.f32 0.5, %v2195
      %v2197 = vsub.f32 1.5, %v2196
      %v2198 = vmul.f32 %v2193, %v2197
      %v2199 = vmul.f32 %v2156, %v2198
      %vm2200 = vcmp.eq.f32.partialorder %v2156, inf
      %v2201 = vsel %vm2200, %v2156, %v2199
      %vm2202 = vcmp.eq.f32.partialorder %v2156, 0.0
      %v2203 = vand.u32 %v2156, 2147483648
      %v2204 = vsel %vm2202, %v2203, %v2201
      %v2205 = vxor.u32 %v2168, 2147483648
      %v2206 = vxor.u32 %v2180, 2147483648
      %v2207 = vxor.u32 %v2192, 2147483648
      %v2208 = vxor.u32 %v2204, 2147483648
      %v2209 = vmul.f32 %v2205, 1.442695
      %v2210 = vpow.pop %v2209
      %v2211 = vmul.f32 %v2206, 1.442695
      %v2212 = vpow.pop %v2211
      %v2213 = vmul.f32 %v2207, 1.442695
      %v2214 = vpow.pop %v2213
      %v2215 = vmul.f32 %v2208, 1.442695
      %v2216 = vpow.pop %v2215
      %v2217 = vadd.f32 %v2210, 1.0
      %v2218 = vadd.f32 %v2212, 1.0
      %v2219 = vadd.f32 %v2214, 1.0
      %v2220 = vadd.f32 %v2216, 1.0
      %v2221 = vrcp.pop %v2217
      %v2222 = vmul.f32 %v2217, %v2221
      %v2223 = vsub.f32 1.0, %v2222
      %v2224 = vmul.f32 %v2221, %v2223
      %v2225 = vadd.f32 %v2221, %v2224
      %vm2226 = vweird.f32 %v2217
      %vm2227 = vweird.f32 %v2221
      %vm2228 = vmor %vm2226, %vm2227
      %v2229 = vsel %vm2228, %v2221, %v2225
      %v2230 = vand.u32 2147483647, %v2217
      %vm2231 = vcmp.eq.f32.partialorder %v2230, 8.507059e+37
      %v2232 = vand.u32 %v2217, 2147483648
      %v2233 = vor.u32 1.1754944e-38, %v2232
      %v2234 = vsel %vm2231, %v2233, %v2229
      %v2235 = vmul.f32 1.0, %v2234
      %v2236 = vrcp.pop %v2218
      %v2237 = vmul.f32 %v2218, %v2236
      %v2238 = vsub.f32 1.0, %v2237
      %v2239 = vmul.f32 %v2236, %v2238
      %v2240 = vadd.f32 %v2236, %v2239
      %vm2241 = vweird.f32 %v2218
      %vm2242 = vweird.f32 %v2236
      %vm2243 = vmor %vm2241, %vm2242
      %v2244 = vsel %vm2243, %v2236, %v2240
      %v2245 = vand.u32 2147483647, %v2218
      %vm2246 = vcmp.eq.f32.partialorder %v2245, 8.507059e+37
      %v2247 = vand.u32 %v2218, 2147483648
      %v2248 = vor.u32 1.1754944e-38, %v2247
      %v2249 = vsel %vm2246, %v2248, %v2244
      %v2250 = vmul.f32 1.0, %v2249
      %v2251 = vrcp.pop %v2219
      %v2252 = vmul.f32 %v2219, %v2251
      %v2253 = vsub.f32 1.0, %v2252
      %v2254 = vmul.f32 %v2251, %v2253
      %v2255 = vadd.f32 %v2251, %v2254
      %vm2256 = vweird.f32 %v2219
      %vm2257 = vweird.f32 %v2251
      %vm2258 = vmor %vm2256, %vm2257
      %v2259 = vsel %vm2258, %v2251, %v2255
      %v2260 = vand.u32 2147483647, %v2219
      %vm2261 = vcmp.eq.f32.partialorder %v2260, 8.507059e+37
      %v2262 = vand.u32 %v2219, 2147483648
      %v2263 = vor.u32 1.1754944e-38, %v2262
      %v2264 = vsel %vm2261, %v2263, %v2259
      %v2265 = vmul.f32 1.0, %v2264
      %v2266 = vrcp.pop %v2220
      %v2267 = vmul.f32 %v2220, %v2266
      %v2268 = vsub.f32 1.0, %v2267
      %v2269 = vmul.f32 %v2266, %v2268
      %v2270 = vadd.f32 %v2266, %v2269
      %vm2271 = vweird.f32 %v2220
      %vm2272 = vweird.f32 %v2266
      %vm2273 = vmor %vm2271, %vm2272
      %v2274 = vsel %vm2273, %v2266, %v2270
      %v2275 = vand.u32 2147483647, %v2220
      %vm2276 = vcmp.eq.f32.partialorder %v2275, 8.507059e+37
      %v2277 = vand.u32 %v2220, 2147483648
      %v2278 = vor.u32 1.1754944e-38, %v2277
      %v2279 = vsel %vm2276, %v2278, %v2274
      %v2280 = vmul.f32 1.0, %v2279
      %v2281 = vmul.f32 %v2094, %v2235
      %v2282 = vmul.f32 %v2097, %v2250
      %v2283 = vmul.f32 %v2100, %v2265
      %v2284 = vmul.f32 %v2103, %v2280
      %v2286 = vsel %vm1196, %v2281, 0
      %v2289 = vsel %vm1196, %v2282, 0
      %v2292 = vsel %vm1196, %v2283, 0
      %v2295 = vsel %vm1196, %v2284, 0
      %v2298 = vsel %vm1209, %v1131, 0
      %2300 = vmatpush.msra.mxu0 0.0
      %2301 = vmatpush.msra.mxu0 0.0
      %2302 = vmatpush.msra.mxu0 0.0
      %2303 = vmatpush.msra.mxu0 0.0
      %2304 = vmatpush.msra.mxu0 0.0
      %2305 = vmatpush.msra.mxu0 0.0
      %2306 = vmatpush.msra.mxu0 0.0
      %2307 = vmatpush.msra.mxu0 0.0
      %2308 = vmatpush.msra.mxu0 0.0
      %2309 = vmatpush.msra.mxu0 0.0
      %2310 = vmatpush.msra.mxu0 0.0
      %2311 = vmatpush.msra.mxu0 0.0
      %2312 = vmatpush.msra.mxu0 0.0
      %2313 = vmatpush.msra.mxu0 0.0
      %2314 = vmatpush.msra.mxu0 %v2298
      %2315 = vmatpush.msra.mxu0 %v1130
      %2316 = vmatmul.f32.gmra.mxu0 %v2286
      %v2317 = vpop.f32.mrf.mxu0
      %v2318 = vadd.f32 0.0, %v2317
      %2319 = vmatmul.f32.gmra.mxu0 %v2289
      %v2320 = vpop.f32.mrf.mxu0
      %v2321 = vadd.f32 0.0, %v2320
      %2322 = vmatmul.f32.gmra.mxu0 %v2292
      %v2323 = vpop.f32.mrf.mxu0
      %v2324 = vadd.f32 0.0, %v2323
      %2325 = vmatmul.f32.gmra.mxu0 %v2295
      %v2326 = vpop.f32.mrf.mxu0
      %v2327 = vadd.f32 0.0, %v2326
      %2328 = vdwg.mxu0
      %v2329 = vmul.f32 %v2318, %v2318
      %v2330 = vmul.f32 %v2321, %v2321
      %v2331 = vmul.f32 %v2324, %v2324
      %v2332 = vmul.f32 %v2327, %v2327
      %v2334 = vsel %vm1196, %v2329, 0
      %v2337 = vsel %vm1196, %v2330, 0
      %v2340 = vsel %vm1196, %v2331, 0
      %v2343 = vsel %vm1196, %v2332, 0
      %v2346 = vsel %vm1209, %v1139, 0
      %2348 = vmatpush.msra.mxu0 0.0
      %2349 = vmatpush.msra.mxu0 0.0
      %2350 = vmatpush.msra.mxu0 0.0
      %2351 = vmatpush.msra.mxu0 0.0
      %2352 = vmatpush.msra.mxu0 0.0
      %2353 = vmatpush.msra.mxu0 0.0
      %2354 = vmatpush.msra.mxu0 0.0
      %2355 = vmatpush.msra.mxu0 0.0
      %2356 = vmatpush.msra.mxu0 0.0
      %2357 = vmatpush.msra.mxu0 0.0
      %2358 = vmatpush.msra.mxu0 0.0
      %2359 = vmatpush.msra.mxu0 0.0
      %2360 = vmatpush.msra.mxu0 0.0
      %2361 = vmatpush.msra.mxu0 0.0
      %2362 = vmatpush.msra.mxu0 %v2346
      %2363 = vmatpush.msra.mxu0 %v1138
      %2364 = vmatmul.f32.gmra.mxu0 %v2334
      %v2365 = vpop.f32.mrf.mxu0
      %v2366 = vadd.f32 0.0, %v2365
      %2367 = vmatmul.f32.gmra.mxu0 %v2337
      %v2368 = vpop.f32.mrf.mxu0
      %v2369 = vadd.f32 0.0, %v2368
      %2370 = vmatmul.f32.gmra.mxu0 %v2340
      %v2371 = vpop.f32.mrf.mxu0
      %v2372 = vadd.f32 0.0, %v2371
      %2373 = vmatmul.f32.gmra.mxu0 %v2343
      %v2374 = vpop.f32.mrf.mxu0
      %v2375 = vadd.f32 0.0, %v2374
      %2376 = vdwg.mxu0
      %v2377 = vmax.f32 %v2366, 1e-08
      %v2378 = vmax.f32 %v2369, 1e-08
      %v2379 = vmax.f32 %v2372, 1e-08
      %v2380 = vmax.f32 %v2375, 1e-08
      %v2381 = vrsqrt.pop %v2377
      %v2382 = vmul.f32 %v2381, %v2377
      %v2383 = vmul.f32 %v2382, %v2381
      %v2384 = vmul.f32 0.5, %v2383
      %v2385 = vsub.f32 1.5, %v2384
      %v2386 = vmul.f32 %v2381, %v2385
      %v2387 = vmul.f32 %v2377, %v2386
      %vm2388 = vcmp.eq.f32.partialorder %v2377, inf
      %v2389 = vsel %vm2388, %v2377, %v2387
      %vm2390 = vcmp.eq.f32.partialorder %v2377, 0.0
      %v2391 = vand.u32 %v2377, 2147483648
      %v2392 = vsel %vm2390, %v2391, %v2389
      %v2393 = vrsqrt.pop %v2378
      %v2394 = vmul.f32 %v2393, %v2378
      %v2395 = vmul.f32 %v2394, %v2393
      %v2396 = vmul.f32 0.5, %v2395
      %v2397 = vsub.f32 1.5, %v2396
      %v2398 = vmul.f32 %v2393, %v2397
      %v2399 = vmul.f32 %v2378, %v2398
      %vm2400 = vcmp.eq.f32.partialorder %v2378, inf
      %v2401 = vsel %vm2400, %v2378, %v2399
      %vm2402 = vcmp.eq.f32.partialorder %v2378, 0.0
      %v2403 = vand.u32 %v2378, 2147483648
      %v2404 = vsel %vm2402, %v2403, %v2401
      %v2405 = vrsqrt.pop %v2379
      %v2406 = vmul.f32 %v2405, %v2379
      %v2407 = vmul.f32 %v2406, %v2405
      %v2408 = vmul.f32 0.5, %v2407
      %v2409 = vsub.f32 1.5, %v2408
      %v2410 = vmul.f32 %v2405, %v2409
      %v2411 = vmul.f32 %v2379, %v2410
      %vm2412 = vcmp.eq.f32.partialorder %v2379, inf
      %v2413 = vsel %vm2412, %v2379, %v2411
      %vm2414 = vcmp.eq.f32.partialorder %v2379, 0.0
      %v2415 = vand.u32 %v2379, 2147483648
      %v2416 = vsel %vm2414, %v2415, %v2413
      %v2417 = vrsqrt.pop %v2380
      %v2418 = vmul.f32 %v2417, %v2380
      %v2419 = vmul.f32 %v2418, %v2417
      %v2420 = vmul.f32 0.5, %v2419
      %v2421 = vsub.f32 1.5, %v2420
      %v2422 = vmul.f32 %v2417, %v2421
      %v2423 = vmul.f32 %v2380, %v2422
      %vm2424 = vcmp.eq.f32.partialorder %v2380, inf
      %v2425 = vsel %vm2424, %v2380, %v2423
      %vm2426 = vcmp.eq.f32.partialorder %v2380, 0.0
      %v2427 = vand.u32 %v2380, 2147483648
      %v2428 = vsel %vm2426, %v2427, %v2425
      %v2430 = vsel %vm1964, %v2392, 0
      %v2433 = vsel %vm1964, %v2404, 0
      %v2436 = vsel %vm1964, %v2416, 0
      %v2439 = vsel %vm1964, %v2428, 0
      %v2442 = vsel %vm1209, %v1136, 0
      %2444 = vmatpush.msra.mxu0 0.0
      %2445 = vmatpush.msra.mxu0 0.0
      %2446 = vmatpush.msra.mxu0 0.0
      %2447 = vmatpush.msra.mxu0 0.0
      %2448 = vmatpush.msra.mxu0 0.0
      %2449 = vmatpush.msra.mxu0 0.0
      %2450 = vmatpush.msra.mxu0 0.0
      %2451 = vmatpush.msra.mxu0 0.0
      %2452 = vmatpush.msra.mxu0 0.0
      %2453 = vmatpush.msra.mxu0 0.0
      %2454 = vmatpush.msra.mxu0 0.0
      %2455 = vmatpush.msra.mxu0 0.0
      %2456 = vmatpush.msra.mxu0 0.0
      %2457 = vmatpush.msra.mxu0 0.0
      %2458 = vmatpush.msra.mxu0 0.0
      %2459 = vmatpush.msra.mxu0 %v2442
      %2460 = vmatmul.f32.gmra.mxu0 %v2430
      %v2461 = vpop.f32.mrf.mxu0
      %v2462 = vadd.f32 0.0, %v2461
      %2463 = vmatmul.f32.gmra.mxu0 %v2433
      %v2464 = vpop.f32.mrf.mxu0
      %v2465 = vadd.f32 0.0, %v2464
      %2466 = vmatmul.f32.gmra.mxu0 %v2436
      %v2467 = vpop.f32.mrf.mxu0
      %v2468 = vadd.f32 0.0, %v2467
      %2469 = vmatmul.f32.gmra.mxu0 %v2439
      %v2470 = vpop.f32.mrf.mxu0
      %v2471 = vadd.f32 0.0, %v2470
      %2472 = vdwg.mxu0
      %v2474 = vsel %vm1403, %v2057, 0
      %v2477 = vsel %vm1403, %v2058, 0
      %v2480 = vsel %vm1403, %v2059, 0
      %v2483 = vsel %vm1403, %v2060, 0
      %2485 = vmatpush.msra.mxu0 0.0
      %2486 = vmatpush.msra.mxu0 0.0
      %2487 = vmatpush.msra.mxu0 0.0
      %2488 = vmatpush.msra.mxu0 0.0
      %2489 = vmatpush.msra.mxu0 0.0
      %2490 = vmatpush.msra.mxu0 0.0
      %2491 = vmatpush.msra.mxu0 0.0
      %2492 = vmatpush.msra.mxu0 0.0
      %2493 = vmatpush.msra.mxu0 0.0
      %2494 = vmatpush.msra.mxu0 0.0
      %2495 = vmatpush.msra.mxu0 0.0
      %2496 = vmatpush.msra.mxu0 0.0
      %2497 = vmatpush.msra.mxu0 %v1135
      %2498 = vmatpush.msra.mxu0 %v1134
      %2499 = vmatpush.msra.mxu0 %v1133
      %2500 = vmatpush.msra.mxu0 %v1132
      %2501 = vmatmul.f32.gmra.mxu0 %v2474
      %v2502 = vpop.f32.mrf.mxu0
      %v2503 = vadd.f32 %v2462, %v2502
      %2504 = vmatmul.f32.gmra.mxu0 %v2477
      %v2505 = vpop.f32.mrf.mxu0
      %v2506 = vadd.f32 %v2465, %v2505
      %2507 = vmatmul.f32.gmra.mxu0 %v2480
      %v2508 = vpop.f32.mrf.mxu0
      %v2509 = vadd.f32 %v2468, %v2508
      %2510 = vmatmul.f32.gmra.mxu0 %v2483
      %v2511 = vpop.f32.mrf.mxu0
      %v2512 = vadd.f32 %v2471, %v2511
      %2513 = vdwg.mxu0
      %v2515 = vperm.slane %v1137, 0
      %v2517 = vadd.f32 %v2503, %v2515
      %v2518 = vadd.f32 %v2506, %v2515
      %v2519 = vadd.f32 %v2509, %v2515
      %v2520 = vadd.f32 %v2512, %v2515
      %v2522 = vsel %vm1196, %v2318, 0
      %v2525 = vsel %vm1196, %v2321, 0
      %v2528 = vsel %vm1196, %v2324, 0
      %v2531 = vsel %vm1196, %v2327, 0
      %v2534 = vsel %vm1209, %v1141, 0
      %2536 = vmatpush.msra.mxu0 0.0
      %2537 = vmatpush.msra.mxu0 0.0
      %2538 = vmatpush.msra.mxu0 0.0
      %2539 = vmatpush.msra.mxu0 0.0
      %2540 = vmatpush.msra.mxu0 0.0
      %2541 = vmatpush.msra.mxu0 0.0
      %2542 = vmatpush.msra.mxu0 0.0
      %2543 = vmatpush.msra.mxu0 0.0
      %2544 = vmatpush.msra.mxu0 0.0
      %2545 = vmatpush.msra.mxu0 0.0
      %2546 = vmatpush.msra.mxu0 0.0
      %2547 = vmatpush.msra.mxu0 0.0
      %2548 = vmatpush.msra.mxu0 0.0
      %2549 = vmatpush.msra.mxu0 0.0
      %2550 = vmatpush.msra.mxu0 %v2534
      %2551 = vmatpush.msra.mxu0 %v1140
      %2552 = vmatmul.f32.gmra.mxu0 %v2522
      %v2553 = vpop.f32.mrf.mxu0
      %v2554 = vadd.f32 0.0, %v2553
      %2555 = vmatmul.f32.gmra.mxu0 %v2525
      %v2556 = vpop.f32.mrf.mxu0
      %v2557 = vadd.f32 0.0, %v2556
      %2558 = vmatmul.f32.gmra.mxu0 %v2528
      %v2559 = vpop.f32.mrf.mxu0
      %v2560 = vadd.f32 0.0, %v2559
      %2561 = vmatmul.f32.gmra.mxu0 %v2531
      %v2562 = vpop.f32.mrf.mxu0
      %v2563 = vadd.f32 0.0, %v2562
      %2564 = vdwg.mxu0
      %2565 = vst.msk [vmem:[%s1078] sm:$0xff] %vm1403, %v2517
      %2566 = vst.msk [vmem:[%s1078 + $0x8] sm:$0xff] %vm1403, %v2518
      %2567 = vst.msk [vmem:[%s1078 + $0x10] sm:$0xff] %vm1403, %v2519
      %2568 = vst.msk [vmem:[%s1078 + $0x18] sm:$0xff] %vm1403, %v2520
      %2569 = vst.msk [vmem:[%s1084] sm:$0xff] %vm1196, %v2554
      %2570 = vst.msk [vmem:[%s1084 + $0x8] sm:$0xff] %vm1196, %v2557
      %2571 = vst.msk [vmem:[%s1084 + $0x10] sm:$0xff] %vm1196, %v2560
      %2572 = vst.msk [vmem:[%s1084 + $0x18] sm:$0xff] %vm1196, %v2563
      %s2573 = smul.u32 4, %s75
      %p2574 = scmp.lt.s32.totalorder %s2573, 7
      %s2575 = scalar_select %p2574, %s2573, 7
      %s2576 = smul.addr %s2575, 8
      %s2577 = scalar_lea.vmem %s61, %s2576
      %s2578 = smul.u32 4, %s75
      %p2579 = scmp.lt.s32.totalorder %s2578, 7
      %s2580 = scalar_select %p2579, %s2578, 7
      %s2581 = smul.addr %s2580, 8
      %s2582 = scalar_lea.vmem %s63, %s2581
      // Predicated region
      $region141: #{structure_encoder_forward.11} parent=139 // pred_check
        %p2583 = pneg %p753
      $region142: #{structure_encoder_forward.11} parent=139 // pred_check_branch
        %2585 = sbr.rel (%p2583) target = $region144
      $region143: #{structure_encoder_forward.11} parent=139 // pred_region
        %s2586 = smul.u32 4, %s75
      $region144: #{structure_encoder_forward.11} parent=139 // pred_fallthru
        _
      // Predicated region
      $region145: #{structure_encoder_forward.11} parent=139 // pred_check
        %p2587 = pneg %p779
      $region146: #{structure_encoder_forward.11} parent=139 // pred_check_branch
        %2589 = sbr.rel (%p2587) target = $region148
      $region147: #{structure_encoder_forward.11} parent=139 // pred_region
        %s2590 = smul.u32 4, %s75
      $region148: #{structure_encoder_forward.11} parent=139 // pred_fallthru
        _
    $region140: #{structure_encoder_forward.11} parent=5 // pred_fallthru
      _
    %p2591 = scmp.le.s32.totalorder 2, %s70
    // Predicated region
    $region149: #{structure_encoder_forward.11} parent=5 // pred_check
      %p2592 = pneg %p2591
    $region150: #{structure_encoder_forward.11} parent=5 // pred_check_branch
      %2594 = sbr.rel (%p2592) target = $region152
    $region151: #{structure_encoder_forward.11} parent=5 // pred_region
      %s2595 = ssub.s32 %s70, 2
      // Predicated region
      $region153: #{structure_encoder_forward.11} parent=151 // pred_check
        %p2596 = pneg %p759
      $region154: #{structure_encoder_forward.11} parent=151 // pred_check_branch
        %2598 = sbr.rel (%p2596) target = $region156
      $region155: #{structure_encoder_forward.11} parent=151 // pred_region
        %s2599 = smul.u32 4, %s76
        %p2600 = scmp.lt.s32.totalorder %s2599, 7
        %s2601 = scalar_select %p2600, %s2599, 7
        %s2602 = smul.addr %s2601, 8
        %s2603 = scalar_lea.vmem %s61, %s2602
      $region156: #{structure_encoder_forward.11} parent=151 // pred_fallthru
        _
      // Predicated region
      $region157: #{structure_encoder_forward.11} parent=151 // pred_check
        %p2604 = pneg %p785
      $region158: #{structure_encoder_forward.11} parent=151 // pred_check_branch
        %2606 = sbr.rel (%p2604) target = $region160
      $region159: #{structure_encoder_forward.11} parent=151 // pred_region
        %s2607 = smul.u32 4, %s76
        %p2608 = scmp.lt.s32.totalorder %s2607, 7
        %s2609 = scalar_select %p2608, %s2607, 7
        %s2610 = smul.addr %s2609, 8
        %s2611 = scalar_lea.vmem %s63, %s2610
      $region160: #{structure_encoder_forward.11} parent=151 // pred_fallthru
        _
    $region152: #{structure_encoder_forward.11} parent=5 // pred_fallthru
      _
  $region6: #{structure_encoder_forward.11} parent=0 // loop_footer
    %s74 = sadd.s32 1, %s70
  $region7: #{structure_encoder_forward.11} parent=0 // loop_footer_branch
    %69 = sbr.rel target = $region3
  $region8: #{structure_encoder_forward.11} parent=0 // loop_exit
    _

// kernel: structure_encoder_forward.17
$region0: #{structure_encoder_forward.17}
  #allocation0 [shape = 'u32[]', space=smem, size = 0x4, offset = 0x4, fixed_abs, tag = 'smem constant byte address 0x4 - core index']
  #allocation1 [shape = 'u32[72,128]{1,0:T(1,128)}', space=vmem, size = 0x9000, scoped, tag = 'internal scratch']
  %s0 = inlined_call_operand.vmem [shape: f32[32,32], index: 0, kind: input, shape index: {}]
  %s1 = inlined_call_operand.vmem [shape: f32[32,12], index: 1, kind: input, shape index: {}]
  %s2 = inlined_call_operand.vmem [shape: f32[1,32], index: 2, kind: input, shape index: {}]
  %s3 = inlined_call_operand.vmem [shape: f32[1,32], index: 3, kind: input, shape index: {}]
  %s4 = inlined_call_operand.vmem [shape: f32[12,4], index: 4, kind: input, shape index: {}]
  %s5 = inlined_call_operand.vmem [shape: f32[12,12], index: 5, kind: input, shape index: {}]
  %s6 = inlined_call_operand.vmem [shape: f32[32,32], index: 6, kind: input, shape index: {}]
  %s7 = inlined_call_operand.vmem [shape: f32[4,32], index: 7, kind: input, shape index: {}]
  %s8 = inlined_call_operand.vmem [shape: f32[1,32], index: 8, kind: input, shape index: {}]
  %s9 = inlined_call_operand.vmem [shape: f32[12,4], index: 9, kind: input, shape index: {}]
  %s10 = inlined_call_operand.vmem [shape: f32[32,32], index: 10, kind: output, shape index: {}]
  %s11 = sld [smem:[#allocation0]]
  $region73: #{structure_encoder_forward.17} parent=0
    _
  %s13 = ssub.s32 1, %s11
  %s14 = scalar_select 0, %s13, %s11
  loop: start=0, step=1, limit=4
  $region2: #{structure_encoder_forward.17} parent=0 // loop_pre_header
    _
  $region3: #{structure_encoder_forward.17} parent=0 // loop_header
    %s16 = sphi 0, %s20
    %p17 = scmp.ge.s32.totalorder %s16, 4
    %s26 = sphi 0, %s28
    %s29 = sphi 0, %s26
    %s30 = sphi 0, %s29
    %s46 = sphi 0, %s30
    %s52 = sphi 0, %s54
    %s55 = sphi 0, %s52
    %s56 = sphi 0, %s55
    %s72 = sphi 0, %s56
    %s76 = sphi 0, %s76
    %s78 = sphi 0, %s76
    %s79 = sphi 0, %s78
    %s93 = sphi 0, %s79
    %s97 = sphi 0, %s97
    %s99 = sphi 0, %s97
    %s100 = sphi 0, %s99
    %s114 = sphi 0, %s100
    %s118 = sphi 0, %s118
    %s120 = sphi 0, %s118
    %s121 = sphi 0, %s120
    %s135 = sphi 0, %s121
    %s139 = sphi 0, %s139
    %s141 = sphi 0, %s139
    %s142 = sphi 0, %s141
    %s156 = sphi 0, %s142
    %s160 = sphi 0, %s160
    %s162 = sphi 0, %s160
    %s163 = sphi 0, %s162
    %s177 = sphi 0, %s163
    %s181 = sphi 0, %s181
    %s183 = sphi 0, %s181
    %s184 = sphi 0, %s183
    %s198 = sphi 0, %s184
    %s202 = sphi 0, %s202
    %s204 = sphi 0, %s202
    %s205 = sphi 0, %s204
    %s219 = sphi 0, %s205
    %s223 = sphi 0, %s223
    %s225 = sphi 0, %s223
    %s226 = sphi 0, %s225
    %s240 = sphi 0, %s226
    %s246 = sphi 0, %s248
    %s249 = sphi 0, %s246
    %s250 = sphi 0, %s249
    %s266 = sphi 0, %s250
  $region4: #{structure_encoder_forward.17} parent=0 // loop_header_branch
    %19 = sbr.rel (%p17) target = $region8
  $region5: #{structure_encoder_forward.17} parent=0 // loop_body
    %s21 = ssub.s32 %s16, 1
    %s22 = ssub.s32 %s16, 2
    %s23 = sadd.s32 %s16, 1
    %s24 = ssub.s32 %s16, %s23
    %p25 = scmp.eq.s32.totalorder %s24, 0
    %s27 = sadd.s32 %s26, 1
    %s28 = scalar_select %p25, %s26, %s27
    %p31 = pneg %p25
    %p32 = scmp.eq.s32.totalorder %s16, 1
    %p33 = por %p31, %p32
    %p34 = scmp.ne.s32.totalorder %s26, %s29
    %p35 = scmp.eq.s32.totalorder %s16, 0
    %p36 = por %p34, %p35
    %p37 = scmp.ne.s32.totalorder %s26, %s29
    %p38 = scmp.eq.s32.totalorder %s21, 1
    %p39 = por %p37, %p38
    %p40 = scmp.ne.s32.totalorder %s29, %s30
    %p41 = scmp.eq.s32.totalorder %s21, 0
    %p42 = por %p40, %p41
    %p43 = scmp.ne.s32.totalorder %s29, %s30
    %p44 = scmp.eq.s32.totalorder %s22, 1
    %p45 = por %p43, %p44
    %p47 = scmp.ne.s32.totalorder %s30, %s46
    %p48 = scmp.eq.s32.totalorder %s22, 0
    %p49 = por %p47, %p48
    %s50 = ssub.s32 %s16, %s23
    %p51 = scmp.eq.s32.totalorder %s50, 0
    %s53 = sadd.s32 %s52, 1
    %s54 = scalar_select %p51, %s52, %s53
    %p57 = pneg %p51
    %p58 = scmp.eq.s32.totalorder %s16, 1
    %p59 = por %p57, %p58
    %p60 = scmp.ne.s32.totalorder %s52, %s55
    %p61 = scmp.eq.s32.totalorder %s16, 0
    %p62 = por %p60, %p61
    %p63 = scmp.ne.s32.totalorder %s52, %s55
    %p64 = scmp.eq.s32.totalorder %s21, 1
    %p65 = por %p63, %p64
    %p66 = scmp.ne.s32.totalorder %s55, %s56
    %p67 = scmp.eq.s32.totalorder %s21, 0
    %p68 = por %p66, %p67
    %p69 = scmp.ne.s32.totalorder %s55, %s56
    %p70 = scmp.eq.s32.totalorder %s22, 1
    %p71 = por %p69, %p70
    %p73 = scmp.ne.s32.totalorder %s56, %s72
    %p74 = scmp.eq.s32.totalorder %s22, 0
    %p75 = por %p73, %p74
    %s77 = sadd.s32 %s76, 1
    %p80 = scmp.eq.s32.totalorder %s16, 1
    %p81 = scmp.ne.s32.totalorder %s76, %s78
    %p82 = scmp.eq.s32.totalorder %s16, 0
    %p83 = por %p81, %p82
    %p84 = scmp.ne.s32.totalorder %s76, %s78
    %p85 = scmp.eq.s32.totalorder %s21, 1
    %p86 = por %p84, %p85
    %p87 = scmp.ne.s32.totalorder %s78, %s79
    %p88 = scmp.eq.s32.totalorder %s21, 0
    %p89 = por %p87, %p88
    %p90 = scmp.ne.s32.totalorder %s78, %s79
    %p91 = scmp.eq.s32.totalorder %s22, 1
    %p92 = por %p90, %p91
    %p94 = scmp.ne.s32.totalorder %s79, %s93
    %p95 = scmp.eq.s32.totalorder %s22, 0
    %p96 = por %p94, %p95
    %s98 = sadd.s32 %s97, 1
    %p101 = scmp.eq.s32.totalorder %s16, 1
    %p102 = scmp.ne.s32.totalorder %s97, %s99
    %p103 = scmp.eq.s32.totalorder %s16, 0
    %p104 = por %p102, %p103
    %p105 = scmp.ne.s32.totalorder %s97, %s99
    %p106 = scmp.eq.s32.totalorder %s21, 1
    %p107 = por %p105, %p106
    %p108 = scmp.ne.s32.totalorder %s99, %s100
    %p109 = scmp.eq.s32.totalorder %s21, 0
    %p110 = por %p108, %p109
    %p111 = scmp.ne.s32.totalorder %s99, %s100
    %p112 = scmp.eq.s32.totalorder %s22, 1
    %p113 = por %p111, %p112
    %p115 = scmp.ne.s32.totalorder %s100, %s114
    %p116 = scmp.eq.s32.totalorder %s22, 0
    %p117 = por %p115, %p116
    %s119 = sadd.s32 %s118, 1
    %p122 = scmp.eq.s32.totalorder %s16, 1
    %p123 = scmp.ne.s32.totalorder %s118, %s120
    %p124 = scmp.eq.s32.totalorder %s16, 0
    %p125 = por %p123, %p124
    %p126 = scmp.ne.s32.totalorder %s118, %s120
    %p127 = scmp.eq.s32.totalorder %s21, 1
    %p128 = por %p126, %p127
    %p129 = scmp.ne.s32.totalorder %s120, %s121
    %p130 = scmp.eq.s32.totalorder %s21, 0
    %p131 = por %p129, %p130
    %p132 = scmp.ne.s32.totalorder %s120, %s121
    %p133 = scmp.eq.s32.totalorder %s22, 1
    %p134 = por %p132, %p133
    %p136 = scmp.ne.s32.totalorder %s121, %s135
    %p137 = scmp.eq.s32.totalorder %s22, 0
    %p138 = por %p136, %p137
    %s140 = sadd.s32 %s139, 1
    %p143 = scmp.eq.s32.totalorder %s16, 1
    %p144 = scmp.ne.s32.totalorder %s139, %s141
    %p145 = scmp.eq.s32.totalorder %s16, 0
    %p146 = por %p144, %p145
    %p147 = scmp.ne.s32.totalorder %s139, %s141
    %p148 = scmp.eq.s32.totalorder %s21, 1
    %p149 = por %p147, %p148
    %p150 = scmp.ne.s32.totalorder %s141, %s142
    %p151 = scmp.eq.s32.totalorder %s21, 0
    %p152 = por %p150, %p151
    %p153 = scmp.ne.s32.totalorder %s141, %s142
    %p154 = scmp.eq.s32.totalorder %s22, 1
    %p155 = por %p153, %p154
    %p157 = scmp.ne.s32.totalorder %s142, %s156
    %p158 = scmp.eq.s32.totalorder %s22, 0
    %p159 = por %p157, %p158
    %s161 = sadd.s32 %s160, 1
    %p164 = scmp.eq.s32.totalorder %s16, 1
    %p165 = scmp.ne.s32.totalorder %s160, %s162
    %p166 = scmp.eq.s32.totalorder %s16, 0
    %p167 = por %p165, %p166
    %p168 = scmp.ne.s32.totalorder %s160, %s162
    %p169 = scmp.eq.s32.totalorder %s21, 1
    %p170 = por %p168, %p169
    %p171 = scmp.ne.s32.totalorder %s162, %s163
    %p172 = scmp.eq.s32.totalorder %s21, 0
    %p173 = por %p171, %p172
    %p174 = scmp.ne.s32.totalorder %s162, %s163
    %p175 = scmp.eq.s32.totalorder %s22, 1
    %p176 = por %p174, %p175
    %p178 = scmp.ne.s32.totalorder %s163, %s177
    %p179 = scmp.eq.s32.totalorder %s22, 0
    %p180 = por %p178, %p179
    %s182 = sadd.s32 %s181, 1
    %p185 = scmp.eq.s32.totalorder %s16, 1
    %p186 = scmp.ne.s32.totalorder %s181, %s183
    %p187 = scmp.eq.s32.totalorder %s16, 0
    %p188 = por %p186, %p187
    %p189 = scmp.ne.s32.totalorder %s181, %s183
    %p190 = scmp.eq.s32.totalorder %s21, 1
    %p191 = por %p189, %p190
    %p192 = scmp.ne.s32.totalorder %s183, %s184
    %p193 = scmp.eq.s32.totalorder %s21, 0
    %p194 = por %p192, %p193
    %p195 = scmp.ne.s32.totalorder %s183, %s184
    %p196 = scmp.eq.s32.totalorder %s22, 1
    %p197 = por %p195, %p196
    %p199 = scmp.ne.s32.totalorder %s184, %s198
    %p200 = scmp.eq.s32.totalorder %s22, 0
    %p201 = por %p199, %p200
    %s203 = sadd.s32 %s202, 1
    %p206 = scmp.eq.s32.totalorder %s16, 1
    %p207 = scmp.ne.s32.totalorder %s202, %s204
    %p208 = scmp.eq.s32.totalorder %s16, 0
    %p209 = por %p207, %p208
    %p210 = scmp.ne.s32.totalorder %s202, %s204
    %p211 = scmp.eq.s32.totalorder %s21, 1
    %p212 = por %p210, %p211
    %p213 = scmp.ne.s32.totalorder %s204, %s205
    %p214 = scmp.eq.s32.totalorder %s21, 0
    %p215 = por %p213, %p214
    %p216 = scmp.ne.s32.totalorder %s204, %s205
    %p217 = scmp.eq.s32.totalorder %s22, 1
    %p218 = por %p216, %p217
    %p220 = scmp.ne.s32.totalorder %s205, %s219
    %p221 = scmp.eq.s32.totalorder %s22, 0
    %p222 = por %p220, %p221
    %s224 = sadd.s32 %s223, 1
    %p227 = scmp.eq.s32.totalorder %s16, 1
    %p228 = scmp.ne.s32.totalorder %s223, %s225
    %p229 = scmp.eq.s32.totalorder %s16, 0
    %p230 = por %p228, %p229
    %p231 = scmp.ne.s32.totalorder %s223, %s225
    %p232 = scmp.eq.s32.totalorder %s21, 1
    %p233 = por %p231, %p232
    %p234 = scmp.ne.s32.totalorder %s225, %s226
    %p235 = scmp.eq.s32.totalorder %s21, 0
    %p236 = por %p234, %p235
    %p237 = scmp.ne.s32.totalorder %s225, %s226
    %p238 = scmp.eq.s32.totalorder %s22, 1
    %p239 = por %p237, %p238
    %p241 = scmp.ne.s32.totalorder %s226, %s240
    %p242 = scmp.eq.s32.totalorder %s22, 0
    %p243 = por %p241, %p242
    %s244 = ssub.s32 %s16, %s23
    %p245 = scmp.eq.s32.totalorder %s244, 0
    %s247 = sadd.s32 %s246, 1
    %s248 = scalar_select %p245, %s246, %s247
    %p251 = pneg %p245
    %p252 = scmp.eq.s32.totalorder %s16, 1
    %p253 = por %p251, %p252
    %p254 = scmp.ne.s32.totalorder %s246, %s249
    %p255 = scmp.eq.s32.totalorder %s16, 0
    %p256 = por %p254, %p255
    %p257 = scmp.ne.s32.totalorder %s246, %s249
    %p258 = scmp.eq.s32.totalorder %s21, 1
    %p259 = por %p257, %p258
    %p260 = scmp.ne.s32.totalorder %s249, %s250
    %p261 = scmp.eq.s32.totalorder %s21, 0
    %p262 = por %p260, %p261
    %p263 = scmp.ne.s32.totalorder %s249, %s250
    %p264 = scmp.eq.s32.totalorder %s22, 1
    %p265 = por %p263, %p264
    %p267 = scmp.ne.s32.totalorder %s250, %s266
    %p268 = scmp.eq.s32.totalorder %s22, 0
    %p269 = por %p267, %p268
    %p270 = scmp.le.s32.totalorder 1, %s16
    %p271 = scmp.lt.s32.totalorder %s16, 3
    %p272 = pnand %p270, %p271
    %p273 = pneg %p272
    // Predicated region
    $region9: #{structure_encoder_forward.17} parent=5 // pred_check
      _
    $region10: #{structure_encoder_forward.17} parent=5 // pred_check_branch
      %275 = sbr.rel (%p272) target = $region12
    $region11: #{structure_encoder_forward.17} parent=5 // pred_region
      %s276 = ssub.s32 %s16, 1
      // Predicated region
      $region13: #{structure_encoder_forward.17} parent=11 // pred_check
        %p277 = pneg %p89
      $region14: #{structure_encoder_forward.17} parent=11 // pred_check_branch
        %279 = sbr.rel (%p277) target = $region16
      $region15: #{structure_encoder_forward.17} parent=11 // pred_region
        _
      $region16: #{structure_encoder_forward.17} parent=11 // pred_fallthru
        _
      // Predicated region
      $region17: #{structure_encoder_forward.17} parent=11 // pred_check
        %p280 = pneg %p110
      $region18: #{structure_encoder_forward.17} parent=11 // pred_check_branch
        %282 = sbr.rel (%p280) target = $region20
      $region19: #{structure_encoder_forward.17} parent=11 // pred_region
        _
      $region20: #{structure_encoder_forward.17} parent=11 // pred_fallthru
        _
      // Predicated region
      $region21: #{structure_encoder_forward.17} parent=11 // pred_check
        %p283 = pneg %p131
      $region22: #{structure_encoder_forward.17} parent=11 // pred_check_branch
        %285 = sbr.rel (%p283) target = $region24
      $region23: #{structure_encoder_forward.17} parent=11 // pred_region
        _
      $region24: #{structure_encoder_forward.17} parent=11 // pred_fallthru
        _
      // Predicated region
      $region25: #{structure_encoder_forward.17} parent=11 // pred_check
        %p286 = pneg %p152
      $region26: #{structure_encoder_forward.17} parent=11 // pred_check_branch
        %288 = sbr.rel (%p286) target = $region28
      $region27: #{structure_encoder_forward.17} parent=11 // pred_region
        _
      $region28: #{structure_encoder_forward.17} parent=11 // pred_fallthru
        _
      // Predicated region
      $region29: #{structure_encoder_forward.17} parent=11 // pred_check
        %p289 = pneg %p173
      $region30: #{structure_encoder_forward.17} parent=11 // pred_check_branch
        %291 = sbr.rel (%p289) target = $region32
      $region31: #{structure_encoder_forward.17} parent=11 // pred_region
        _
      $region32: #{structure_encoder_forward.17} parent=11 // pred_fallthru
        _
      // Predicated region
      $region33: #{structure_encoder_forward.17} parent=11 // pred_check
        %p292 = pneg %p194
      $region34: #{structure_encoder_forward.17} parent=11 // pred_check_branch
        %294 = sbr.rel (%p292) target = $region36
      $region35: #{structure_encoder_forward.17} parent=11 // pred_region
        _
      $region36: #{structure_encoder_forward.17} parent=11 // pred_fallthru
        _
      // Predicated region
      $region37: #{structure_encoder_forward.17} parent=11 // pred_check
        %p295 = pneg %p215
      $region38: #{structure_encoder_forward.17} parent=11 // pred_check_branch
        %297 = sbr.rel (%p295) target = $region40
      $region39: #{structure_encoder_forward.17} parent=11 // pred_region
        _
      $region40: #{structure_encoder_forward.17} parent=11 // pred_fallthru
        _
      // Predicated region
      $region41: #{structure_encoder_forward.17} parent=11 // pred_check
        %p298 = pneg %p236
      $region42: #{structure_encoder_forward.17} parent=11 // pred_check_branch
        %300 = sbr.rel (%p298) target = $region44
      $region43: #{structure_encoder_forward.17} parent=11 // pred_region
        _
      $region44: #{structure_encoder_forward.17} parent=11 // pred_fallthru
        _
    $region12: #{structure_encoder_forward.17} parent=5 // pred_fallthru
      _
    %p301 = scmp.lt.s32.totalorder %s16, 2
    // Predicated region
    $region45: #{structure_encoder_forward.17} parent=5 // pred_check
      %p302 = pneg %p301
    $region46: #{structure_encoder_forward.17} parent=5 // pred_check_branch
      %304 = sbr.rel (%p302) target = $region48
    $region47: #{structure_encoder_forward.17} parent=5 // pred_region
      // Predicated region
      $region49: #{structure_encoder_forward.17} parent=47 // pred_check
        %p305 = pneg %p36
      $region50: #{structure_encoder_forward.17} parent=47 // pred_check_branch
        %307 = sbr.rel (%p305) target = $region52
      $region51: #{structure_encoder_forward.17} parent=47 // pred_region
        %s308 = smul.u32 2, %s16
        %p309 = scmp.lt.s32.totalorder %s308, 3
        %s310 = scalar_select %p309, %s308, 3
        %s311 = smul.addr %s310, 8
        %s312 = scalar_lea.vmem %s0, %s311
        %s313 = smul.u32 2, %s16
      $region52: #{structure_encoder_forward.17} parent=47 // pred_fallthru
        _
      // Predicated region
      $region53: #{structure_encoder_forward.17} parent=47 // pred_check
        %p314 = pneg %p62
      $region54: #{structure_encoder_forward.17} parent=47 // pred_check_branch
        %316 = sbr.rel (%p314) target = $region56
      $region55: #{structure_encoder_forward.17} parent=47 // pred_region
        %s317 = smul.u32 2, %s16
        %p318 = scmp.lt.s32.totalorder %s317, 3
        %s319 = scalar_select %p318, %s317, 3
        %s320 = smul.addr %s319, 8
        %s321 = scalar_lea.vmem %s1, %s320
        %s322 = smul.u32 2, %s16
      $region56: #{structure_encoder_forward.17} parent=47 // pred_fallthru
        _
    $region48: #{structure_encoder_forward.17} parent=5 // pred_fallthru
      _
    %p323 = scmp.le.s32.totalorder 1, %s16
    %p324 = scmp.lt.s32.totalorder %s16, 3
    %p325 = pnand %p323, %p324
    %p326 = pneg %p325
    // Predicated region
    $region57: #{structure_encoder_forward.17} parent=5 // pred_check
      _
    $region58: #{structure_encoder_forward.17} parent=5 // pred_check_branch
      %328 = sbr.rel (%p325) target = $region60
    $region59: #{structure_encoder_forward.17} parent=5 // pred_region
      %s329 = ssub.s32 %s16, 1
      %s330 = smul.u32 2, %s21
      %p331 = scmp.lt.s32.totalorder %s330, 3
      %s332 = scalar_select %p331, %s330, 3
      %s333 = smul.addr %s332, 8
      %s334 = scalar_lea.vmem %s0, %s333
      %p335 = pneg %p42
      %p336 = pneg %p39
      %s337 = smul.u32 2, %s21
      %p338 = scmp.lt.s32.totalorder %s337, 3
      %s339 = scalar_select %p338, %s337, 3
      %s340 = smul.addr %s339, 8
      %s341 = scalar_lea.vmem %s1, %s340
      %p342 = pneg %p68
      %p343 = pneg %p65
      %p344 = pneg %p89
      %p345 = pneg %p86
      %p346 = pneg %p110
      %p347 = pneg %p107
      %p348 = pneg %p131
      %p349 = pneg %p128
      %p350 = pneg %p152
      %p351 = pneg %p149
      %p352 = pneg %p173
      %p353 = pneg %p170
      %p354 = pneg %p194
      %p355 = pneg %p191
      %p356 = pneg %p215
      %p357 = pneg %p212
      %p358 = pneg %p236
      %p359 = pneg %p233
      %p360 = pneg %p262
      %p361 = pneg %p259
      %s362 = smul.u32 2, %s21
      %p363 = scmp.lt.s32.totalorder %s362, 3
      %s364 = scalar_select %p363, %s362, 3
      %s365 = smul.addr %s364, 8
      %s366 = scalar_lea.vmem %s10, %s365
      %s367 = smul.u32 2, %s21
      %p368 = scmp.lt.s32.totalorder %s367, 3
      %s369 = scalar_select %p368, %s367, 3
      %s370 = smul.addr %s369, 8
      %s371 = scalar_lea.vmem %s0, %s370
      %s372 = smul.u32 2, %s21
      %s373 = smul.u32 2, %s21
      %p374 = scmp.lt.s32.totalorder %s373, 3
      %s375 = scalar_select %p374, %s373, 3
      %s376 = smul.addr %s375, 8
      %s377 = scalar_lea.vmem %s1, %s376
      %s378 = smul.u32 2, %s21
      %s379 = smul.u32 2, %s21
      %p380 = scmp.lt.s32.totalorder %s379, 3
      %s381 = scalar_select %p380, %s379, 3
      %s382 = smul.addr %s381, 8
      %s383 = scalar_lea.vmem %s10, %s382
      %s384 = smul.u32 2, %s21
      %v385 = vld [vmem:[%s2] sm:$0x1]
      %v386 = vld [vmem:[%s3] sm:$0x1]
      %v387 = vld [vmem:[%s4] sm:$0xff]
      %v388 = vld [vmem:[%s4 + $0x8] sm:$0xf]
      %v389 = vld [vmem:[%s5] sm:$0xff]
      %v390 = vld [vmem:[%s5 + $0x8] sm:$0xf]
      %v391 = vld [vmem:[%s6] sm:$0xff]
      %v392 = vld [vmem:[%s6 + $0x8] sm:$0xff]
      %v393 = vld [vmem:[%s6 + $0x10] sm:$0xff]
      %v394 = vld [vmem:[%s6 + $0x18] sm:$0xff]
      %v395 = vld [vmem:[%s7] sm:$0xf]
      %v396 = vld [vmem:[%s8] sm:$0x1]
      %v397 = vld [vmem:[%s9] sm:$0xff]
      %v398 = vld [vmem:[%s9 + $0x8] sm:$0xf]
      %v399 = vld [vmem:[%s371] sm:$0xff]
      %v400 = vld [vmem:[%s371 + $0x8] sm:$0xff]
      %v401 = vld [vmem:[%s377] sm:$0xff]
      %v402 = vld [vmem:[%s377 + $0x8] sm:$0xff]
      %vm403 = vcmask 261120
      %v404 = vsel %vm403, %v399, 0.0
      %405 = vadd.xlane.f32.xlu0 %v404
      %v406 = vpop.xlane.xlu0 %405
      %v407 = vsel %vm403, %v400, 0.0
      %408 = vadd.xlane.f32.xlu0 %v407
      %v409 = vpop.xlane.xlu0 %408
      %v410 = vrcp.pop 32.0
      %v411 = vmul.f32 32.0, %v410
      %v412 = vsub.f32 1.0, %v411
      %v413 = vmul.f32 %v410, %v412
      %v414 = vadd.f32 %v410, %v413
      %vm415 = vweird.f32 %v410
      %v416 = vsel %vm415, %v410, %v414
      %v417 = vmul.f32 %v406, %v416
      %v418 = vmul.f32 %v409, %v416
      %v419 = vsub.f32 %v399, %v417
      %v420 = vsub.f32 %v400, %v418
      %v421 = vmul.f32 %v419, %v419
      %v422 = vmul.f32 %v420, %v420
      %v423 = vsel %vm403, %v421, 0.0
      %424 = vadd.xlane.f32.xlu0 %v423
      %v425 = vpop.xlane.xlu0 %424
      %v426 = vsel %vm403, %v422, 0.0
      %427 = vadd.xlane.f32.xlu0 %v426
      %v428 = vpop.xlane.xlu0 %427
      %v429 = vmul.f32 %v425, %v416
      %v430 = vmul.f32 %v428, %v416
      %v431 = vadd.f32 %v429, 1e-05
      %v432 = vadd.f32 %v430, 1e-05
      %v433 = vrsqrt.pop %v431
      %v434 = vmul.f32 %v433, %v431
      %v435 = vmul.f32 %v434, %v433
      %v436 = vmul.f32 0.5, %v435
      %v437 = vsub.f32 1.5, %v436
      %v438 = vmul.f32 %v433, %v437
      %vm439 = vweird.f32 %v431
      %vm440 = vweird.f32 %v433
      %vm441 = vmor %vm439, %vm440
      %v442 = vsel %vm441, %v433, %v438
      %v443 = vrsqrt.pop %v432
      %v444 = vmul.f32 %v443, %v432
      %v445 = vmul.f32 %v444, %v443
      %v446 = vmul.f32 0.5, %v445
      %v447 = vsub.f32 1.5, %v446
      %v448 = vmul.f32 %v443, %v447
      %vm449 = vweird.f32 %v432
      %vm450 = vweird.f32 %v443
      %vm451 = vmor %vm449, %vm450
      %v452 = vsel %vm451, %v443, %v448
      %v453 = vmul.f32 %v419, %v442
      %v454 = vmul.f32 %v420, %v452
      %v456 = vperm.slane %v385, 0
      %v458 = vmul.f32 %v453, %v456
      %v459 = vmul.f32 %v454, %v456
      %v461 = vperm.slane %v386, 0
      %v463 = vadd.f32 %v458, %v461
      %v464 = vadd.f32 %v459, %v461
      %v465 = vmul.f32 %v401, %v401
      %v466 = vmul.f32 %v402, %v402
      %vm467 = vcmask 97280
      %v469 = vsel %vm467, %v465, 0
      %v472 = vsel %vm467, %v466, 0
      %vm474 = vcmask 1043456
      %v476 = vsel %vm474, %v388, 0
      %478 = vmatpush.msra.mxu0 0.0
      %479 = vmatpush.msra.mxu0 0.0
      %480 = vmatpush.msra.mxu0 0.0
      %481 = vmatpush.msra.mxu0 0.0
      %482 = vmatpush.msra.mxu0 0.0
      %483 = vmatpush.msra.mxu0 0.0
      %484 = vmatpush.msra.mxu0 0.0
      %485 = vmatpush.msra.mxu0 0.0
      %486 = vmatpush.msra.mxu0 0.0
      %487 = vmatpush.msra.mxu0 0.0
      %488 = vmatpush.msra.mxu0 0.0
      %489 = vmatpush.msra.mxu0 0.0
      %490 = vmatpush.msra.mxu0 0.0
      %491 = vmatpush.msra.mxu0 0.0
      %492 = vmatpush.msra.mxu0 %v476
      %493 = vmatpush.msra.mxu0 %v387
      %494 = vmatmul.f32.gmra.mxu0 %v469
      %v495 = vpop.f32.mrf.mxu0
      %v496 = vadd.f32 0.0, %v495
      %497 = vmatmul.f32.gmra.mxu0 %v472
      %v498 = vpop.f32.mrf.mxu0
      %v499 = vadd.f32 0.0, %v498
      %500 = vdwg.mxu0
      %v501 = vmax.f32 %v496, 1e-08
      %v502 = vmax.f32 %v499, 1e-08
      %vm503 = vcmask 31744
      %v504 = vsel %vm503, %v501, 0.0
      %505 = vadd.xlane.f32.xlu0 %v504
      %v506 = vpop.xlane.xlu0 %505
      %v507 = vsel %vm503, %v502, 0.0
      %508 = vadd.xlane.f32.xlu0 %v507
      %v509 = vpop.xlane.xlu0 %508
      %v510 = vrcp.pop 4.0
      %v511 = vmul.f32 4.0, %v510
      %v512 = vsub.f32 1.0, %v511
      %v513 = vmul.f32 %v510, %v512
      %v514 = vadd.f32 %v510, %v513
      %vm515 = vweird.f32 %v510
      %v516 = vsel %vm515, %v510, %v514
      %v517 = vmul.f32 %v506, %v516
      %v518 = vmul.f32 %v509, %v516
      %v519 = vrsqrt.pop %v517
      %v520 = vmul.f32 %v519, %v517
      %v521 = vmul.f32 %v520, %v519
      %v522 = vmul.f32 0.5, %v521
      %v523 = vsub.f32 1.5, %v522
      %v524 = vmul.f32 %v519, %v523
      %vm525 = vweird.f32 %v517
      %vm526 = vweird.f32 %v519
      %vm527 = vmor %vm525, %vm526
      %v528 = vsel %vm527, %v519, %v524
      %v529 = vrsqrt.pop %v518
      %v530 = vmul.f32 %v529, %v518
      %v531 = vmul.f32 %v530, %v529
      %v532 = vmul.f32 0.5, %v531
      %v533 = vsub.f32 1.5, %v532
      %v534 = vmul.f32 %v529, %v533
      %vm535 = vweird.f32 %v518
      %vm536 = vweird.f32 %v529
      %vm537 = vmor %vm535, %vm536
      %v538 = vsel %vm537, %v529, %v534
      %v539 = vmul.f32 %v401, %v528
      %v540 = vmul.f32 %v402, %v538
      %v542 = vsel %vm467, %v539, 0
      %v545 = vsel %vm467, %v540, 0
      %v548 = vsel %vm474, %v390, 0
      %550 = vmatpush.msra.mxu0 0.0
      %551 = vmatpush.msra.mxu0 0.0
      %552 = vmatpush.msra.mxu0 0.0
      %553 = vmatpush.msra.mxu0 0.0
      %554 = vmatpush.msra.mxu0 0.0
      %555 = vmatpush.msra.mxu0 0.0
      %556 = vmatpush.msra.mxu0 0.0
      %557 = vmatpush.msra.mxu0 0.0
      %558 = vmatpush.msra.mxu0 0.0
      %559 = vmatpush.msra.mxu0 0.0
      %560 = vmatpush.msra.mxu0 0.0
      %561 = vmatpush.msra.mxu0 0.0
      %562 = vmatpush.msra.mxu0 0.0
      %563 = vmatpush.msra.mxu0 0.0
      %564 = vmatpush.msra.mxu0 %v548
      %565 = vmatpush.msra.mxu0 %v389
      %566 = vmatmul.f32.gmra.mxu0 %v542
      %v567 = vpop.f32.mrf.mxu0
      %v568 = vadd.f32 0.0, %v567
      %569 = vmatmul.f32.gmra.mxu0 %v545
      %v570 = vpop.f32.mrf.mxu0
      %v571 = vadd.f32 0.0, %v570
      %572 = vdwg.mxu0
      %v573 = vmul.f32 %v568, %v568
      %v574 = vmul.f32 %v571, %v571
      %v576 = vsel %vm467, %v573, 0
      %v579 = vsel %vm467, %v574, 0
      %v582 = vsel %vm474, %v398, 0
      %584 = vmatpush.msra.mxu0 0.0
      %585 = vmatpush.msra.mxu0 0.0
      %586 = vmatpush.msra.mxu0 0.0
      %587 = vmatpush.msra.mxu0 0.0
      %588 = vmatpush.msra.mxu0 0.0
      %589 = vmatpush.msra.mxu0 0.0
      %590 = vmatpush.msra.mxu0 0.0
      %591 = vmatpush.msra.mxu0 0.0
      %592 = vmatpush.msra.mxu0 0.0
      %593 = vmatpush.msra.mxu0 0.0
      %594 = vmatpush.msra.mxu0 0.0
      %595 = vmatpush.msra.mxu0 0.0
      %596 = vmatpush.msra.mxu0 0.0
      %597 = vmatpush.msra.mxu0 0.0
      %598 = vmatpush.msra.mxu0 %v582
      %599 = vmatpush.msra.mxu0 %v397
      %600 = vmatmul.f32.gmra.mxu0 %v576
      %v601 = vpop.f32.mrf.mxu0
      %v602 = vadd.f32 0.0, %v601
      %603 = vmatmul.f32.gmra.mxu0 %v579
      %v604 = vpop.f32.mrf.mxu0
      %v605 = vadd.f32 0.0, %v604
      %606 = vdwg.mxu0
      %v607 = vmax.f32 %v602, 1e-08
      %v608 = vmax.f32 %v605, 1e-08
      %v609 = vrsqrt.pop %v607
      %v610 = vmul.f32 %v609, %v607
      %v611 = vmul.f32 %v610, %v609
      %v612 = vmul.f32 0.5, %v611
      %v613 = vsub.f32 1.5, %v612
      %v614 = vmul.f32 %v609, %v613
      %v615 = vmul.f32 %v607, %v614
      %vm616 = vcmp.eq.f32.partialorder %v607, inf
      %v617 = vsel %vm616, %v607, %v615
      %vm618 = vcmp.eq.f32.partialorder %v607, 0.0
      %v619 = vand.u32 %v607, 2147483648
      %v620 = vsel %vm618, %v619, %v617
      %v621 = vrsqrt.pop %v608
      %v622 = vmul.f32 %v621, %v608
      %v623 = vmul.f32 %v622, %v621
      %v624 = vmul.f32 0.5, %v623
      %v625 = vsub.f32 1.5, %v624
      %v626 = vmul.f32 %v621, %v625
      %v627 = vmul.f32 %v608, %v626
      %vm628 = vcmp.eq.f32.partialorder %v608, inf
      %v629 = vsel %vm628, %v608, %v627
      %vm630 = vcmp.eq.f32.partialorder %v608, 0.0
      %v631 = vand.u32 %v608, 2147483648
      %v632 = vsel %vm630, %v631, %v629
      %v634 = vsel %vm503, %v620, 0
      %v637 = vsel %vm503, %v632, 0
      %v640 = vsel %vm474, %v395, 0
      %642 = vmatpush.msra.mxu0 0.0
      %643 = vmatpush.msra.mxu0 0.0
      %644 = vmatpush.msra.mxu0 0.0
      %645 = vmatpush.msra.mxu0 0.0
      %646 = vmatpush.msra.mxu0 0.0
      %647 = vmatpush.msra.mxu0 0.0
      %648 = vmatpush.msra.mxu0 0.0
      %649 = vmatpush.msra.mxu0 0.0
      %650 = vmatpush.msra.mxu0 0.0
      %651 = vmatpush.msra.mxu0 0.0
      %652 = vmatpush.msra.mxu0 0.0
      %653 = vmatpush.msra.mxu0 0.0
      %654 = vmatpush.msra.mxu0 0.0
      %655 = vmatpush.msra.mxu0 0.0
      %656 = vmatpush.msra.mxu0 0.0
      %657 = vmatpush.msra.mxu0 %v640
      %658 = vmatmul.f32.gmra.mxu0 %v634
      %v659 = vpop.f32.mrf.mxu0
      %v660 = vadd.f32 0.0, %v659
      %661 = vmatmul.f32.gmra.mxu0 %v637
      %v662 = vpop.f32.mrf.mxu0
      %v663 = vadd.f32 0.0, %v662
      %664 = vdwg.mxu0
      %v666 = vsel %vm403, %v463, 0
      %v669 = vsel %vm403, %v464, 0
      %671 = vmatpush.msra.mxu0 0.0
      %672 = vmatpush.msra.mxu0 0.0
      %673 = vmatpush.msra.mxu0 0.0
      %674 = vmatpush.msra.mxu0 0.0
      %675 = vmatpush.msra.mxu0 0.0
      %676 = vmatpush.msra.mxu0 0.0
      %677 = vmatpush.msra.mxu0 0.0
      %678 = vmatpush.msra.mxu0 0.0
      %679 = vmatpush.msra.mxu0 0.0
      %680 = vmatpush.msra.mxu0 0.0
      %681 = vmatpush.msra.mxu0 0.0
      %682 = vmatpush.msra.mxu0 0.0
      %683 = vmatpush.msra.mxu0 %v394
      %684 = vmatpush.msra.mxu0 %v393
      %685 = vmatpush.msra.mxu0 %v392
      %686 = vmatpush.msra.mxu0 %v391
      %687 = vmatmul.f32.gmra.mxu0 %v666
      %v688 = vpop.f32.mrf.mxu0
      %v689 = vadd.f32 %v660, %v688
      %690 = vmatmul.f32.gmra.mxu0 %v669
      %v691 = vpop.f32.mrf.mxu0
      %v692 = vadd.f32 %v663, %v691
      %693 = vdwg.mxu0
      %v695 = vperm.slane %v396, 0
      %v697 = vadd.f32 %v689, %v695
      %v698 = vadd.f32 %v692, %v695
      %v699 = vmax.f32 %v697, 0.0
      %v700 = vmax.f32 %v698, 0.0
      %701 = vst.msk [vmem:[%s383] sm:$0xff] %vm403, %v699
      %702 = vst.msk [vmem:[%s383 + $0x8] sm:$0xff] %vm403, %v700
      %s703 = smul.u32 2, %s21
      %p704 = scmp.lt.s32.totalorder %s703, 3
      %s705 = scalar_select %p704, %s703, 3
      %s706 = smul.addr %s705, 8
      %s707 = scalar_lea.vmem %s10, %s706
      // Predicated region
      $region61: #{structure_encoder_forward.17} parent=59 // pred_check
        %p708 = pneg %p259
      $region62: #{structure_encoder_forward.17} parent=59 // pred_check_branch
        %710 = sbr.rel (%p708) target = $region64
      $region63: #{structure_encoder_forward.17} parent=59 // pred_region
        %s711 = smul.u32 2, %s21
      $region64: #{structure_encoder_forward.17} parent=59 // pred_fallthru
        _
    $region60: #{structure_encoder_forward.17} parent=5 // pred_fallthru
      _
    %p712 = scmp.le.s32.totalorder 2, %s16
    // Predicated region
    $region65: #{structure_encoder_forward.17} parent=5 // pred_check
      %p713 = pneg %p712
    $region66: #{structure_encoder_forward.17} parent=5 // pred_check_branch
      %715 = sbr.rel (%p713) target = $region68
    $region67: #{structure_encoder_forward.17} parent=5 // pred_region
      %s716 = ssub.s32 %s16, 2
      // Predicated region
      $region69: #{structure_encoder_forward.17} parent=67 // pred_check
        %p717 = pneg %p265
      $region70: #{structure_encoder_forward.17} parent=67 // pred_check_branch
        %719 = sbr.rel (%p717) target = $region72
      $region71: #{structure_encoder_forward.17} parent=67 // pred_region
        %s720 = smul.u32 2, %s22
        %p721 = scmp.lt.s32.totalorder %s720, 3
        %s722 = scalar_select %p721, %s720, 3
        %s723 = smul.addr %s722, 8
        %s724 = scalar_lea.vmem %s10, %s723
      $region72: #{structure_encoder_forward.17} parent=67 // pred_fallthru
        _
    $region68: #{structure_encoder_forward.17} parent=5 // pred_fallthru
      _
  $region6: #{structure_encoder_forward.17} parent=0 // loop_footer
    %s20 = sadd.s32 1, %s16
  $region7: #{structure_encoder_forward.17} parent=0 // loop_footer_branch
    %15 = sbr.rel target = $region3
  $region8: #{structure_encoder_forward.17} parent=0 // loop_exit
    _

// kernel: structure_encoder_forward.12
$region0: #{structure_encoder_forward.12}
  #allocation0 [shape = 'u32[]', space=smem, size = 0x4, offset = 0x4, fixed_abs, tag = 'smem constant byte address 0x4 - core index']
  #allocation1 [shape = 'u32[72,128]{1,0:T(1,128)}', space=vmem, size = 0x9000, scoped, tag = 'internal scratch']
  %s0 = inlined_call_operand.vmem [shape: f32[32,32], index: 0, kind: input, shape index: {}]
  %s1 = inlined_call_operand.vmem [shape: f32[32,12], index: 1, kind: input, shape index: {}]
  %s2 = inlined_call_operand.vmem [shape: f32[32,32], index: 2, kind: input, shape index: {}]
  %s3 = inlined_call_operand.vmem [shape: f32[32,12], index: 3, kind: input, shape index: {}]
  %s4 = inlined_call_operand.vmem [shape: f32[32,1], index: 4, kind: input, shape index: {}]
  %s5 = inlined_call_operand.vmem [shape: f32[1,32], index: 5, kind: input, shape index: {}]
  %s6 = inlined_call_operand.vmem [shape: f32[1,32], index: 6, kind: input, shape index: {}]
  %s7 = inlined_call_operand.vmem [shape: f32[12,4], index: 7, kind: input, shape index: {}]
  %s8 = inlined_call_operand.vmem [shape: f32[12,24], index: 8, kind: input, shape index: {}]
  %s9 = inlined_call_operand.vmem [shape: f32[32,128], index: 9, kind: input, shape index: {}]
  %s10 = inlined_call_operand.vmem [shape: f32[8,128], index: 10, kind: input, shape index: {}]
  %s11 = inlined_call_operand.vmem [shape: f32[1,128], index: 11, kind: input, shape index: {}]
  %s12 = inlined_call_operand.vmem [shape: f32[24,8], index: 12, kind: input, shape index: {}]
  %s13 = inlined_call_operand.vmem [shape: f32[24,24], index: 13, kind: input, shape index: {}]
  %s14 = inlined_call_operand.vmem [shape: f32[24,24], index: 14, kind: input, shape index: {}]
  %s15 = inlined_call_operand.vmem [shape: f32[24,24], index: 15, kind: input, shape index: {}]
  %s16 = inlined_call_operand.vmem [shape: f32[128,32], index: 16, kind: input, shape index: {}]
  %s17 = inlined_call_operand.vmem [shape: f32[8,32], index: 17, kind: input, shape index: {}]
  %s18 = inlined_call_operand.vmem [shape: f32[1,32], index: 18, kind: input, shape index: {}]
  %s19 = inlined_call_operand.vmem [shape: f32[24,8], index: 19, kind: input, shape index: {}]
  %s20 = inlined_call_operand.vmem [shape: f32[24,12], index: 20, kind: input, shape index: {}]
  %s21 = inlined_call_operand.vmem [shape: f32[1,32], index: 21, kind: input, shape index: {}]
  %s22 = inlined_call_operand.vmem [shape: f32[1,32], index: 22, kind: input, shape index: {}]
  %s23 = inlined_call_operand.vmem [shape: f32[12,4], index: 23, kind: input, shape index: {}]
  %s24 = inlined_call_operand.vmem [shape: f32[32,32], index: 24, kind: output, shape index: {0}]
  %s25 = inlined_call_operand.vmem [shape: f32[32,12], index: 25, kind: output, shape index: {1}]
  %26 = xla_tuple %s24, %s25
  %s27 = sld [smem:[#allocation0]]
  $region137: #{structure_encoder_forward.12} parent=0
    _
  %s29 = ssub.s32 1, %s27
  %s30 = scalar_select 0, %s29, %s27
  loop: start=0, step=1, limit=4
  $region2: #{structure_encoder_forward.12} parent=0 // loop_pre_header
    _
  $region3: #{structure_encoder_forward.12} parent=0 // loop_header
    %s32 = sphi 0, %s36
    %p33 = scmp.ge.s32.totalorder %s32, 4
    %s42 = sphi 0, %s44
    %s45 = sphi 0, %s42
    %s46 = sphi 0, %s45
    %s62 = sphi 0, %s46
    %s68 = sphi 0, %s70
    %s71 = sphi 0, %s68
    %s72 = sphi 0, %s71
    %s88 = sphi 0, %s72
    %s94 = sphi 0, %s96
    %s97 = sphi 0, %s94
    %s98 = sphi 0, %s97
    %s114 = sphi 0, %s98
    %s120 = sphi 0, %s122
    %s123 = sphi 0, %s120
    %s124 = sphi 0, %s123
    %s140 = sphi 0, %s124
    %s146 = sphi 0, %s148
    %s149 = sphi 0, %s146
    %s150 = sphi 0, %s149
    %s166 = sphi 0, %s150
    %s170 = sphi 0, %s170
    %s172 = sphi 0, %s170
    %s173 = sphi 0, %s172
    %s187 = sphi 0, %s173
    %s191 = sphi 0, %s191
    %s193 = sphi 0, %s191
    %s194 = sphi 0, %s193
    %s208 = sphi 0, %s194
    %s212 = sphi 0, %s212
    %s214 = sphi 0, %s212
    %s215 = sphi 0, %s214
    %s229 = sphi 0, %s215
    %s233 = sphi 0, %s233
    %s235 = sphi 0, %s233
    %s236 = sphi 0, %s235
    %s250 = sphi 0, %s236
    %s254 = sphi 0, %s254
    %s256 = sphi 0, %s254
    %s257 = sphi 0, %s256
    %s271 = sphi 0, %s257
    %s275 = sphi 0, %s275
    %s277 = sphi 0, %s275
    %s278 = sphi 0, %s277
    %s292 = sphi 0, %s278
    %s296 = sphi 0, %s296
    %s298 = sphi 0, %s296
    %s299 = sphi 0, %s298
    %s313 = sphi 0, %s299
    %s317 = sphi 0, %s317
    %s319 = sphi 0, %s317
    %s320 = sphi 0, %s319
    %s334 = sphi 0, %s320
    %s338 = sphi 0, %s338
    %s340 = sphi 0, %s338
    %s341 = sphi 0, %s340
    %s355 = sphi 0, %s341
    %s359 = sphi 0, %s359
    %s361 = sphi 0, %s359
    %s362 = sphi 0, %s361
    %s376 = sphi 0, %s362
    %s380 = sphi 0, %s380
    %s382 = sphi 0, %s380
    %s383 = sphi 0, %s382
    %s397 = sphi 0, %s383
    %s401 = sphi 0, %s401
    %s403 = sphi 0, %s401
    %s404 = sphi 0, %s403
    %s418 = sphi 0, %s404
    %s422 = sphi 0, %s422
    %s424 = sphi 0, %s422
    %s425 = sphi 0, %s424
    %s439 = sphi 0, %s425
    %s443 = sphi 0, %s443
    %s445 = sphi 0, %s443
    %s446 = sphi 0, %s445
    %s460 = sphi 0, %s446
    %s464 = sphi 0, %s464
    %s466 = sphi 0, %s464
    %s467 = sphi 0, %s466
    %s481 = sphi 0, %s467
    %s485 = sphi 0, %s485
    %s487 = sphi 0, %s485
    %s488 = sphi 0, %s487
    %s502 = sphi 0, %s488
    %s506 = sphi 0, %s506
    %s508 = sphi 0, %s506
    %s509 = sphi 0, %s508
    %s523 = sphi 0, %s509
    %s527 = sphi 0, %s527
    %s529 = sphi 0, %s527
    %s530 = sphi 0, %s529
    %s544 = sphi 0, %s530
    %s548 = sphi 0, %s548
    %s550 = sphi 0, %s548
    %s551 = sphi 0, %s550
    %s565 = sphi 0, %s551
    %s571 = sphi 0, %s573
    %s574 = sphi 0, %s571
    %s575 = sphi 0, %s574
    %s591 = sphi 0, %s575
    %s597 = sphi 0, %s599
    %s600 = sphi 0, %s597
    %s601 = sphi 0, %s600
    %s617 = sphi 0, %s601
  $region4: #{structure_encoder_forward.12} parent=0 // loop_header_branch
    %35 = sbr.rel (%p33) target = $region8
  $region5: #{structure_encoder_forward.12} parent=0 // loop_body
    %s37 = ssub.s32 %s32, 1
    %s38 = ssub.s32 %s32, 2
    %s39 = sadd.s32 %s32, 1
    %s40 = ssub.s32 %s32, %s39
    %p41 = scmp.eq.s32.totalorder %s40, 0
    %s43 = sadd.s32 %s42, 1
    %s44 = scalar_select %p41, %s42, %s43
    %p47 = pneg %p41
    %p48 = scmp.eq.s32.totalorder %s32, 1
    %p49 = por %p47, %p48
    %p50 = scmp.ne.s32.totalorder %s42, %s45
    %p51 = scmp.eq.s32.totalorder %s32, 0
    %p52 = por %p50, %p51
    %p53 = scmp.ne.s32.totalorder %s42, %s45
    %p54 = scmp.eq.s32.totalorder %s37, 1
    %p55 = por %p53, %p54
    %p56 = scmp.ne.s32.totalorder %s45, %s46
    %p57 = scmp.eq.s32.totalorder %s37, 0
    %p58 = por %p56, %p57
    %p59 = scmp.ne.s32.totalorder %s45, %s46
    %p60 = scmp.eq.s32.totalorder %s38, 1
    %p61 = por %p59, %p60
    %p63 = scmp.ne.s32.totalorder %s46, %s62
    %p64 = scmp.eq.s32.totalorder %s38, 0
    %p65 = por %p63, %p64
    %s66 = ssub.s32 %s32, %s39
    %p67 = scmp.eq.s32.totalorder %s66, 0
    %s69 = sadd.s32 %s68, 1
    %s70 = scalar_select %p67, %s68, %s69
    %p73 = pneg %p67
    %p74 = scmp.eq.s32.totalorder %s32, 1
    %p75 = por %p73, %p74
    %p76 = scmp.ne.s32.totalorder %s68, %s71
    %p77 = scmp.eq.s32.totalorder %s32, 0
    %p78 = por %p76, %p77
    %p79 = scmp.ne.s32.totalorder %s68, %s71
    %p80 = scmp.eq.s32.totalorder %s37, 1
    %p81 = por %p79, %p80
    %p82 = scmp.ne.s32.totalorder %s71, %s72
    %p83 = scmp.eq.s32.totalorder %s37, 0
    %p84 = por %p82, %p83
    %p85 = scmp.ne.s32.totalorder %s71, %s72
    %p86 = scmp.eq.s32.totalorder %s38, 1
    %p87 = por %p85, %p86
    %p89 = scmp.ne.s32.totalorder %s72, %s88
    %p90 = scmp.eq.s32.totalorder %s38, 0
    %p91 = por %p89, %p90
    %s92 = ssub.s32 %s32, %s39
    %p93 = scmp.eq.s32.totalorder %s92, 0
    %s95 = sadd.s32 %s94, 1
    %s96 = scalar_select %p93, %s94, %s95
    %p99 = pneg %p93
    %p100 = scmp.eq.s32.totalorder %s32, 1
    %p101 = por %p99, %p100
    %p102 = scmp.ne.s32.totalorder %s94, %s97
    %p103 = scmp.eq.s32.totalorder %s32, 0
    %p104 = por %p102, %p103
    %p105 = scmp.ne.s32.totalorder %s94, %s97
    %p106 = scmp.eq.s32.totalorder %s37, 1
    %p107 = por %p105, %p106
    %p108 = scmp.ne.s32.totalorder %s97, %s98
    %p109 = scmp.eq.s32.totalorder %s37, 0
    %p110 = por %p108, %p109
    %p111 = scmp.ne.s32.totalorder %s97, %s98
    %p112 = scmp.eq.s32.totalorder %s38, 1
    %p113 = por %p111, %p112
    %p115 = scmp.ne.s32.totalorder %s98, %s114
    %p116 = scmp.eq.s32.totalorder %s38, 0
    %p117 = por %p115, %p116
    %s118 = ssub.s32 %s32, %s39
    %p119 = scmp.eq.s32.totalorder %s118, 0
    %s121 = sadd.s32 %s120, 1
    %s122 = scalar_select %p119, %s120, %s121
    %p125 = pneg %p119
    %p126 = scmp.eq.s32.totalorder %s32, 1
    %p127 = por %p125, %p126
    %p128 = scmp.ne.s32.totalorder %s120, %s123
    %p129 = scmp.eq.s32.totalorder %s32, 0
    %p130 = por %p128, %p129
    %p131 = scmp.ne.s32.totalorder %s120, %s123
    %p132 = scmp.eq.s32.totalorder %s37, 1
    %p133 = por %p131, %p132
    %p134 = scmp.ne.s32.totalorder %s123, %s124
    %p135 = scmp.eq.s32.totalorder %s37, 0
    %p136 = por %p134, %p135
    %p137 = scmp.ne.s32.totalorder %s123, %s124
    %p138 = scmp.eq.s32.totalorder %s38, 1
    %p139 = por %p137, %p138
    %p141 = scmp.ne.s32.totalorder %s124, %s140
    %p142 = scmp.eq.s32.totalorder %s38, 0
    %p143 = por %p141, %p142
    %s144 = ssub.s32 %s32, %s39
    %p145 = scmp.eq.s32.totalorder %s144, 0
    %s147 = sadd.s32 %s146, 1
    %s148 = scalar_select %p145, %s146, %s147
    %p151 = pneg %p145
    %p152 = scmp.eq.s32.totalorder %s32, 1
    %p153 = por %p151, %p152
    %p154 = scmp.ne.s32.totalorder %s146, %s149
    %p155 = scmp.eq.s32.totalorder %s32, 0
    %p156 = por %p154, %p155
    %p157 = scmp.ne.s32.totalorder %s146, %s149
    %p158 = scmp.eq.s32.totalorder %s37, 1
    %p159 = por %p157, %p158
    %p160 = scmp.ne.s32.totalorder %s149, %s150
    %p161 = scmp.eq.s32.totalorder %s37, 0
    %p162 = por %p160, %p161
    %p163 = scmp.ne.s32.totalorder %s149, %s150
    %p164 = scmp.eq.s32.totalorder %s38, 1
    %p165 = por %p163, %p164
    %p167 = scmp.ne.s32.totalorder %s150, %s166
    %p168 = scmp.eq.s32.totalorder %s38, 0
    %p169 = por %p167, %p168
    %s171 = sadd.s32 %s170, 1
    %p174 = scmp.eq.s32.totalorder %s32, 1
    %p175 = scmp.ne.s32.totalorder %s170, %s172
    %p176 = scmp.eq.s32.totalorder %s32, 0
    %p177 = por %p175, %p176
    %p178 = scmp.ne.s32.totalorder %s170, %s172
    %p179 = scmp.eq.s32.totalorder %s37, 1
    %p180 = por %p178, %p179
    %p181 = scmp.ne.s32.totalorder %s172, %s173
    %p182 = scmp.eq.s32.totalorder %s37, 0
    %p183 = por %p181, %p182
    %p184 = scmp.ne.s32.totalorder %s172, %s173
    %p185 = scmp.eq.s32.totalorder %s38, 1
    %p186 = por %p184, %p185
    %p188 = scmp.ne.s32.totalorder %s173, %s187
    %p189 = scmp.eq.s32.totalorder %s38, 0
    %p190 = por %p188, %p189
    %s192 = sadd.s32 %s191, 1
    %p195 = scmp.eq.s32.totalorder %s32, 1
    %p196 = scmp.ne.s32.totalorder %s191, %s193
    %p197 = scmp.eq.s32.totalorder %s32, 0
    %p198 = por %p196, %p197
    %p199 = scmp.ne.s32.totalorder %s191, %s193
    %p200 = scmp.eq.s32.totalorder %s37, 1
    %p201 = por %p199, %p200
    %p202 = scmp.ne.s32.totalorder %s193, %s194
    %p203 = scmp.eq.s32.totalorder %s37, 0
    %p204 = por %p202, %p203
    %p205 = scmp.ne.s32.totalorder %s193, %s194
    %p206 = scmp.eq.s32.totalorder %s38, 1
    %p207 = por %p205, %p206
    %p209 = scmp.ne.s32.totalorder %s194, %s208
    %p210 = scmp.eq.s32.totalorder %s38, 0
    %p211 = por %p209, %p210
    %s213 = sadd.s32 %s212, 1
    %p216 = scmp.eq.s32.totalorder %s32, 1
    %p217 = scmp.ne.s32.totalorder %s212, %s214
    %p218 = scmp.eq.s32.totalorder %s32, 0
    %p219 = por %p217, %p218
    %p220 = scmp.ne.s32.totalorder %s212, %s214
    %p221 = scmp.eq.s32.totalorder %s37, 1
    %p222 = por %p220, %p221
    %p223 = scmp.ne.s32.totalorder %s214, %s215
    %p224 = scmp.eq.s32.totalorder %s37, 0
    %p225 = por %p223, %p224
    %p226 = scmp.ne.s32.totalorder %s214, %s215
    %p227 = scmp.eq.s32.totalorder %s38, 1
    %p228 = por %p226, %p227
    %p230 = scmp.ne.s32.totalorder %s215, %s229
    %p231 = scmp.eq.s32.totalorder %s38, 0
    %p232 = por %p230, %p231
    %s234 = sadd.s32 %s233, 1
    %p237 = scmp.eq.s32.totalorder %s32, 1
    %p238 = scmp.ne.s32.totalorder %s233, %s235
    %p239 = scmp.eq.s32.totalorder %s32, 0
    %p240 = por %p238, %p239
    %p241 = scmp.ne.s32.totalorder %s233, %s235
    %p242 = scmp.eq.s32.totalorder %s37, 1
    %p243 = por %p241, %p242
    %p244 = scmp.ne.s32.totalorder %s235, %s236
    %p245 = scmp.eq.s32.totalorder %s37, 0
    %p246 = por %p244, %p245
    %p247 = scmp.ne.s32.totalorder %s235, %s236
    %p248 = scmp.eq.s32.totalorder %s38, 1
    %p249 = por %p247, %p248
    %p251 = scmp.ne.s32.totalorder %s236, %s250
    %p252 = scmp.eq.s32.totalorder %s38, 0
    %p253 = por %p251, %p252
    %s255 = sadd.s32 %s254, 1
    %p258 = scmp.eq.s32.totalorder %s32, 1
    %p259 = scmp.ne.s32.totalorder %s254, %s256
    %p260 = scmp.eq.s32.totalorder %s32, 0
    %p261 = por %p259, %p260
    %p262 = scmp.ne.s32.totalorder %s254, %s256
    %p263 = scmp.eq.s32.totalorder %s37, 1
    %p264 = por %p262, %p263
    %p265 = scmp.ne.s32.totalorder %s256, %s257
    %p266 = scmp.eq.s32.totalorder %s37, 0
    %p267 = por %p265, %p266
    %p268 = scmp.ne.s32.totalorder %s256, %s257
    %p269 = scmp.eq.s32.totalorder %s38, 1
    %p270 = por %p268, %p269
    %p272 = scmp.ne.s32.totalorder %s257, %s271
    %p273 = scmp.eq.s32.totalorder %s38, 0
    %p274 = por %p272, %p273
    %s276 = sadd.s32 %s275, 1
    %p279 = scmp.eq.s32.totalorder %s32, 1
    %p280 = scmp.ne.s32.totalorder %s275, %s277
    %p281 = scmp.eq.s32.totalorder %s32, 0
    %p282 = por %p280, %p281
    %p283 = scmp.ne.s32.totalorder %s275, %s277
    %p284 = scmp.eq.s32.totalorder %s37, 1
    %p285 = por %p283, %p284
    %p286 = scmp.ne.s32.totalorder %s277, %s278
    %p287 = scmp.eq.s32.totalorder %s37, 0
    %p288 = por %p286, %p287
    %p289 = scmp.ne.s32.totalorder %s277, %s278
    %p290 = scmp.eq.s32.totalorder %s38, 1
    %p291 = por %p289, %p290
    %p293 = scmp.ne.s32.totalorder %s278, %s292
    %p294 = scmp.eq.s32.totalorder %s38, 0
    %p295 = por %p293, %p294
    %s297 = sadd.s32 %s296, 1
    %p300 = scmp.eq.s32.totalorder %s32, 1
    %p301 = scmp.ne.s32.totalorder %s296, %s298
    %p302 = scmp.eq.s32.totalorder %s32, 0
    %p303 = por %p301, %p302
    %p304 = scmp.ne.s32.totalorder %s296, %s298
    %p305 = scmp.eq.s32.totalorder %s37, 1
    %p306 = por %p304, %p305
    %p307 = scmp.ne.s32.totalorder %s298, %s299
    %p308 = scmp.eq.s32.totalorder %s37, 0
    %p309 = por %p307, %p308
    %p310 = scmp.ne.s32.totalorder %s298, %s299
    %p311 = scmp.eq.s32.totalorder %s38, 1
    %p312 = por %p310, %p311
    %p314 = scmp.ne.s32.totalorder %s299, %s313
    %p315 = scmp.eq.s32.totalorder %s38, 0
    %p316 = por %p314, %p315
    %s318 = sadd.s32 %s317, 1
    %p321 = scmp.eq.s32.totalorder %s32, 1
    %p322 = scmp.ne.s32.totalorder %s317, %s319
    %p323 = scmp.eq.s32.totalorder %s32, 0
    %p324 = por %p322, %p323
    %p325 = scmp.ne.s32.totalorder %s317, %s319
    %p326 = scmp.eq.s32.totalorder %s37, 1
    %p327 = por %p325, %p326
    %p328 = scmp.ne.s32.totalorder %s319, %s320
    %p329 = scmp.eq.s32.totalorder %s37, 0
    %p330 = por %p328, %p329
    %p331 = scmp.ne.s32.totalorder %s319, %s320
    %p332 = scmp.eq.s32.totalorder %s38, 1
    %p333 = por %p331, %p332
    %p335 = scmp.ne.s32.totalorder %s320, %s334
    %p336 = scmp.eq.s32.totalorder %s38, 0
    %p337 = por %p335, %p336
    %s339 = sadd.s32 %s338, 1
    %p342 = scmp.eq.s32.totalorder %s32, 1
    %p343 = scmp.ne.s32.totalorder %s338, %s340
    %p344 = scmp.eq.s32.totalorder %s32, 0
    %p345 = por %p343, %p344
    %p346 = scmp.ne.s32.totalorder %s338, %s340
    %p347 = scmp.eq.s32.totalorder %s37, 1
    %p348 = por %p346, %p347
    %p349 = scmp.ne.s32.totalorder %s340, %s341
    %p350 = scmp.eq.s32.totalorder %s37, 0
    %p351 = por %p349, %p350
    %p352 = scmp.ne.s32.totalorder %s340, %s341
    %p353 = scmp.eq.s32.totalorder %s38, 1
    %p354 = por %p352, %p353
    %p356 = scmp.ne.s32.totalorder %s341, %s355
    %p357 = scmp.eq.s32.totalorder %s38, 0
    %p358 = por %p356, %p357
    %s360 = sadd.s32 %s359, 1
    %p363 = scmp.eq.s32.totalorder %s32, 1
    %p364 = scmp.ne.s32.totalorder %s359, %s361
    %p365 = scmp.eq.s32.totalorder %s32, 0
    %p366 = por %p364, %p365
    %p367 = scmp.ne.s32.totalorder %s359, %s361
    %p368 = scmp.eq.s32.totalorder %s37, 1
    %p369 = por %p367, %p368
    %p370 = scmp.ne.s32.totalorder %s361, %s362
    %p371 = scmp.eq.s32.totalorder %s37, 0
    %p372 = por %p370, %p371
    %p373 = scmp.ne.s32.totalorder %s361, %s362
    %p374 = scmp.eq.s32.totalorder %s38, 1
    %p375 = por %p373, %p374
    %p377 = scmp.ne.s32.totalorder %s362, %s376
    %p378 = scmp.eq.s32.totalorder %s38, 0
    %p379 = por %p377, %p378
    %s381 = sadd.s32 %s380, 1
    %p384 = scmp.eq.s32.totalorder %s32, 1
    %p385 = scmp.ne.s32.totalorder %s380, %s382
    %p386 = scmp.eq.s32.totalorder %s32, 0
    %p387 = por %p385, %p386
    %p388 = scmp.ne.s32.totalorder %s380, %s382
    %p389 = scmp.eq.s32.totalorder %s37, 1
    %p390 = por %p388, %p389
    %p391 = scmp.ne.s32.totalorder %s382, %s383
    %p392 = scmp.eq.s32.totalorder %s37, 0
    %p393 = por %p391, %p392
    %p394 = scmp.ne.s32.totalorder %s382, %s383
    %p395 = scmp.eq.s32.totalorder %s38, 1
    %p396 = por %p394, %p395
    %p398 = scmp.ne.s32.totalorder %s383, %s397
    %p399 = scmp.eq.s32.totalorder %s38, 0
    %p400 = por %p398, %p399
    %s402 = sadd.s32 %s401, 1
    %p405 = scmp.eq.s32.totalorder %s32, 1
    %p406 = scmp.ne.s32.totalorder %s401, %s403
    %p407 = scmp.eq.s32.totalorder %s32, 0
    %p408 = por %p406, %p407
    %p409 = scmp.ne.s32.totalorder %s401, %s403
    %p410 = scmp.eq.s32.totalorder %s37, 1
    %p411 = por %p409, %p410
    %p412 = scmp.ne.s32.totalorder %s403, %s404
    %p413 = scmp.eq.s32.totalorder %s37, 0
    %p414 = por %p412, %p413
    %p415 = scmp.ne.s32.totalorder %s403, %s404
    %p416 = scmp.eq.s32.totalorder %s38, 1
    %p417 = por %p415, %p416
    %p419 = scmp.ne.s32.totalorder %s404, %s418
    %p420 = scmp.eq.s32.totalorder %s38, 0
    %p421 = por %p419, %p420
    %s423 = sadd.s32 %s422, 1
    %p426 = scmp.eq.s32.totalorder %s32, 1
    %p427 = scmp.ne.s32.totalorder %s422, %s424
    %p428 = scmp.eq.s32.totalorder %s32, 0
    %p429 = por %p427, %p428
    %p430 = scmp.ne.s32.totalorder %s422, %s424
    %p431 = scmp.eq.s32.totalorder %s37, 1
    %p432 = por %p430, %p431
    %p433 = scmp.ne.s32.totalorder %s424, %s425
    %p434 = scmp.eq.s32.totalorder %s37, 0
    %p435 = por %p433, %p434
    %p436 = scmp.ne.s32.totalorder %s424, %s425
    %p437 = scmp.eq.s32.totalorder %s38, 1
    %p438 = por %p436, %p437
    %p440 = scmp.ne.s32.totalorder %s425, %s439
    %p441 = scmp.eq.s32.totalorder %s38, 0
    %p442 = por %p440, %p441
    %s444 = sadd.s32 %s443, 1
    %p447 = scmp.eq.s32.totalorder %s32, 1
    %p448 = scmp.ne.s32.totalorder %s443, %s445
    %p449 = scmp.eq.s32.totalorder %s32, 0
    %p450 = por %p448, %p449
    %p451 = scmp.ne.s32.totalorder %s443, %s445
    %p452 = scmp.eq.s32.totalorder %s37, 1
    %p453 = por %p451, %p452
    %p454 = scmp.ne.s32.totalorder %s445, %s446
    %p455 = scmp.eq.s32.totalorder %s37, 0
    %p456 = por %p454, %p455
    %p457 = scmp.ne.s32.totalorder %s445, %s446
    %p458 = scmp.eq.s32.totalorder %s38, 1
    %p459 = por %p457, %p458
    %p461 = scmp.ne.s32.totalorder %s446, %s460
    %p462 = scmp.eq.s32.totalorder %s38, 0
    %p463 = por %p461, %p462
    %s465 = sadd.s32 %s464, 1
    %p468 = scmp.eq.s32.totalorder %s32, 1
    %p469 = scmp.ne.s32.totalorder %s464, %s466
    %p470 = scmp.eq.s32.totalorder %s32, 0
    %p471 = por %p469, %p470
    %p472 = scmp.ne.s32.totalorder %s464, %s466
    %p473 = scmp.eq.s32.totalorder %s37, 1
    %p474 = por %p472, %p473
    %p475 = scmp.ne.s32.totalorder %s466, %s467
    %p476 = scmp.eq.s32.totalorder %s37, 0
    %p477 = por %p475, %p476
    %p478 = scmp.ne.s32.totalorder %s466, %s467
    %p479 = scmp.eq.s32.totalorder %s38, 1
    %p480 = por %p478, %p479
    %p482 = scmp.ne.s32.totalorder %s467, %s481
    %p483 = scmp.eq.s32.totalorder %s38, 0
    %p484 = por %p482, %p483
    %s486 = sadd.s32 %s485, 1
    %p489 = scmp.eq.s32.totalorder %s32, 1
    %p490 = scmp.ne.s32.totalorder %s485, %s487
    %p491 = scmp.eq.s32.totalorder %s32, 0
    %p492 = por %p490, %p491
    %p493 = scmp.ne.s32.totalorder %s485, %s487
    %p494 = scmp.eq.s32.totalorder %s37, 1
    %p495 = por %p493, %p494
    %p496 = scmp.ne.s32.totalorder %s487, %s488
    %p497 = scmp.eq.s32.totalorder %s37, 0
    %p498 = por %p496, %p497
    %p499 = scmp.ne.s32.totalorder %s487, %s488
    %p500 = scmp.eq.s32.totalorder %s38, 1
    %p501 = por %p499, %p500
    %p503 = scmp.ne.s32.totalorder %s488, %s502
    %p504 = scmp.eq.s32.totalorder %s38, 0
    %p505 = por %p503, %p504
    %s507 = sadd.s32 %s506, 1
    %p510 = scmp.eq.s32.totalorder %s32, 1
    %p511 = scmp.ne.s32.totalorder %s506, %s508
    %p512 = scmp.eq.s32.totalorder %s32, 0
    %p513 = por %p511, %p512
    %p514 = scmp.ne.s32.totalorder %s506, %s508
    %p515 = scmp.eq.s32.totalorder %s37, 1
    %p516 = por %p514, %p515
    %p517 = scmp.ne.s32.totalorder %s508, %s509
    %p518 = scmp.eq.s32.totalorder %s37, 0
    %p519 = por %p517, %p518
    %p520 = scmp.ne.s32.totalorder %s508, %s509
    %p521 = scmp.eq.s32.totalorder %s38, 1
    %p522 = por %p520, %p521
    %p524 = scmp.ne.s32.totalorder %s509, %s523
    %p525 = scmp.eq.s32.totalorder %s38, 0
    %p526 = por %p524, %p525
    %s528 = sadd.s32 %s527, 1
    %p531 = scmp.eq.s32.totalorder %s32, 1
    %p532 = scmp.ne.s32.totalorder %s527, %s529
    %p533 = scmp.eq.s32.totalorder %s32, 0
    %p534 = por %p532, %p533
    %p535 = scmp.ne.s32.totalorder %s527, %s529
    %p536 = scmp.eq.s32.totalorder %s37, 1
    %p537 = por %p535, %p536
    %p538 = scmp.ne.s32.totalorder %s529, %s530
    %p539 = scmp.eq.s32.totalorder %s37, 0
    %p540 = por %p538, %p539
    %p541 = scmp.ne.s32.totalorder %s529, %s530
    %p542 = scmp.eq.s32.totalorder %s38, 1
    %p543 = por %p541, %p542
    %p545 = scmp.ne.s32.totalorder %s530, %s544
    %p546 = scmp.eq.s32.totalorder %s38, 0
    %p547 = por %p545, %p546
    %s549 = sadd.s32 %s548, 1
    %p552 = scmp.eq.s32.totalorder %s32, 1
    %p553 = scmp.ne.s32.totalorder %s548, %s550
    %p554 = scmp.eq.s32.totalorder %s32, 0
    %p555 = por %p553, %p554
    %p556 = scmp.ne.s32.totalorder %s548, %s550
    %p557 = scmp.eq.s32.totalorder %s37, 1
    %p558 = por %p556, %p557
    %p559 = scmp.ne.s32.totalorder %s550, %s551
    %p560 = scmp.eq.s32.totalorder %s37, 0
    %p561 = por %p559, %p560
    %p562 = scmp.ne.s32.totalorder %s550, %s551
    %p563 = scmp.eq.s32.totalorder %s38, 1
    %p564 = por %p562, %p563
    %p566 = scmp.ne.s32.totalorder %s551, %s565
    %p567 = scmp.eq.s32.totalorder %s38, 0
    %p568 = por %p566, %p567
    %s569 = ssub.s32 %s32, %s39
    %p570 = scmp.eq.s32.totalorder %s569, 0
    %s572 = sadd.s32 %s571, 1
    %s573 = scalar_select %p570, %s571, %s572
    %p576 = pneg %p570
    %p577 = scmp.eq.s32.totalorder %s32, 1
    %p578 = por %p576, %p577
    %p579 = scmp.ne.s32.totalorder %s571, %s574
    %p580 = scmp.eq.s32.totalorder %s32, 0
    %p581 = por %p579, %p580
    %p582 = scmp.ne.s32.totalorder %s571, %s574
    %p583 = scmp.eq.s32.totalorder %s37, 1
    %p584 = por %p582, %p583
    %p585 = scmp.ne.s32.totalorder %s574, %s575
    %p586 = scmp.eq.s32.totalorder %s37, 0
    %p587 = por %p585, %p586
    %p588 = scmp.ne.s32.totalorder %s574, %s575
    %p589 = scmp.eq.s32.totalorder %s38, 1
    %p590 = por %p588, %p589
    %p592 = scmp.ne.s32.totalorder %s575, %s591
    %p593 = scmp.eq.s32.totalorder %s38, 0
    %p594 = por %p592, %p593
    %s595 = ssub.s32 %s32, %s39
    %p596 = scmp.eq.s32.totalorder %s595, 0
    %s598 = sadd.s32 %s597, 1
    %s599 = scalar_select %p596, %s597, %s598
    %p602 = pneg %p596
    %p603 = scmp.eq.s32.totalorder %s32, 1
    %p604 = por %p602, %p603
    %p605 = scmp.ne.s32.totalorder %s597, %s600
    %p606 = scmp.eq.s32.totalorder %s32, 0
    %p607 = por %p605, %p606
    %p608 = scmp.ne.s32.totalorder %s597, %s600
    %p609 = scmp.eq.s32.totalorder %s37, 1
    %p610 = por %p608, %p609
    %p611 = scmp.ne.s32.totalorder %s600, %s601
    %p612 = scmp.eq.s32.totalorder %s37, 0
    %p613 = por %p611, %p612
    %p614 = scmp.ne.s32.totalorder %s600, %s601
    %p615 = scmp.eq.s32.totalorder %s38, 1
    %p616 = por %p614, %p615
    %p618 = scmp.ne.s32.totalorder %s601, %s617
    %p619 = scmp.eq.s32.totalorder %s38, 0
    %p620 = por %p618, %p619
    %p621 = scmp.le.s32.totalorder 1, %s32
    %p622 = scmp.lt.s32.totalorder %s32, 3
    %p623 = pnand %p621, %p622
    %p624 = pneg %p623
    // Predicated region
    $region9: #{structure_encoder_forward.12} parent=5 // pred_check
      _
    $region10: #{structure_encoder_forward.12} parent=5 // pred_check_branch
      %626 = sbr.rel (%p623) target = $region12
    $region11: #{structure_encoder_forward.12} parent=5 // pred_region
      %s627 = ssub.s32 %s32, 1
      // Predicated region
      $region13: #{structure_encoder_forward.12} parent=11 // pred_check
        %p628 = pneg %p183
      $region14: #{structure_encoder_forward.12} parent=11 // pred_check_branch
        %630 = sbr.rel (%p628) target = $region16
      $region15: #{structure_encoder_forward.12} parent=11 // pred_region
        _
      $region16: #{structure_encoder_forward.12} parent=11 // pred_fallthru
        _
      // Predicated region
      $region17: #{structure_encoder_forward.12} parent=11 // pred_check
        %p631 = pneg %p204
      $region18: #{structure_encoder_forward.12} parent=11 // pred_check_branch
        %633 = sbr.rel (%p631) target = $region20
      $region19: #{structure_encoder_forward.12} parent=11 // pred_region
        _
      $region20: #{structure_encoder_forward.12} parent=11 // pred_fallthru
        _
      // Predicated region
      $region21: #{structure_encoder_forward.12} parent=11 // pred_check
        %p634 = pneg %p225
      $region22: #{structure_encoder_forward.12} parent=11 // pred_check_branch
        %636 = sbr.rel (%p634) target = $region24
      $region23: #{structure_encoder_forward.12} parent=11 // pred_region
        _
      $region24: #{structure_encoder_forward.12} parent=11 // pred_fallthru
        _
      // Predicated region
      $region25: #{structure_encoder_forward.12} parent=11 // pred_check
        %p637 = pneg %p246
      $region26: #{structure_encoder_forward.12} parent=11 // pred_check_branch
        %639 = sbr.rel (%p637) target = $region28
      $region27: #{structure_encoder_forward.12} parent=11 // pred_region
        _
      $region28: #{structure_encoder_forward.12} parent=11 // pred_fallthru
        _
      // Predicated region
      $region29: #{structure_encoder_forward.12} parent=11 // pred_check
        %p640 = pneg %p267
      $region30: #{structure_encoder_forward.12} parent=11 // pred_check_branch
        %642 = sbr.rel (%p640) target = $region32
      $region31: #{structure_encoder_forward.12} parent=11 // pred_region
        _
      $region32: #{structure_encoder_forward.12} parent=11 // pred_fallthru
        _
      // Predicated region
      $region33: #{structure_encoder_forward.12} parent=11 // pred_check
        %p643 = pneg %p288
      $region34: #{structure_encoder_forward.12} parent=11 // pred_check_branch
        %645 = sbr.rel (%p643) target = $region36
      $region35: #{structure_encoder_forward.12} parent=11 // pred_region
        _
      $region36: #{structure_encoder_forward.12} parent=11 // pred_fallthru
        _
      // Predicated region
      $region37: #{structure_encoder_forward.12} parent=11 // pred_check
        %p646 = pneg %p309
      $region38: #{structure_encoder_forward.12} parent=11 // pred_check_branch
        %648 = sbr.rel (%p646) target = $region40
      $region39: #{structure_encoder_forward.12} parent=11 // pred_region
        _
      $region40: #{structure_encoder_forward.12} parent=11 // pred_fallthru
        _
      // Predicated region
      $region41: #{structure_encoder_forward.12} parent=11 // pred_check
        %p649 = pneg %p330
      $region42: #{structure_encoder_forward.12} parent=11 // pred_check_branch
        %651 = sbr.rel (%p649) target = $region44
      $region43: #{structure_encoder_forward.12} parent=11 // pred_region
        _
      $region44: #{structure_encoder_forward.12} parent=11 // pred_fallthru
        _
      // Predicated region
      $region45: #{structure_encoder_forward.12} parent=11 // pred_check
        %p652 = pneg %p351
      $region46: #{structure_encoder_forward.12} parent=11 // pred_check_branch
        %654 = sbr.rel (%p652) target = $region48
      $region47: #{structure_encoder_forward.12} parent=11 // pred_region
        _
      $region48: #{structure_encoder_forward.12} parent=11 // pred_fallthru
        _
      // Predicated region
      $region49: #{structure_encoder_forward.12} parent=11 // pred_check
        %p655 = pneg %p372
      $region50: #{structure_encoder_forward.12} parent=11 // pred_check_branch
        %657 = sbr.rel (%p655) target = $region52
      $region51: #{structure_encoder_forward.12} parent=11 // pred_region
        _
      $region52: #{structure_encoder_forward.12} parent=11 // pred_fallthru
        _
      // Predicated region
      $region53: #{structure_encoder_forward.12} parent=11 // pred_check
        %p658 = pneg %p393
      $region54: #{structure_encoder_forward.12} parent=11 // pred_check_branch
        %660 = sbr.rel (%p658) target = $region56
      $region55: #{structure_encoder_forward.12} parent=11 // pred_region
        _
      $region56: #{structure_encoder_forward.12} parent=11 // pred_fallthru
        _
      // Predicated region
      $region57: #{structure_encoder_forward.12} parent=11 // pred_check
        %p661 = pneg %p414
      $region58: #{structure_encoder_forward.12} parent=11 // pred_check_branch
        %663 = sbr.rel (%p661) target = $region60
      $region59: #{structure_encoder_forward.12} parent=11 // pred_region
        _
      $region60: #{structure_encoder_forward.12} parent=11 // pred_fallthru
        _
      // Predicated region
      $region61: #{structure_encoder_forward.12} parent=11 // pred_check
        %p664 = pneg %p435
      $region62: #{structure_encoder_forward.12} parent=11 // pred_check_branch
        %666 = sbr.rel (%p664) target = $region64
      $region63: #{structure_encoder_forward.12} parent=11 // pred_region
        _
      $region64: #{structure_encoder_forward.12} parent=11 // pred_fallthru
        _
      // Predicated region
      $region65: #{structure_encoder_forward.12} parent=11 // pred_check
        %p667 = pneg %p456
      $region66: #{structure_encoder_forward.12} parent=11 // pred_check_branch
        %669 = sbr.rel (%p667) target = $region68
      $region67: #{structure_encoder_forward.12} parent=11 // pred_region
        _
      $region68: #{structure_encoder_forward.12} parent=11 // pred_fallthru
        _
      // Predicated region
      $region69: #{structure_encoder_forward.12} parent=11 // pred_check
        %p670 = pneg %p477
      $region70: #{structure_encoder_forward.12} parent=11 // pred_check_branch
        %672 = sbr.rel (%p670) target = $region72
      $region71: #{structure_encoder_forward.12} parent=11 // pred_region
        _
      $region72: #{structure_encoder_forward.12} parent=11 // pred_fallthru
        _
      // Predicated region
      $region73: #{structure_encoder_forward.12} parent=11 // pred_check
        %p673 = pneg %p498
      $region74: #{structure_encoder_forward.12} parent=11 // pred_check_branch
        %675 = sbr.rel (%p673) target = $region76
      $region75: #{structure_encoder_forward.12} parent=11 // pred_region
        _
      $region76: #{structure_encoder_forward.12} parent=11 // pred_fallthru
        _
      // Predicated region
      $region77: #{structure_encoder_forward.12} parent=11 // pred_check
        %p676 = pneg %p519
      $region78: #{structure_encoder_forward.12} parent=11 // pred_check_branch
        %678 = sbr.rel (%p676) target = $region80
      $region79: #{structure_encoder_forward.12} parent=11 // pred_region
        _
      $region80: #{structure_encoder_forward.12} parent=11 // pred_fallthru
        _
      // Predicated region
      $region81: #{structure_encoder_forward.12} parent=11 // pred_check
        %p679 = pneg %p540
      $region82: #{structure_encoder_forward.12} parent=11 // pred_check_branch
        %681 = sbr.rel (%p679) target = $region84
      $region83: #{structure_encoder_forward.12} parent=11 // pred_region
        _
      $region84: #{structure_encoder_forward.12} parent=11 // pred_fallthru
        _
      // Predicated region
      $region85: #{structure_encoder_forward.12} parent=11 // pred_check
        %p682 = pneg %p561
      $region86: #{structure_encoder_forward.12} parent=11 // pred_check_branch
        %684 = sbr.rel (%p682) target = $region88
      $region87: #{structure_encoder_forward.12} parent=11 // pred_region
        _
      $region88: #{structure_encoder_forward.12} parent=11 // pred_fallthru
        _
    $region12: #{structure_encoder_forward.12} parent=5 // pred_fallthru
      _
    %p685 = scmp.lt.s32.totalorder %s32, 2
    // Predicated region
    $region89: #{structure_encoder_forward.12} parent=5 // pred_check
      %p686 = pneg %p685
    $region90: #{structure_encoder_forward.12} parent=5 // pred_check_branch
      %688 = sbr.rel (%p686) target = $region92
    $region91: #{structure_encoder_forward.12} parent=5 // pred_region
      // Predicated region
      $region93: #{structure_encoder_forward.12} parent=91 // pred_check
        %p689 = pneg %p52
      $region94: #{structure_encoder_forward.12} parent=91 // pred_check_branch
        %691 = sbr.rel (%p689) target = $region96
      $region95: #{structure_encoder_forward.12} parent=91 // pred_region
        %s692 = smul.u32 2, %s32
        %p693 = scmp.lt.s32.totalorder %s692, 3
        %s694 = scalar_select %p693, %s692, 3
        %s695 = smul.addr %s694, 8
        %s696 = scalar_lea.vmem %s0, %s695
        %s697 = smul.u32 2, %s32
      $region96: #{structure_encoder_forward.12} parent=91 // pred_fallthru
        _
      // Predicated region
      $region97: #{structure_encoder_forward.12} parent=91 // pred_check
        %p698 = pneg %p78
      $region98: #{structure_encoder_forward.12} parent=91 // pred_check_branch
        %700 = sbr.rel (%p698) target = $region100
      $region99: #{structure_encoder_forward.12} parent=91 // pred_region
        %s701 = smul.u32 2, %s32
        %p702 = scmp.lt.s32.totalorder %s701, 3
        %s703 = scalar_select %p702, %s701, 3
        %s704 = smul.addr %s703, 8
        %s705 = scalar_lea.vmem %s1, %s704
        %s706 = smul.u32 2, %s32
      $region100: #{structure_encoder_forward.12} parent=91 // pred_fallthru
        _
      // Predicated region
      $region101: #{structure_encoder_forward.12} parent=91 // pred_check
        %p707 = pneg %p104
      $region102: #{structure_encoder_forward.12} parent=91 // pred_check_branch
        %709 = sbr.rel (%p707) target = $region104
      $region103: #{structure_encoder_forward.12} parent=91 // pred_region
        %s710 = smul.u32 2, %s32
        %p711 = scmp.lt.s32.totalorder %s710, 3
        %s712 = scalar_select %p711, %s710, 3
        %s713 = smul.addr %s712, 8
        %s714 = scalar_lea.vmem %s2, %s713
        %s715 = smul.u32 2, %s32
      $region104: #{structure_encoder_forward.12} parent=91 // pred_fallthru
        _
      // Predicated region
      $region105: #{structure_encoder_forward.12} parent=91 // pred_check
        %p716 = pneg %p130
      $region106: #{structure_encoder_forward.12} parent=91 // pred_check_branch
        %718 = sbr.rel (%p716) target = $region108
      $region107: #{structure_encoder_forward.12} parent=91 // pred_region
        %s719 = smul.u32 2, %s32
        %p720 = scmp.lt.s32.totalorder %s719, 3
        %s721 = scalar_select %p720, %s719, 3
        %s722 = smul.addr %s721, 8
        %s723 = scalar_lea.vmem %s3, %s722
        %s724 = smul.u32 2, %s32
      $region108: #{structure_encoder_forward.12} parent=91 // pred_fallthru
        _
      // Predicated region
      $region109: #{structure_encoder_forward.12} parent=91 // pred_check
        %p725 = pneg %p156
      $region110: #{structure_encoder_forward.12} parent=91 // pred_check_branch
        %727 = sbr.rel (%p725) target = $region112
      $region111: #{structure_encoder_forward.12} parent=91 // pred_region
        %s728 = smul.u32 2, %s32
        %p729 = scmp.lt.s32.totalorder %s728, 3
        %s730 = scalar_select %p729, %s728, 3
        %s731 = smul.addr %s730, 8
        %s732 = scalar_lea.vmem %s4, %s731
        %s733 = smul.u32 2, %s32
      $region112: #{structure_encoder_forward.12} parent=91 // pred_fallthru
        _
    $region92: #{structure_encoder_forward.12} parent=5 // pred_fallthru
      _
    %p734 = scmp.le.s32.totalorder 1, %s32
    %p735 = scmp.lt.s32.totalorder %s32, 3
    %p736 = pnand %p734, %p735
    %p737 = pneg %p736
    // Predicated region
    $region113: #{structure_encoder_forward.12} parent=5 // pred_check
      _
    $region114: #{structure_encoder_forward.12} parent=5 // pred_check_branch
      %739 = sbr.rel (%p736) target = $region116
    $region115: #{structure_encoder_forward.12} parent=5 // pred_region
      %s740 = ssub.s32 %s32, 1
      %s741 = smul.u32 2, %s37
      %p742 = scmp.lt.s32.totalorder %s741, 3
      %s743 = scalar_select %p742, %s741, 3
      %s744 = smul.addr %s743, 8
      %s745 = scalar_lea.vmem %s0, %s744
      %p746 = pneg %p58
      %p747 = pneg %p55
      %s748 = smul.u32 2, %s37
      %p749 = scmp.lt.s32.totalorder %s748, 3
      %s750 = scalar_select %p749, %s748, 3
      %s751 = smul.addr %s750, 8
      %s752 = scalar_lea.vmem %s1, %s751
      %p753 = pneg %p84
      %p754 = pneg %p81
      %s755 = smul.u32 2, %s37
      %p756 = scmp.lt.s32.totalorder %s755, 3
      %s757 = scalar_select %p756, %s755, 3
      %s758 = smul.addr %s757, 8
      %s759 = scalar_lea.vmem %s2, %s758
      %p760 = pneg %p110
      %p761 = pneg %p107
      %s762 = smul.u32 2, %s37
      %p763 = scmp.lt.s32.totalorder %s762, 3
      %s764 = scalar_select %p763, %s762, 3
      %s765 = smul.addr %s764, 8
      %s766 = scalar_lea.vmem %s3, %s765
      %p767 = pneg %p136
      %p768 = pneg %p133
      %s769 = smul.u32 2, %s37
      %p770 = scmp.lt.s32.totalorder %s769, 3
      %s771 = scalar_select %p770, %s769, 3
      %s772 = smul.addr %s771, 8
      %s773 = scalar_lea.vmem %s4, %s772
      %p774 = pneg %p162
      %p775 = pneg %p159
      %p776 = pneg %p183
      %p777 = pneg %p180
      %p778 = pneg %p204
      %p779 = pneg %p201
      %p780 = pneg %p225
      %p781 = pneg %p222
      %p782 = pneg %p246
      %p783 = pneg %p243
      %p784 = pneg %p267
      %p785 = pneg %p264
      %p786 = pneg %p288
      %p787 = pneg %p285
      %p788 = pneg %p309
      %p789 = pneg %p306
      %p790 = pneg %p330
      %p791 = pneg %p327
      %p792 = pneg %p351
      %p793 = pneg %p348
      %p794 = pneg %p372
      %p795 = pneg %p369
      %p796 = pneg %p393
      %p797 = pneg %p390
      %p798 = pneg %p414
      %p799 = pneg %p411
      %p800 = pneg %p435
      %p801 = pneg %p432
      %p802 = pneg %p456
      %p803 = pneg %p453
      %p804 = pneg %p477
      %p805 = pneg %p474
      %p806 = pneg %p498
      %p807 = pneg %p495
      %p808 = pneg %p519
      %p809 = pneg %p516
      %p810 = pneg %p540
      %p811 = pneg %p537
      %p812 = pneg %p561
      %p813 = pneg %p558
      %p814 = pneg %p587
      %p815 = pneg %p584
      %s816 = smul.u32 2, %s37
      %p817 = scmp.lt.s32.totalorder %s816, 3
      %s818 = scalar_select %p817, %s816, 3
      %s819 = smul.addr %s818, 8
      %s820 = scalar_lea.vmem %s24, %s819
      %p821 = pneg %p613
      %p822 = pneg %p610
      %s823 = smul.u32 2, %s37
      %p824 = scmp.lt.s32.totalorder %s823, 3
      %s825 = scalar_select %p824, %s823, 3
      %s826 = smul.addr %s825, 8
      %s827 = scalar_lea.vmem %s25, %s826
      %s828 = smul.u32 2, %s37
      %p829 = scmp.lt.s32.totalorder %s828, 3
      %s830 = scalar_select %p829, %s828, 3
      %s831 = smul.addr %s830, 8
      %s832 = scalar_lea.vmem %s0, %s831
      %s833 = smul.u32 2, %s37
      %s834 = smul.u32 2, %s37
      %p835 = scmp.lt.s32.totalorder %s834, 3
      %s836 = scalar_select %p835, %s834, 3
      %s837 = smul.addr %s836, 8
      %s838 = scalar_lea.vmem %s1, %s837
      %s839 = smul.u32 2, %s37
      %s840 = smul.u32 2, %s37
      %p841 = scmp.lt.s32.totalorder %s840, 3
      %s842 = scalar_select %p841, %s840, 3
      %s843 = smul.addr %s842, 8
      %s844 = scalar_lea.vmem %s2, %s843
      %s845 = smul.u32 2, %s37
      %s846 = smul.u32 2, %s37
      %p847 = scmp.lt.s32.totalorder %s846, 3
      %s848 = scalar_select %p847, %s846, 3
      %s849 = smul.addr %s848, 8
      %s850 = scalar_lea.vmem %s3, %s849
      %s851 = smul.u32 2, %s37
      %s852 = smul.u32 2, %s37
      %p853 = scmp.lt.s32.totalorder %s852, 3
      %s854 = scalar_select %p853, %s852, 3
      %s855 = smul.addr %s854, 8
      %s856 = scalar_lea.vmem %s4, %s855
      %s857 = smul.u32 2, %s37
      %s858 = smul.u32 2, %s37
      %p859 = scmp.lt.s32.totalorder %s858, 3
      %s860 = scalar_select %p859, %s858, 3
      %s861 = smul.addr %s860, 8
      %s862 = scalar_lea.vmem %s24, %s861
      %s863 = smul.u32 2, %s37
      %s864 = smul.u32 2, %s37
      %p865 = scmp.lt.s32.totalorder %s864, 3
      %s866 = scalar_select %p865, %s864, 3
      %s867 = smul.addr %s866, 8
      %s868 = scalar_lea.vmem %s25, %s867
      %s869 = smul.u32 2, %s37
      %v870 = vld [vmem:[%s5] sm:$0x1]
      %v871 = vld [vmem:[%s6] sm:$0x1]
      %v872 = vld [vmem:[%s7] sm:$0xff]
      %v873 = vld [vmem:[%s7 + $0x8] sm:$0xf]
      %v874 = vld [vmem:[%s8] sm:$0xff]
      %v875 = vld [vmem:[%s8 + $0x8] sm:$0xf]
      %v876 = vld [vmem:[%s9] sm:$0xff]
      %v877 = vld [vmem:[%s9 + $0x8] sm:$0xff]
      %v878 = vld [vmem:[%s9 + $0x10] sm:$0xff]
      %v879 = vld [vmem:[%s9 + $0x18] sm:$0xff]
      %v880 = vld [vmem:[%s10] sm:$0xff]
      %v881 = vld [vmem:[%s11] sm:$0x1]
      %v882 = vld [vmem:[%s12] sm:$0xff]
      %v883 = vld [vmem:[%s12 + $0x8] sm:$0xff]
      %v884 = vld [vmem:[%s12 + $0x10] sm:$0xff]
      %v885 = vld [vmem:[%s13] sm:$0xff]
      %v886 = vld [vmem:[%s13 + $0x8] sm:$0xff]
      %v887 = vld [vmem:[%s13 + $0x10] sm:$0xff]
      %v888 = vld [vmem:[%s14] sm:$0xff]
      %v889 = vld [vmem:[%s14 + $0x8] sm:$0xff]
      %v890 = vld [vmem:[%s14 + $0x10] sm:$0xff]
      %v891 = vld [vmem:[%s15] sm:$0xff]
      %v892 = vld [vmem:[%s15 + $0x8] sm:$0xff]
      %v893 = vld [vmem:[%s15 + $0x10] sm:$0xff]
      %v894 = vld [vmem:[%s16] sm:$0xff]
      %v895 = vld [vmem:[%s16 + $0x8] sm:$0xff]
      %v896 = vld [vmem:[%s16 + $0x10] sm:$0xff]
      %v897 = vld [vmem:[%s16 + $0x18] sm:$0xff]
      %v898 = vld [vmem:[%s16 + $0x20] sm:$0xff]
      %v899 = vld [vmem:[%s16 + $0x28] sm:$0xff]
      %v900 = vld [vmem:[%s16 + $0x30] sm:$0xff]
      %v901 = vld [vmem:[%s16 + $0x38] sm:$0xff]
      %v902 = vld [vmem:[%s16 + $0x40] sm:$0xff]
      %v903 = vld [vmem:[%s16 + $0x48] sm:$0xff]
      %v904 = vld [vmem:[%s16 + $0x50] sm:$0xff]
      %v905 = vld [vmem:[%s16 + $0x58] sm:$0xff]
      %v906 = vld [vmem:[%s16 + $0x60] sm:$0xff]
      %v907 = vld [vmem:[%s16 + $0x68] sm:$0xff]
      %v908 = vld [vmem:[%s16 + $0x70] sm:$0xff]
      %v909 = vld [vmem:[%s16 + $0x78] sm:$0xff]
      %v910 = vld [vmem:[%s17] sm:$0xff]
      %v911 = vld [vmem:[%s18] sm:$0x1]
      %v912 = vld [vmem:[%s19] sm:$0xff]
      %v913 = vld [vmem:[%s19 + $0x8] sm:$0xff]
      %v914 = vld [vmem:[%s19 + $0x10] sm:$0xff]
      %v915 = vld [vmem:[%s20] sm:$0xff]
      %v916 = vld [vmem:[%s20 + $0x8] sm:$0xff]
      %v917 = vld [vmem:[%s20 + $0x10] sm:$0xff]
      %v918 = vld [vmem:[%s21] sm:$0x1]
      %v919 = vld [vmem:[%s22] sm:$0x1]
      %v920 = vld [vmem:[%s23] sm:$0xff]
      %v921 = vld [vmem:[%s23 + $0x8] sm:$0xf]
      %v922 = vld [vmem:[%s856] sm:$0xff]
      %v923 = vld [vmem:[%s856 + $0x8] sm:$0xff]
      %v924 = vld [vmem:[%s832] sm:$0xff]
      %v925 = vld [vmem:[%s832 + $0x8] sm:$0xff]
      %v926 = vld [vmem:[%s844] sm:$0xff]
      %v927 = vld [vmem:[%s844 + $0x8] sm:$0xff]
      %929 = vset.pattern.permute.xlu0 0
      %930 = vperm.xlu0 %929, %v922
      %v931 = vpop.permute.xlu0 %930
      %934 = vset.pattern.permute.xlu0 0
      %935 = vperm.xlu0 %934, %v923
      %v936 = vpop.permute.xlu0 %935
      %v938 = vmul.f32 %v926, %v931
      %v939 = vmul.f32 %v927, %v936
      %v940 = vadd.f32 %v924, %v938
      %v941 = vadd.f32 %v925, %v939
      %v942 = vld [vmem:[%s838] sm:$0xff]
      %v943 = vld [vmem:[%s838 + $0x8] sm:$0xff]
      %v944 = vld [vmem:[%s850] sm:$0xff]
      %v945 = vld [vmem:[%s850 + $0x8] sm:$0xff]
      %v946 = vmul.f32 %v944, %v931
      %v947 = vmul.f32 %v945, %v936
      %v948 = vadd.f32 %v942, %v946
      %v949 = vadd.f32 %v943, %v947
      %vm950 = vcmask 261120
      %v951 = vsel %vm950, %v940, 0.0
      %952 = vadd.xlane.f32.xlu0 %v951
      %v953 = vpop.xlane.xlu0 %952
      %v954 = vsel %vm950, %v941, 0.0
      %955 = vadd.xlane.f32.xlu0 %v954
      %v956 = vpop.xlane.xlu0 %955
      %v957 = vrcp.pop 32.0
      %v958 = vmul.f32 32.0, %v957
      %v959 = vsub.f32 1.0, %v958
      %v960 = vmul.f32 %v957, %v959
      %v961 = vadd.f32 %v957, %v960
      %vm962 = vweird.f32 %v957
      %v963 = vsel %vm962, %v957, %v961
      %v964 = vmul.f32 %v953, %v963
      %v965 = vmul.f32 %v956, %v963
      %v966 = vsub.f32 %v940, %v964
      %v967 = vsub.f32 %v941, %v965
      %v968 = vmul.f32 %v966, %v966
      %v969 = vmul.f32 %v967, %v967
      %v970 = vsel %vm950, %v968, 0.0
      %971 = vadd.xlane.f32.xlu0 %v970
      %v972 = vpop.xlane.xlu0 %971
      %v973 = vsel %vm950, %v969, 0.0
      %974 = vadd.xlane.f32.xlu0 %v973
      %v975 = vpop.xlane.xlu0 %974
      %v976 = vmul.f32 %v972, %v963
      %v977 = vmul.f32 %v975, %v963
      %v978 = vadd.f32 %v976, 1e-05
      %v979 = vadd.f32 %v977, 1e-05
      %v980 = vrsqrt.pop %v978
      %v981 = vmul.f32 %v980, %v978
      %v982 = vmul.f32 %v981, %v980
      %v983 = vmul.f32 0.5, %v982
      %v984 = vsub.f32 1.5, %v983
      %v985 = vmul.f32 %v980, %v984
      %vm986 = vweird.f32 %v978
      %vm987 = vweird.f32 %v980
      %vm988 = vmor %vm986, %vm987
      %v989 = vsel %vm988, %v980, %v985
      %v990 = vrsqrt.pop %v979
      %v991 = vmul.f32 %v990, %v979
      %v992 = vmul.f32 %v991, %v990
      %v993 = vmul.f32 0.5, %v992
      %v994 = vsub.f32 1.5, %v993
      %v995 = vmul.f32 %v990, %v994
      %vm996 = vweird.f32 %v979
      %vm997 = vweird.f32 %v990
      %vm998 = vmor %vm996, %vm997
      %v999 = vsel %vm998, %v990, %v995
      %v1000 = vmul.f32 %v966, %v989
      %v1001 = vmul.f32 %v967, %v999
      %v1003 = vperm.slane %v870, 0
      %v1005 = vmul.f32 %v1000, %v1003
      %v1006 = vmul.f32 %v1001, %v1003
      %v1008 = vperm.slane %v871, 0
      %v1010 = vadd.f32 %v1005, %v1008
      %v1011 = vadd.f32 %v1006, %v1008
      %v1012 = vmul.f32 %v948, %v948
      %v1013 = vmul.f32 %v949, %v949
      %vm1014 = vcmask 97280
      %v1016 = vsel %vm1014, %v1012, 0
      %v1019 = vsel %vm1014, %v1013, 0
      %vm1021 = vcmask 1043456
      %v1023 = vsel %vm1021, %v873, 0
      %1025 = vmatpush.msra.mxu0 0.0
      %1026 = vmatpush.msra.mxu0 0.0
      %1027 = vmatpush.msra.mxu0 0.0
      %1028 = vmatpush.msra.mxu0 0.0
      %1029 = vmatpush.msra.mxu0 0.0
      %1030 = vmatpush.msra.mxu0 0.0
      %1031 = vmatpush.msra.mxu0 0.0
      %1032 = vmatpush.msra.mxu0 0.0
      %1033 = vmatpush.msra.mxu0 0.0
      %1034 = vmatpush.msra.mxu0 0.0
      %1035 = vmatpush.msra.mxu0 0.0
      %1036 = vmatpush.msra.mxu0 0.0
      %1037 = vmatpush.msra.mxu0 0.0
      %1038 = vmatpush.msra.mxu0 0.0
      %1039 = vmatpush.msra.mxu0 %v1023
      %1040 = vmatpush.msra.mxu0 %v872
      %1041 = vmatmul.f32.gmra.mxu0 %v1016
      %v1042 = vpop.f32.mrf.mxu0
      %v1043 = vadd.f32 0.0, %v1042
      %1044 = vmatmul.f32.gmra.mxu0 %v1019
      %v1045 = vpop.f32.mrf.mxu0
      %v1046 = vadd.f32 0.0, %v1045
      %1047 = vdwg.mxu0
      %v1048 = vmax.f32 %v1043, 1e-08
      %v1049 = vmax.f32 %v1046, 1e-08
      %vm1050 = vcmask 31744
      %v1051 = vsel %vm1050, %v1048, 0.0
      %1052 = vadd.xlane.f32.xlu0 %v1051
      %v1053 = vpop.xlane.xlu0 %1052
      %v1054 = vsel %vm1050, %v1049, 0.0
      %1055 = vadd.xlane.f32.xlu0 %v1054
      %v1056 = vpop.xlane.xlu0 %1055
      %v1057 = vrcp.pop 4.0
      %v1058 = vmul.f32 4.0, %v1057
      %v1059 = vsub.f32 1.0, %v1058
      %v1060 = vmul.f32 %v1057, %v1059
      %v1061 = vadd.f32 %v1057, %v1060
      %vm1062 = vweird.f32 %v1057
      %v1063 = vsel %vm1062, %v1057, %v1061
      %v1064 = vmul.f32 %v1053, %v1063
      %v1065 = vmul.f32 %v1056, %v1063
      %v1066 = vrsqrt.pop %v1064
      %v1067 = vmul.f32 %v1066, %v1064
      %v1068 = vmul.f32 %v1067, %v1066
      %v1069 = vmul.f32 0.5, %v1068
      %v1070 = vsub.f32 1.5, %v1069
      %v1071 = vmul.f32 %v1066, %v1070
      %vm1072 = vweird.f32 %v1064
      %vm1073 = vweird.f32 %v1066
      %vm1074 = vmor %vm1072, %vm1073
      %v1075 = vsel %vm1074, %v1066, %v1071
      %v1076 = vrsqrt.pop %v1065
      %v1077 = vmul.f32 %v1076, %v1065
      %v1078 = vmul.f32 %v1077, %v1076
      %v1079 = vmul.f32 0.5, %v1078
      %v1080 = vsub.f32 1.5, %v1079
      %v1081 = vmul.f32 %v1076, %v1080
      %vm1082 = vweird.f32 %v1065
      %vm1083 = vweird.f32 %v1076
      %vm1084 = vmor %vm1082, %vm1083
      %v1085 = vsel %vm1084, %v1076, %v1081
      %v1086 = vmul.f32 %v948, %v1075
      %v1087 = vmul.f32 %v949, %v1085
      %v1089 = vsel %vm1014, %v1086, 0
      %v1092 = vsel %vm1014, %v1087, 0
      %v1095 = vsel %vm1021, %v875, 0
      %1097 = vmatpush.msra.mxu0 0.0
      %1098 = vmatpush.msra.mxu0 0.0
      %1099 = vmatpush.msra.mxu0 0.0
      %1100 = vmatpush.msra.mxu0 0.0
      %1101 = vmatpush.msra.mxu0 0.0
      %1102 = vmatpush.msra.mxu0 0.0
      %1103 = vmatpush.msra.mxu0 0.0
      %1104 = vmatpush.msra.mxu0 0.0
      %1105 = vmatpush.msra.mxu0 0.0
      %1106 = vmatpush.msra.mxu0 0.0
      %1107 = vmatpush.msra.mxu0 0.0
      %1108 = vmatpush.msra.mxu0 0.0
      %1109 = vmatpush.msra.mxu0 0.0
      %1110 = vmatpush.msra.mxu0 0.0
      %1111 = vmatpush.msra.mxu0 %v1095
      %1112 = vmatpush.msra.mxu0 %v874
      %1113 = vmatmul.f32.gmra.mxu0 %v1089
      %v1114 = vpop.f32.mrf.mxu0
      %v1115 = vadd.f32 0.0, %v1114
      %1116 = vmatmul.f32.gmra.mxu0 %v1092
      %v1117 = vpop.f32.mrf.mxu0
      %v1118 = vadd.f32 0.0, %v1117
      %1119 = vdwg.mxu0
      %v1120 = vmul.f32 %v1115, %v1115
      %v1121 = vmul.f32 %v1118, %v1118
      %vm1122 = vcmask 195584
      %v1124 = vsel %vm1122, %v1120, 0
      %v1127 = vsel %vm1122, %v1121, 0
      %1129 = vmatpush.msra.mxu0 0.0
      %1130 = vmatpush.msra.mxu0 0.0
      %1131 = vmatpush.msra.mxu0 0.0
      %1132 = vmatpush.msra.mxu0 0.0
      %1133 = vmatpush.msra.mxu0 0.0
      %1134 = vmatpush.msra.mxu0 0.0
      %1135 = vmatpush.msra.mxu0 0.0
      %1136 = vmatpush.msra.mxu0 0.0
      %1137 = vmatpush.msra.mxu0 0.0
      %1138 = vmatpush.msra.mxu0 0.0
      %1139 = vmatpush.msra.mxu0 0.0
      %1140 = vmatpush.msra.mxu0 0.0
      %1141 = vmatpush.msra.mxu0 0.0
      %1142 = vmatpush.msra.mxu0 %v884
      %1143 = vmatpush.msra.mxu0 %v883
      %1144 = vmatpush.msra.mxu0 %v882
      %1145 = vmatmul.f32.gmra.mxu0 %v1124
      %v1146 = vpop.f32.mrf.mxu0
      %v1147 = vadd.f32 0.0, %v1146
      %1148 = vmatmul.f32.gmra.mxu0 %v1127
      %v1149 = vpop.f32.mrf.mxu0
      %v1150 = vadd.f32 0.0, %v1149
      %1151 = vdwg.mxu0
      %v1152 = vmax.f32 %v1147, 1e-08
      %v1153 = vmax.f32 %v1150, 1e-08
      %v1154 = vrsqrt.pop %v1152
      %v1155 = vmul.f32 %v1154, %v1152
      %v1156 = vmul.f32 %v1155, %v1154
      %v1157 = vmul.f32 0.5, %v1156
      %v1158 = vsub.f32 1.5, %v1157
      %v1159 = vmul.f32 %v1154, %v1158
      %v1160 = vmul.f32 %v1152, %v1159
      %vm1161 = vcmp.eq.f32.partialorder %v1152, inf
      %v1162 = vsel %vm1161, %v1152, %v1160
      %vm1163 = vcmp.eq.f32.partialorder %v1152, 0.0
      %v1164 = vand.u32 %v1152, 2147483648
      %v1165 = vsel %vm1163, %v1164, %v1162
      %v1166 = vrsqrt.pop %v1153
      %v1167 = vmul.f32 %v1166, %v1153
      %v1168 = vmul.f32 %v1167, %v1166
      %v1169 = vmul.f32 0.5, %v1168
      %v1170 = vsub.f32 1.5, %v1169
      %v1171 = vmul.f32 %v1166, %v1170
      %v1172 = vmul.f32 %v1153, %v1171
      %vm1173 = vcmp.eq.f32.partialorder %v1153, inf
      %v1174 = vsel %vm1173, %v1153, %v1172
      %vm1175 = vcmp.eq.f32.partialorder %v1153, 0.0
      %v1176 = vand.u32 %v1153, 2147483648
      %v1177 = vsel %vm1175, %v1176, %v1174
      %vm1178 = vcmask 64512
      %v1180 = vsel %vm1178, %v1165, 0
      %v1183 = vsel %vm1178, %v1177, 0
      %1185 = vmatpush.msra.mxu0 0.0
      %1186 = vmatpush.msra.mxu0 0.0
      %1187 = vmatpush.msra.mxu0 0.0
      %1188 = vmatpush.msra.mxu0 0.0
      %1189 = vmatpush.msra.mxu0 0.0
      %1190 = vmatpush.msra.mxu0 0.0
      %1191 = vmatpush.msra.mxu0 0.0
      %1192 = vmatpush.msra.mxu0 0.0
      %1193 = vmatpush.msra.mxu0 0.0
      %1194 = vmatpush.msra.mxu0 0.0
      %1195 = vmatpush.msra.mxu0 0.0
      %1196 = vmatpush.msra.mxu0 0.0
      %1197 = vmatpush.msra.mxu0 0.0
      %1198 = vmatpush.msra.mxu0 0.0
      %1199 = vmatpush.msra.mxu0 0.0
      %1200 = vmatpush.msra.mxu0 %v880
      %1201 = vmatmul.f32.gmra.mxu0 %v1180
      %v1202 = vpop.f32.mrf.mxu0
      %v1203 = vadd.f32 0.0, %v1202
      %1204 = vmatmul.f32.gmra.mxu0 %v1183
      %v1205 = vpop.f32.mrf.mxu0
      %v1206 = vadd.f32 0.0, %v1205
      %1207 = vdwg.mxu0
      %v1209 = vsel %vm950, %v1010, 0
      %v1212 = vsel %vm950, %v1011, 0
      %1214 = vmatpush.msra.mxu0 0.0
      %1215 = vmatpush.msra.mxu0 0.0
      %1216 = vmatpush.msra.mxu0 0.0
      %1217 = vmatpush.msra.mxu0 0.0
      %1218 = vmatpush.msra.mxu0 0.0
      %1219 = vmatpush.msra.mxu0 0.0
      %1220 = vmatpush.msra.mxu0 0.0
      %1221 = vmatpush.msra.mxu0 0.0
      %1222 = vmatpush.msra.mxu0 0.0
      %1223 = vmatpush.msra.mxu0 0.0
      %1224 = vmatpush.msra.mxu0 0.0
      %1225 = vmatpush.msra.mxu0 0.0
      %1226 = vmatpush.msra.mxu0 %v879
      %1227 = vmatpush.msra.mxu0 %v878
      %1228 = vmatpush.msra.mxu0 %v877
      %1229 = vmatpush.msra.mxu0 %v876
      %1230 = vmatmul.f32.gmra.mxu0 %v1209
      %v1231 = vpop.f32.mrf.mxu0
      %v1232 = vadd.f32 %v1203, %v1231
      %1233 = vmatmul.f32.gmra.mxu0 %v1212
      %v1234 = vpop.f32.mrf.mxu0
      %v1235 = vadd.f32 %v1206, %v1234
      %1236 = vdwg.mxu0
      %v1238 = vperm.slane %v881, 0
      %v1240 = vadd.f32 %v1232, %v1238
      %v1241 = vadd.f32 %v1235, %v1238
      %v1242 = vmax.f32 %v1240, 0.0
      %v1243 = vmax.f32 %v1241, 0.0
      %v1245 = vsel %vm1122, %v1115, 0
      %v1248 = vsel %vm1122, %v1118, 0
      %1250 = vmatpush.msra.mxu0 0.0
      %1251 = vmatpush.msra.mxu0 0.0
      %1252 = vmatpush.msra.mxu0 0.0
      %1253 = vmatpush.msra.mxu0 0.0
      %1254 = vmatpush.msra.mxu0 0.0
      %1255 = vmatpush.msra.mxu0 0.0
      %1256 = vmatpush.msra.mxu0 0.0
      %1257 = vmatpush.msra.mxu0 0.0
      %1258 = vmatpush.msra.mxu0 0.0
      %1259 = vmatpush.msra.mxu0 0.0
      %1260 = vmatpush.msra.mxu0 0.0
      %1261 = vmatpush.msra.mxu0 0.0
      %1262 = vmatpush.msra.mxu0 0.0
      %1263 = vmatpush.msra.mxu0 %v887
      %1264 = vmatpush.msra.mxu0 %v886
      %1265 = vmatpush.msra.mxu0 %v885
      %1266 = vmatmul.f32.gmra.mxu0 %v1245
      %v1267 = vpop.f32.mrf.mxu0
      %v1268 = vadd.f32 0.0, %v1267
      %1269 = vmatmul.f32.gmra.mxu0 %v1248
      %v1270 = vpop.f32.mrf.mxu0
      %v1271 = vadd.f32 0.0, %v1270
      %1272 = vdwg.mxu0
      %v1273 = vmul.f32 %v1268, %v1268
      %v1274 = vmul.f32 %v1271, %v1271
      %v1276 = vsel %vm1122, %v1273, 0
      %v1279 = vsel %vm1122, %v1274, 0
      %1281 = vmatpush.msra.mxu0 0.0
      %1282 = vmatpush.msra.mxu0 0.0
      %1283 = vmatpush.msra.mxu0 0.0
      %1284 = vmatpush.msra.mxu0 0.0
      %1285 = vmatpush.msra.mxu0 0.0
      %1286 = vmatpush.msra.mxu0 0.0
      %1287 = vmatpush.msra.mxu0 0.0
      %1288 = vmatpush.msra.mxu0 0.0
      %1289 = vmatpush.msra.mxu0 0.0
      %1290 = vmatpush.msra.mxu0 0.0
      %1291 = vmatpush.msra.mxu0 0.0
      %1292 = vmatpush.msra.mxu0 0.0
      %1293 = vmatpush.msra.mxu0 0.0
      %1294 = vmatpush.msra.mxu0 %v890
      %1295 = vmatpush.msra.mxu0 %v889
      %1296 = vmatpush.msra.mxu0 %v888
      %1297 = vmatmul.f32.gmra.mxu0 %v1276
      %v1298 = vpop.f32.mrf.mxu0
      %v1299 = vadd.f32 0.0, %v1298
      %1300 = vmatmul.f32.gmra.mxu0 %v1279
      %v1301 = vpop.f32.mrf.mxu0
      %v1302 = vadd.f32 0.0, %v1301
      %1303 = vdwg.mxu0
      %v1304 = vmax.f32 %v1299, 1e-08
      %v1305 = vmax.f32 %v1302, 1e-08
      %v1306 = vrsqrt.pop %v1304
      %v1307 = vmul.f32 %v1306, %v1304
      %v1308 = vmul.f32 %v1307, %v1306
      %v1309 = vmul.f32 0.5, %v1308
      %v1310 = vsub.f32 1.5, %v1309
      %v1311 = vmul.f32 %v1306, %v1310
      %v1312 = vmul.f32 %v1304, %v1311
      %vm1313 = vcmp.eq.f32.partialorder %v1304, inf
      %v1314 = vsel %vm1313, %v1304, %v1312
      %vm1315 = vcmp.eq.f32.partialorder %v1304, 0.0
      %v1316 = vand.u32 %v1304, 2147483648
      %v1317 = vsel %vm1315, %v1316, %v1314
      %v1318 = vrsqrt.pop %v1305
      %v1319 = vmul.f32 %v1318, %v1305
      %v1320 = vmul.f32 %v1319, %v1318
      %v1321 = vmul.f32 0.5, %v1320
      %v1322 = vsub.f32 1.5, %v1321
      %v1323 = vmul.f32 %v1318, %v1322
      %v1324 = vmul.f32 %v1305, %v1323
      %vm1325 = vcmp.eq.f32.partialorder %v1305, inf
      %v1326 = vsel %vm1325, %v1305, %v1324
      %vm1327 = vcmp.eq.f32.partialorder %v1305, 0.0
      %v1328 = vand.u32 %v1305, 2147483648
      %v1329 = vsel %vm1327, %v1328, %v1326
      %v1330 = vxor.u32 %v1317, 2147483648
      %v1331 = vxor.u32 %v1329, 2147483648
      %v1332 = vmul.f32 %v1330, 1.442695
      %v1333 = vpow.pop %v1332
      %v1334 = vmul.f32 %v1331, 1.442695
      %v1335 = vpow.pop %v1334
      %v1336 = vadd.f32 %v1333, 1.0
      %v1337 = vadd.f32 %v1335, 1.0
      %v1338 = vrcp.pop %v1336
      %v1339 = vmul.f32 %v1336, %v1338
      %v1340 = vsub.f32 1.0, %v1339
      %v1341 = vmul.f32 %v1338, %v1340
      %v1342 = vadd.f32 %v1338, %v1341
      %vm1343 = vweird.f32 %v1336
      %vm1344 = vweird.f32 %v1338
      %vm1345 = vmor %vm1343, %vm1344
      %v1346 = vsel %vm1345, %v1338, %v1342
      %v1347 = vand.u32 2147483647, %v1336
      %vm1348 = vcmp.eq.f32.partialorder %v1347, 8.507059e+37
      %v1349 = vand.u32 %v1336, 2147483648
      %v1350 = vor.u32 1.1754944e-38, %v1349
      %v1351 = vsel %vm1348, %v1350, %v1346
      %v1352 = vmul.f32 1.0, %v1351
      %v1353 = vrcp.pop %v1337
      %v1354 = vmul.f32 %v1337, %v1353
      %v1355 = vsub.f32 1.0, %v1354
      %v1356 = vmul.f32 %v1353, %v1355
      %v1357 = vadd.f32 %v1353, %v1356
      %vm1358 = vweird.f32 %v1337
      %vm1359 = vweird.f32 %v1353
      %vm1360 = vmor %vm1358, %vm1359
      %v1361 = vsel %vm1360, %v1353, %v1357
      %v1362 = vand.u32 2147483647, %v1337
      %vm1363 = vcmp.eq.f32.partialorder %v1362, 8.507059e+37
      %v1364 = vand.u32 %v1337, 2147483648
      %v1365 = vor.u32 1.1754944e-38, %v1364
      %v1366 = vsel %vm1363, %v1365, %v1361
      %v1367 = vmul.f32 1.0, %v1366
      %v1368 = vmul.f32 %v1268, %v1352
      %v1369 = vmul.f32 %v1271, %v1367
      %v1371 = vsel %vm1122, %v1368, 0
      %v1374 = vsel %vm1122, %v1369, 0
      %1376 = vmatpush.msra.mxu0 0.0
      %1377 = vmatpush.msra.mxu0 0.0
      %1378 = vmatpush.msra.mxu0 0.0
      %1379 = vmatpush.msra.mxu0 0.0
      %1380 = vmatpush.msra.mxu0 0.0
      %1381 = vmatpush.msra.mxu0 0.0
      %1382 = vmatpush.msra.mxu0 0.0
      %1383 = vmatpush.msra.mxu0 0.0
      %1384 = vmatpush.msra.mxu0 0.0
      %1385 = vmatpush.msra.mxu0 0.0
      %1386 = vmatpush.msra.mxu0 0.0
      %1387 = vmatpush.msra.mxu0 0.0
      %1388 = vmatpush.msra.mxu0 0.0
      %1389 = vmatpush.msra.mxu0 %v893
      %1390 = vmatpush.msra.mxu0 %v892
      %1391 = vmatpush.msra.mxu0 %v891
      %1392 = vmatmul.f32.gmra.mxu0 %v1371
      %v1393 = vpop.f32.mrf.mxu0
      %v1394 = vadd.f32 0.0, %v1393
      %1395 = vmatmul.f32.gmra.mxu0 %v1374
      %v1396 = vpop.f32.mrf.mxu0
      %v1397 = vadd.f32 0.0, %v1396
      %1398 = vdwg.mxu0
      %v1399 = vmul.f32 %v1394, %v1394
      %v1400 = vmul.f32 %v1397, %v1397
      %v1402 = vsel %vm1122, %v1399, 0
      %v1405 = vsel %vm1122, %v1400, 0
      %1407 = vmatpush.msra.mxu0 0.0
      %1408 = vmatpush.msra.mxu0 0.0
      %1409 = vmatpush.msra.mxu0 0.0
      %1410 = vmatpush.msra.mxu0 0.0
      %1411 = vmatpush.msra.mxu0 0.0
      %1412 = vmatpush.msra.mxu0 0.0
      %1413 = vmatpush.msra.mxu0 0.0
      %1414 = vmatpush.msra.mxu0 0.0
      %1415 = vmatpush.msra.mxu0 0.0
      %1416 = vmatpush.msra.mxu0 0.0
      %1417 = vmatpush.msra.mxu0 0.0
      %1418 = vmatpush.msra.mxu0 0.0
      %1419 = vmatpush.msra.mxu0 0.0
      %1420 = vmatpush.msra.mxu0 %v914
      %1421 = vmatpush.msra.mxu0 %v913
      %1422 = vmatpush.msra.mxu0 %v912
      %1423 = vmatmul.f32.gmra.mxu0 %v1402
      %v1424 = vpop.f32.mrf.mxu0
      %v1425 = vadd.f32 0.0, %v1424
      %1426 = vmatmul.f32.gmra.mxu0 %v1405
      %v1427 = vpop.f32.mrf.mxu0
      %v1428 = vadd.f32 0.0, %v1427
      %1429 = vdwg.mxu0
      %v1430 = vmax.f32 %v1425, 1e-08
      %v1431 = vmax.f32 %v1428, 1e-08
      %v1432 = vrsqrt.pop %v1430
      %v1433 = vmul.f32 %v1432, %v1430
      %v1434 = vmul.f32 %v1433, %v1432
      %v1435 = vmul.f32 0.5, %v1434
      %v1436 = vsub.f32 1.5, %v1435
      %v1437 = vmul.f32 %v1432, %v1436
      %v1438 = vmul.f32 %v1430, %v1437
      %vm1439 = vcmp.eq.f32.partialorder %v1430, inf
      %v1440 = vsel %vm1439, %v1430, %v1438
      %vm1441 = vcmp.eq.f32.partialorder %v1430, 0.0
      %v1442 = vand.u32 %v1430, 2147483648
      %v1443 = vsel %vm1441, %v1442, %v1440
      %v1444 = vrsqrt.pop %v1431
      %v1445 = vmul.f32 %v1444, %v1431
      %v1446 = vmul.f32 %v1445, %v1444
      %v1447 = vmul.f32 0.5, %v1446
      %v1448 = vsub.f32 1.5, %v1447
      %v1449 = vmul.f32 %v1444, %v1448
      %v1450 = vmul.f32 %v1431, %v1449
      %vm1451 = vcmp.eq.f32.partialorder %v1431, inf
      %v1452 = vsel %vm1451, %v1431, %v1450
      %vm1453 = vcmp.eq.f32.partialorder %v1431, 0.0
      %v1454 = vand.u32 %v1431, 2147483648
      %v1455 = vsel %vm1453, %v1454, %v1452
      %v1457 = vsel %vm1178, %v1443, 0
      %v1460 = vsel %vm1178, %v1455, 0
      %1462 = vmatpush.msra.mxu0 0.0
      %1463 = vmatpush.msra.mxu0 0.0
      %1464 = vmatpush.msra.mxu0 0.0
      %1465 = vmatpush.msra.mxu0 0.0
      %1466 = vmatpush.msra.mxu0 0.0
      %1467 = vmatpush.msra.mxu0 0.0
      %1468 = vmatpush.msra.mxu0 0.0
      %1469 = vmatpush.msra.mxu0 0.0
      %1470 = vmatpush.msra.mxu0 0.0
      %1471 = vmatpush.msra.mxu0 0.0
      %1472 = vmatpush.msra.mxu0 0.0
      %1473 = vmatpush.msra.mxu0 0.0
      %1474 = vmatpush.msra.mxu0 0.0
      %1475 = vmatpush.msra.mxu0 0.0
      %1476 = vmatpush.msra.mxu0 0.0
      %1477 = vmatpush.msra.mxu0 %v910
      %1478 = vmatmul.f32.gmra.mxu0 %v1457
      %v1479 = vpop.f32.mrf.mxu0
      %v1480 = vadd.f32 0.0, %v1479
      %1481 = vmatmul.f32.gmra.mxu0 %v1460
      %v1482 = vpop.f32.mrf.mxu0
      %v1483 = vadd.f32 0.0, %v1482
      %1484 = vdwg.mxu0
      %1485 = vmatpush.msra.mxu0 %v909
      %1486 = vmatpush.msra.mxu0 %v908
      %1487 = vmatpush.msra.mxu0 %v907
      %1488 = vmatpush.msra.mxu0 %v906
      %1489 = vmatpush.msra.mxu0 %v905
      %1490 = vmatpush.msra.mxu0 %v904
      %1491 = vmatpush.msra.mxu0 %v903
      %1492 = vmatpush.msra.mxu0 %v902
      %1493 = vmatpush.msra.mxu0 %v901
      %1494 = vmatpush.msra.mxu0 %v900
      %1495 = vmatpush.msra.mxu0 %v899
      %1496 = vmatpush.msra.mxu0 %v898
      %1497 = vmatpush.msra.mxu0 %v897
      %1498 = vmatpush.msra.mxu0 %v896
      %1499 = vmatpush.msra.mxu0 %v895
      %1500 = vmatpush.msra.mxu0 %v894
      %1501 = vmatmul.f32.gmra.mxu0 %v1242
      %v1502 = vpop.f32.mrf.mxu0
      %v1503 = vadd.f32 %v1480, %v1502
      %1504 = vmatmul.f32.gmra.mxu0 %v1243
      %v1505 = vpop.f32.mrf.mxu0
      %v1506 = vadd.f32 %v1483, %v1505
      %1507 = vdwg.mxu0
      %v1509 = vperm.slane %v911, 0
      %v1511 = vadd.f32 %v1503, %v1509
      %v1512 = vadd.f32 %v1506, %v1509
      %v1514 = vsel %vm1122, %v1394, 0
      %v1517 = vsel %vm1122, %v1397, 0
      %1519 = vmatpush.msra.mxu0 0.0
      %1520 = vmatpush.msra.mxu0 0.0
      %1521 = vmatpush.msra.mxu0 0.0
      %1522 = vmatpush.msra.mxu0 0.0
      %1523 = vmatpush.msra.mxu0 0.0
      %1524 = vmatpush.msra.mxu0 0.0
      %1525 = vmatpush.msra.mxu0 0.0
      %1526 = vmatpush.msra.mxu0 0.0
      %1527 = vmatpush.msra.mxu0 0.0
      %1528 = vmatpush.msra.mxu0 0.0
      %1529 = vmatpush.msra.mxu0 0.0
      %1530 = vmatpush.msra.mxu0 0.0
      %1531 = vmatpush.msra.mxu0 0.0
      %1532 = vmatpush.msra.mxu0 %v917
      %1533 = vmatpush.msra.mxu0 %v916
      %1534 = vmatpush.msra.mxu0 %v915
      %1535 = vmatmul.f32.gmra.mxu0 %v1514
      %v1536 = vpop.f32.mrf.mxu0
      %v1537 = vadd.f32 0.0, %v1536
      %1538 = vmatmul.f32.gmra.mxu0 %v1517
      %v1539 = vpop.f32.mrf.mxu0
      %v1540 = vadd.f32 0.0, %v1539
      %1541 = vdwg.mxu0
      %v1542 = vadd.f32 %v1010, %v1511
      %v1543 = vadd.f32 %v1011, %v1512
      %v1544 = vadd.f32 %v1086, %v1537
      %v1545 = vadd.f32 %v1087, %v1540
      %v1546 = vsel %vm950, %v1542, 0.0
      %1547 = vadd.xlane.f32.xlu0 %v1546
      %v1548 = vpop.xlane.xlu0 %1547
      %v1549 = vsel %vm950, %v1543, 0.0
      %1550 = vadd.xlane.f32.xlu0 %v1549
      %v1551 = vpop.xlane.xlu0 %1550
      %v1552 = vmul.f32 %v1548, %v963
      %v1553 = vmul.f32 %v1551, %v963
      %v1554 = vsub.f32 %v1542, %v1552
      %v1555 = vsub.f32 %v1543, %v1553
      %v1556 = vmul.f32 %v1554, %v1554
      %v1557 = vmul.f32 %v1555, %v1555
      %v1558 = vsel %vm950, %v1556, 0.0
      %1559 = vadd.xlane.f32.xlu0 %v1558
      %v1560 = vpop.xlane.xlu0 %1559
      %v1561 = vsel %vm950, %v1557, 0.0
      %1562 = vadd.xlane.f32.xlu0 %v1561
      %v1563 = vpop.xlane.xlu0 %1562
      %v1564 = vmul.f32 %v1560, %v963
      %v1565 = vmul.f32 %v1563, %v963
      %v1566 = vadd.f32 %v1564, 1e-05
      %v1567 = vadd.f32 %v1565, 1e-05
      %v1568 = vrsqrt.pop %v1566
      %v1569 = vmul.f32 %v1568, %v1566
      %v1570 = vmul.f32 %v1569, %v1568
      %v1571 = vmul.f32 0.5, %v1570
      %v1572 = vsub.f32 1.5, %v1571
      %v1573 = vmul.f32 %v1568, %v1572
      %vm1574 = vweird.f32 %v1566
      %vm1575 = vweird.f32 %v1568
      %vm1576 = vmor %vm1574, %vm1575
      %v1577 = vsel %vm1576, %v1568, %v1573
      %v1578 = vrsqrt.pop %v1567
      %v1579 = vmul.f32 %v1578, %v1567
      %v1580 = vmul.f32 %v1579, %v1578
      %v1581 = vmul.f32 0.5, %v1580
      %v1582 = vsub.f32 1.5, %v1581
      %v1583 = vmul.f32 %v1578, %v1582
      %vm1584 = vweird.f32 %v1567
      %vm1585 = vweird.f32 %v1578
      %vm1586 = vmor %vm1584, %vm1585
      %v1587 = vsel %vm1586, %v1578, %v1583
      %v1588 = vmul.f32 %v1554, %v1577
      %v1589 = vmul.f32 %v1555, %v1587
      %v1591 = vperm.slane %v918, 0
      %v1593 = vmul.f32 %v1588, %v1591
      %v1594 = vmul.f32 %v1589, %v1591
      %v1596 = vperm.slane %v919, 0
      %v1598 = vadd.f32 %v1593, %v1596
      %v1599 = vadd.f32 %v1594, %v1596
      %v1600 = vmul.f32 %v1544, %v1544
      %v1601 = vmul.f32 %v1545, %v1545
      %v1603 = vsel %vm1014, %v1600, 0
      %v1606 = vsel %vm1014, %v1601, 0
      %v1609 = vsel %vm1021, %v921, 0
      %1611 = vmatpush.msra.mxu0 0.0
      %1612 = vmatpush.msra.mxu0 0.0
      %1613 = vmatpush.msra.mxu0 0.0
      %1614 = vmatpush.msra.mxu0 0.0
      %1615 = vmatpush.msra.mxu0 0.0
      %1616 = vmatpush.msra.mxu0 0.0
      %1617 = vmatpush.msra.mxu0 0.0
      %1618 = vmatpush.msra.mxu0 0.0
      %1619 = vmatpush.msra.mxu0 0.0
      %1620 = vmatpush.msra.mxu0 0.0
      %1621 = vmatpush.msra.mxu0 0.0
      %1622 = vmatpush.msra.mxu0 0.0
      %1623 = vmatpush.msra.mxu0 0.0
      %1624 = vmatpush.msra.mxu0 0.0
      %1625 = vmatpush.msra.mxu0 %v1609
      %1626 = vmatpush.msra.mxu0 %v920
      %1627 = vmatmul.f32.gmra.mxu0 %v1603
      %v1628 = vpop.f32.mrf.mxu0
      %v1629 = vadd.f32 0.0, %v1628
      %1630 = vmatmul.f32.gmra.mxu0 %v1606
      %v1631 = vpop.f32.mrf.mxu0
      %v1632 = vadd.f32 0.0, %v1631
      %1633 = vdwg.mxu0
      %v1634 = vmax.f32 %v1629, 1e-08
      %v1635 = vmax.f32 %v1632, 1e-08
      %v1636 = vsel %vm1050, %v1634, 0.0
      %1637 = vadd.xlane.f32.xlu0 %v1636
      %v1638 = vpop.xlane.xlu0 %1637
      %v1639 = vsel %vm1050, %v1635, 0.0
      %1640 = vadd.xlane.f32.xlu0 %v1639
      %v1641 = vpop.xlane.xlu0 %1640
      %v1642 = vmul.f32 %v1638, %v1063
      %v1643 = vmul.f32 %v1641, %v1063
      %v1644 = vrsqrt.pop %v1642
      %v1645 = vmul.f32 %v1644, %v1642
      %v1646 = vmul.f32 %v1645, %v1644
      %v1647 = vmul.f32 0.5, %v1646
      %v1648 = vsub.f32 1.5, %v1647
      %v1649 = vmul.f32 %v1644, %v1648
      %vm1650 = vweird.f32 %v1642
      %vm1651 = vweird.f32 %v1644
      %vm1652 = vmor %vm1650, %vm1651
      %v1653 = vsel %vm1652, %v1644, %v1649
      %v1654 = vrsqrt.pop %v1643
      %v1655 = vmul.f32 %v1654, %v1643
      %v1656 = vmul.f32 %v1655, %v1654
      %v1657 = vmul.f32 0.5, %v1656
      %v1658 = vsub.f32 1.5, %v1657
      %v1659 = vmul.f32 %v1654, %v1658
      %vm1660 = vweird.f32 %v1643
      %vm1661 = vweird.f32 %v1654
      %vm1662 = vmor %vm1660, %vm1661
      %v1663 = vsel %vm1662, %v1654, %v1659
      %v1664 = vmul.f32 %v1544, %v1653
      %v1665 = vmul.f32 %v1545, %v1663
      %1666 = vst.msk [vmem:[%s862] sm:$0xff] %vm950, %v1598
      %1667 = vst.msk [vmem:[%s862 + $0x8] sm:$0xff] %vm950, %v1599
      %1668 = vst.msk [vmem:[%s868] sm:$0xff] %vm1014, %v1664
      %1669 = vst.msk [vmem:[%s868 + $0x8] sm:$0xff] %vm1014, %v1665
      %s1670 = smul.u32 2, %s37
      %p1671 = scmp.lt.s32.totalorder %s1670, 3
      %s1672 = scalar_select %p1671, %s1670, 3
      %s1673 = smul.addr %s1672, 8
      %s1674 = scalar_lea.vmem %s24, %s1673
      %s1675 = smul.u32 2, %s37
      %p1676 = scmp.lt.s32.totalorder %s1675, 3
      %s1677 = scalar_select %p1676, %s1675, 3
      %s1678 = smul.addr %s1677, 8
      %s1679 = scalar_lea.vmem %s25, %s1678
      // Predicated region
      $region117: #{structure_encoder_forward.12} parent=115 // pred_check
        %p1680 = pneg %p584
      $region118: #{structure_encoder_forward.12} parent=115 // pred_check_branch
        %1682 = sbr.rel (%p1680) target = $region120
      $region119: #{structure_encoder_forward.12} parent=115 // pred_region
        %s1683 = smul.u32 2, %s37
      $region120: #{structure_encoder_forward.12} parent=115 // pred_fallthru
        _
      // Predicated region
      $region121: #{structure_encoder_forward.12} parent=115 // pred_check
        %p1684 = pneg %p610
      $region122: #{structure_encoder_forward.12} parent=115 // pred_check_branch
        %1686 = sbr.rel (%p1684) target = $region124
      $region123: #{structure_encoder_forward.12} parent=115 // pred_region
        %s1687 = smul.u32 2, %s37
      $region124: #{structure_encoder_forward.12} parent=115 // pred_fallthru
        _
    $region116: #{structure_encoder_forward.12} parent=5 // pred_fallthru
      _
    %p1688 = scmp.le.s32.totalorder 2, %s32
    // Predicated region
    $region125: #{structure_encoder_forward.12} parent=5 // pred_check
      %p1689 = pneg %p1688
    $region126: #{structure_encoder_forward.12} parent=5 // pred_check_branch
      %1691 = sbr.rel (%p1689) target = $region128
    $region127: #{structure_encoder_forward.12} parent=5 // pred_region
      %s1692 = ssub.s32 %s32, 2
      // Predicated region
      $region129: #{structure_encoder_forward.12} parent=127 // pred_check
        %p1693 = pneg %p590
      $region130: #{structure_encoder_forward.12} parent=127 // pred_check_branch
        %1695 = sbr.rel (%p1693) target = $region132
      $region131: #{structure_encoder_forward.12} parent=127 // pred_region
        %s1696 = smul.u32 2, %s38
        %p1697 = scmp.lt.s32.totalorder %s1696, 3
        %s1698 = scalar_select %p1697, %s1696, 3
        %s1699 = smul.addr %s1698, 8
        %s1700 = scalar_lea.vmem %s24, %s1699
      $region132: #{structure_encoder_forward.12} parent=127 // pred_fallthru
        _
      // Predicated region
      $region133: #{structure_encoder_forward.12} parent=127 // pred_check
        %p1701 = pneg %p616
      $region134: #{structure_encoder_forward.12} parent=127 // pred_check_branch
        %1703 = sbr.rel (%p1701) target = $region136
      $region135: #{structure_encoder_forward.12} parent=127 // pred_region
        %s1704 = smul.u32 2, %s38
        %p1705 = scmp.lt.s32.totalorder %s1704, 3
        %s1706 = scalar_select %p1705, %s1704, 3
        %s1707 = smul.addr %s1706, 8
        %s1708 = scalar_lea.vmem %s25, %s1707
      $region136: #{structure_encoder_forward.12} parent=127 // pred_fallthru
        _
    $region128: #{structure_encoder_forward.12} parent=5 // pred_fallthru
      _
  $region6: #{structure_encoder_forward.12} parent=0 // loop_footer
    %s36 = sadd.s32 1, %s32
  $region7: #{structure_encoder_forward.12} parent=0 // loop_footer_branch
    %31 = sbr.rel target = $region3
  $region8: #{structure_encoder_forward.12} parent=0 // loop_exit
    _

</llo_original>
